<compile_context>
chip_gen: v7x
topology: tpu7x:2x2x1
jax: 0.10.0
libtpu: 0.0.40
codegen_flags: <defaults>
</compile_context>

<pallas_src>
import jax
import jax.numpy as jnp
from jax.experimental import pallas as pl
from jax.experimental.pallas import tpu as pltpu

IN_DIM = 28 * 28      # 784
K_PAD = 896           # 784 padded up to a multiple of 128
HID = 512
OUT_DIM = 10
OUT_PAD = 128         # lane-aligned padded logits width
N_LAYERS = 8          # 7x Linear+ReLU, then Linear(512, 10)


def _mlp_kernel(x_ref, *refs):
    """refs = (w0, ..., w7, b_all, out).

    Weights are bf16 and held resident in VMEM across batch-tile grid steps
    (constant index_map); only the x / out tiles move per grid step.
    """
    out_ref = refs[-1]
    b_ref = refs[-2]
    w_refs = refs[:-2]

    b_all = b_ref[...]                 # (8, 512) fp32, tiny, loaded once
    h = x_ref[...]                     # (TB, 896) bf16
    for layer in range(N_LAYERS):
        w = w_refs[layer][...]         # bf16 (K, N)
        acc = jnp.dot(h, w, preferred_element_type=jnp.float32)   # fp32 MXU acc
        n_out = w.shape[-1]
        acc = acc + b_all[layer, :n_out][None, :]
        if layer < N_LAYERS - 1:
            h = jnp.maximum(acc, 0.0).astype(jnp.bfloat16)        # ReLU, back to bf16
        else:
            out_ref[...] = acc         # (TB, 128) fp32, lane-dense store


@jax.jit
def neural_network_forward(x, weights, b_all):
    """x: (B, 28, 28) fp32; weights: tuple of bf16 (in, out) mats; b_all: (8, 512) fp32."""
    B = x.shape[0]
    x_flat = x.reshape(B, IN_DIM).astype(jnp.bfloat16)            # nn.Flatten()
    x_flat = jnp.pad(x_flat, ((0, 0), (0, K_PAD - IN_DIM)))       # zero-pad K: 784 -> 896

    # Batch tiling: large tiles for MXU row occupancy when batch is big,
    # 16-row tiles (bf16 sublane-packed) otherwise.
    TB = 128 if B >= 128 else 16
    B_pad = ((B + TB - 1) // TB) * TB
    if B_pad != B:
        x_flat = jnp.pad(x_flat, ((0, B_pad - B), (0, 0)))
    num_tiles = B_pad // TB

    in_specs = [pl.BlockSpec((TB, K_PAD), lambda i: (i, 0))]      # streamed per tile
    for w in weights:                                             # resident in VMEM
        in_specs.append(pl.BlockSpec(w.shape, lambda i: (0, 0)))
    in_specs.append(pl.BlockSpec(b_all.shape, lambda i: (0, 0)))  # resident in VMEM

    out_padded = pl.pallas_call(
        _mlp_kernel,
        out_shape=jax.ShapeDtypeStruct((B_pad, OUT_PAD), jnp.float32),
        grid_spec=pltpu.PrefetchScalarGridSpec(
            num_scalar_prefetch=0,
            grid=(num_tiles,),
            in_specs=in_specs,
            out_specs=pl.BlockSpec((TB, OUT_PAD), lambda i: (i, 0)),
            scratch_shapes=[],
        ),
        compiler_params=pltpu.CompilerParams(
            dimension_semantics=("parallel",),     # batch tiles split across TCs (v7x)
            vmem_limit_bytes=32 << 20,             # fits v7x's 64 MiB VMEM with headroom
        ),
    )(x_flat, *weights, b_all)
    return out_padded[:B, :OUT_DIM]


def init_params(key):
    """PyTorch-style init: weights (out, in), biases (out,), fp32."""
    dims = [IN_DIM] + [HID] * 7 + [OUT_DIM]
    params = []
    for i in range(len(dims) - 1):
        key, kw, kb = jax.random.split(key, 3)
        bound = 1.0 / (dims[i] ** 0.5)
        w = jax.random.uniform(kw, (dims[i + 1], dims[i]), jnp.float32, -bound, bound)
        b = jax.random.uniform(kb, (dims[i + 1],), jnp.float32, -bound, bound)
        params.append((w, b))
    return params


def pack_params(params):
    """Convert PyTorch-layout fp32 params into the kernel layout:
    bf16 transposed (in, out) weights (K/N padded where needed) and a single
    (8, 512) fp32 bias array."""
    weights = []
    biases = jnp.zeros((N_LAYERS, HID), jnp.float32)
    for i, (w_torch, b) in enumerate(params):
        w = w_torch.T.astype(jnp.bfloat16)                        # (in, out)
        if i == 0:
            w = jnp.pad(w, ((0, K_PAD - IN_DIM), (0, 0)))         # zero rows: no effect
        if i == N_LAYERS - 1:
            w = jnp.pad(w, ((0, 0), (0, OUT_PAD - OUT_DIM)))      # zero cols: sliced off
        weights.append(w)
        biases = biases.at[i, : b.shape[0]].set(b)
    return tuple(weights), biases


def reference_forward(x, params):
    """Pure-JAX reference mirroring the kernel numerics (bf16 matmul, fp32 acc)."""
    h = x.reshape(x.shape[0], IN_DIM)
    for i, (w_torch, b) in enumerate(params):
        h = jnp.dot(h.astype(jnp.bfloat16), w_torch.T.astype(jnp.bfloat16),
                    preferred_element_type=jnp.float32) + b
        if i < len(params) - 1:
            h = jnp.maximum(h, 0.0)
    return h


if __name__ == "__main__":
    key = jax.random.PRNGKey(0)
    key, kx = jax.random.split(key)

    B = 32  # small batch; 2 grid steps of 16 rows -> exercises weight residency
    x = jax.random.normal(kx, (B, 28, 28), dtype=jnp.float32)
    params = init_params(key)
    weights, b_all = pack_params(params)

    logits = neural_network_forward(x, weights, b_all)
    logits = jax.block_until_ready(logits)

    ref = reference_forward(x, params)
    assert logits.shape == (B, OUT_DIM), logits.shape
    max_err = float(jnp.max(jnp.abs(logits - ref)))
    assert max_err < 2e-2, max_err
    print("KERNEL_OK")
</pallas_src>

<mosaic_0001>
module attributes {stable_mosaic.version = 11 : i64} {
  func.func @_mlp_kernel(%arg0: i32, %arg1: memref<16x896xbf16, #tpu.memory_space<vmem>>, %arg2: memref<896x512xbf16, #tpu.memory_space<vmem>>, %arg3: memref<512x512xbf16, #tpu.memory_space<vmem>>, %arg4: memref<512x512xbf16, #tpu.memory_space<vmem>>, %arg5: memref<512x512xbf16, #tpu.memory_space<vmem>>, %arg6: memref<512x512xbf16, #tpu.memory_space<vmem>>, %arg7: memref<512x512xbf16, #tpu.memory_space<vmem>>, %arg8: memref<512x512xbf16, #tpu.memory_space<vmem>>, %arg9: memref<512x128xbf16, #tpu.memory_space<vmem>>, %arg10: memref<8x512xf32, #tpu.memory_space<vmem>>, %arg11: memref<16x128xf32, #tpu.memory_space<vmem>>) attributes {dimension_semantics = [#tpu.dimension_semantics<parallel>], iteration_bounds = array<i64: 2>, scalar_prefetch = 0 : i64, scratch_operands = 0 : i64, tpu.core_type = #tpu.core_type<tc>, window_params = [{transform_indices = @transform_0, window_bounds = array<i64: 16, 896>}, {pipeline_mode = #tpu.pipeline_mode<synchronous>, transform_indices = @transform_1, window_bounds = array<i64: 896, 512>}, {pipeline_mode = #tpu.pipeline_mode<synchronous>, transform_indices = @transform_2, window_bounds = array<i64: 512, 512>}, {pipeline_mode = #tpu.pipeline_mode<synchronous>, transform_indices = @transform_3, window_bounds = array<i64: 512, 512>}, {pipeline_mode = #tpu.pipeline_mode<synchronous>, transform_indices = @transform_4, window_bounds = array<i64: 512, 512>}, {pipeline_mode = #tpu.pipeline_mode<synchronous>, transform_indices = @transform_5, window_bounds = array<i64: 512, 512>}, {pipeline_mode = #tpu.pipeline_mode<synchronous>, transform_indices = @transform_6, window_bounds = array<i64: 512, 512>}, {pipeline_mode = #tpu.pipeline_mode<synchronous>, transform_indices = @transform_7, window_bounds = array<i64: 512, 512>}, {pipeline_mode = #tpu.pipeline_mode<synchronous>, transform_indices = @transform_8, window_bounds = array<i64: 512, 128>}, {pipeline_mode = #tpu.pipeline_mode<synchronous>, transform_indices = @transform_9, window_bounds = array<i64: 8, 512>}, {transform_indices = @transform_10, window_bounds = array<i64: 16, 128>}]} {
    %c0 = arith.constant 0 : index
    %c0_0 = arith.constant 0 : index
    %0 = vector.load %arg10[%c0, %c0_0] : memref<8x512xf32, #tpu.memory_space<vmem>>, vector<8x512xf32>
    %c0_1 = arith.constant 0 : index
    %c0_2 = arith.constant 0 : index
    %1 = vector.load %arg1[%c0_1, %c0_2] : memref<16x896xbf16, #tpu.memory_space<vmem>>, vector<16x896xbf16>
    %c0_3 = arith.constant 0 : index
    %c0_4 = arith.constant 0 : index
    %2 = vector.load %arg2[%c0_3, %c0_4] : memref<896x512xbf16, #tpu.memory_space<vmem>>, vector<896x512xbf16>
    %cst = arith.constant dense<0.000000e+00> : vector<16x512xf32>
    %3 = tpu.matmul %1, %2, %cst {dimension_numbers = #tpu.dot_dimension_numbers<[1], [0], [0], [1], [0, 0, 1, 1], [], []>} : vector<16x896xbf16>, vector<896x512xbf16>, vector<16x512xf32> -> vector<16x512xf32>
    %4 = vector.extract_strided_slice %0 {offsets = [0, 0], sizes = [1, 512], strides = [1, 1]} : vector<8x512xf32> to vector<1x512xf32>
    %5 = vector.shape_cast %4 : vector<1x512xf32> to vector<512xf32>
    %6 = vector.shape_cast %5 : vector<512xf32> to vector<1x512xf32>
    %7 = vector.broadcast %6 : vector<1x512xf32> to vector<16x512xf32>
    %8 = arith.addf %3, %7 : vector<16x512xf32>
    %cst_5 = arith.constant 0.000000e+00 : f32
    %9 = vector.broadcast %cst_5 : f32 to vector<16x512xf32>
    %10 = arith.maximumf %8, %9 : vector<16x512xf32>
    %11 = arith.truncf %10 : vector<16x512xf32> to vector<16x512xbf16>
    %c0_6 = arith.constant 0 : index
    %c0_7 = arith.constant 0 : index
    %12 = vector.load %arg3[%c0_6, %c0_7] : memref<512x512xbf16, #tpu.memory_space<vmem>>, vector<512x512xbf16>
    %cst_8 = arith.constant dense<0.000000e+00> : vector<16x512xf32>
    %13 = tpu.matmul %11, %12, %cst_8 {dimension_numbers = #tpu.dot_dimension_numbers<[1], [0], [0], [1], [0, 0, 1, 1], [], []>} : vector<16x512xbf16>, vector<512x512xbf16>, vector<16x512xf32> -> vector<16x512xf32>
    %14 = vector.extract_strided_slice %0 {offsets = [1, 0], sizes = [1, 512], strides = [1, 1]} : vector<8x512xf32> to vector<1x512xf32>
    %15 = vector.shape_cast %14 : vector<1x512xf32> to vector<512xf32>
    %16 = vector.shape_cast %15 : vector<512xf32> to vector<1x512xf32>
    %17 = vector.broadcast %16 : vector<1x512xf32> to vector<16x512xf32>
    %18 = arith.addf %13, %17 : vector<16x512xf32>
    %cst_9 = arith.constant 0.000000e+00 : f32
    %19 = vector.broadcast %cst_9 : f32 to vector<16x512xf32>
    %20 = arith.maximumf %18, %19 : vector<16x512xf32>
    %21 = arith.truncf %20 : vector<16x512xf32> to vector<16x512xbf16>
    %c0_10 = arith.constant 0 : index
    %c0_11 = arith.constant 0 : index
    %22 = vector.load %arg4[%c0_10, %c0_11] : memref<512x512xbf16, #tpu.memory_space<vmem>>, vector<512x512xbf16>
    %cst_12 = arith.constant dense<0.000000e+00> : vector<16x512xf32>
    %23 = tpu.matmul %21, %22, %cst_12 {dimension_numbers = #tpu.dot_dimension_numbers<[1], [0], [0], [1], [0, 0, 1, 1], [], []>} : vector<16x512xbf16>, vector<512x512xbf16>, vector<16x512xf32> -> vector<16x512xf32>
    %24 = vector.extract_strided_slice %0 {offsets = [2, 0], sizes = [1, 512], strides = [1, 1]} : vector<8x512xf32> to vector<1x512xf32>
    %25 = vector.shape_cast %24 : vector<1x512xf32> to vector<512xf32>
    %26 = vector.shape_cast %25 : vector<512xf32> to vector<1x512xf32>
    %27 = vector.broadcast %26 : vector<1x512xf32> to vector<16x512xf32>
    %28 = arith.addf %23, %27 : vector<16x512xf32>
    %cst_13 = arith.constant 0.000000e+00 : f32
    %29 = vector.broadcast %cst_13 : f32 to vector<16x512xf32>
    %30 = arith.maximumf %28, %29 : vector<16x512xf32>
    %31 = arith.truncf %30 : vector<16x512xf32> to vector<16x512xbf16>
    %c0_14 = arith.constant 0 : index
    %c0_15 = arith.constant 0 : index
    %32 = vector.load %arg5[%c0_14, %c0_15] : memref<512x512xbf16, #tpu.memory_space<vmem>>, vector<512x512xbf16>
    %cst_16 = arith.constant dense<0.000000e+00> : vector<16x512xf32>
    %33 = tpu.matmul %31, %32, %cst_16 {dimension_numbers = #tpu.dot_dimension_numbers<[1], [0], [0], [1], [0, 0, 1, 1], [], []>} : vector<16x512xbf16>, vector<512x512xbf16>, vector<16x512xf32> -> vector<16x512xf32>
    %34 = vector.extract_strided_slice %0 {offsets = [3, 0], sizes = [1, 512], strides = [1, 1]} : vector<8x512xf32> to vector<1x512xf32>
    %35 = vector.shape_cast %34 : vector<1x512xf32> to vector<512xf32>
    %36 = vector.shape_cast %35 : vector<512xf32> to vector<1x512xf32>
    %37 = vector.broadcast %36 : vector<1x512xf32> to vector<16x512xf32>
    %38 = arith.addf %33, %37 : vector<16x512xf32>
    %cst_17 = arith.constant 0.000000e+00 : f32
    %39 = vector.broadcast %cst_17 : f32 to vector<16x512xf32>
    %40 = arith.maximumf %38, %39 : vector<16x512xf32>
    %41 = arith.truncf %40 : vector<16x512xf32> to vector<16x512xbf16>
    %c0_18 = arith.constant 0 : index
    %c0_19 = arith.constant 0 : index
    %42 = vector.load %arg6[%c0_18, %c0_19] : memref<512x512xbf16, #tpu.memory_space<vmem>>, vector<512x512xbf16>
    %cst_20 = arith.constant dense<0.000000e+00> : vector<16x512xf32>
    %43 = tpu.matmul %41, %42, %cst_20 {dimension_numbers = #tpu.dot_dimension_numbers<[1], [0], [0], [1], [0, 0, 1, 1], [], []>} : vector<16x512xbf16>, vector<512x512xbf16>, vector<16x512xf32> -> vector<16x512xf32>
    %44 = vector.extract_strided_slice %0 {offsets = [4, 0], sizes = [1, 512], strides = [1, 1]} : vector<8x512xf32> to vector<1x512xf32>
    %45 = vector.shape_cast %44 : vector<1x512xf32> to vector<512xf32>
    %46 = vector.shape_cast %45 : vector<512xf32> to vector<1x512xf32>
    %47 = vector.broadcast %46 : vector<1x512xf32> to vector<16x512xf32>
    %48 = arith.addf %43, %47 : vector<16x512xf32>
    %cst_21 = arith.constant 0.000000e+00 : f32
    %49 = vector.broadcast %cst_21 : f32 to vector<16x512xf32>
    %50 = arith.maximumf %48, %49 : vector<16x512xf32>
    %51 = arith.truncf %50 : vector<16x512xf32> to vector<16x512xbf16>
    %c0_22 = arith.constant 0 : index
    %c0_23 = arith.constant 0 : index
    %52 = vector.load %arg7[%c0_22, %c0_23] : memref<512x512xbf16, #tpu.memory_space<vmem>>, vector<512x512xbf16>
    %cst_24 = arith.constant dense<0.000000e+00> : vector<16x512xf32>
    %53 = tpu.matmul %51, %52, %cst_24 {dimension_numbers = #tpu.dot_dimension_numbers<[1], [0], [0], [1], [0, 0, 1, 1], [], []>} : vector<16x512xbf16>, vector<512x512xbf16>, vector<16x512xf32> -> vector<16x512xf32>
    %54 = vector.extract_strided_slice %0 {offsets = [5, 0], sizes = [1, 512], strides = [1, 1]} : vector<8x512xf32> to vector<1x512xf32>
    %55 = vector.shape_cast %54 : vector<1x512xf32> to vector<512xf32>
    %56 = vector.shape_cast %55 : vector<512xf32> to vector<1x512xf32>
    %57 = vector.broadcast %56 : vector<1x512xf32> to vector<16x512xf32>
    %58 = arith.addf %53, %57 : vector<16x512xf32>
    %cst_25 = arith.constant 0.000000e+00 : f32
    %59 = vector.broadcast %cst_25 : f32 to vector<16x512xf32>
    %60 = arith.maximumf %58, %59 : vector<16x512xf32>
    %61 = arith.truncf %60 : vector<16x512xf32> to vector<16x512xbf16>
    %c0_26 = arith.constant 0 : index
    %c0_27 = arith.constant 0 : index
    %62 = vector.load %arg8[%c0_26, %c0_27] : memref<512x512xbf16, #tpu.memory_space<vmem>>, vector<512x512xbf16>
    %cst_28 = arith.constant dense<0.000000e+00> : vector<16x512xf32>
    %63 = tpu.matmul %61, %62, %cst_28 {dimension_numbers = #tpu.dot_dimension_numbers<[1], [0], [0], [1], [0, 0, 1, 1], [], []>} : vector<16x512xbf16>, vector<512x512xbf16>, vector<16x512xf32> -> vector<16x512xf32>
    %64 = vector.extract_strided_slice %0 {offsets = [6, 0], sizes = [1, 512], strides = [1, 1]} : vector<8x512xf32> to vector<1x512xf32>
    %65 = vector.shape_cast %64 : vector<1x512xf32> to vector<512xf32>
    %66 = vector.shape_cast %65 : vector<512xf32> to vector<1x512xf32>
    %67 = vector.broadcast %66 : vector<1x512xf32> to vector<16x512xf32>
    %68 = arith.addf %63, %67 : vector<16x512xf32>
    %cst_29 = arith.constant 0.000000e+00 : f32
    %69 = vector.broadcast %cst_29 : f32 to vector<16x512xf32>
    %70 = arith.maximumf %68, %69 : vector<16x512xf32>
    %71 = arith.truncf %70 : vector<16x512xf32> to vector<16x512xbf16>
    %c0_30 = arith.constant 0 : index
    %c0_31 = arith.constant 0 : index
    %72 = vector.load %arg9[%c0_30, %c0_31] : memref<512x128xbf16, #tpu.memory_space<vmem>>, vector<512x128xbf16>
    %cst_32 = arith.constant dense<0.000000e+00> : vector<16x128xf32>
    %73 = tpu.matmul %71, %72, %cst_32 {dimension_numbers = #tpu.dot_dimension_numbers<[1], [0], [0], [1], [0, 0, 1, 1], [], []>} : vector<16x512xbf16>, vector<512x128xbf16>, vector<16x128xf32> -> vector<16x128xf32>
    %74 = vector.extract_strided_slice %0 {offsets = [7, 0], sizes = [1, 128], strides = [1, 1]} : vector<8x512xf32> to vector<1x128xf32>
    %75 = vector.shape_cast %74 : vector<1x128xf32> to vector<128xf32>
    %76 = vector.shape_cast %75 : vector<128xf32> to vector<1x128xf32>
    %77 = vector.broadcast %76 : vector<1x128xf32> to vector<16x128xf32>
    %78 = arith.addf %73, %77 : vector<16x128xf32>
    %c0_33 = arith.constant 0 : index
    %c0_34 = arith.constant 0 : index
    %79 = vector.load %arg11[%c0_33, %c0_34] : memref<16x128xf32, #tpu.memory_space<vmem>>, vector<16x128xf32>
    tpu.vector_store %arg11[%c0_33, %c0_34], %78 {strides = array<i32>} : memref<16x128xf32, #tpu.memory_space<vmem>>, vector<16x128xf32>,
    return
  }
  func.func @transform_0(%arg0: i32) -> (i32, i32) {
    %c0_i32 = arith.constant 0 : i32
    %c0_i32_0 = arith.constant 0 : i32
    return %arg0, %c0_i32 : i32, i32
  }
  func.func @transform_1(%arg0: i32) -> (i32, i32) {
    %c0_i32 = arith.constant 0 : i32
    %c0_i32_0 = arith.constant 0 : i32
    %c0_i32_1 = arith.constant 0 : i32
    return %c0_i32, %c0_i32_0 : i32, i32
  }
  func.func @transform_2(%arg0: i32) -> (i32, i32) {
    %c0_i32 = arith.constant 0 : i32
    %c0_i32_0 = arith.constant 0 : i32
    %c0_i32_1 = arith.constant 0 : i32
    return %c0_i32, %c0_i32_0 : i32, i32
  }
  func.func @transform_3(%arg0: i32) -> (i32, i32) {
    %c0_i32 = arith.constant 0 : i32
    %c0_i32_0 = arith.constant 0 : i32
    %c0_i32_1 = arith.constant 0 : i32
    return %c0_i32, %c0_i32_0 : i32, i32
  }
  func.func @transform_4(%arg0: i32) -> (i32, i32) {
    %c0_i32 = arith.constant 0 : i32
    %c0_i32_0 = arith.constant 0 : i32
    %c0_i32_1 = arith.constant 0 : i32
    return %c0_i32, %c0_i32_0 : i32, i32
  }
  func.func @transform_5(%arg0: i32) -> (i32, i32) {
    %c0_i32 = arith.constant 0 : i32
    %c0_i32_0 = arith.constant 0 : i32
    %c0_i32_1 = arith.constant 0 : i32
    return %c0_i32, %c0_i32_0 : i32, i32
  }
  func.func @transform_6(%arg0: i32) -> (i32, i32) {
    %c0_i32 = arith.constant 0 : i32
    %c0_i32_0 = arith.constant 0 : i32
    %c0_i32_1 = arith.constant 0 : i32
    return %c0_i32, %c0_i32_0 : i32, i32
  }
  func.func @transform_7(%arg0: i32) -> (i32, i32) {
    %c0_i32 = arith.constant 0 : i32
    %c0_i32_0 = arith.constant 0 : i32
    %c0_i32_1 = arith.constant 0 : i32
    return %c0_i32, %c0_i32_0 : i32, i32
  }
  func.func @transform_8(%arg0: i32) -> (i32, i32) {
    %c0_i32 = arith.constant 0 : i32
    %c0_i32_0 = arith.constant 0 : i32
    %c0_i32_1 = arith.constant 0 : i32
    return %c0_i32, %c0_i32_0 : i32, i32
  }
  func.func @transform_9(%arg0: i32) -> (i32, i32) {
    %c0_i32 = arith.constant 0 : i32
    %c0_i32_0 = arith.constant 0 : i32
    %c0_i32_1 = arith.constant 0 : i32
    return %c0_i32, %c0_i32_0 : i32, i32
  }
  func.func @transform_10(%arg0: i32) -> (i32, i32) {
    %c0_i32 = arith.constant 0 : i32
    %c0_i32_0 = arith.constant 0 : i32
    return %arg0, %c0_i32 : i32, i32
  }
}

</mosaic_0001>

<llo_original>
// kernel: neural_network_forward.1
$region0: #{neural_network_forward.1}
  #allocation0 [shape = 'u32[]', space=smem, size = 0x4, offset = 0x4, fixed_abs, tag = 'smem constant byte address 0x4 - core index']
  #allocation1 [shape = 'u32[144,128]{1,0:T(1,128)}', space=vmem, size = 0x12000, scoped, tag = 'internal scratch']
  %s0 = inlined_call_operand.vmem [shape: bf16[32,896], index: 0, kind: input, shape index: {}]
  %s1 = inlined_call_operand.vmem [shape: bf16[896,512], index: 1, kind: input, shape index: {}]
  %s2 = inlined_call_operand.vmem [shape: bf16[512,512], index: 2, kind: input, shape index: {}]
  %s3 = inlined_call_operand.hbm [shape: bf16[512,512], index: 3, kind: input, shape index: {}]
  %s4 = inlined_call_operand.hbm [shape: bf16[512,512], index: 4, kind: input, shape index: {}]
  %s5 = inlined_call_operand.hbm [shape: bf16[512,512], index: 5, kind: input, shape index: {}]
  %s6 = inlined_call_operand.hbm [shape: bf16[512,512], index: 6, kind: input, shape index: {}]
  %s7 = inlined_call_operand.hbm [shape: bf16[512,512], index: 7, kind: input, shape index: {}]
  %s8 = inlined_call_operand.vmem [shape: bf16[512,128], index: 8, kind: input, shape index: {}]
  %s9 = inlined_call_operand.vmem [shape: f32[8,512], index: 9, kind: input, shape index: {}]
  %s10 = inlined_call_operand.vmem [shape: f32[32,128], index: 10, kind: output, shape index: {}]
  %s11 = sld [smem:[#allocation0]]
  $region93: #{neural_network_forward.1} parent=0
    _
  %s13 = ssub.s32 1, %s11
  %s14 = scalar_select 0, %s13, %s11
  $region1: #{neural_network_forward.1} parent=0
    #allocation2 [shape = 'u8[524288]{0}', space=vmem, size = 0x80000, scoped, tag = 'input window, operand 3, single buffered']
    #allocation3 [shape = 's32[2]{0}', space=sflag, size = 0x8, scoped, tag = 'scoped memory for neural_network_forward.1']
    #allocation4 [shape = 'u8[524288]{0}', space=vmem, size = 0x80000, scoped, tag = 'input window, operand 4, single buffered']
    #allocation5 [shape = 's32[1]{0}', space=sflag, size = 0x4, scoped, tag = 'scoped memory for neural_network_forward.1']
    #allocation6 [shape = 'u8[524288]{0}', space=vmem, size = 0x80000, scoped, tag = 'input window, operand 5, single buffered']
    #allocation7 [shape = 'u8[524288]{0}', space=vmem, size = 0x80000, scoped, tag = 'input window, operand 6, single buffered']
    #allocation8 [shape = 's32[1]{0}', space=sflag, size = 0x4, scoped, tag = 'scoped memory for neural_network_forward.1']
    #allocation9 [shape = 'u8[524288]{0}', space=vmem, size = 0x80000, scoped, tag = 'input window, operand 7, single buffered']
    %15 = vsyncpa [#allocation3], 0
    %16 = vsyncpa [#allocation5], 0
    %17 = vsyncpa [#allocation8], 0
    loop: start=0, step=1, limit=4
    $region2: #{neural_network_forward.1} parent=1 // loop_pre_header
      _
    $region3: #{neural_network_forward.1} parent=1 // loop_header
      %s19 = sphi 0, %s23
      %p20 = scmp.ge.s32.totalorder %s19, 4
      %s29 = sphi 0, %s31
      %s32 = sphi 0, %s29
      %s33 = sphi 0, %s32
      %s49 = sphi 0, %s33
      %s53 = sphi 0, %s53
      %s55 = sphi 0, %s53
      %s56 = sphi 0, %s55
      %s70 = sphi 0, %s56
      %s74 = sphi 0, %s74
      %s76 = sphi 0, %s74
      %s77 = sphi 0, %s76
      %s91 = sphi 0, %s77
      %s95 = sphi 0, %s95
      %s97 = sphi 0, %s95
      %s98 = sphi 0, %s97
      %s112 = sphi 0, %s98
      %s116 = sphi 0, %s116
      %s118 = sphi 0, %s116
      %s119 = sphi 0, %s118
      %s133 = sphi 0, %s119
      %s137 = sphi 0, %s137
      %s139 = sphi 0, %s137
      %s140 = sphi 0, %s139
      %s154 = sphi 0, %s140
      %s158 = sphi 0, %s158
      %s160 = sphi 0, %s158
      %s161 = sphi 0, %s160
      %s175 = sphi 0, %s161
      %s179 = sphi 0, %s179
      %s181 = sphi 0, %s179
      %s182 = sphi 0, %s181
      %s196 = sphi 0, %s182
      %s200 = sphi 0, %s200
      %s202 = sphi 0, %s200
      %s203 = sphi 0, %s202
      %s217 = sphi 0, %s203
      %s221 = sphi 0, %s221
      %s223 = sphi 0, %s221
      %s224 = sphi 0, %s223
      %s238 = sphi 0, %s224
      %s244 = sphi 0, %s246
      %s247 = sphi 0, %s244
      %s248 = sphi 0, %s247
      %s264 = sphi 0, %s248
    $region4: #{neural_network_forward.1} parent=1 // loop_header_branch
      %22 = sbr.rel (%p20) target = $region8
    $region5: #{neural_network_forward.1} parent=1 // loop_body
      %s24 = ssub.s32 %s19, 1
      %s25 = ssub.s32 %s19, 2
      %s26 = sadd.s32 %s19, 1
      %s27 = ssub.s32 %s19, %s26
      %p28 = scmp.eq.s32.totalorder %s27, 0
      %s30 = sadd.s32 %s29, 1
      %s31 = scalar_select %p28, %s29, %s30
      %p34 = pneg %p28
      %p35 = scmp.eq.s32.totalorder %s19, 1
      %p36 = por %p34, %p35
      %p37 = scmp.ne.s32.totalorder %s29, %s32
      %p38 = scmp.eq.s32.totalorder %s19, 0
      %p39 = por %p37, %p38
      %p40 = scmp.ne.s32.totalorder %s29, %s32
      %p41 = scmp.eq.s32.totalorder %s24, 1
      %p42 = por %p40, %p41
      %p43 = scmp.ne.s32.totalorder %s32, %s33
      %p44 = scmp.eq.s32.totalorder %s24, 0
      %p45 = por %p43, %p44
      %p46 = scmp.ne.s32.totalorder %s32, %s33
      %p47 = scmp.eq.s32.totalorder %s25, 1
      %p48 = por %p46, %p47
      %p50 = scmp.ne.s32.totalorder %s33, %s49
      %p51 = scmp.eq.s32.totalorder %s25, 0
      %p52 = por %p50, %p51
      %s54 = sadd.s32 %s53, 1
      %p57 = scmp.eq.s32.totalorder %s19, 1
      %p58 = scmp.ne.s32.totalorder %s53, %s55
      %p59 = scmp.eq.s32.totalorder %s19, 0
      %p60 = por %p58, %p59
      %p61 = scmp.ne.s32.totalorder %s53, %s55
      %p62 = scmp.eq.s32.totalorder %s24, 1
      %p63 = por %p61, %p62
      %p64 = scmp.ne.s32.totalorder %s55, %s56
      %p65 = scmp.eq.s32.totalorder %s24, 0
      %p66 = por %p64, %p65
      %p67 = scmp.ne.s32.totalorder %s55, %s56
      %p68 = scmp.eq.s32.totalorder %s25, 1
      %p69 = por %p67, %p68
      %p71 = scmp.ne.s32.totalorder %s56, %s70
      %p72 = scmp.eq.s32.totalorder %s25, 0
      %p73 = por %p71, %p72
      %s75 = sadd.s32 %s74, 1
      %p78 = scmp.eq.s32.totalorder %s19, 1
      %p79 = scmp.ne.s32.totalorder %s74, %s76
      %p80 = scmp.eq.s32.totalorder %s19, 0
      %p81 = por %p79, %p80
      %p82 = scmp.ne.s32.totalorder %s74, %s76
      %p83 = scmp.eq.s32.totalorder %s24, 1
      %p84 = por %p82, %p83
      %p85 = scmp.ne.s32.totalorder %s76, %s77
      %p86 = scmp.eq.s32.totalorder %s24, 0
      %p87 = por %p85, %p86
      %p88 = scmp.ne.s32.totalorder %s76, %s77
      %p89 = scmp.eq.s32.totalorder %s25, 1
      %p90 = por %p88, %p89
      %p92 = scmp.ne.s32.totalorder %s77, %s91
      %p93 = scmp.eq.s32.totalorder %s25, 0
      %p94 = por %p92, %p93
      %s96 = sadd.s32 %s95, 1
      %p99 = scmp.eq.s32.totalorder %s19, 1
      %p100 = scmp.ne.s32.totalorder %s95, %s97
      %p101 = scmp.eq.s32.totalorder %s19, 0
      %p102 = por %p100, %p101
      %p103 = scmp.ne.s32.totalorder %s95, %s97
      %p104 = scmp.eq.s32.totalorder %s24, 1
      %p105 = por %p103, %p104
      %p106 = scmp.ne.s32.totalorder %s97, %s98
      %p107 = scmp.eq.s32.totalorder %s24, 0
      %p108 = por %p106, %p107
      %p109 = scmp.ne.s32.totalorder %s97, %s98
      %p110 = scmp.eq.s32.totalorder %s25, 1
      %p111 = por %p109, %p110
      %p113 = scmp.ne.s32.totalorder %s98, %s112
      %p114 = scmp.eq.s32.totalorder %s25, 0
      %p115 = por %p113, %p114
      %s117 = sadd.s32 %s116, 1
      %p120 = scmp.eq.s32.totalorder %s19, 1
      %p121 = scmp.ne.s32.totalorder %s116, %s118
      %p122 = scmp.eq.s32.totalorder %s19, 0
      %p123 = por %p121, %p122
      %p124 = scmp.ne.s32.totalorder %s116, %s118
      %p125 = scmp.eq.s32.totalorder %s24, 1
      %p126 = por %p124, %p125
      %p127 = scmp.ne.s32.totalorder %s118, %s119
      %p128 = scmp.eq.s32.totalorder %s24, 0
      %p129 = por %p127, %p128
      %p130 = scmp.ne.s32.totalorder %s118, %s119
      %p131 = scmp.eq.s32.totalorder %s25, 1
      %p132 = por %p130, %p131
      %p134 = scmp.ne.s32.totalorder %s119, %s133
      %p135 = scmp.eq.s32.totalorder %s25, 0
      %p136 = por %p134, %p135
      %s138 = sadd.s32 %s137, 1
      %p141 = scmp.eq.s32.totalorder %s19, 1
      %p142 = scmp.ne.s32.totalorder %s137, %s139
      %p143 = scmp.eq.s32.totalorder %s19, 0
      %p144 = por %p142, %p143
      %p145 = scmp.ne.s32.totalorder %s137, %s139
      %p146 = scmp.eq.s32.totalorder %s24, 1
      %p147 = por %p145, %p146
      %p148 = scmp.ne.s32.totalorder %s139, %s140
      %p149 = scmp.eq.s32.totalorder %s24, 0
      %p150 = por %p148, %p149
      %p151 = scmp.ne.s32.totalorder %s139, %s140
      %p152 = scmp.eq.s32.totalorder %s25, 1
      %p153 = por %p151, %p152
      %p155 = scmp.ne.s32.totalorder %s140, %s154
      %p156 = scmp.eq.s32.totalorder %s25, 0
      %p157 = por %p155, %p156
      %s159 = sadd.s32 %s158, 1
      %p162 = scmp.eq.s32.totalorder %s19, 1
      %p163 = scmp.ne.s32.totalorder %s158, %s160
      %p164 = scmp.eq.s32.totalorder %s19, 0
      %p165 = por %p163, %p164
      %p166 = scmp.ne.s32.totalorder %s158, %s160
      %p167 = scmp.eq.s32.totalorder %s24, 1
      %p168 = por %p166, %p167
      %p169 = scmp.ne.s32.totalorder %s160, %s161
      %p170 = scmp.eq.s32.totalorder %s24, 0
      %p171 = por %p169, %p170
      %p172 = scmp.ne.s32.totalorder %s160, %s161
      %p173 = scmp.eq.s32.totalorder %s25, 1
      %p174 = por %p172, %p173
      %p176 = scmp.ne.s32.totalorder %s161, %s175
      %p177 = scmp.eq.s32.totalorder %s25, 0
      %p178 = por %p176, %p177
      %s180 = sadd.s32 %s179, 1
      %p183 = scmp.eq.s32.totalorder %s19, 1
      %p184 = scmp.ne.s32.totalorder %s179, %s181
      %p185 = scmp.eq.s32.totalorder %s19, 0
      %p186 = por %p184, %p185
      %p187 = scmp.ne.s32.totalorder %s179, %s181
      %p188 = scmp.eq.s32.totalorder %s24, 1
      %p189 = por %p187, %p188
      %p190 = scmp.ne.s32.totalorder %s181, %s182
      %p191 = scmp.eq.s32.totalorder %s24, 0
      %p192 = por %p190, %p191
      %p193 = scmp.ne.s32.totalorder %s181, %s182
      %p194 = scmp.eq.s32.totalorder %s25, 1
      %p195 = por %p193, %p194
      %p197 = scmp.ne.s32.totalorder %s182, %s196
      %p198 = scmp.eq.s32.totalorder %s25, 0
      %p199 = por %p197, %p198
      %s201 = sadd.s32 %s200, 1
      %p204 = scmp.eq.s32.totalorder %s19, 1
      %p205 = scmp.ne.s32.totalorder %s200, %s202
      %p206 = scmp.eq.s32.totalorder %s19, 0
      %p207 = por %p205, %p206
      %p208 = scmp.ne.s32.totalorder %s200, %s202
      %p209 = scmp.eq.s32.totalorder %s24, 1
      %p210 = por %p208, %p209
      %p211 = scmp.ne.s32.totalorder %s202, %s203
      %p212 = scmp.eq.s32.totalorder %s24, 0
      %p213 = por %p211, %p212
      %p214 = scmp.ne.s32.totalorder %s202, %s203
      %p215 = scmp.eq.s32.totalorder %s25, 1
      %p216 = por %p214, %p215
      %p218 = scmp.ne.s32.totalorder %s203, %s217
      %p219 = scmp.eq.s32.totalorder %s25, 0
      %p220 = por %p218, %p219
      %s222 = sadd.s32 %s221, 1
      %p225 = scmp.eq.s32.totalorder %s19, 1
      %p226 = scmp.ne.s32.totalorder %s221, %s223
      %p227 = scmp.eq.s32.totalorder %s19, 0
      %p228 = por %p226, %p227
      %p229 = scmp.ne.s32.totalorder %s221, %s223
      %p230 = scmp.eq.s32.totalorder %s24, 1
      %p231 = por %p229, %p230
      %p232 = scmp.ne.s32.totalorder %s223, %s224
      %p233 = scmp.eq.s32.totalorder %s24, 0
      %p234 = por %p232, %p233
      %p235 = scmp.ne.s32.totalorder %s223, %s224
      %p236 = scmp.eq.s32.totalorder %s25, 1
      %p237 = por %p235, %p236
      %p239 = scmp.ne.s32.totalorder %s224, %s238
      %p240 = scmp.eq.s32.totalorder %s25, 0
      %p241 = por %p239, %p240
      %s242 = ssub.s32 %s19, %s26
      %p243 = scmp.eq.s32.totalorder %s242, 0
      %s245 = sadd.s32 %s244, 1
      %s246 = scalar_select %p243, %s244, %s245
      %p249 = pneg %p243
      %p250 = scmp.eq.s32.totalorder %s19, 1
      %p251 = por %p249, %p250
      %p252 = scmp.ne.s32.totalorder %s244, %s247
      %p253 = scmp.eq.s32.totalorder %s19, 0
      %p254 = por %p252, %p253
      %p255 = scmp.ne.s32.totalorder %s244, %s247
      %p256 = scmp.eq.s32.totalorder %s24, 1
      %p257 = por %p255, %p256
      %p258 = scmp.ne.s32.totalorder %s247, %s248
      %p259 = scmp.eq.s32.totalorder %s24, 0
      %p260 = por %p258, %p259
      %p261 = scmp.ne.s32.totalorder %s247, %s248
      %p262 = scmp.eq.s32.totalorder %s25, 1
      %p263 = por %p261, %p262
      %p265 = scmp.ne.s32.totalorder %s248, %s264
      %p266 = scmp.eq.s32.totalorder %s25, 0
      %p267 = por %p265, %p266
      %p268 = scmp.le.s32.totalorder 1, %s19
      %p269 = scmp.lt.s32.totalorder %s19, 3
      %p270 = pnand %p268, %p269
      %p271 = pneg %p270
      // Predicated region
      $region9: #{neural_network_forward.1} parent=5 // pred_check
        _
      $region10: #{neural_network_forward.1} parent=5 // pred_check_branch
        %273 = sbr.rel (%p270) target = $region12
      $region11: #{neural_network_forward.1} parent=5 // pred_region
        %s274 = ssub.s32 %s19, 1
        // Predicated region
        $region13: #{neural_network_forward.1} parent=11 // pred_check
          %p275 = pneg %p66
        $region14: #{neural_network_forward.1} parent=11 // pred_check_branch
          %277 = sbr.rel (%p275) target = $region16
        $region15: #{neural_network_forward.1} parent=11 // pred_region
          _
        $region16: #{neural_network_forward.1} parent=11 // pred_fallthru
          _
        // Predicated region
        $region17: #{neural_network_forward.1} parent=11 // pred_check
          %p278 = pneg %p87
        $region18: #{neural_network_forward.1} parent=11 // pred_check_branch
          %280 = sbr.rel (%p278) target = $region20
        $region19: #{neural_network_forward.1} parent=11 // pred_region
          _
        $region20: #{neural_network_forward.1} parent=11 // pred_fallthru
          _
        // Predicated region
        $region21: #{neural_network_forward.1} parent=11 // pred_check
          %p281 = pneg %p108
        $region22: #{neural_network_forward.1} parent=11 // pred_check_branch
          %283 = sbr.rel (%p281) target = $region24
        $region23: #{neural_network_forward.1} parent=11 // pred_region
          %s285 = ssub.s32 16384, 16384
          %286 = vsyncadd [#allocation3], %s285
          %s287 = sshll.u32 [#allocation2], 4
          %s288 = int_to_ptr.vmem [resolvable:$true] %s287
          %293 = dma.hbm_to_vmem [thread:$0]  %s3, 16384, %s288, [#allocation3], 256, 256, 16
        $region24: #{neural_network_forward.1} parent=11 // pred_fallthru
          _
        // Predicated region
        $region25: #{neural_network_forward.1} parent=11 // pred_check
          %p294 = pneg %p129
        $region26: #{neural_network_forward.1} parent=11 // pred_check_branch
          %296 = sbr.rel (%p294) target = $region28
        $region27: #{neural_network_forward.1} parent=11 // pred_region
          %s298 = ssub.s32 16384, 16384
          %299 = vsyncadd [#allocation5], %s298
          %s300 = sshll.u32 [#allocation4], 4
          %s301 = int_to_ptr.vmem [resolvable:$true] %s300
          %306 = dma.hbm_to_vmem [thread:$0]  %s4, 16384, %s301, [#allocation5], 256, 256, 16
        $region28: #{neural_network_forward.1} parent=11 // pred_fallthru
          _
        // Predicated region
        $region29: #{neural_network_forward.1} parent=11 // pred_check
          %p307 = pneg %p150
        $region30: #{neural_network_forward.1} parent=11 // pred_check_branch
          %309 = sbr.rel (%p307) target = $region32
        $region31: #{neural_network_forward.1} parent=11 // pred_region
          %s311 = ssub.s32 16384, 16384
          %312 = vsyncadd [#allocation5], %s311
          %s313 = sshll.u32 [#allocation6], 4
          %s314 = int_to_ptr.vmem [resolvable:$true] %s313
          %319 = dma.hbm_to_vmem [thread:$0]  %s5, 16384, %s314, [#allocation5], 256, 256, 16
        $region32: #{neural_network_forward.1} parent=11 // pred_fallthru
          _
        // Predicated region
        $region33: #{neural_network_forward.1} parent=11 // pred_check
          %p320 = pneg %p171
        $region34: #{neural_network_forward.1} parent=11 // pred_check_branch
          %322 = sbr.rel (%p320) target = $region36
        $region35: #{neural_network_forward.1} parent=11 // pred_region
          %s324 = ssub.s32 16384, 16384
          %325 = vsyncadd [#allocation8], %s324
          %s326 = sshll.u32 [#allocation7], 4
          %s327 = int_to_ptr.vmem [resolvable:$true] %s326
          %332 = dma.hbm_to_vmem [thread:$0]  %s6, 16384, %s327, [#allocation8], 256, 256, 16
        $region36: #{neural_network_forward.1} parent=11 // pred_fallthru
          _
        // Predicated region
        $region37: #{neural_network_forward.1} parent=11 // pred_check
          %p333 = pneg %p192
        $region38: #{neural_network_forward.1} parent=11 // pred_check_branch
          %335 = sbr.rel (%p333) target = $region40
        $region39: #{neural_network_forward.1} parent=11 // pred_region
          %s337 = ssub.s32 16384, 16384
          %338 = vsyncadd [#allocation8], %s337
          %s339 = sshll.u32 [#allocation9], 4
          %s340 = int_to_ptr.vmem [resolvable:$true] %s339
          %345 = dma.hbm_to_vmem [thread:$0]  %s7, 16384, %s340, [#allocation8], 256, 256, 16
        $region40: #{neural_network_forward.1} parent=11 // pred_fallthru
          _
        // Predicated region
        $region41: #{neural_network_forward.1} parent=11 // pred_check
          %p346 = pneg %p213
        $region42: #{neural_network_forward.1} parent=11 // pred_check_branch
          %348 = sbr.rel (%p346) target = $region44
        $region43: #{neural_network_forward.1} parent=11 // pred_region
          _
        $region44: #{neural_network_forward.1} parent=11 // pred_fallthru
          _
        // Predicated region
        $region45: #{neural_network_forward.1} parent=11 // pred_check
          %p349 = pneg %p234
        $region46: #{neural_network_forward.1} parent=11 // pred_check_branch
          %351 = sbr.rel (%p349) target = $region48
        $region47: #{neural_network_forward.1} parent=11 // pred_region
          _
        $region48: #{neural_network_forward.1} parent=11 // pred_fallthru
          _
      $region12: #{neural_network_forward.1} parent=5 // pred_fallthru
        _
      %p352 = scmp.lt.s32.totalorder %s19, 2
      // Predicated region
      $region49: #{neural_network_forward.1} parent=5 // pred_check
        %p353 = pneg %p352
      $region50: #{neural_network_forward.1} parent=5 // pred_check_branch
        %355 = sbr.rel (%p353) target = $region52
      $region51: #{neural_network_forward.1} parent=5 // pred_region
        // Predicated region
        $region53: #{neural_network_forward.1} parent=51 // pred_check
          %p356 = pneg %p39
        $region54: #{neural_network_forward.1} parent=51 // pred_check_branch
          %358 = sbr.rel (%p356) target = $region56
        $region55: #{neural_network_forward.1} parent=51 // pred_region
          %s359 = smul.u32 2, %s19
          %p360 = scmp.lt.s32.totalorder %s359, 3
          %s361 = scalar_select %p360, %s359, 3
          %s362 = smul.addr %s361, 7
          %s363 = smul.addr %s362, 4
          %s364 = scalar_lea.vmem %s0, %s363
          %s365 = smul.u32 2, %s19
        $region56: #{neural_network_forward.1} parent=51 // pred_fallthru
          _
      $region52: #{neural_network_forward.1} parent=5 // pred_fallthru
        _
      %p366 = scmp.le.s32.totalorder 1, %s19
      %p367 = scmp.lt.s32.totalorder %s19, 3
      %p368 = pnand %p366, %p367
      %p369 = pneg %p368
      // Predicated region
      $region57: #{neural_network_forward.1} parent=5 // pred_check
        _
      $region58: #{neural_network_forward.1} parent=5 // pred_check_branch
        %371 = sbr.rel (%p368) target = $region60
      $region59: #{neural_network_forward.1} parent=5 // pred_region
        %s372 = ssub.s32 %s19, 1
        // Predicated region
        $region61: #{neural_network_forward.1} parent=59 // pred_check
          %p373 = pneg %p108
        $region62: #{neural_network_forward.1} parent=59 // pred_check_branch
          %375 = sbr.rel (%p373) target = $region64
        $region63: #{neural_network_forward.1} parent=59 // pred_region
          %376 = dma.done [#allocation3], 16384
        $region64: #{neural_network_forward.1} parent=59 // pred_fallthru
          _
        // Predicated region
        $region65: #{neural_network_forward.1} parent=59 // pred_check
          %p377 = pneg %p129
        $region66: #{neural_network_forward.1} parent=59 // pred_check_branch
          %379 = sbr.rel (%p377) target = $region68
        $region67: #{neural_network_forward.1} parent=59 // pred_region
          %380 = dma.done [#allocation5], 16384
        $region68: #{neural_network_forward.1} parent=59 // pred_fallthru
          _
        // Predicated region
        $region69: #{neural_network_forward.1} parent=59 // pred_check
          %p381 = pneg %p150
        $region70: #{neural_network_forward.1} parent=59 // pred_check_branch
          %383 = sbr.rel (%p381) target = $region72
        $region71: #{neural_network_forward.1} parent=59 // pred_region
          %384 = dma.done [#allocation5], 16384
        $region72: #{neural_network_forward.1} parent=59 // pred_fallthru
          _
        // Predicated region
        $region73: #{neural_network_forward.1} parent=59 // pred_check
          %p385 = pneg %p171
        $region74: #{neural_network_forward.1} parent=59 // pred_check_branch
          %387 = sbr.rel (%p385) target = $region76
        $region75: #{neural_network_forward.1} parent=59 // pred_region
          %388 = dma.done [#allocation8], 16384
        $region76: #{neural_network_forward.1} parent=59 // pred_fallthru
          _
        // Predicated region
        $region77: #{neural_network_forward.1} parent=59 // pred_check
          %p389 = pneg %p192
        $region78: #{neural_network_forward.1} parent=59 // pred_check_branch
          %391 = sbr.rel (%p389) target = $region80
        $region79: #{neural_network_forward.1} parent=59 // pred_region
          %392 = dma.done [#allocation8], 16384
        $region80: #{neural_network_forward.1} parent=59 // pred_fallthru
          _
        %s393 = smul.u32 2, %s24
        %p394 = scmp.lt.s32.totalorder %s393, 3
        %s395 = scalar_select %p394, %s393, 3
        %s396 = smul.addr %s395, 7
        %s397 = smul.addr %s396, 4
        %s398 = scalar_lea.vmem %s0, %s397
        %p399 = pneg %p45
        %p400 = pneg %p42
        %p401 = pneg %p66
        %p402 = pneg %p63
        %p403 = pneg %p87
        %p404 = pneg %p84
        %p405 = pneg %p108
        %p406 = pneg %p105
        %p407 = pneg %p129
        %p408 = pneg %p126
        %p409 = pneg %p150
        %p410 = pneg %p147
        %p411 = pneg %p171
        %p412 = pneg %p168
        %p413 = pneg %p192
        %p414 = pneg %p189
        %p415 = pneg %p213
        %p416 = pneg %p210
        %p417 = pneg %p234
        %p418 = pneg %p231
        %p419 = pneg %p260
        %p420 = pneg %p257
        %s421 = smul.u32 2, %s24
        %p422 = scmp.lt.s32.totalorder %s421, 3
        %s423 = scalar_select %p422, %s421, 3
        %s424 = smul.addr %s423, 8
        %s425 = scalar_lea.vmem %s10, %s424
        %s426 = smul.u32 2, %s24
        %p427 = scmp.lt.s32.totalorder %s426, 3
        %s428 = scalar_select %p427, %s426, 3
        %s429 = smul.addr %s428, 7
        %s430 = smul.addr %s429, 4
        %s431 = scalar_lea.vmem %s0, %s430
        %s432 = smul.u32 2, %s24
        %s433 = smul.u32 2, %s24
        %p434 = scmp.lt.s32.totalorder %s433, 3
        %s435 = scalar_select %p434, %s433, 3
        %s436 = smul.addr %s435, 8
        %s437 = scalar_lea.vmem %s10, %s436
        %s438 = smul.u32 2, %s24
        %v440 = vld [vmem:[%s9] sm:$0xff]
        %v441 = vld [vmem:[%s9 + $0x8] sm:$0xff]
        %v442 = vld [vmem:[%s9 + $0x10] sm:$0xff]
        %v443 = vld [vmem:[%s9 + $0x18] sm:$0xff]
        %v444 = vld [vmem:[%s431] sm:$0xff]
        %v445 = vld [vmem:[%s431 + $0x8] sm:$0xff]
        %v446 = vld [vmem:[%s431 + $0x10] sm:$0xff]
        %v447 = vld [vmem:[%s431 + $0x18] sm:$0xf]
        %v448 = vld [vmem:[%s431 + $0x1c] sm:$0xff]
        %v449 = vld [vmem:[%s431 + $0x24] sm:$0xff]
        %v450 = vld [vmem:[%s431 + $0x2c] sm:$0xff]
        %v451 = vld [vmem:[%s431 + $0x34] sm:$0xf]
        %v452 = vld [vmem:[%s1] sm:$0xff]
        %v453 = vld [vmem:[%s1 + $0x8] sm:$0xff]
        %v454 = vld [vmem:[%s1 + $0x10] sm:$0xff]
        %v455 = vld [vmem:[%s1 + $0x18] sm:$0xff]
        %v456 = vld [vmem:[%s1 + $0x20] sm:$0xff]
        %v457 = vld [vmem:[%s1 + $0x28] sm:$0xff]
        %v458 = vld [vmem:[%s1 + $0x30] sm:$0xff]
        %v459 = vld [vmem:[%s1 + $0x38] sm:$0xff]
        %v460 = vld [vmem:[%s1 + $0x40] sm:$0xff]
        %v461 = vld [vmem:[%s1 + $0x48] sm:$0xff]
        %v462 = vld [vmem:[%s1 + $0x50] sm:$0xff]
        %v463 = vld [vmem:[%s1 + $0x58] sm:$0xff]
        %v464 = vld [vmem:[%s1 + $0x60] sm:$0xff]
        %v465 = vld [vmem:[%s1 + $0x68] sm:$0xff]
        %v466 = vld [vmem:[%s1 + $0x70] sm:$0xff]
        %v467 = vld [vmem:[%s1 + $0x78] sm:$0xff]
        %v468 = vld [vmem:[%s1 + $0x80] sm:$0xff]
        %v469 = vld [vmem:[%s1 + $0x88] sm:$0xff]
        %v470 = vld [vmem:[%s1 + $0x90] sm:$0xff]
        %v471 = vld [vmem:[%s1 + $0x98] sm:$0xff]
        %v472 = vld [vmem:[%s1 + $0xa0] sm:$0xff]
        %v473 = vld [vmem:[%s1 + $0xa8] sm:$0xff]
        %v474 = vld [vmem:[%s1 + $0xb0] sm:$0xff]
        %v475 = vld [vmem:[%s1 + $0xb8] sm:$0xff]
        %v476 = vld [vmem:[%s1 + $0xc0] sm:$0xff]
        %v477 = vld [vmem:[%s1 + $0xc8] sm:$0xff]
        %v478 = vld [vmem:[%s1 + $0xd0] sm:$0xff]
        %v479 = vld [vmem:[%s1 + $0xd8] sm:$0xff]
        %v480 = vld [vmem:[%s1 + $0xe0] sm:$0xff]
        %v481 = vld [vmem:[%s1 + $0xe8] sm:$0xff]
        %v482 = vld [vmem:[%s1 + $0xf0] sm:$0xff]
        %v483 = vld [vmem:[%s1 + $0xf8] sm:$0xff]
        %v484 = vld [vmem:[%s1 + $0x100] sm:$0xff]
        %v485 = vld [vmem:[%s1 + $0x108] sm:$0xff]
        %v486 = vld [vmem:[%s1 + $0x110] sm:$0xff]
        %v487 = vld [vmem:[%s1 + $0x118] sm:$0xff]
        %v488 = vld [vmem:[%s1 + $0x120] sm:$0xff]
        %v489 = vld [vmem:[%s1 + $0x128] sm:$0xff]
        %v490 = vld [vmem:[%s1 + $0x130] sm:$0xff]
        %v491 = vld [vmem:[%s1 + $0x138] sm:$0xff]
        %v492 = vld [vmem:[%s1 + $0x140] sm:$0xff]
        %v493 = vld [vmem:[%s1 + $0x148] sm:$0xff]
        %v494 = vld [vmem:[%s1 + $0x150] sm:$0xff]
        %v495 = vld [vmem:[%s1 + $0x158] sm:$0xff]
        %v496 = vld [vmem:[%s1 + $0x160] sm:$0xff]
        %v497 = vld [vmem:[%s1 + $0x168] sm:$0xff]
        %v498 = vld [vmem:[%s1 + $0x170] sm:$0xff]
        %v499 = vld [vmem:[%s1 + $0x178] sm:$0xff]
        %v500 = vld [vmem:[%s1 + $0x180] sm:$0xff]
        %v501 = vld [vmem:[%s1 + $0x188] sm:$0xff]
        %v502 = vld [vmem:[%s1 + $0x190] sm:$0xff]
        %v503 = vld [vmem:[%s1 + $0x198] sm:$0xff]
        %v504 = vld [vmem:[%s1 + $0x1a0] sm:$0xff]
        %v505 = vld [vmem:[%s1 + $0x1a8] sm:$0xff]
        %v506 = vld [vmem:[%s1 + $0x1b0] sm:$0xff]
        %v507 = vld [vmem:[%s1 + $0x1b8] sm:$0xff]
        %v508 = vld [vmem:[%s1 + $0x1c0] sm:$0xff]
        %v509 = vld [vmem:[%s1 + $0x1c8] sm:$0xff]
        %v510 = vld [vmem:[%s1 + $0x1d0] sm:$0xff]
        %v511 = vld [vmem:[%s1 + $0x1d8] sm:$0xff]
        %v512 = vld [vmem:[%s1 + $0x1e0] sm:$0xff]
        %v513 = vld [vmem:[%s1 + $0x1e8] sm:$0xff]
        %v514 = vld [vmem:[%s1 + $0x1f0] sm:$0xff]
        %v515 = vld [vmem:[%s1 + $0x1f8] sm:$0xff]
        %v516 = vld [vmem:[%s1 + $0x200] sm:$0xff]
        %v517 = vld [vmem:[%s1 + $0x208] sm:$0xff]
        %v518 = vld [vmem:[%s1 + $0x210] sm:$0xff]
        %v519 = vld [vmem:[%s1 + $0x218] sm:$0xff]
        %v520 = vld [vmem:[%s1 + $0x220] sm:$0xff]
        %v521 = vld [vmem:[%s1 + $0x228] sm:$0xff]
        %v522 = vld [vmem:[%s1 + $0x230] sm:$0xff]
        %v523 = vld [vmem:[%s1 + $0x238] sm:$0xff]
        %v524 = vld [vmem:[%s1 + $0x240] sm:$0xff]
        %v525 = vld [vmem:[%s1 + $0x248] sm:$0xff]
        %v526 = vld [vmem:[%s1 + $0x250] sm:$0xff]
        %v527 = vld [vmem:[%s1 + $0x258] sm:$0xff]
        %v528 = vld [vmem:[%s1 + $0x260] sm:$0xff]
        %v529 = vld [vmem:[%s1 + $0x268] sm:$0xff]
        %v530 = vld [vmem:[%s1 + $0x270] sm:$0xff]
        %v531 = vld [vmem:[%s1 + $0x278] sm:$0xff]
        %v532 = vld [vmem:[%s1 + $0x280] sm:$0xff]
        %v533 = vld [vmem:[%s1 + $0x288] sm:$0xff]
        %v534 = vld [vmem:[%s1 + $0x290] sm:$0xff]
        %v535 = vld [vmem:[%s1 + $0x298] sm:$0xff]
        %v536 = vld [vmem:[%s1 + $0x2a0] sm:$0xff]
        %v537 = vld [vmem:[%s1 + $0x2a8] sm:$0xff]
        %v538 = vld [vmem:[%s1 + $0x2b0] sm:$0xff]
        %v539 = vld [vmem:[%s1 + $0x2b8] sm:$0xff]
        %v540 = vld [vmem:[%s1 + $0x2c0] sm:$0xff]
        %v541 = vld [vmem:[%s1 + $0x2c8] sm:$0xff]
        %v542 = vld [vmem:[%s1 + $0x2d0] sm:$0xff]
        %v543 = vld [vmem:[%s1 + $0x2d8] sm:$0xff]
        %v544 = vld [vmem:[%s1 + $0x2e0] sm:$0xff]
        %v545 = vld [vmem:[%s1 + $0x2e8] sm:$0xff]
        %v546 = vld [vmem:[%s1 + $0x2f0] sm:$0xff]
        %v547 = vld [vmem:[%s1 + $0x2f8] sm:$0xff]
        %v548 = vld [vmem:[%s1 + $0x300] sm:$0xff]
        %v549 = vld [vmem:[%s1 + $0x308] sm:$0xff]
        %v550 = vld [vmem:[%s1 + $0x310] sm:$0xff]
        %v551 = vld [vmem:[%s1 + $0x318] sm:$0xff]
        %v552 = vld [vmem:[%s1 + $0x320] sm:$0xff]
        %v553 = vld [vmem:[%s1 + $0x328] sm:$0xff]
        %v554 = vld [vmem:[%s1 + $0x330] sm:$0xff]
        %v555 = vld [vmem:[%s1 + $0x338] sm:$0xff]
        %v556 = vld [vmem:[%s1 + $0x340] sm:$0xff]
        %v557 = vld [vmem:[%s1 + $0x348] sm:$0xff]
        %v558 = vld [vmem:[%s1 + $0x350] sm:$0xff]
        %v559 = vld [vmem:[%s1 + $0x358] sm:$0xff]
        %v560 = vld [vmem:[%s1 + $0x360] sm:$0xff]
        %v561 = vld [vmem:[%s1 + $0x368] sm:$0xff]
        %v562 = vld [vmem:[%s1 + $0x370] sm:$0xff]
        %v563 = vld [vmem:[%s1 + $0x378] sm:$0xff]
        %v564 = vld [vmem:[%s1 + $0x380] sm:$0xff]
        %v565 = vld [vmem:[%s1 + $0x388] sm:$0xff]
        %v566 = vld [vmem:[%s1 + $0x390] sm:$0xff]
        %v567 = vld [vmem:[%s1 + $0x398] sm:$0xff]
        %v568 = vld [vmem:[%s1 + $0x3a0] sm:$0xff]
        %v569 = vld [vmem:[%s1 + $0x3a8] sm:$0xff]
        %v570 = vld [vmem:[%s1 + $0x3b0] sm:$0xff]
        %v571 = vld [vmem:[%s1 + $0x3b8] sm:$0xff]
        %v572 = vld [vmem:[%s1 + $0x3c0] sm:$0xff]
        %v573 = vld [vmem:[%s1 + $0x3c8] sm:$0xff]
        %v574 = vld [vmem:[%s1 + $0x3d0] sm:$0xff]
        %v575 = vld [vmem:[%s1 + $0x3d8] sm:$0xff]
        %v576 = vld [vmem:[%s1 + $0x3e0] sm:$0xff]
        %v577 = vld [vmem:[%s1 + $0x3e8] sm:$0xff]
        %v578 = vld [vmem:[%s1 + $0x3f0] sm:$0xff]
        %v579 = vld [vmem:[%s1 + $0x3f8] sm:$0xff]
        %v580 = vld [vmem:[%s1 + $0x400] sm:$0xff]
        %v581 = vld [vmem:[%s1 + $0x408] sm:$0xff]
        %v582 = vld [vmem:[%s1 + $0x410] sm:$0xff]
        %v583 = vld [vmem:[%s1 + $0x418] sm:$0xff]
        %v584 = vld [vmem:[%s1 + $0x420] sm:$0xff]
        %v585 = vld [vmem:[%s1 + $0x428] sm:$0xff]
        %v586 = vld [vmem:[%s1 + $0x430] sm:$0xff]
        %v587 = vld [vmem:[%s1 + $0x438] sm:$0xff]
        %v588 = vld [vmem:[%s1 + $0x440] sm:$0xff]
        %v589 = vld [vmem:[%s1 + $0x448] sm:$0xff]
        %v590 = vld [vmem:[%s1 + $0x450] sm:$0xff]
        %v591 = vld [vmem:[%s1 + $0x458] sm:$0xff]
        %v592 = vld [vmem:[%s1 + $0x460] sm:$0xff]
        %v593 = vld [vmem:[%s1 + $0x468] sm:$0xff]
        %v594 = vld [vmem:[%s1 + $0x470] sm:$0xff]
        %v595 = vld [vmem:[%s1 + $0x478] sm:$0xff]
        %v596 = vld [vmem:[%s1 + $0x480] sm:$0xff]
        %v597 = vld [vmem:[%s1 + $0x488] sm:$0xff]
        %v598 = vld [vmem:[%s1 + $0x490] sm:$0xff]
        %v599 = vld [vmem:[%s1 + $0x498] sm:$0xff]
        %v600 = vld [vmem:[%s1 + $0x4a0] sm:$0xff]
        %v601 = vld [vmem:[%s1 + $0x4a8] sm:$0xff]
        %v602 = vld [vmem:[%s1 + $0x4b0] sm:$0xff]
        %v603 = vld [vmem:[%s1 + $0x4b8] sm:$0xff]
        %v604 = vld [vmem:[%s1 + $0x4c0] sm:$0xff]
        %v605 = vld [vmem:[%s1 + $0x4c8] sm:$0xff]
        %v606 = vld [vmem:[%s1 + $0x4d0] sm:$0xff]
        %v607 = vld [vmem:[%s1 + $0x4d8] sm:$0xff]
        %v608 = vld [vmem:[%s1 + $0x4e0] sm:$0xff]
        %v609 = vld [vmem:[%s1 + $0x4e8] sm:$0xff]
        %v610 = vld [vmem:[%s1 + $0x4f0] sm:$0xff]
        %v611 = vld [vmem:[%s1 + $0x4f8] sm:$0xff]
        %v612 = vld [vmem:[%s1 + $0x500] sm:$0xff]
        %v613 = vld [vmem:[%s1 + $0x508] sm:$0xff]
        %v614 = vld [vmem:[%s1 + $0x510] sm:$0xff]
        %v615 = vld [vmem:[%s1 + $0x518] sm:$0xff]
        %v616 = vld [vmem:[%s1 + $0x520] sm:$0xff]
        %v617 = vld [vmem:[%s1 + $0x528] sm:$0xff]
        %v618 = vld [vmem:[%s1 + $0x530] sm:$0xff]
        %v619 = vld [vmem:[%s1 + $0x538] sm:$0xff]
        %v620 = vld [vmem:[%s1 + $0x540] sm:$0xff]
        %v621 = vld [vmem:[%s1 + $0x548] sm:$0xff]
        %v622 = vld [vmem:[%s1 + $0x550] sm:$0xff]
        %v623 = vld [vmem:[%s1 + $0x558] sm:$0xff]
        %v624 = vld [vmem:[%s1 + $0x560] sm:$0xff]
        %v625 = vld [vmem:[%s1 + $0x568] sm:$0xff]
        %v626 = vld [vmem:[%s1 + $0x570] sm:$0xff]
        %v627 = vld [vmem:[%s1 + $0x578] sm:$0xff]
        %v628 = vld [vmem:[%s1 + $0x580] sm:$0xff]
        %v629 = vld [vmem:[%s1 + $0x588] sm:$0xff]
        %v630 = vld [vmem:[%s1 + $0x590] sm:$0xff]
        %v631 = vld [vmem:[%s1 + $0x598] sm:$0xff]
        %v632 = vld [vmem:[%s1 + $0x5a0] sm:$0xff]
        %v633 = vld [vmem:[%s1 + $0x5a8] sm:$0xff]
        %v634 = vld [vmem:[%s1 + $0x5b0] sm:$0xff]
        %v635 = vld [vmem:[%s1 + $0x5b8] sm:$0xff]
        %v636 = vld [vmem:[%s1 + $0x5c0] sm:$0xff]
        %v637 = vld [vmem:[%s1 + $0x5c8] sm:$0xff]
        %v638 = vld [vmem:[%s1 + $0x5d0] sm:$0xff]
        %v639 = vld [vmem:[%s1 + $0x5d8] sm:$0xff]
        %v640 = vld [vmem:[%s1 + $0x5e0] sm:$0xff]
        %v641 = vld [vmem:[%s1 + $0x5e8] sm:$0xff]
        %v642 = vld [vmem:[%s1 + $0x5f0] sm:$0xff]
        %v643 = vld [vmem:[%s1 + $0x5f8] sm:$0xff]
        %v644 = vld [vmem:[%s1 + $0x600] sm:$0xff]
        %v645 = vld [vmem:[%s1 + $0x608] sm:$0xff]
        %v646 = vld [vmem:[%s1 + $0x610] sm:$0xff]
        %v647 = vld [vmem:[%s1 + $0x618] sm:$0xff]
        %v648 = vld [vmem:[%s1 + $0x620] sm:$0xff]
        %v649 = vld [vmem:[%s1 + $0x628] sm:$0xff]
        %v650 = vld [vmem:[%s1 + $0x630] sm:$0xff]
        %v651 = vld [vmem:[%s1 + $0x638] sm:$0xff]
        %v652 = vld [vmem:[%s1 + $0x640] sm:$0xff]
        %v653 = vld [vmem:[%s1 + $0x648] sm:$0xff]
        %v654 = vld [vmem:[%s1 + $0x650] sm:$0xff]
        %v655 = vld [vmem:[%s1 + $0x658] sm:$0xff]
        %v656 = vld [vmem:[%s1 + $0x660] sm:$0xff]
        %v657 = vld [vmem:[%s1 + $0x668] sm:$0xff]
        %v658 = vld [vmem:[%s1 + $0x670] sm:$0xff]
        %v659 = vld [vmem:[%s1 + $0x678] sm:$0xff]
        %v660 = vld [vmem:[%s1 + $0x680] sm:$0xff]
        %v661 = vld [vmem:[%s1 + $0x688] sm:$0xff]
        %v662 = vld [vmem:[%s1 + $0x690] sm:$0xff]
        %v663 = vld [vmem:[%s1 + $0x698] sm:$0xff]
        %v664 = vld [vmem:[%s1 + $0x6a0] sm:$0xff]
        %v665 = vld [vmem:[%s1 + $0x6a8] sm:$0xff]
        %v666 = vld [vmem:[%s1 + $0x6b0] sm:$0xff]
        %v667 = vld [vmem:[%s1 + $0x6b8] sm:$0xff]
        %v668 = vld [vmem:[%s1 + $0x6c0] sm:$0xff]
        %v669 = vld [vmem:[%s1 + $0x6c8] sm:$0xff]
        %v670 = vld [vmem:[%s1 + $0x6d0] sm:$0xff]
        %v671 = vld [vmem:[%s1 + $0x6d8] sm:$0xff]
        %v672 = vld [vmem:[%s1 + $0x6e0] sm:$0xff]
        %v673 = vld [vmem:[%s1 + $0x6e8] sm:$0xff]
        %v674 = vld [vmem:[%s1 + $0x6f0] sm:$0xff]
        %v675 = vld [vmem:[%s1 + $0x6f8] sm:$0xff]
        %v676 = vlaneseq
        %v677 = vshrl.u32 %v676, 7
        %v678 = vsub.s32 0, %v677
        %v679 = vrot.slane %v440, %v678
        %v680 = vlaneseq
        %v681 = vshrl.u32 %v680, 7
        %v682 = vsub.s32 0, %v681
        %v683 = vrot.slane %v441, %v682
        %v684 = vlaneseq
        %v685 = vshrl.u32 %v684, 7
        %v686 = vsub.s32 0, %v685
        %v687 = vrot.slane %v442, %v686
        %v688 = vlaneseq
        %v689 = vshrl.u32 %v688, 7
        %v690 = vsub.s32 0, %v689
        %v691 = vrot.slane %v443, %v690
        %v700 = vunpack.c.l.b16 %v444
        %v701 = vunpack.c.h.b16 %v444
        %v702 = vunpack.c.l.b16 %v445
        %v703 = vunpack.c.h.b16 %v445
        %v704 = vunpack.c.l.b16 %v446
        %v705 = vunpack.c.h.b16 %v446
        %v706 = vunpack.c.l.b16 %v447
        %v707 = vunpack.c.l.b16 %v448
        %v708 = vunpack.c.h.b16 %v448
        %v709 = vunpack.c.l.b16 %v449
        %v710 = vunpack.c.h.b16 %v449
        %v711 = vunpack.c.l.b16 %v450
        %v712 = vunpack.c.h.b16 %v450
        %v713 = vunpack.c.l.b16 %v451
        %v714 = vpack.c.b16 %v707, %v700
        %v715 = vpack.c.b16 %v708, %v701
        %v716 = vpack.c.b16 %v709, %v702
        %v717 = vpack.c.b16 %v710, %v703
        %v718 = vpack.c.b16 %v711, %v704
        %v719 = vpack.c.b16 %v712, %v705
        %v720 = vpack.c.b16 %v713, %v706
        %v952 = vunpack.c.l.b16 %v452
        %v953 = vunpack.c.h.b16 %v452
        %v954 = vunpack.c.l.b16 %v453
        %v955 = vunpack.c.h.b16 %v453
        %v956 = vunpack.c.l.b16 %v454
        %v957 = vunpack.c.h.b16 %v454
        %v958 = vunpack.c.l.b16 %v455
        %v959 = vunpack.c.h.b16 %v455
        %v960 = vunpack.c.l.b16 %v456
        %v961 = vunpack.c.h.b16 %v456
        %v962 = vunpack.c.l.b16 %v457
        %v963 = vunpack.c.h.b16 %v457
        %v964 = vunpack.c.l.b16 %v458
        %v965 = vunpack.c.h.b16 %v458
        %v966 = vunpack.c.l.b16 %v459
        %v967 = vunpack.c.h.b16 %v459
        %v968 = vunpack.c.l.b16 %v460
        %v969 = vunpack.c.h.b16 %v460
        %v970 = vunpack.c.l.b16 %v461
        %v971 = vunpack.c.h.b16 %v461
        %v972 = vunpack.c.l.b16 %v462
        %v973 = vunpack.c.h.b16 %v462
        %v974 = vunpack.c.l.b16 %v463
        %v975 = vunpack.c.h.b16 %v463
        %v976 = vunpack.c.l.b16 %v464
        %v977 = vunpack.c.h.b16 %v464
        %v978 = vunpack.c.l.b16 %v465
        %v979 = vunpack.c.h.b16 %v465
        %v980 = vunpack.c.l.b16 %v466
        %v981 = vunpack.c.h.b16 %v466
        %v982 = vunpack.c.l.b16 %v467
        %v983 = vunpack.c.h.b16 %v467
        %v984 = vunpack.c.l.b16 %v468
        %v985 = vunpack.c.h.b16 %v468
        %v986 = vunpack.c.l.b16 %v469
        %v987 = vunpack.c.h.b16 %v469
        %v988 = vunpack.c.l.b16 %v470
        %v989 = vunpack.c.h.b16 %v470
        %v990 = vunpack.c.l.b16 %v471
        %v991 = vunpack.c.h.b16 %v471
        %v992 = vunpack.c.l.b16 %v472
        %v993 = vunpack.c.h.b16 %v472
        %v994 = vunpack.c.l.b16 %v473
        %v995 = vunpack.c.h.b16 %v473
        %v996 = vunpack.c.l.b16 %v474
        %v997 = vunpack.c.h.b16 %v474
        %v998 = vunpack.c.l.b16 %v475
        %v999 = vunpack.c.h.b16 %v475
        %v1000 = vunpack.c.l.b16 %v476
        %v1001 = vunpack.c.h.b16 %v476
        %v1002 = vunpack.c.l.b16 %v477
        %v1003 = vunpack.c.h.b16 %v477
        %v1004 = vunpack.c.l.b16 %v478
        %v1005 = vunpack.c.h.b16 %v478
        %v1006 = vunpack.c.l.b16 %v479
        %v1007 = vunpack.c.h.b16 %v479
        %v1008 = vunpack.c.l.b16 %v480
        %v1009 = vunpack.c.h.b16 %v480
        %v1010 = vunpack.c.l.b16 %v481
        %v1011 = vunpack.c.h.b16 %v481
        %v1012 = vunpack.c.l.b16 %v482
        %v1013 = vunpack.c.h.b16 %v482
        %v1014 = vunpack.c.l.b16 %v483
        %v1015 = vunpack.c.h.b16 %v483
        %v1016 = vunpack.c.l.b16 %v484
        %v1017 = vunpack.c.h.b16 %v484
        %v1018 = vunpack.c.l.b16 %v485
        %v1019 = vunpack.c.h.b16 %v485
        %v1020 = vunpack.c.l.b16 %v486
        %v1021 = vunpack.c.h.b16 %v486
        %v1022 = vunpack.c.l.b16 %v487
        %v1023 = vunpack.c.h.b16 %v487
        %v1024 = vunpack.c.l.b16 %v488
        %v1025 = vunpack.c.h.b16 %v488
        %v1026 = vunpack.c.l.b16 %v489
        %v1027 = vunpack.c.h.b16 %v489
        %v1028 = vunpack.c.l.b16 %v490
        %v1029 = vunpack.c.h.b16 %v490
        %v1030 = vunpack.c.l.b16 %v491
        %v1031 = vunpack.c.h.b16 %v491
        %v1032 = vunpack.c.l.b16 %v492
        %v1033 = vunpack.c.h.b16 %v492
        %v1034 = vunpack.c.l.b16 %v493
        %v1035 = vunpack.c.h.b16 %v493
        %v1036 = vunpack.c.l.b16 %v494
        %v1037 = vunpack.c.h.b16 %v494
        %v1038 = vunpack.c.l.b16 %v495
        %v1039 = vunpack.c.h.b16 %v495
        %v1040 = vunpack.c.l.b16 %v496
        %v1041 = vunpack.c.h.b16 %v496
        %v1042 = vunpack.c.l.b16 %v497
        %v1043 = vunpack.c.h.b16 %v497
        %v1044 = vunpack.c.l.b16 %v498
        %v1045 = vunpack.c.h.b16 %v498
        %v1046 = vunpack.c.l.b16 %v499
        %v1047 = vunpack.c.h.b16 %v499
        %v1048 = vunpack.c.l.b16 %v500
        %v1049 = vunpack.c.h.b16 %v500
        %v1050 = vunpack.c.l.b16 %v501
        %v1051 = vunpack.c.h.b16 %v501
        %v1052 = vunpack.c.l.b16 %v502
        %v1053 = vunpack.c.h.b16 %v502
        %v1054 = vunpack.c.l.b16 %v503
        %v1055 = vunpack.c.h.b16 %v503
        %v1056 = vunpack.c.l.b16 %v504
        %v1057 = vunpack.c.h.b16 %v504
        %v1058 = vunpack.c.l.b16 %v505
        %v1059 = vunpack.c.h.b16 %v505
        %v1060 = vunpack.c.l.b16 %v506
        %v1061 = vunpack.c.h.b16 %v506
        %v1062 = vunpack.c.l.b16 %v507
        %v1063 = vunpack.c.h.b16 %v507
        %v1064 = vunpack.c.l.b16 %v508
        %v1065 = vunpack.c.h.b16 %v508
        %v1066 = vunpack.c.l.b16 %v509
        %v1067 = vunpack.c.h.b16 %v509
        %v1068 = vunpack.c.l.b16 %v510
        %v1069 = vunpack.c.h.b16 %v510
        %v1070 = vunpack.c.l.b16 %v511
        %v1071 = vunpack.c.h.b16 %v511
        %v1072 = vunpack.c.l.b16 %v512
        %v1073 = vunpack.c.h.b16 %v512
        %v1074 = vunpack.c.l.b16 %v513
        %v1075 = vunpack.c.h.b16 %v513
        %v1076 = vunpack.c.l.b16 %v514
        %v1077 = vunpack.c.h.b16 %v514
        %v1078 = vunpack.c.l.b16 %v515
        %v1079 = vunpack.c.h.b16 %v515
        %v1080 = vunpack.c.l.b16 %v516
        %v1081 = vunpack.c.h.b16 %v516
        %v1082 = vunpack.c.l.b16 %v517
        %v1083 = vunpack.c.h.b16 %v517
        %v1084 = vunpack.c.l.b16 %v518
        %v1085 = vunpack.c.h.b16 %v518
        %v1086 = vunpack.c.l.b16 %v519
        %v1087 = vunpack.c.h.b16 %v519
        %v1088 = vunpack.c.l.b16 %v520
        %v1089 = vunpack.c.h.b16 %v520
        %v1090 = vunpack.c.l.b16 %v521
        %v1091 = vunpack.c.h.b16 %v521
        %v1092 = vunpack.c.l.b16 %v522
        %v1093 = vunpack.c.h.b16 %v522
        %v1094 = vunpack.c.l.b16 %v523
        %v1095 = vunpack.c.h.b16 %v523
        %v1096 = vunpack.c.l.b16 %v524
        %v1097 = vunpack.c.h.b16 %v524
        %v1098 = vunpack.c.l.b16 %v525
        %v1099 = vunpack.c.h.b16 %v525
        %v1100 = vunpack.c.l.b16 %v526
        %v1101 = vunpack.c.h.b16 %v526
        %v1102 = vunpack.c.l.b16 %v527
        %v1103 = vunpack.c.h.b16 %v527
        %v1104 = vunpack.c.l.b16 %v528
        %v1105 = vunpack.c.h.b16 %v528
        %v1106 = vunpack.c.l.b16 %v529
        %v1107 = vunpack.c.h.b16 %v529
        %v1108 = vunpack.c.l.b16 %v530
        %v1109 = vunpack.c.h.b16 %v530
        %v1110 = vunpack.c.l.b16 %v531
        %v1111 = vunpack.c.h.b16 %v531
        %v1112 = vunpack.c.l.b16 %v532
        %v1113 = vunpack.c.h.b16 %v532
        %v1114 = vunpack.c.l.b16 %v533
        %v1115 = vunpack.c.h.b16 %v533
        %v1116 = vunpack.c.l.b16 %v534
        %v1117 = vunpack.c.h.b16 %v534
        %v1118 = vunpack.c.l.b16 %v535
        %v1119 = vunpack.c.h.b16 %v535
        %v1120 = vunpack.c.l.b16 %v536
        %v1121 = vunpack.c.h.b16 %v536
        %v1122 = vunpack.c.l.b16 %v537
        %v1123 = vunpack.c.h.b16 %v537
        %v1124 = vunpack.c.l.b16 %v538
        %v1125 = vunpack.c.h.b16 %v538
        %v1126 = vunpack.c.l.b16 %v539
        %v1127 = vunpack.c.h.b16 %v539
        %v1128 = vunpack.c.l.b16 %v540
        %v1129 = vunpack.c.h.b16 %v540
        %v1130 = vunpack.c.l.b16 %v541
        %v1131 = vunpack.c.h.b16 %v541
        %v1132 = vunpack.c.l.b16 %v542
        %v1133 = vunpack.c.h.b16 %v542
        %v1134 = vunpack.c.l.b16 %v543
        %v1135 = vunpack.c.h.b16 %v543
        %v1136 = vunpack.c.l.b16 %v544
        %v1137 = vunpack.c.h.b16 %v544
        %v1138 = vunpack.c.l.b16 %v545
        %v1139 = vunpack.c.h.b16 %v545
        %v1140 = vunpack.c.l.b16 %v546
        %v1141 = vunpack.c.h.b16 %v546
        %v1142 = vunpack.c.l.b16 %v547
        %v1143 = vunpack.c.h.b16 %v547
        %v1144 = vunpack.c.l.b16 %v548
        %v1145 = vunpack.c.h.b16 %v548
        %v1146 = vunpack.c.l.b16 %v549
        %v1147 = vunpack.c.h.b16 %v549
        %v1148 = vunpack.c.l.b16 %v550
        %v1149 = vunpack.c.h.b16 %v550
        %v1150 = vunpack.c.l.b16 %v551
        %v1151 = vunpack.c.h.b16 %v551
        %v1152 = vunpack.c.l.b16 %v552
        %v1153 = vunpack.c.h.b16 %v552
        %v1154 = vunpack.c.l.b16 %v553
        %v1155 = vunpack.c.h.b16 %v553
        %v1156 = vunpack.c.l.b16 %v554
        %v1157 = vunpack.c.h.b16 %v554
        %v1158 = vunpack.c.l.b16 %v555
        %v1159 = vunpack.c.h.b16 %v555
        %v1160 = vunpack.c.l.b16 %v556
        %v1161 = vunpack.c.h.b16 %v556
        %v1162 = vunpack.c.l.b16 %v557
        %v1163 = vunpack.c.h.b16 %v557
        %v1164 = vunpack.c.l.b16 %v558
        %v1165 = vunpack.c.h.b16 %v558
        %v1166 = vunpack.c.l.b16 %v559
        %v1167 = vunpack.c.h.b16 %v559
        %v1168 = vunpack.c.l.b16 %v560
        %v1169 = vunpack.c.h.b16 %v560
        %v1170 = vunpack.c.l.b16 %v561
        %v1171 = vunpack.c.h.b16 %v561
        %v1172 = vunpack.c.l.b16 %v562
        %v1173 = vunpack.c.h.b16 %v562
        %v1174 = vunpack.c.l.b16 %v563
        %v1175 = vunpack.c.h.b16 %v563
        %v1176 = vunpack.c.l.b16 %v564
        %v1177 = vunpack.c.h.b16 %v564
        %v1178 = vunpack.c.l.b16 %v565
        %v1179 = vunpack.c.h.b16 %v565
        %v1180 = vunpack.c.l.b16 %v566
        %v1181 = vunpack.c.h.b16 %v566
        %v1182 = vunpack.c.l.b16 %v567
        %v1183 = vunpack.c.h.b16 %v567
        %v1184 = vunpack.c.l.b16 %v568
        %v1185 = vunpack.c.h.b16 %v568
        %v1186 = vunpack.c.l.b16 %v569
        %v1187 = vunpack.c.h.b16 %v569
        %v1188 = vunpack.c.l.b16 %v570
        %v1189 = vunpack.c.h.b16 %v570
        %v1190 = vunpack.c.l.b16 %v571
        %v1191 = vunpack.c.h.b16 %v571
        %v1192 = vunpack.c.l.b16 %v572
        %v1193 = vunpack.c.h.b16 %v572
        %v1194 = vunpack.c.l.b16 %v573
        %v1195 = vunpack.c.h.b16 %v573
        %v1196 = vunpack.c.l.b16 %v574
        %v1197 = vunpack.c.h.b16 %v574
        %v1198 = vunpack.c.l.b16 %v575
        %v1199 = vunpack.c.h.b16 %v575
        %v1200 = vunpack.c.l.b16 %v576
        %v1201 = vunpack.c.h.b16 %v576
        %v1202 = vunpack.c.l.b16 %v577
        %v1203 = vunpack.c.h.b16 %v577
        %v1204 = vunpack.c.l.b16 %v578
        %v1205 = vunpack.c.h.b16 %v578
        %v1206 = vunpack.c.l.b16 %v579
        %v1207 = vunpack.c.h.b16 %v579
        %v1208 = vunpack.c.l.b16 %v580
        %v1209 = vunpack.c.h.b16 %v580
        %v1210 = vunpack.c.l.b16 %v581
        %v1211 = vunpack.c.h.b16 %v581
        %v1212 = vunpack.c.l.b16 %v582
        %v1213 = vunpack.c.h.b16 %v582
        %v1214 = vunpack.c.l.b16 %v583
        %v1215 = vunpack.c.h.b16 %v583
        %v1216 = vunpack.c.l.b16 %v584
        %v1217 = vunpack.c.h.b16 %v584
        %v1218 = vunpack.c.l.b16 %v585
        %v1219 = vunpack.c.h.b16 %v585
        %v1220 = vunpack.c.l.b16 %v586
        %v1221 = vunpack.c.h.b16 %v586
        %v1222 = vunpack.c.l.b16 %v587
        %v1223 = vunpack.c.h.b16 %v587
        %v1224 = vunpack.c.l.b16 %v588
        %v1225 = vunpack.c.h.b16 %v588
        %v1226 = vunpack.c.l.b16 %v589
        %v1227 = vunpack.c.h.b16 %v589
        %v1228 = vunpack.c.l.b16 %v590
        %v1229 = vunpack.c.h.b16 %v590
        %v1230 = vunpack.c.l.b16 %v591
        %v1231 = vunpack.c.h.b16 %v591
        %v1232 = vunpack.c.l.b16 %v592
        %v1233 = vunpack.c.h.b16 %v592
        %v1234 = vunpack.c.l.b16 %v593
        %v1235 = vunpack.c.h.b16 %v593
        %v1236 = vunpack.c.l.b16 %v594
        %v1237 = vunpack.c.h.b16 %v594
        %v1238 = vunpack.c.l.b16 %v595
        %v1239 = vunpack.c.h.b16 %v595
        %v1240 = vunpack.c.l.b16 %v596
        %v1241 = vunpack.c.h.b16 %v596
        %v1242 = vunpack.c.l.b16 %v597
        %v1243 = vunpack.c.h.b16 %v597
        %v1244 = vunpack.c.l.b16 %v598
        %v1245 = vunpack.c.h.b16 %v598
        %v1246 = vunpack.c.l.b16 %v599
        %v1247 = vunpack.c.h.b16 %v599
        %v1248 = vunpack.c.l.b16 %v600
        %v1249 = vunpack.c.h.b16 %v600
        %v1250 = vunpack.c.l.b16 %v601
        %v1251 = vunpack.c.h.b16 %v601
        %v1252 = vunpack.c.l.b16 %v602
        %v1253 = vunpack.c.h.b16 %v602
        %v1254 = vunpack.c.l.b16 %v603
        %v1255 = vunpack.c.h.b16 %v603
        %v1256 = vunpack.c.l.b16 %v604
        %v1257 = vunpack.c.h.b16 %v604
        %v1258 = vunpack.c.l.b16 %v605
        %v1259 = vunpack.c.h.b16 %v605
        %v1260 = vunpack.c.l.b16 %v606
        %v1261 = vunpack.c.h.b16 %v606
        %v1262 = vunpack.c.l.b16 %v607
        %v1263 = vunpack.c.h.b16 %v607
        %v1264 = vunpack.c.l.b16 %v608
        %v1265 = vunpack.c.h.b16 %v608
        %v1266 = vunpack.c.l.b16 %v609
        %v1267 = vunpack.c.h.b16 %v609
        %v1268 = vunpack.c.l.b16 %v610
        %v1269 = vunpack.c.h.b16 %v610
        %v1270 = vunpack.c.l.b16 %v611
        %v1271 = vunpack.c.h.b16 %v611
        %v1272 = vunpack.c.l.b16 %v612
        %v1273 = vunpack.c.h.b16 %v612
        %v1274 = vunpack.c.l.b16 %v613
        %v1275 = vunpack.c.h.b16 %v613
        %v1276 = vunpack.c.l.b16 %v614
        %v1277 = vunpack.c.h.b16 %v614
        %v1278 = vunpack.c.l.b16 %v615
        %v1279 = vunpack.c.h.b16 %v615
        %v1280 = vunpack.c.l.b16 %v616
        %v1281 = vunpack.c.h.b16 %v616
        %v1282 = vunpack.c.l.b16 %v617
        %v1283 = vunpack.c.h.b16 %v617
        %v1284 = vunpack.c.l.b16 %v618
        %v1285 = vunpack.c.h.b16 %v618
        %v1286 = vunpack.c.l.b16 %v619
        %v1287 = vunpack.c.h.b16 %v619
        %v1288 = vunpack.c.l.b16 %v620
        %v1289 = vunpack.c.h.b16 %v620
        %v1290 = vunpack.c.l.b16 %v621
        %v1291 = vunpack.c.h.b16 %v621
        %v1292 = vunpack.c.l.b16 %v622
        %v1293 = vunpack.c.h.b16 %v622
        %v1294 = vunpack.c.l.b16 %v623
        %v1295 = vunpack.c.h.b16 %v623
        %v1296 = vunpack.c.l.b16 %v624
        %v1297 = vunpack.c.h.b16 %v624
        %v1298 = vunpack.c.l.b16 %v625
        %v1299 = vunpack.c.h.b16 %v625
        %v1300 = vunpack.c.l.b16 %v626
        %v1301 = vunpack.c.h.b16 %v626
        %v1302 = vunpack.c.l.b16 %v627
        %v1303 = vunpack.c.h.b16 %v627
        %v1304 = vunpack.c.l.b16 %v628
        %v1305 = vunpack.c.h.b16 %v628
        %v1306 = vunpack.c.l.b16 %v629
        %v1307 = vunpack.c.h.b16 %v629
        %v1308 = vunpack.c.l.b16 %v630
        %v1309 = vunpack.c.h.b16 %v630
        %v1310 = vunpack.c.l.b16 %v631
        %v1311 = vunpack.c.h.b16 %v631
        %v1312 = vunpack.c.l.b16 %v632
        %v1313 = vunpack.c.h.b16 %v632
        %v1314 = vunpack.c.l.b16 %v633
        %v1315 = vunpack.c.h.b16 %v633
        %v1316 = vunpack.c.l.b16 %v634
        %v1317 = vunpack.c.h.b16 %v634
        %v1318 = vunpack.c.l.b16 %v635
        %v1319 = vunpack.c.h.b16 %v635
        %v1320 = vunpack.c.l.b16 %v636
        %v1321 = vunpack.c.h.b16 %v636
        %v1322 = vunpack.c.l.b16 %v637
        %v1323 = vunpack.c.h.b16 %v637
        %v1324 = vunpack.c.l.b16 %v638
        %v1325 = vunpack.c.h.b16 %v638
        %v1326 = vunpack.c.l.b16 %v639
        %v1327 = vunpack.c.h.b16 %v639
        %v1328 = vunpack.c.l.b16 %v640
        %v1329 = vunpack.c.h.b16 %v640
        %v1330 = vunpack.c.l.b16 %v641
        %v1331 = vunpack.c.h.b16 %v641
        %v1332 = vunpack.c.l.b16 %v642
        %v1333 = vunpack.c.h.b16 %v642
        %v1334 = vunpack.c.l.b16 %v643
        %v1335 = vunpack.c.h.b16 %v643
        %v1336 = vunpack.c.l.b16 %v644
        %v1337 = vunpack.c.h.b16 %v644
        %v1338 = vunpack.c.l.b16 %v645
        %v1339 = vunpack.c.h.b16 %v645
        %v1340 = vunpack.c.l.b16 %v646
        %v1341 = vunpack.c.h.b16 %v646
        %v1342 = vunpack.c.l.b16 %v647
        %v1343 = vunpack.c.h.b16 %v647
        %v1344 = vunpack.c.l.b16 %v648
        %v1345 = vunpack.c.h.b16 %v648
        %v1346 = vunpack.c.l.b16 %v649
        %v1347 = vunpack.c.h.b16 %v649
        %v1348 = vunpack.c.l.b16 %v650
        %v1349 = vunpack.c.h.b16 %v650
        %v1350 = vunpack.c.l.b16 %v651
        %v1351 = vunpack.c.h.b16 %v651
        %v1352 = vunpack.c.l.b16 %v652
        %v1353 = vunpack.c.h.b16 %v652
        %v1354 = vunpack.c.l.b16 %v653
        %v1355 = vunpack.c.h.b16 %v653
        %v1356 = vunpack.c.l.b16 %v654
        %v1357 = vunpack.c.h.b16 %v654
        %v1358 = vunpack.c.l.b16 %v655
        %v1359 = vunpack.c.h.b16 %v655
        %v1360 = vunpack.c.l.b16 %v656
        %v1361 = vunpack.c.h.b16 %v656
        %v1362 = vunpack.c.l.b16 %v657
        %v1363 = vunpack.c.h.b16 %v657
        %v1364 = vunpack.c.l.b16 %v658
        %v1365 = vunpack.c.h.b16 %v658
        %v1366 = vunpack.c.l.b16 %v659
        %v1367 = vunpack.c.h.b16 %v659
        %v1368 = vunpack.c.l.b16 %v660
        %v1369 = vunpack.c.h.b16 %v660
        %v1370 = vunpack.c.l.b16 %v661
        %v1371 = vunpack.c.h.b16 %v661
        %v1372 = vunpack.c.l.b16 %v662
        %v1373 = vunpack.c.h.b16 %v662
        %v1374 = vunpack.c.l.b16 %v663
        %v1375 = vunpack.c.h.b16 %v663
        %v1376 = vunpack.c.l.b16 %v664
        %v1377 = vunpack.c.h.b16 %v664
        %v1378 = vunpack.c.l.b16 %v665
        %v1379 = vunpack.c.h.b16 %v665
        %v1380 = vunpack.c.l.b16 %v666
        %v1381 = vunpack.c.h.b16 %v666
        %v1382 = vunpack.c.l.b16 %v667
        %v1383 = vunpack.c.h.b16 %v667
        %v1384 = vunpack.c.l.b16 %v668
        %v1385 = vunpack.c.h.b16 %v668
        %v1386 = vunpack.c.l.b16 %v669
        %v1387 = vunpack.c.h.b16 %v669
        %v1388 = vunpack.c.l.b16 %v670
        %v1389 = vunpack.c.h.b16 %v670
        %v1390 = vunpack.c.l.b16 %v671
        %v1391 = vunpack.c.h.b16 %v671
        %v1392 = vunpack.c.l.b16 %v672
        %v1393 = vunpack.c.h.b16 %v672
        %v1394 = vunpack.c.l.b16 %v673
        %v1395 = vunpack.c.h.b16 %v673
        %v1396 = vunpack.c.l.b16 %v674
        %v1397 = vunpack.c.h.b16 %v674
        %v1398 = vunpack.c.l.b16 %v675
        %v1399 = vunpack.c.h.b16 %v675
        %v1400 = vpack.c.b16 %v956, %v952
        %v1401 = vpack.c.b16 %v957, %v953
        %v1402 = vpack.c.b16 %v958, %v954
        %v1403 = vpack.c.b16 %v959, %v955
        %v1404 = vpack.c.b16 %v964, %v960
        %v1405 = vpack.c.b16 %v965, %v961
        %v1406 = vpack.c.b16 %v966, %v962
        %v1407 = vpack.c.b16 %v967, %v963
        %v1408 = vpack.c.b16 %v972, %v968
        %v1409 = vpack.c.b16 %v973, %v969
        %v1410 = vpack.c.b16 %v974, %v970
        %v1411 = vpack.c.b16 %v975, %v971
        %v1412 = vpack.c.b16 %v980, %v976
        %v1413 = vpack.c.b16 %v981, %v977
        %v1414 = vpack.c.b16 %v982, %v978
        %v1415 = vpack.c.b16 %v983, %v979
        %v1416 = vpack.c.b16 %v988, %v984
        %v1417 = vpack.c.b16 %v989, %v985
        %v1418 = vpack.c.b16 %v990, %v986
        %v1419 = vpack.c.b16 %v991, %v987
        %v1420 = vpack.c.b16 %v996, %v992
        %v1421 = vpack.c.b16 %v997, %v993
        %v1422 = vpack.c.b16 %v998, %v994
        %v1423 = vpack.c.b16 %v999, %v995
        %v1424 = vpack.c.b16 %v1004, %v1000
        %v1425 = vpack.c.b16 %v1005, %v1001
        %v1426 = vpack.c.b16 %v1006, %v1002
        %v1427 = vpack.c.b16 %v1007, %v1003
        %v1428 = vpack.c.b16 %v1012, %v1008
        %v1429 = vpack.c.b16 %v1013, %v1009
        %v1430 = vpack.c.b16 %v1014, %v1010
        %v1431 = vpack.c.b16 %v1015, %v1011
        %v1432 = vpack.c.b16 %v1020, %v1016
        %v1433 = vpack.c.b16 %v1021, %v1017
        %v1434 = vpack.c.b16 %v1022, %v1018
        %v1435 = vpack.c.b16 %v1023, %v1019
        %v1436 = vpack.c.b16 %v1028, %v1024
        %v1437 = vpack.c.b16 %v1029, %v1025
        %v1438 = vpack.c.b16 %v1030, %v1026
        %v1439 = vpack.c.b16 %v1031, %v1027
        %v1440 = vpack.c.b16 %v1036, %v1032
        %v1441 = vpack.c.b16 %v1037, %v1033
        %v1442 = vpack.c.b16 %v1038, %v1034
        %v1443 = vpack.c.b16 %v1039, %v1035
        %v1444 = vpack.c.b16 %v1044, %v1040
        %v1445 = vpack.c.b16 %v1045, %v1041
        %v1446 = vpack.c.b16 %v1046, %v1042
        %v1447 = vpack.c.b16 %v1047, %v1043
        %v1448 = vpack.c.b16 %v1052, %v1048
        %v1449 = vpack.c.b16 %v1053, %v1049
        %v1450 = vpack.c.b16 %v1054, %v1050
        %v1451 = vpack.c.b16 %v1055, %v1051
        %v1452 = vpack.c.b16 %v1060, %v1056
        %v1453 = vpack.c.b16 %v1061, %v1057
        %v1454 = vpack.c.b16 %v1062, %v1058
        %v1455 = vpack.c.b16 %v1063, %v1059
        %v1456 = vpack.c.b16 %v1068, %v1064
        %v1457 = vpack.c.b16 %v1069, %v1065
        %v1458 = vpack.c.b16 %v1070, %v1066
        %v1459 = vpack.c.b16 %v1071, %v1067
        %v1460 = vpack.c.b16 %v1076, %v1072
        %v1461 = vpack.c.b16 %v1077, %v1073
        %v1462 = vpack.c.b16 %v1078, %v1074
        %v1463 = vpack.c.b16 %v1079, %v1075
        %v1464 = vpack.c.b16 %v1084, %v1080
        %v1465 = vpack.c.b16 %v1085, %v1081
        %v1466 = vpack.c.b16 %v1086, %v1082
        %v1467 = vpack.c.b16 %v1087, %v1083
        %v1468 = vpack.c.b16 %v1092, %v1088
        %v1469 = vpack.c.b16 %v1093, %v1089
        %v1470 = vpack.c.b16 %v1094, %v1090
        %v1471 = vpack.c.b16 %v1095, %v1091
        %v1472 = vpack.c.b16 %v1100, %v1096
        %v1473 = vpack.c.b16 %v1101, %v1097
        %v1474 = vpack.c.b16 %v1102, %v1098
        %v1475 = vpack.c.b16 %v1103, %v1099
        %v1476 = vpack.c.b16 %v1108, %v1104
        %v1477 = vpack.c.b16 %v1109, %v1105
        %v1478 = vpack.c.b16 %v1110, %v1106
        %v1479 = vpack.c.b16 %v1111, %v1107
        %v1480 = vpack.c.b16 %v1116, %v1112
        %v1481 = vpack.c.b16 %v1117, %v1113
        %v1482 = vpack.c.b16 %v1118, %v1114
        %v1483 = vpack.c.b16 %v1119, %v1115
        %v1484 = vpack.c.b16 %v1124, %v1120
        %v1485 = vpack.c.b16 %v1125, %v1121
        %v1486 = vpack.c.b16 %v1126, %v1122
        %v1487 = vpack.c.b16 %v1127, %v1123
        %v1488 = vpack.c.b16 %v1132, %v1128
        %v1489 = vpack.c.b16 %v1133, %v1129
        %v1490 = vpack.c.b16 %v1134, %v1130
        %v1491 = vpack.c.b16 %v1135, %v1131
        %v1492 = vpack.c.b16 %v1140, %v1136
        %v1493 = vpack.c.b16 %v1141, %v1137
        %v1494 = vpack.c.b16 %v1142, %v1138
        %v1495 = vpack.c.b16 %v1143, %v1139
        %v1496 = vpack.c.b16 %v1148, %v1144
        %v1497 = vpack.c.b16 %v1149, %v1145
        %v1498 = vpack.c.b16 %v1150, %v1146
        %v1499 = vpack.c.b16 %v1151, %v1147
        %v1500 = vpack.c.b16 %v1156, %v1152
        %v1501 = vpack.c.b16 %v1157, %v1153
        %v1502 = vpack.c.b16 %v1158, %v1154
        %v1503 = vpack.c.b16 %v1159, %v1155
        %v1504 = vpack.c.b16 %v1164, %v1160
        %v1505 = vpack.c.b16 %v1165, %v1161
        %v1506 = vpack.c.b16 %v1166, %v1162
        %v1507 = vpack.c.b16 %v1167, %v1163
        %v1508 = vpack.c.b16 %v1172, %v1168
        %v1509 = vpack.c.b16 %v1173, %v1169
        %v1510 = vpack.c.b16 %v1174, %v1170
        %v1511 = vpack.c.b16 %v1175, %v1171
        %v1512 = vpack.c.b16 %v1180, %v1176
        %v1513 = vpack.c.b16 %v1181, %v1177
        %v1514 = vpack.c.b16 %v1182, %v1178
        %v1515 = vpack.c.b16 %v1183, %v1179
        %v1516 = vpack.c.b16 %v1188, %v1184
        %v1517 = vpack.c.b16 %v1189, %v1185
        %v1518 = vpack.c.b16 %v1190, %v1186
        %v1519 = vpack.c.b16 %v1191, %v1187
        %v1520 = vpack.c.b16 %v1196, %v1192
        %v1521 = vpack.c.b16 %v1197, %v1193
        %v1522 = vpack.c.b16 %v1198, %v1194
        %v1523 = vpack.c.b16 %v1199, %v1195
        %v1524 = vpack.c.b16 %v1204, %v1200
        %v1525 = vpack.c.b16 %v1205, %v1201
        %v1526 = vpack.c.b16 %v1206, %v1202
        %v1527 = vpack.c.b16 %v1207, %v1203
        %v1528 = vpack.c.b16 %v1212, %v1208
        %v1529 = vpack.c.b16 %v1213, %v1209
        %v1530 = vpack.c.b16 %v1214, %v1210
        %v1531 = vpack.c.b16 %v1215, %v1211
        %v1532 = vpack.c.b16 %v1220, %v1216
        %v1533 = vpack.c.b16 %v1221, %v1217
        %v1534 = vpack.c.b16 %v1222, %v1218
        %v1535 = vpack.c.b16 %v1223, %v1219
        %v1536 = vpack.c.b16 %v1228, %v1224
        %v1537 = vpack.c.b16 %v1229, %v1225
        %v1538 = vpack.c.b16 %v1230, %v1226
        %v1539 = vpack.c.b16 %v1231, %v1227
        %v1540 = vpack.c.b16 %v1236, %v1232
        %v1541 = vpack.c.b16 %v1237, %v1233
        %v1542 = vpack.c.b16 %v1238, %v1234
        %v1543 = vpack.c.b16 %v1239, %v1235
        %v1544 = vpack.c.b16 %v1244, %v1240
        %v1545 = vpack.c.b16 %v1245, %v1241
        %v1546 = vpack.c.b16 %v1246, %v1242
        %v1547 = vpack.c.b16 %v1247, %v1243
        %v1548 = vpack.c.b16 %v1252, %v1248
        %v1549 = vpack.c.b16 %v1253, %v1249
        %v1550 = vpack.c.b16 %v1254, %v1250
        %v1551 = vpack.c.b16 %v1255, %v1251
        %v1552 = vpack.c.b16 %v1260, %v1256
        %v1553 = vpack.c.b16 %v1261, %v1257
        %v1554 = vpack.c.b16 %v1262, %v1258
        %v1555 = vpack.c.b16 %v1263, %v1259
        %v1556 = vpack.c.b16 %v1268, %v1264
        %v1557 = vpack.c.b16 %v1269, %v1265
        %v1558 = vpack.c.b16 %v1270, %v1266
        %v1559 = vpack.c.b16 %v1271, %v1267
        %v1560 = vpack.c.b16 %v1276, %v1272
        %v1561 = vpack.c.b16 %v1277, %v1273
        %v1562 = vpack.c.b16 %v1278, %v1274
        %v1563 = vpack.c.b16 %v1279, %v1275
        %v1564 = vpack.c.b16 %v1284, %v1280
        %v1565 = vpack.c.b16 %v1285, %v1281
        %v1566 = vpack.c.b16 %v1286, %v1282
        %v1567 = vpack.c.b16 %v1287, %v1283
        %v1568 = vpack.c.b16 %v1292, %v1288
        %v1569 = vpack.c.b16 %v1293, %v1289
        %v1570 = vpack.c.b16 %v1294, %v1290
        %v1571 = vpack.c.b16 %v1295, %v1291
        %v1572 = vpack.c.b16 %v1300, %v1296
        %v1573 = vpack.c.b16 %v1301, %v1297
        %v1574 = vpack.c.b16 %v1302, %v1298
        %v1575 = vpack.c.b16 %v1303, %v1299
        %v1576 = vpack.c.b16 %v1308, %v1304
        %v1577 = vpack.c.b16 %v1309, %v1305
        %v1578 = vpack.c.b16 %v1310, %v1306
        %v1579 = vpack.c.b16 %v1311, %v1307
        %v1580 = vpack.c.b16 %v1316, %v1312
        %v1581 = vpack.c.b16 %v1317, %v1313
        %v1582 = vpack.c.b16 %v1318, %v1314
        %v1583 = vpack.c.b16 %v1319, %v1315
        %v1584 = vpack.c.b16 %v1324, %v1320
        %v1585 = vpack.c.b16 %v1325, %v1321
        %v1586 = vpack.c.b16 %v1326, %v1322
        %v1587 = vpack.c.b16 %v1327, %v1323
        %v1588 = vpack.c.b16 %v1332, %v1328
        %v1589 = vpack.c.b16 %v1333, %v1329
        %v1590 = vpack.c.b16 %v1334, %v1330
        %v1591 = vpack.c.b16 %v1335, %v1331
        %v1592 = vpack.c.b16 %v1340, %v1336
        %v1593 = vpack.c.b16 %v1341, %v1337
        %v1594 = vpack.c.b16 %v1342, %v1338
        %v1595 = vpack.c.b16 %v1343, %v1339
        %v1596 = vpack.c.b16 %v1348, %v1344
        %v1597 = vpack.c.b16 %v1349, %v1345
        %v1598 = vpack.c.b16 %v1350, %v1346
        %v1599 = vpack.c.b16 %v1351, %v1347
        %v1600 = vpack.c.b16 %v1356, %v1352
        %v1601 = vpack.c.b16 %v1357, %v1353
        %v1602 = vpack.c.b16 %v1358, %v1354
        %v1603 = vpack.c.b16 %v1359, %v1355
        %v1604 = vpack.c.b16 %v1364, %v1360
        %v1605 = vpack.c.b16 %v1365, %v1361
        %v1606 = vpack.c.b16 %v1366, %v1362
        %v1607 = vpack.c.b16 %v1367, %v1363
        %v1608 = vpack.c.b16 %v1372, %v1368
        %v1609 = vpack.c.b16 %v1373, %v1369
        %v1610 = vpack.c.b16 %v1374, %v1370
        %v1611 = vpack.c.b16 %v1375, %v1371
        %v1612 = vpack.c.b16 %v1380, %v1376
        %v1613 = vpack.c.b16 %v1381, %v1377
        %v1614 = vpack.c.b16 %v1382, %v1378
        %v1615 = vpack.c.b16 %v1383, %v1379
        %v1616 = vpack.c.b16 %v1388, %v1384
        %v1617 = vpack.c.b16 %v1389, %v1385
        %v1618 = vpack.c.b16 %v1390, %v1386
        %v1619 = vpack.c.b16 %v1391, %v1387
        %v1620 = vpack.c.b16 %v1396, %v1392
        %v1621 = vpack.c.b16 %v1397, %v1393
        %v1622 = vpack.c.b16 %v1398, %v1394
        %v1623 = vpack.c.b16 %v1399, %v1395
        %1848 = vmatprep.subr.bf16.mxu0 %v1401
        %1849 = vmatpush1.bf16.msra.mxu0 %v1400
        %1850 = vmatprep.subr.bf16.mxu0 %v1405
        %1851 = vmatpush1.bf16.msra.mxu0 %v1404
        %1852 = vmatprep.subr.bf16.mxu0 %v1409
        %1853 = vmatpush1.bf16.msra.mxu0 %v1408
        %1854 = vmatprep.subr.bf16.mxu0 %v1413
        %1855 = vmatpush1.bf16.msra.mxu0 %v1412
        %1856 = vmatprep.subr.bf16.mxu0 %v1417
        %1857 = vmatpush1.bf16.msra.mxu0 %v1416
        %1858 = vmatprep.subr.bf16.mxu0 %v1421
        %1859 = vmatpush1.bf16.msra.mxu0 %v1420
        %1860 = vmatprep.subr.bf16.mxu0 %v1425
        %1861 = vmatpush1.bf16.msra.mxu0 %v1424
        %1862 = vmatprep.subr.bf16.mxu0 %v1429
        %1863 = vmatpush1.bf16.msra.mxu0 %v1428
        %1864 = vmatprep.subr.bf16.mxu0 %v1433
        %1865 = vmatpush1.bf16.msra.mxu0 %v1432
        %1866 = vmatprep.subr.bf16.mxu0 %v1437
        %1867 = vmatpush1.bf16.msra.mxu0 %v1436
        %1868 = vmatprep.subr.bf16.mxu0 %v1441
        %1869 = vmatpush1.bf16.msra.mxu0 %v1440
        %1870 = vmatprep.subr.bf16.mxu0 %v1445
        %1871 = vmatpush1.bf16.msra.mxu0 %v1444
        %1872 = vmatprep.subr.bf16.mxu0 %v1449
        %1873 = vmatpush1.bf16.msra.mxu0 %v1448
        %1874 = vmatprep.subr.bf16.mxu0 %v1453
        %1875 = vmatpush1.bf16.msra.mxu0 %v1452
        %1876 = vmatprep.subr.bf16.mxu0 %v1457
        %1877 = vmatpush1.bf16.msra.mxu0 %v1456
        %1878 = vmatprep.subr.bf16.mxu0 %v1461
        %1879 = vmatpush1.bf16.msra.mxu0 %v1460
        %1880 = vmatprep.mubr.bf16.mxu0 %v715
        %1881 = vmatmul.mubr.bf16.gmra.mrb[0].mxu0 %v714
        %v1882 = vpop.f32.mrb[0].mxu0
        %v1883 = vadd.f32 %v679, %v1882
        %v1884 = vpop.f32.mrb[0].mxu0
        %v1885 = vadd.f32 %v683, %v1884
        %v1886 = vpop.f32.mrb[0].mxu0
        %v1887 = vadd.f32 %v679, %v1886
        %v1888 = vpop.f32.mrb[0].mxu0
        %v1889 = vadd.f32 %v683, %v1888
        %1890 = vdwg.mxu0
        %1891 = vmatprep.subr.bf16.mxu0 %v1465
        %1892 = vmatpush1.bf16.msra.mxu0 %v1464
        %1893 = vmatprep.subr.bf16.mxu0 %v1469
        %1894 = vmatpush1.bf16.msra.mxu0 %v1468
        %1895 = vmatprep.subr.bf16.mxu0 %v1473
        %1896 = vmatpush1.bf16.msra.mxu0 %v1472
        %1897 = vmatprep.subr.bf16.mxu0 %v1477
        %1898 = vmatpush1.bf16.msra.mxu0 %v1476
        %1899 = vmatprep.subr.bf16.mxu0 %v1481
        %1900 = vmatpush1.bf16.msra.mxu0 %v1480
        %1901 = vmatprep.subr.bf16.mxu0 %v1485
        %1902 = vmatpush1.bf16.msra.mxu0 %v1484
        %1903 = vmatprep.subr.bf16.mxu0 %v1489
        %1904 = vmatpush1.bf16.msra.mxu0 %v1488
        %1905 = vmatprep.subr.bf16.mxu0 %v1493
        %1906 = vmatpush1.bf16.msra.mxu0 %v1492
        %1907 = vmatprep.subr.bf16.mxu0 %v1497
        %1908 = vmatpush1.bf16.msra.mxu0 %v1496
        %1909 = vmatprep.subr.bf16.mxu0 %v1501
        %1910 = vmatpush1.bf16.msra.mxu0 %v1500
        %1911 = vmatprep.subr.bf16.mxu0 %v1505
        %1912 = vmatpush1.bf16.msra.mxu0 %v1504
        %1913 = vmatprep.subr.bf16.mxu0 %v1509
        %1914 = vmatpush1.bf16.msra.mxu0 %v1508
        %1915 = vmatprep.subr.bf16.mxu0 %v1513
        %1916 = vmatpush1.bf16.msra.mxu0 %v1512
        %1917 = vmatprep.subr.bf16.mxu0 %v1517
        %1918 = vmatpush1.bf16.msra.mxu0 %v1516
        %1919 = vmatprep.subr.bf16.mxu0 %v1521
        %1920 = vmatpush1.bf16.msra.mxu0 %v1520
        %1921 = vmatprep.subr.bf16.mxu0 %v1525
        %1922 = vmatpush1.bf16.msra.mxu0 %v1524
        %1923 = vmatprep.mubr.bf16.mxu0 %v717
        %1924 = vmatmul.mubr.bf16.gmra.mrb[0].mxu0 %v716
        %v1925 = vpop.f32.mrb[0].mxu0
        %v1926 = vadd.f32 %v1883, %v1925
        %v1927 = vpop.f32.mrb[0].mxu0
        %v1928 = vadd.f32 %v1885, %v1927
        %v1929 = vpop.f32.mrb[0].mxu0
        %v1930 = vadd.f32 %v1887, %v1929
        %v1931 = vpop.f32.mrb[0].mxu0
        %v1932 = vadd.f32 %v1889, %v1931
        %1933 = vdwg.mxu0
        %1934 = vmatprep.subr.bf16.mxu0 %v1529
        %1935 = vmatpush1.bf16.msra.mxu0 %v1528
        %1936 = vmatprep.subr.bf16.mxu0 %v1533
        %1937 = vmatpush1.bf16.msra.mxu0 %v1532
        %1938 = vmatprep.subr.bf16.mxu0 %v1537
        %1939 = vmatpush1.bf16.msra.mxu0 %v1536
        %1940 = vmatprep.subr.bf16.mxu0 %v1541
        %1941 = vmatpush1.bf16.msra.mxu0 %v1540
        %1942 = vmatprep.subr.bf16.mxu0 %v1545
        %1943 = vmatpush1.bf16.msra.mxu0 %v1544
        %1944 = vmatprep.subr.bf16.mxu0 %v1549
        %1945 = vmatpush1.bf16.msra.mxu0 %v1548
        %1946 = vmatprep.subr.bf16.mxu0 %v1553
        %1947 = vmatpush1.bf16.msra.mxu0 %v1552
        %1948 = vmatprep.subr.bf16.mxu0 %v1557
        %1949 = vmatpush1.bf16.msra.mxu0 %v1556
        %1950 = vmatprep.subr.bf16.mxu0 %v1561
        %1951 = vmatpush1.bf16.msra.mxu0 %v1560
        %1952 = vmatprep.subr.bf16.mxu0 %v1565
        %1953 = vmatpush1.bf16.msra.mxu0 %v1564
        %1954 = vmatprep.subr.bf16.mxu0 %v1569
        %1955 = vmatpush1.bf16.msra.mxu0 %v1568
        %1956 = vmatprep.subr.bf16.mxu0 %v1573
        %1957 = vmatpush1.bf16.msra.mxu0 %v1572
        %1958 = vmatprep.subr.bf16.mxu0 %v1577
        %1959 = vmatpush1.bf16.msra.mxu0 %v1576
        %1960 = vmatprep.subr.bf16.mxu0 %v1581
        %1961 = vmatpush1.bf16.msra.mxu0 %v1580
        %1962 = vmatprep.subr.bf16.mxu0 %v1585
        %1963 = vmatpush1.bf16.msra.mxu0 %v1584
        %1964 = vmatprep.subr.bf16.mxu0 %v1589
        %1965 = vmatpush1.bf16.msra.mxu0 %v1588
        %1966 = vmatprep.mubr.bf16.mxu0 %v719
        %1967 = vmatmul.mubr.bf16.gmra.mrb[0].mxu0 %v718
        %v1968 = vpop.f32.mrb[0].mxu0
        %v1969 = vadd.f32 %v1926, %v1968
        %v1970 = vpop.f32.mrb[0].mxu0
        %v1971 = vadd.f32 %v1928, %v1970
        %v1972 = vpop.f32.mrb[0].mxu0
        %v1973 = vadd.f32 %v1930, %v1972
        %v1974 = vpop.f32.mrb[0].mxu0
        %v1975 = vadd.f32 %v1932, %v1974
        %1976 = vdwg.mxu0
        %1977 = vmatprep.subr.bf16.mxu0 %v1593
        %1978 = vmatpush1.bf16.msra.mxu0 %v1592
        %1979 = vmatprep.subr.bf16.mxu0 %v1597
        %1980 = vmatpush1.bf16.msra.mxu0 %v1596
        %1981 = vmatprep.subr.bf16.mxu0 %v1601
        %1982 = vmatpush1.bf16.msra.mxu0 %v1600
        %1983 = vmatprep.subr.bf16.mxu0 %v1605
        %1984 = vmatpush1.bf16.msra.mxu0 %v1604
        %1985 = vmatprep.subr.bf16.mxu0 %v1609
        %1986 = vmatpush1.bf16.msra.mxu0 %v1608
        %1987 = vmatprep.subr.bf16.mxu0 %v1613
        %1988 = vmatpush1.bf16.msra.mxu0 %v1612
        %1989 = vmatprep.subr.bf16.mxu0 %v1617
        %1990 = vmatpush1.bf16.msra.mxu0 %v1616
        %1991 = vmatprep.subr.bf16.mxu0 %v1621
        %1992 = vmatpush1.bf16.msra.mxu0 %v1620
        %1993 = vmatprep.subr.bf16.mxu0 0
        %1994 = vmatpush1.bf16.msra.mxu0 0
        %1995 = vmatprep.subr.bf16.mxu0 0
        %1996 = vmatpush1.bf16.msra.mxu0 0
        %1997 = vmatprep.subr.bf16.mxu0 0
        %1998 = vmatpush1.bf16.msra.mxu0 0
        %1999 = vmatprep.subr.bf16.mxu0 0
        %2000 = vmatpush1.bf16.msra.mxu0 0
        %2001 = vmatprep.subr.bf16.mxu0 0
        %2002 = vmatpush1.bf16.msra.mxu0 0
        %2003 = vmatprep.subr.bf16.mxu0 0
        %2004 = vmatpush1.bf16.msra.mxu0 0
        %2005 = vmatprep.subr.bf16.mxu0 0
        %2006 = vmatpush1.bf16.msra.mxu0 0
        %2007 = vmatprep.subr.bf16.mxu0 0
        %2008 = vmatpush1.bf16.msra.mxu0 0
        %2009 = vmatprep.mubr.bf16.mxu0 0
        %2010 = vmatmul.mubr.bf16.gmra.mrb[0].mxu0 %v720
        %v2011 = vpop.f32.mrb[0].mxu0
        %v2012 = vadd.f32 %v1969, %v2011
        %v2013 = vpop.f32.mrb[0].mxu0
        %v2014 = vadd.f32 %v1971, %v2013
        %v2015 = vpop.f32.mrb[0].mxu0
        %v2016 = vadd.f32 %v1973, %v2015
        %v2017 = vpop.f32.mrb[0].mxu0
        %v2018 = vadd.f32 %v1975, %v2017
        %2019 = vdwg.mxu0
        %2020 = vmatprep.subr.bf16.mxu0 %v1403
        %2021 = vmatpush1.bf16.msra.mxu0 %v1402
        %2022 = vmatprep.subr.bf16.mxu0 %v1407
        %2023 = vmatpush1.bf16.msra.mxu0 %v1406
        %2024 = vmatprep.subr.bf16.mxu0 %v1411
        %2025 = vmatpush1.bf16.msra.mxu0 %v1410
        %2026 = vmatprep.subr.bf16.mxu0 %v1415
        %2027 = vmatpush1.bf16.msra.mxu0 %v1414
        %2028 = vmatprep.subr.bf16.mxu0 %v1419
        %2029 = vmatpush1.bf16.msra.mxu0 %v1418
        %2030 = vmatprep.subr.bf16.mxu0 %v1423
        %2031 = vmatpush1.bf16.msra.mxu0 %v1422
        %2032 = vmatprep.subr.bf16.mxu0 %v1427
        %2033 = vmatpush1.bf16.msra.mxu0 %v1426
        %2034 = vmatprep.subr.bf16.mxu0 %v1431
        %2035 = vmatpush1.bf16.msra.mxu0 %v1430
        %2036 = vmatprep.subr.bf16.mxu0 %v1435
        %2037 = vmatpush1.bf16.msra.mxu0 %v1434
        %2038 = vmatprep.subr.bf16.mxu0 %v1439
        %2039 = vmatpush1.bf16.msra.mxu0 %v1438
        %2040 = vmatprep.subr.bf16.mxu0 %v1443
        %2041 = vmatpush1.bf16.msra.mxu0 %v1442
        %2042 = vmatprep.subr.bf16.mxu0 %v1447
        %2043 = vmatpush1.bf16.msra.mxu0 %v1446
        %2044 = vmatprep.subr.bf16.mxu0 %v1451
        %2045 = vmatpush1.bf16.msra.mxu0 %v1450
        %2046 = vmatprep.subr.bf16.mxu0 %v1455
        %2047 = vmatpush1.bf16.msra.mxu0 %v1454
        %2048 = vmatprep.subr.bf16.mxu0 %v1459
        %2049 = vmatpush1.bf16.msra.mxu0 %v1458
        %2050 = vmatprep.subr.bf16.mxu0 %v1463
        %2051 = vmatpush1.bf16.msra.mxu0 %v1462
        %2052 = vmatprep.mubr.bf16.mxu0 %v715
        %2053 = vmatmul.mubr.bf16.gmra.mrb[0].mxu0 %v714
        %v2054 = vpop.f32.mrb[0].mxu0
        %v2055 = vadd.f32 %v687, %v2054
        %v2056 = vpop.f32.mrb[0].mxu0
        %v2057 = vadd.f32 %v691, %v2056
        %v2058 = vpop.f32.mrb[0].mxu0
        %v2059 = vadd.f32 %v687, %v2058
        %v2060 = vpop.f32.mrb[0].mxu0
        %v2061 = vadd.f32 %v691, %v2060
        %2062 = vdwg.mxu0
        %2063 = vmatprep.subr.bf16.mxu0 %v1467
        %2064 = vmatpush1.bf16.msra.mxu0 %v1466
        %2065 = vmatprep.subr.bf16.mxu0 %v1471
        %2066 = vmatpush1.bf16.msra.mxu0 %v1470
        %2067 = vmatprep.subr.bf16.mxu0 %v1475
        %2068 = vmatpush1.bf16.msra.mxu0 %v1474
        %2069 = vmatprep.subr.bf16.mxu0 %v1479
        %2070 = vmatpush1.bf16.msra.mxu0 %v1478
        %2071 = vmatprep.subr.bf16.mxu0 %v1483
        %2072 = vmatpush1.bf16.msra.mxu0 %v1482
        %2073 = vmatprep.subr.bf16.mxu0 %v1487
        %2074 = vmatpush1.bf16.msra.mxu0 %v1486
        %2075 = vmatprep.subr.bf16.mxu0 %v1491
        %2076 = vmatpush1.bf16.msra.mxu0 %v1490
        %2077 = vmatprep.subr.bf16.mxu0 %v1495
        %2078 = vmatpush1.bf16.msra.mxu0 %v1494
        %2079 = vmatprep.subr.bf16.mxu0 %v1499
        %2080 = vmatpush1.bf16.msra.mxu0 %v1498
        %2081 = vmatprep.subr.bf16.mxu0 %v1503
        %2082 = vmatpush1.bf16.msra.mxu0 %v1502
        %2083 = vmatprep.subr.bf16.mxu0 %v1507
        %2084 = vmatpush1.bf16.msra.mxu0 %v1506
        %2085 = vmatprep.subr.bf16.mxu0 %v1511
        %2086 = vmatpush1.bf16.msra.mxu0 %v1510
        %2087 = vmatprep.subr.bf16.mxu0 %v1515
        %2088 = vmatpush1.bf16.msra.mxu0 %v1514
        %2089 = vmatprep.subr.bf16.mxu0 %v1519
        %2090 = vmatpush1.bf16.msra.mxu0 %v1518
        %2091 = vmatprep.subr.bf16.mxu0 %v1523
        %2092 = vmatpush1.bf16.msra.mxu0 %v1522
        %2093 = vmatprep.subr.bf16.mxu0 %v1527
        %2094 = vmatpush1.bf16.msra.mxu0 %v1526
        %2095 = vmatprep.mubr.bf16.mxu0 %v717
        %2096 = vmatmul.mubr.bf16.gmra.mrb[0].mxu0 %v716
        %v2097 = vpop.f32.mrb[0].mxu0
        %v2098 = vadd.f32 %v2055, %v2097
        %v2099 = vpop.f32.mrb[0].mxu0
        %v2100 = vadd.f32 %v2057, %v2099
        %v2101 = vpop.f32.mrb[0].mxu0
        %v2102 = vadd.f32 %v2059, %v2101
        %v2103 = vpop.f32.mrb[0].mxu0
        %v2104 = vadd.f32 %v2061, %v2103
        %2105 = vdwg.mxu0
        %2106 = vmatprep.subr.bf16.mxu0 %v1531
        %2107 = vmatpush1.bf16.msra.mxu0 %v1530
        %2108 = vmatprep.subr.bf16.mxu0 %v1535
        %2109 = vmatpush1.bf16.msra.mxu0 %v1534
        %2110 = vmatprep.subr.bf16.mxu0 %v1539
        %2111 = vmatpush1.bf16.msra.mxu0 %v1538
        %2112 = vmatprep.subr.bf16.mxu0 %v1543
        %2113 = vmatpush1.bf16.msra.mxu0 %v1542
        %2114 = vmatprep.subr.bf16.mxu0 %v1547
        %2115 = vmatpush1.bf16.msra.mxu0 %v1546
        %2116 = vmatprep.subr.bf16.mxu0 %v1551
        %2117 = vmatpush1.bf16.msra.mxu0 %v1550
        %2118 = vmatprep.subr.bf16.mxu0 %v1555
        %2119 = vmatpush1.bf16.msra.mxu0 %v1554
        %2120 = vmatprep.subr.bf16.mxu0 %v1559
        %2121 = vmatpush1.bf16.msra.mxu0 %v1558
        %2122 = vmatprep.subr.bf16.mxu0 %v1563
        %2123 = vmatpush1.bf16.msra.mxu0 %v1562
        %2124 = vmatprep.subr.bf16.mxu0 %v1567
        %2125 = vmatpush1.bf16.msra.mxu0 %v1566
        %2126 = vmatprep.subr.bf16.mxu0 %v1571
        %2127 = vmatpush1.bf16.msra.mxu0 %v1570
        %2128 = vmatprep.subr.bf16.mxu0 %v1575
        %2129 = vmatpush1.bf16.msra.mxu0 %v1574
        %2130 = vmatprep.subr.bf16.mxu0 %v1579
        %2131 = vmatpush1.bf16.msra.mxu0 %v1578
        %2132 = vmatprep.subr.bf16.mxu0 %v1583
        %2133 = vmatpush1.bf16.msra.mxu0 %v1582
        %2134 = vmatprep.subr.bf16.mxu0 %v1587
        %2135 = vmatpush1.bf16.msra.mxu0 %v1586
        %2136 = vmatprep.subr.bf16.mxu0 %v1591
        %2137 = vmatpush1.bf16.msra.mxu0 %v1590
        %2138 = vmatprep.mubr.bf16.mxu0 %v719
        %2139 = vmatmul.mubr.bf16.gmra.mrb[0].mxu0 %v718
        %v2140 = vpop.f32.mrb[0].mxu0
        %v2141 = vadd.f32 %v2098, %v2140
        %v2142 = vpop.f32.mrb[0].mxu0
        %v2143 = vadd.f32 %v2100, %v2142
        %v2144 = vpop.f32.mrb[0].mxu0
        %v2145 = vadd.f32 %v2102, %v2144
        %v2146 = vpop.f32.mrb[0].mxu0
        %v2147 = vadd.f32 %v2104, %v2146
        %2148 = vdwg.mxu0
        %2149 = vmatprep.subr.bf16.mxu0 %v1595
        %2150 = vmatpush1.bf16.msra.mxu0 %v1594
        %2151 = vmatprep.subr.bf16.mxu0 %v1599
        %2152 = vmatpush1.bf16.msra.mxu0 %v1598
        %2153 = vmatprep.subr.bf16.mxu0 %v1603
        %2154 = vmatpush1.bf16.msra.mxu0 %v1602
        %2155 = vmatprep.subr.bf16.mxu0 %v1607
        %2156 = vmatpush1.bf16.msra.mxu0 %v1606
        %2157 = vmatprep.subr.bf16.mxu0 %v1611
        %2158 = vmatpush1.bf16.msra.mxu0 %v1610
        %2159 = vmatprep.subr.bf16.mxu0 %v1615
        %2160 = vmatpush1.bf16.msra.mxu0 %v1614
        %2161 = vmatprep.subr.bf16.mxu0 %v1619
        %2162 = vmatpush1.bf16.msra.mxu0 %v1618
        %2163 = vmatprep.subr.bf16.mxu0 %v1623
        %2164 = vmatpush1.bf16.msra.mxu0 %v1622
        %2165 = vmatprep.subr.bf16.mxu0 0
        %2166 = vmatpush1.bf16.msra.mxu0 0
        %2167 = vmatprep.subr.bf16.mxu0 0
        %2168 = vmatpush1.bf16.msra.mxu0 0
        %2169 = vmatprep.subr.bf16.mxu0 0
        %2170 = vmatpush1.bf16.msra.mxu0 0
        %2171 = vmatprep.subr.bf16.mxu0 0
        %2172 = vmatpush1.bf16.msra.mxu0 0
        %2173 = vmatprep.subr.bf16.mxu0 0
        %2174 = vmatpush1.bf16.msra.mxu0 0
        %2175 = vmatprep.subr.bf16.mxu0 0
        %2176 = vmatpush1.bf16.msra.mxu0 0
        %2177 = vmatprep.subr.bf16.mxu0 0
        %2178 = vmatpush1.bf16.msra.mxu0 0
        %2179 = vmatprep.subr.bf16.mxu0 0
        %2180 = vmatpush1.bf16.msra.mxu0 0
        %2181 = vmatprep.mubr.bf16.mxu0 0
        %2182 = vmatmul.mubr.bf16.gmra.mrb[0].mxu0 %v720
        %v2183 = vpop.f32.mrb[0].mxu0
        %v2184 = vadd.f32 %v2141, %v2183
        %v2185 = vpop.f32.mrb[0].mxu0
        %v2186 = vadd.f32 %v2143, %v2185
        %v2187 = vpop.f32.mrb[0].mxu0
        %v2188 = vadd.f32 %v2145, %v2187
        %v2189 = vpop.f32.mrb[0].mxu0
        %v2190 = vadd.f32 %v2147, %v2189
        %2191 = vdwg.mxu0
        %v2192 = vmax.f32 %v2012, 0.0
        %v2193 = vmax.f32 %v2014, 0.0
        %v2194 = vmax.f32 %v2184, 0.0
        %v2195 = vmax.f32 %v2186, 0.0
        %v2196 = vmax.f32 %v2016, 0.0
        %v2197 = vmax.f32 %v2018, 0.0
        %v2198 = vmax.f32 %v2188, 0.0
        %v2199 = vmax.f32 %v2190, 0.0
        %v2200 = vpack.c.bf16 %v2196, %v2192
        %v2201 = vpack.c.bf16 %v2197, %v2193
        %v2202 = vpack.c.bf16 %v2198, %v2194
        %v2203 = vpack.c.bf16 %v2199, %v2195
        %v2204 = vld [vmem:[%s2] sm:$0xff]
        %v2205 = vld [vmem:[%s2 + $0x8] sm:$0xff]
        %v2206 = vld [vmem:[%s2 + $0x10] sm:$0xff]
        %v2207 = vld [vmem:[%s2 + $0x18] sm:$0xff]
        %v2208 = vld [vmem:[%s2 + $0x20] sm:$0xff]
        %v2209 = vld [vmem:[%s2 + $0x28] sm:$0xff]
        %v2210 = vld [vmem:[%s2 + $0x30] sm:$0xff]
        %v2211 = vld [vmem:[%s2 + $0x38] sm:$0xff]
        %v2212 = vld [vmem:[%s2 + $0x40] sm:$0xff]
        %v2213 = vld [vmem:[%s2 + $0x48] sm:$0xff]
        %v2214 = vld [vmem:[%s2 + $0x50] sm:$0xff]
        %v2215 = vld [vmem:[%s2 + $0x58] sm:$0xff]
        %v2216 = vld [vmem:[%s2 + $0x60] sm:$0xff]
        %v2217 = vld [vmem:[%s2 + $0x68] sm:$0xff]
        %v2218 = vld [vmem:[%s2 + $0x70] sm:$0xff]
        %v2219 = vld [vmem:[%s2 + $0x78] sm:$0xff]
        %v2220 = vld [vmem:[%s2 + $0x80] sm:$0xff]
        %v2221 = vld [vmem:[%s2 + $0x88] sm:$0xff]
        %v2222 = vld [vmem:[%s2 + $0x90] sm:$0xff]
        %v2223 = vld [vmem:[%s2 + $0x98] sm:$0xff]
        %v2224 = vld [vmem:[%s2 + $0xa0] sm:$0xff]
        %v2225 = vld [vmem:[%s2 + $0xa8] sm:$0xff]
        %v2226 = vld [vmem:[%s2 + $0xb0] sm:$0xff]
        %v2227 = vld [vmem:[%s2 + $0xb8] sm:$0xff]
        %v2228 = vld [vmem:[%s2 + $0xc0] sm:$0xff]
        %v2229 = vld [vmem:[%s2 + $0xc8] sm:$0xff]
        %v2230 = vld [vmem:[%s2 + $0xd0] sm:$0xff]
        %v2231 = vld [vmem:[%s2 + $0xd8] sm:$0xff]
        %v2232 = vld [vmem:[%s2 + $0xe0] sm:$0xff]
        %v2233 = vld [vmem:[%s2 + $0xe8] sm:$0xff]
        %v2234 = vld [vmem:[%s2 + $0xf0] sm:$0xff]
        %v2235 = vld [vmem:[%s2 + $0xf8] sm:$0xff]
        %v2236 = vld [vmem:[%s2 + $0x100] sm:$0xff]
        %v2237 = vld [vmem:[%s2 + $0x108] sm:$0xff]
        %v2238 = vld [vmem:[%s2 + $0x110] sm:$0xff]
        %v2239 = vld [vmem:[%s2 + $0x118] sm:$0xff]
        %v2240 = vld [vmem:[%s2 + $0x120] sm:$0xff]
        %v2241 = vld [vmem:[%s2 + $0x128] sm:$0xff]
        %v2242 = vld [vmem:[%s2 + $0x130] sm:$0xff]
        %v2243 = vld [vmem:[%s2 + $0x138] sm:$0xff]
        %v2244 = vld [vmem:[%s2 + $0x140] sm:$0xff]
        %v2245 = vld [vmem:[%s2 + $0x148] sm:$0xff]
        %v2246 = vld [vmem:[%s2 + $0x150] sm:$0xff]
        %v2247 = vld [vmem:[%s2 + $0x158] sm:$0xff]
        %v2248 = vld [vmem:[%s2 + $0x160] sm:$0xff]
        %v2249 = vld [vmem:[%s2 + $0x168] sm:$0xff]
        %v2250 = vld [vmem:[%s2 + $0x170] sm:$0xff]
        %v2251 = vld [vmem:[%s2 + $0x178] sm:$0xff]
        %v2252 = vld [vmem:[%s2 + $0x180] sm:$0xff]
        %v2253 = vld [vmem:[%s2 + $0x188] sm:$0xff]
        %v2254 = vld [vmem:[%s2 + $0x190] sm:$0xff]
        %v2255 = vld [vmem:[%s2 + $0x198] sm:$0xff]
        %v2256 = vld [vmem:[%s2 + $0x1a0] sm:$0xff]
        %v2257 = vld [vmem:[%s2 + $0x1a8] sm:$0xff]
        %v2258 = vld [vmem:[%s2 + $0x1b0] sm:$0xff]
        %v2259 = vld [vmem:[%s2 + $0x1b8] sm:$0xff]
        %v2260 = vld [vmem:[%s2 + $0x1c0] sm:$0xff]
        %v2261 = vld [vmem:[%s2 + $0x1c8] sm:$0xff]
        %v2262 = vld [vmem:[%s2 + $0x1d0] sm:$0xff]
        %v2263 = vld [vmem:[%s2 + $0x1d8] sm:$0xff]
        %v2264 = vld [vmem:[%s2 + $0x1e0] sm:$0xff]
        %v2265 = vld [vmem:[%s2 + $0x1e8] sm:$0xff]
        %v2266 = vld [vmem:[%s2 + $0x1f0] sm:$0xff]
        %v2267 = vld [vmem:[%s2 + $0x1f8] sm:$0xff]
        %v2268 = vld [vmem:[%s2 + $0x200] sm:$0xff]
        %v2269 = vld [vmem:[%s2 + $0x208] sm:$0xff]
        %v2270 = vld [vmem:[%s2 + $0x210] sm:$0xff]
        %v2271 = vld [vmem:[%s2 + $0x218] sm:$0xff]
        %v2272 = vld [vmem:[%s2 + $0x220] sm:$0xff]
        %v2273 = vld [vmem:[%s2 + $0x228] sm:$0xff]
        %v2274 = vld [vmem:[%s2 + $0x230] sm:$0xff]
        %v2275 = vld [vmem:[%s2 + $0x238] sm:$0xff]
        %v2276 = vld [vmem:[%s2 + $0x240] sm:$0xff]
        %v2277 = vld [vmem:[%s2 + $0x248] sm:$0xff]
        %v2278 = vld [vmem:[%s2 + $0x250] sm:$0xff]
        %v2279 = vld [vmem:[%s2 + $0x258] sm:$0xff]
        %v2280 = vld [vmem:[%s2 + $0x260] sm:$0xff]
        %v2281 = vld [vmem:[%s2 + $0x268] sm:$0xff]
        %v2282 = vld [vmem:[%s2 + $0x270] sm:$0xff]
        %v2283 = vld [vmem:[%s2 + $0x278] sm:$0xff]
        %v2284 = vld [vmem:[%s2 + $0x280] sm:$0xff]
        %v2285 = vld [vmem:[%s2 + $0x288] sm:$0xff]
        %v2286 = vld [vmem:[%s2 + $0x290] sm:$0xff]
        %v2287 = vld [vmem:[%s2 + $0x298] sm:$0xff]
        %v2288 = vld [vmem:[%s2 + $0x2a0] sm:$0xff]
        %v2289 = vld [vmem:[%s2 + $0x2a8] sm:$0xff]
        %v2290 = vld [vmem:[%s2 + $0x2b0] sm:$0xff]
        %v2291 = vld [vmem:[%s2 + $0x2b8] sm:$0xff]
        %v2292 = vld [vmem:[%s2 + $0x2c0] sm:$0xff]
        %v2293 = vld [vmem:[%s2 + $0x2c8] sm:$0xff]
        %v2294 = vld [vmem:[%s2 + $0x2d0] sm:$0xff]
        %v2295 = vld [vmem:[%s2 + $0x2d8] sm:$0xff]
        %v2296 = vld [vmem:[%s2 + $0x2e0] sm:$0xff]
        %v2297 = vld [vmem:[%s2 + $0x2e8] sm:$0xff]
        %v2298 = vld [vmem:[%s2 + $0x2f0] sm:$0xff]
        %v2299 = vld [vmem:[%s2 + $0x2f8] sm:$0xff]
        %v2300 = vld [vmem:[%s2 + $0x300] sm:$0xff]
        %v2301 = vld [vmem:[%s2 + $0x308] sm:$0xff]
        %v2302 = vld [vmem:[%s2 + $0x310] sm:$0xff]
        %v2303 = vld [vmem:[%s2 + $0x318] sm:$0xff]
        %v2304 = vld [vmem:[%s2 + $0x320] sm:$0xff]
        %v2305 = vld [vmem:[%s2 + $0x328] sm:$0xff]
        %v2306 = vld [vmem:[%s2 + $0x330] sm:$0xff]
        %v2307 = vld [vmem:[%s2 + $0x338] sm:$0xff]
        %v2308 = vld [vmem:[%s2 + $0x340] sm:$0xff]
        %v2309 = vld [vmem:[%s2 + $0x348] sm:$0xff]
        %v2310 = vld [vmem:[%s2 + $0x350] sm:$0xff]
        %v2311 = vld [vmem:[%s2 + $0x358] sm:$0xff]
        %v2312 = vld [vmem:[%s2 + $0x360] sm:$0xff]
        %v2313 = vld [vmem:[%s2 + $0x368] sm:$0xff]
        %v2314 = vld [vmem:[%s2 + $0x370] sm:$0xff]
        %v2315 = vld [vmem:[%s2 + $0x378] sm:$0xff]
        %v2316 = vld [vmem:[%s2 + $0x380] sm:$0xff]
        %v2317 = vld [vmem:[%s2 + $0x388] sm:$0xff]
        %v2318 = vld [vmem:[%s2 + $0x390] sm:$0xff]
        %v2319 = vld [vmem:[%s2 + $0x398] sm:$0xff]
        %v2320 = vld [vmem:[%s2 + $0x3a0] sm:$0xff]
        %v2321 = vld [vmem:[%s2 + $0x3a8] sm:$0xff]
        %v2322 = vld [vmem:[%s2 + $0x3b0] sm:$0xff]
        %v2323 = vld [vmem:[%s2 + $0x3b8] sm:$0xff]
        %v2324 = vld [vmem:[%s2 + $0x3c0] sm:$0xff]
        %v2325 = vld [vmem:[%s2 + $0x3c8] sm:$0xff]
        %v2326 = vld [vmem:[%s2 + $0x3d0] sm:$0xff]
        %v2327 = vld [vmem:[%s2 + $0x3d8] sm:$0xff]
        %v2328 = vld [vmem:[%s2 + $0x3e0] sm:$0xff]
        %v2329 = vld [vmem:[%s2 + $0x3e8] sm:$0xff]
        %v2330 = vld [vmem:[%s2 + $0x3f0] sm:$0xff]
        %v2331 = vld [vmem:[%s2 + $0x3f8] sm:$0xff]
        %v2332 = vlaneseq
        %v2333 = vshrl.u32 %v2332, 7
        %v2334 = vsub.s32 1, %v2333
        %v2335 = vrot.slane %v440, %v2334
        %v2336 = vlaneseq
        %v2337 = vshrl.u32 %v2336, 7
        %v2338 = vsub.s32 1, %v2337
        %v2339 = vrot.slane %v441, %v2338
        %v2340 = vlaneseq
        %v2341 = vshrl.u32 %v2340, 7
        %v2342 = vsub.s32 1, %v2341
        %v2343 = vrot.slane %v442, %v2342
        %v2344 = vlaneseq
        %v2345 = vshrl.u32 %v2344, 7
        %v2346 = vsub.s32 1, %v2345
        %v2347 = vrot.slane %v443, %v2346
        %v2476 = vunpack.c.l.b16 %v2204
        %v2477 = vunpack.c.h.b16 %v2204
        %v2478 = vunpack.c.l.b16 %v2205
        %v2479 = vunpack.c.h.b16 %v2205
        %v2480 = vunpack.c.l.b16 %v2206
        %v2481 = vunpack.c.h.b16 %v2206
        %v2482 = vunpack.c.l.b16 %v2207
        %v2483 = vunpack.c.h.b16 %v2207
        %v2484 = vunpack.c.l.b16 %v2208
        %v2485 = vunpack.c.h.b16 %v2208
        %v2486 = vunpack.c.l.b16 %v2209
        %v2487 = vunpack.c.h.b16 %v2209
        %v2488 = vunpack.c.l.b16 %v2210
        %v2489 = vunpack.c.h.b16 %v2210
        %v2490 = vunpack.c.l.b16 %v2211
        %v2491 = vunpack.c.h.b16 %v2211
        %v2492 = vunpack.c.l.b16 %v2212
        %v2493 = vunpack.c.h.b16 %v2212
        %v2494 = vunpack.c.l.b16 %v2213
        %v2495 = vunpack.c.h.b16 %v2213
        %v2496 = vunpack.c.l.b16 %v2214
        %v2497 = vunpack.c.h.b16 %v2214
        %v2498 = vunpack.c.l.b16 %v2215
        %v2499 = vunpack.c.h.b16 %v2215
        %v2500 = vunpack.c.l.b16 %v2216
        %v2501 = vunpack.c.h.b16 %v2216
        %v2502 = vunpack.c.l.b16 %v2217
        %v2503 = vunpack.c.h.b16 %v2217
        %v2504 = vunpack.c.l.b16 %v2218
        %v2505 = vunpack.c.h.b16 %v2218
        %v2506 = vunpack.c.l.b16 %v2219
        %v2507 = vunpack.c.h.b16 %v2219
        %v2508 = vunpack.c.l.b16 %v2220
        %v2509 = vunpack.c.h.b16 %v2220
        %v2510 = vunpack.c.l.b16 %v2221
        %v2511 = vunpack.c.h.b16 %v2221
        %v2512 = vunpack.c.l.b16 %v2222
        %v2513 = vunpack.c.h.b16 %v2222
        %v2514 = vunpack.c.l.b16 %v2223
        %v2515 = vunpack.c.h.b16 %v2223
        %v2516 = vunpack.c.l.b16 %v2224
        %v2517 = vunpack.c.h.b16 %v2224
        %v2518 = vunpack.c.l.b16 %v2225
        %v2519 = vunpack.c.h.b16 %v2225
        %v2520 = vunpack.c.l.b16 %v2226
        %v2521 = vunpack.c.h.b16 %v2226
        %v2522 = vunpack.c.l.b16 %v2227
        %v2523 = vunpack.c.h.b16 %v2227
        %v2524 = vunpack.c.l.b16 %v2228
        %v2525 = vunpack.c.h.b16 %v2228
        %v2526 = vunpack.c.l.b16 %v2229
        %v2527 = vunpack.c.h.b16 %v2229
        %v2528 = vunpack.c.l.b16 %v2230
        %v2529 = vunpack.c.h.b16 %v2230
        %v2530 = vunpack.c.l.b16 %v2231
        %v2531 = vunpack.c.h.b16 %v2231
        %v2532 = vunpack.c.l.b16 %v2232
        %v2533 = vunpack.c.h.b16 %v2232
        %v2534 = vunpack.c.l.b16 %v2233
        %v2535 = vunpack.c.h.b16 %v2233
        %v2536 = vunpack.c.l.b16 %v2234
        %v2537 = vunpack.c.h.b16 %v2234
        %v2538 = vunpack.c.l.b16 %v2235
        %v2539 = vunpack.c.h.b16 %v2235
        %v2540 = vunpack.c.l.b16 %v2236
        %v2541 = vunpack.c.h.b16 %v2236
        %v2542 = vunpack.c.l.b16 %v2237
        %v2543 = vunpack.c.h.b16 %v2237
        %v2544 = vunpack.c.l.b16 %v2238
        %v2545 = vunpack.c.h.b16 %v2238
        %v2546 = vunpack.c.l.b16 %v2239
        %v2547 = vunpack.c.h.b16 %v2239
        %v2548 = vunpack.c.l.b16 %v2240
        %v2549 = vunpack.c.h.b16 %v2240
        %v2550 = vunpack.c.l.b16 %v2241
        %v2551 = vunpack.c.h.b16 %v2241
        %v2552 = vunpack.c.l.b16 %v2242
        %v2553 = vunpack.c.h.b16 %v2242
        %v2554 = vunpack.c.l.b16 %v2243
        %v2555 = vunpack.c.h.b16 %v2243
        %v2556 = vunpack.c.l.b16 %v2244
        %v2557 = vunpack.c.h.b16 %v2244
        %v2558 = vunpack.c.l.b16 %v2245
        %v2559 = vunpack.c.h.b16 %v2245
        %v2560 = vunpack.c.l.b16 %v2246
        %v2561 = vunpack.c.h.b16 %v2246
        %v2562 = vunpack.c.l.b16 %v2247
        %v2563 = vunpack.c.h.b16 %v2247
        %v2564 = vunpack.c.l.b16 %v2248
        %v2565 = vunpack.c.h.b16 %v2248
        %v2566 = vunpack.c.l.b16 %v2249
        %v2567 = vunpack.c.h.b16 %v2249
        %v2568 = vunpack.c.l.b16 %v2250
        %v2569 = vunpack.c.h.b16 %v2250
        %v2570 = vunpack.c.l.b16 %v2251
        %v2571 = vunpack.c.h.b16 %v2251
        %v2572 = vunpack.c.l.b16 %v2252
        %v2573 = vunpack.c.h.b16 %v2252
        %v2574 = vunpack.c.l.b16 %v2253
        %v2575 = vunpack.c.h.b16 %v2253
        %v2576 = vunpack.c.l.b16 %v2254
        %v2577 = vunpack.c.h.b16 %v2254
        %v2578 = vunpack.c.l.b16 %v2255
        %v2579 = vunpack.c.h.b16 %v2255
        %v2580 = vunpack.c.l.b16 %v2256
        %v2581 = vunpack.c.h.b16 %v2256
        %v2582 = vunpack.c.l.b16 %v2257
        %v2583 = vunpack.c.h.b16 %v2257
        %v2584 = vunpack.c.l.b16 %v2258
        %v2585 = vunpack.c.h.b16 %v2258
        %v2586 = vunpack.c.l.b16 %v2259
        %v2587 = vunpack.c.h.b16 %v2259
        %v2588 = vunpack.c.l.b16 %v2260
        %v2589 = vunpack.c.h.b16 %v2260
        %v2590 = vunpack.c.l.b16 %v2261
        %v2591 = vunpack.c.h.b16 %v2261
        %v2592 = vunpack.c.l.b16 %v2262
        %v2593 = vunpack.c.h.b16 %v2262
        %v2594 = vunpack.c.l.b16 %v2263
        %v2595 = vunpack.c.h.b16 %v2263
        %v2596 = vunpack.c.l.b16 %v2264
        %v2597 = vunpack.c.h.b16 %v2264
        %v2598 = vunpack.c.l.b16 %v2265
        %v2599 = vunpack.c.h.b16 %v2265
        %v2600 = vunpack.c.l.b16 %v2266
        %v2601 = vunpack.c.h.b16 %v2266
        %v2602 = vunpack.c.l.b16 %v2267
        %v2603 = vunpack.c.h.b16 %v2267
        %v2604 = vunpack.c.l.b16 %v2268
        %v2605 = vunpack.c.h.b16 %v2268
        %v2606 = vunpack.c.l.b16 %v2269
        %v2607 = vunpack.c.h.b16 %v2269
        %v2608 = vunpack.c.l.b16 %v2270
        %v2609 = vunpack.c.h.b16 %v2270
        %v2610 = vunpack.c.l.b16 %v2271
        %v2611 = vunpack.c.h.b16 %v2271
        %v2612 = vunpack.c.l.b16 %v2272
        %v2613 = vunpack.c.h.b16 %v2272
        %v2614 = vunpack.c.l.b16 %v2273
        %v2615 = vunpack.c.h.b16 %v2273
        %v2616 = vunpack.c.l.b16 %v2274
        %v2617 = vunpack.c.h.b16 %v2274
        %v2618 = vunpack.c.l.b16 %v2275
        %v2619 = vunpack.c.h.b16 %v2275
        %v2620 = vunpack.c.l.b16 %v2276
        %v2621 = vunpack.c.h.b16 %v2276
        %v2622 = vunpack.c.l.b16 %v2277
        %v2623 = vunpack.c.h.b16 %v2277
        %v2624 = vunpack.c.l.b16 %v2278
        %v2625 = vunpack.c.h.b16 %v2278
        %v2626 = vunpack.c.l.b16 %v2279
        %v2627 = vunpack.c.h.b16 %v2279
        %v2628 = vunpack.c.l.b16 %v2280
        %v2629 = vunpack.c.h.b16 %v2280
        %v2630 = vunpack.c.l.b16 %v2281
        %v2631 = vunpack.c.h.b16 %v2281
        %v2632 = vunpack.c.l.b16 %v2282
        %v2633 = vunpack.c.h.b16 %v2282
        %v2634 = vunpack.c.l.b16 %v2283
        %v2635 = vunpack.c.h.b16 %v2283
        %v2636 = vunpack.c.l.b16 %v2284
        %v2637 = vunpack.c.h.b16 %v2284
        %v2638 = vunpack.c.l.b16 %v2285
        %v2639 = vunpack.c.h.b16 %v2285
        %v2640 = vunpack.c.l.b16 %v2286
        %v2641 = vunpack.c.h.b16 %v2286
        %v2642 = vunpack.c.l.b16 %v2287
        %v2643 = vunpack.c.h.b16 %v2287
        %v2644 = vunpack.c.l.b16 %v2288
        %v2645 = vunpack.c.h.b16 %v2288
        %v2646 = vunpack.c.l.b16 %v2289
        %v2647 = vunpack.c.h.b16 %v2289
        %v2648 = vunpack.c.l.b16 %v2290
        %v2649 = vunpack.c.h.b16 %v2290
        %v2650 = vunpack.c.l.b16 %v2291
        %v2651 = vunpack.c.h.b16 %v2291
        %v2652 = vunpack.c.l.b16 %v2292
        %v2653 = vunpack.c.h.b16 %v2292
        %v2654 = vunpack.c.l.b16 %v2293
        %v2655 = vunpack.c.h.b16 %v2293
        %v2656 = vunpack.c.l.b16 %v2294
        %v2657 = vunpack.c.h.b16 %v2294
        %v2658 = vunpack.c.l.b16 %v2295
        %v2659 = vunpack.c.h.b16 %v2295
        %v2660 = vunpack.c.l.b16 %v2296
        %v2661 = vunpack.c.h.b16 %v2296
        %v2662 = vunpack.c.l.b16 %v2297
        %v2663 = vunpack.c.h.b16 %v2297
        %v2664 = vunpack.c.l.b16 %v2298
        %v2665 = vunpack.c.h.b16 %v2298
        %v2666 = vunpack.c.l.b16 %v2299
        %v2667 = vunpack.c.h.b16 %v2299
        %v2668 = vunpack.c.l.b16 %v2300
        %v2669 = vunpack.c.h.b16 %v2300
        %v2670 = vunpack.c.l.b16 %v2301
        %v2671 = vunpack.c.h.b16 %v2301
        %v2672 = vunpack.c.l.b16 %v2302
        %v2673 = vunpack.c.h.b16 %v2302
        %v2674 = vunpack.c.l.b16 %v2303
        %v2675 = vunpack.c.h.b16 %v2303
        %v2676 = vunpack.c.l.b16 %v2304
        %v2677 = vunpack.c.h.b16 %v2304
        %v2678 = vunpack.c.l.b16 %v2305
        %v2679 = vunpack.c.h.b16 %v2305
        %v2680 = vunpack.c.l.b16 %v2306
        %v2681 = vunpack.c.h.b16 %v2306
        %v2682 = vunpack.c.l.b16 %v2307
        %v2683 = vunpack.c.h.b16 %v2307
        %v2684 = vunpack.c.l.b16 %v2308
        %v2685 = vunpack.c.h.b16 %v2308
        %v2686 = vunpack.c.l.b16 %v2309
        %v2687 = vunpack.c.h.b16 %v2309
        %v2688 = vunpack.c.l.b16 %v2310
        %v2689 = vunpack.c.h.b16 %v2310
        %v2690 = vunpack.c.l.b16 %v2311
        %v2691 = vunpack.c.h.b16 %v2311
        %v2692 = vunpack.c.l.b16 %v2312
        %v2693 = vunpack.c.h.b16 %v2312
        %v2694 = vunpack.c.l.b16 %v2313
        %v2695 = vunpack.c.h.b16 %v2313
        %v2696 = vunpack.c.l.b16 %v2314
        %v2697 = vunpack.c.h.b16 %v2314
        %v2698 = vunpack.c.l.b16 %v2315
        %v2699 = vunpack.c.h.b16 %v2315
        %v2700 = vunpack.c.l.b16 %v2316
        %v2701 = vunpack.c.h.b16 %v2316
        %v2702 = vunpack.c.l.b16 %v2317
        %v2703 = vunpack.c.h.b16 %v2317
        %v2704 = vunpack.c.l.b16 %v2318
        %v2705 = vunpack.c.h.b16 %v2318
        %v2706 = vunpack.c.l.b16 %v2319
        %v2707 = vunpack.c.h.b16 %v2319
        %v2708 = vunpack.c.l.b16 %v2320
        %v2709 = vunpack.c.h.b16 %v2320
        %v2710 = vunpack.c.l.b16 %v2321
        %v2711 = vunpack.c.h.b16 %v2321
        %v2712 = vunpack.c.l.b16 %v2322
        %v2713 = vunpack.c.h.b16 %v2322
        %v2714 = vunpack.c.l.b16 %v2323
        %v2715 = vunpack.c.h.b16 %v2323
        %v2716 = vunpack.c.l.b16 %v2324
        %v2717 = vunpack.c.h.b16 %v2324
        %v2718 = vunpack.c.l.b16 %v2325
        %v2719 = vunpack.c.h.b16 %v2325
        %v2720 = vunpack.c.l.b16 %v2326
        %v2721 = vunpack.c.h.b16 %v2326
        %v2722 = vunpack.c.l.b16 %v2327
        %v2723 = vunpack.c.h.b16 %v2327
        %v2724 = vunpack.c.l.b16 %v2328
        %v2725 = vunpack.c.h.b16 %v2328
        %v2726 = vunpack.c.l.b16 %v2329
        %v2727 = vunpack.c.h.b16 %v2329
        %v2728 = vunpack.c.l.b16 %v2330
        %v2729 = vunpack.c.h.b16 %v2330
        %v2730 = vunpack.c.l.b16 %v2331
        %v2731 = vunpack.c.h.b16 %v2331
        %v2732 = vpack.c.b16 %v2480, %v2476
        %v2733 = vpack.c.b16 %v2481, %v2477
        %v2734 = vpack.c.b16 %v2482, %v2478
        %v2735 = vpack.c.b16 %v2483, %v2479
        %v2736 = vpack.c.b16 %v2488, %v2484
        %v2737 = vpack.c.b16 %v2489, %v2485
        %v2738 = vpack.c.b16 %v2490, %v2486
        %v2739 = vpack.c.b16 %v2491, %v2487
        %v2740 = vpack.c.b16 %v2496, %v2492
        %v2741 = vpack.c.b16 %v2497, %v2493
        %v2742 = vpack.c.b16 %v2498, %v2494
        %v2743 = vpack.c.b16 %v2499, %v2495
        %v2744 = vpack.c.b16 %v2504, %v2500
        %v2745 = vpack.c.b16 %v2505, %v2501
        %v2746 = vpack.c.b16 %v2506, %v2502
        %v2747 = vpack.c.b16 %v2507, %v2503
        %v2748 = vpack.c.b16 %v2512, %v2508
        %v2749 = vpack.c.b16 %v2513, %v2509
        %v2750 = vpack.c.b16 %v2514, %v2510
        %v2751 = vpack.c.b16 %v2515, %v2511
        %v2752 = vpack.c.b16 %v2520, %v2516
        %v2753 = vpack.c.b16 %v2521, %v2517
        %v2754 = vpack.c.b16 %v2522, %v2518
        %v2755 = vpack.c.b16 %v2523, %v2519
        %v2756 = vpack.c.b16 %v2528, %v2524
        %v2757 = vpack.c.b16 %v2529, %v2525
        %v2758 = vpack.c.b16 %v2530, %v2526
        %v2759 = vpack.c.b16 %v2531, %v2527
        %v2760 = vpack.c.b16 %v2536, %v2532
        %v2761 = vpack.c.b16 %v2537, %v2533
        %v2762 = vpack.c.b16 %v2538, %v2534
        %v2763 = vpack.c.b16 %v2539, %v2535
        %v2764 = vpack.c.b16 %v2544, %v2540
        %v2765 = vpack.c.b16 %v2545, %v2541
        %v2766 = vpack.c.b16 %v2546, %v2542
        %v2767 = vpack.c.b16 %v2547, %v2543
        %v2768 = vpack.c.b16 %v2552, %v2548
        %v2769 = vpack.c.b16 %v2553, %v2549
        %v2770 = vpack.c.b16 %v2554, %v2550
        %v2771 = vpack.c.b16 %v2555, %v2551
        %v2772 = vpack.c.b16 %v2560, %v2556
        %v2773 = vpack.c.b16 %v2561, %v2557
        %v2774 = vpack.c.b16 %v2562, %v2558
        %v2775 = vpack.c.b16 %v2563, %v2559
        %v2776 = vpack.c.b16 %v2568, %v2564
        %v2777 = vpack.c.b16 %v2569, %v2565
        %v2778 = vpack.c.b16 %v2570, %v2566
        %v2779 = vpack.c.b16 %v2571, %v2567
        %v2780 = vpack.c.b16 %v2576, %v2572
        %v2781 = vpack.c.b16 %v2577, %v2573
        %v2782 = vpack.c.b16 %v2578, %v2574
        %v2783 = vpack.c.b16 %v2579, %v2575
        %v2784 = vpack.c.b16 %v2584, %v2580
        %v2785 = vpack.c.b16 %v2585, %v2581
        %v2786 = vpack.c.b16 %v2586, %v2582
        %v2787 = vpack.c.b16 %v2587, %v2583
        %v2788 = vpack.c.b16 %v2592, %v2588
        %v2789 = vpack.c.b16 %v2593, %v2589
        %v2790 = vpack.c.b16 %v2594, %v2590
        %v2791 = vpack.c.b16 %v2595, %v2591
        %v2792 = vpack.c.b16 %v2600, %v2596
        %v2793 = vpack.c.b16 %v2601, %v2597
        %v2794 = vpack.c.b16 %v2602, %v2598
        %v2795 = vpack.c.b16 %v2603, %v2599
        %v2796 = vpack.c.b16 %v2608, %v2604
        %v2797 = vpack.c.b16 %v2609, %v2605
        %v2798 = vpack.c.b16 %v2610, %v2606
        %v2799 = vpack.c.b16 %v2611, %v2607
        %v2800 = vpack.c.b16 %v2616, %v2612
        %v2801 = vpack.c.b16 %v2617, %v2613
        %v2802 = vpack.c.b16 %v2618, %v2614
        %v2803 = vpack.c.b16 %v2619, %v2615
        %v2804 = vpack.c.b16 %v2624, %v2620
        %v2805 = vpack.c.b16 %v2625, %v2621
        %v2806 = vpack.c.b16 %v2626, %v2622
        %v2807 = vpack.c.b16 %v2627, %v2623
        %v2808 = vpack.c.b16 %v2632, %v2628
        %v2809 = vpack.c.b16 %v2633, %v2629
        %v2810 = vpack.c.b16 %v2634, %v2630
        %v2811 = vpack.c.b16 %v2635, %v2631
        %v2812 = vpack.c.b16 %v2640, %v2636
        %v2813 = vpack.c.b16 %v2641, %v2637
        %v2814 = vpack.c.b16 %v2642, %v2638
        %v2815 = vpack.c.b16 %v2643, %v2639
        %v2816 = vpack.c.b16 %v2648, %v2644
        %v2817 = vpack.c.b16 %v2649, %v2645
        %v2818 = vpack.c.b16 %v2650, %v2646
        %v2819 = vpack.c.b16 %v2651, %v2647
        %v2820 = vpack.c.b16 %v2656, %v2652
        %v2821 = vpack.c.b16 %v2657, %v2653
        %v2822 = vpack.c.b16 %v2658, %v2654
        %v2823 = vpack.c.b16 %v2659, %v2655
        %v2824 = vpack.c.b16 %v2664, %v2660
        %v2825 = vpack.c.b16 %v2665, %v2661
        %v2826 = vpack.c.b16 %v2666, %v2662
        %v2827 = vpack.c.b16 %v2667, %v2663
        %v2828 = vpack.c.b16 %v2672, %v2668
        %v2829 = vpack.c.b16 %v2673, %v2669
        %v2830 = vpack.c.b16 %v2674, %v2670
        %v2831 = vpack.c.b16 %v2675, %v2671
        %v2832 = vpack.c.b16 %v2680, %v2676
        %v2833 = vpack.c.b16 %v2681, %v2677
        %v2834 = vpack.c.b16 %v2682, %v2678
        %v2835 = vpack.c.b16 %v2683, %v2679
        %v2836 = vpack.c.b16 %v2688, %v2684
        %v2837 = vpack.c.b16 %v2689, %v2685
        %v2838 = vpack.c.b16 %v2690, %v2686
        %v2839 = vpack.c.b16 %v2691, %v2687
        %v2840 = vpack.c.b16 %v2696, %v2692
        %v2841 = vpack.c.b16 %v2697, %v2693
        %v2842 = vpack.c.b16 %v2698, %v2694
        %v2843 = vpack.c.b16 %v2699, %v2695
        %v2844 = vpack.c.b16 %v2704, %v2700
        %v2845 = vpack.c.b16 %v2705, %v2701
        %v2846 = vpack.c.b16 %v2706, %v2702
        %v2847 = vpack.c.b16 %v2707, %v2703
        %v2848 = vpack.c.b16 %v2712, %v2708
        %v2849 = vpack.c.b16 %v2713, %v2709
        %v2850 = vpack.c.b16 %v2714, %v2710
        %v2851 = vpack.c.b16 %v2715, %v2711
        %v2852 = vpack.c.b16 %v2720, %v2716
        %v2853 = vpack.c.b16 %v2721, %v2717
        %v2854 = vpack.c.b16 %v2722, %v2718
        %v2855 = vpack.c.b16 %v2723, %v2719
        %v2856 = vpack.c.b16 %v2728, %v2724
        %v2857 = vpack.c.b16 %v2729, %v2725
        %v2858 = vpack.c.b16 %v2730, %v2726
        %v2859 = vpack.c.b16 %v2731, %v2727
        %2988 = vmatprep.subr.bf16.mxu0 %v2733
        %2989 = vmatpush1.bf16.msra.mxu0 %v2732
        %2990 = vmatprep.subr.bf16.mxu0 %v2737
        %2991 = vmatpush1.bf16.msra.mxu0 %v2736
        %2992 = vmatprep.subr.bf16.mxu0 %v2741
        %2993 = vmatpush1.bf16.msra.mxu0 %v2740
        %2994 = vmatprep.subr.bf16.mxu0 %v2745
        %2995 = vmatpush1.bf16.msra.mxu0 %v2744
        %2996 = vmatprep.subr.bf16.mxu0 %v2749
        %2997 = vmatpush1.bf16.msra.mxu0 %v2748
        %2998 = vmatprep.subr.bf16.mxu0 %v2753
        %2999 = vmatpush1.bf16.msra.mxu0 %v2752
        %3000 = vmatprep.subr.bf16.mxu0 %v2757
        %3001 = vmatpush1.bf16.msra.mxu0 %v2756
        %3002 = vmatprep.subr.bf16.mxu0 %v2761
        %3003 = vmatpush1.bf16.msra.mxu0 %v2760
        %3004 = vmatprep.subr.bf16.mxu0 %v2765
        %3005 = vmatpush1.bf16.msra.mxu0 %v2764
        %3006 = vmatprep.subr.bf16.mxu0 %v2769
        %3007 = vmatpush1.bf16.msra.mxu0 %v2768
        %3008 = vmatprep.subr.bf16.mxu0 %v2773
        %3009 = vmatpush1.bf16.msra.mxu0 %v2772
        %3010 = vmatprep.subr.bf16.mxu0 %v2777
        %3011 = vmatpush1.bf16.msra.mxu0 %v2776
        %3012 = vmatprep.subr.bf16.mxu0 %v2781
        %3013 = vmatpush1.bf16.msra.mxu0 %v2780
        %3014 = vmatprep.subr.bf16.mxu0 %v2785
        %3015 = vmatpush1.bf16.msra.mxu0 %v2784
        %3016 = vmatprep.subr.bf16.mxu0 %v2789
        %3017 = vmatpush1.bf16.msra.mxu0 %v2788
        %3018 = vmatprep.subr.bf16.mxu0 %v2793
        %3019 = vmatpush1.bf16.msra.mxu0 %v2792
        %3020 = vmatprep.mubr.bf16.mxu0 %v2201
        %3021 = vmatmul.mubr.bf16.gmra.mrb[0].mxu0 %v2200
        %v3022 = vpop.f32.mrb[0].mxu0
        %v3023 = vadd.f32 %v2335, %v3022
        %v3024 = vpop.f32.mrb[0].mxu0
        %v3025 = vadd.f32 %v2339, %v3024
        %v3026 = vpop.f32.mrb[0].mxu0
        %v3027 = vadd.f32 %v2335, %v3026
        %v3028 = vpop.f32.mrb[0].mxu0
        %v3029 = vadd.f32 %v2339, %v3028
        %3030 = vdwg.mxu0
        %3031 = vmatprep.subr.bf16.mxu0 %v2797
        %3032 = vmatpush1.bf16.msra.mxu0 %v2796
        %3033 = vmatprep.subr.bf16.mxu0 %v2801
        %3034 = vmatpush1.bf16.msra.mxu0 %v2800
        %3035 = vmatprep.subr.bf16.mxu0 %v2805
        %3036 = vmatpush1.bf16.msra.mxu0 %v2804
        %3037 = vmatprep.subr.bf16.mxu0 %v2809
        %3038 = vmatpush1.bf16.msra.mxu0 %v2808
        %3039 = vmatprep.subr.bf16.mxu0 %v2813
        %3040 = vmatpush1.bf16.msra.mxu0 %v2812
        %3041 = vmatprep.subr.bf16.mxu0 %v2817
        %3042 = vmatpush1.bf16.msra.mxu0 %v2816
        %3043 = vmatprep.subr.bf16.mxu0 %v2821
        %3044 = vmatpush1.bf16.msra.mxu0 %v2820
        %3045 = vmatprep.subr.bf16.mxu0 %v2825
        %3046 = vmatpush1.bf16.msra.mxu0 %v2824
        %3047 = vmatprep.subr.bf16.mxu0 %v2829
        %3048 = vmatpush1.bf16.msra.mxu0 %v2828
        %3049 = vmatprep.subr.bf16.mxu0 %v2833
        %3050 = vmatpush1.bf16.msra.mxu0 %v2832
        %3051 = vmatprep.subr.bf16.mxu0 %v2837
        %3052 = vmatpush1.bf16.msra.mxu0 %v2836
        %3053 = vmatprep.subr.bf16.mxu0 %v2841
        %3054 = vmatpush1.bf16.msra.mxu0 %v2840
        %3055 = vmatprep.subr.bf16.mxu0 %v2845
        %3056 = vmatpush1.bf16.msra.mxu0 %v2844
        %3057 = vmatprep.subr.bf16.mxu0 %v2849
        %3058 = vmatpush1.bf16.msra.mxu0 %v2848
        %3059 = vmatprep.subr.bf16.mxu0 %v2853
        %3060 = vmatpush1.bf16.msra.mxu0 %v2852
        %3061 = vmatprep.subr.bf16.mxu0 %v2857
        %3062 = vmatpush1.bf16.msra.mxu0 %v2856
        %3063 = vmatprep.mubr.bf16.mxu0 %v2203
        %3064 = vmatmul.mubr.bf16.gmra.mrb[0].mxu0 %v2202
        %v3065 = vpop.f32.mrb[0].mxu0
        %v3066 = vadd.f32 %v3023, %v3065
        %v3067 = vpop.f32.mrb[0].mxu0
        %v3068 = vadd.f32 %v3025, %v3067
        %v3069 = vpop.f32.mrb[0].mxu0
        %v3070 = vadd.f32 %v3027, %v3069
        %v3071 = vpop.f32.mrb[0].mxu0
        %v3072 = vadd.f32 %v3029, %v3071
        %3073 = vdwg.mxu0
        %3074 = vmatprep.subr.bf16.mxu0 %v2735
        %3075 = vmatpush1.bf16.msra.mxu0 %v2734
        %3076 = vmatprep.subr.bf16.mxu0 %v2739
        %3077 = vmatpush1.bf16.msra.mxu0 %v2738
        %3078 = vmatprep.subr.bf16.mxu0 %v2743
        %3079 = vmatpush1.bf16.msra.mxu0 %v2742
        %3080 = vmatprep.subr.bf16.mxu0 %v2747
        %3081 = vmatpush1.bf16.msra.mxu0 %v2746
        %3082 = vmatprep.subr.bf16.mxu0 %v2751
        %3083 = vmatpush1.bf16.msra.mxu0 %v2750
        %3084 = vmatprep.subr.bf16.mxu0 %v2755
        %3085 = vmatpush1.bf16.msra.mxu0 %v2754
        %3086 = vmatprep.subr.bf16.mxu0 %v2759
        %3087 = vmatpush1.bf16.msra.mxu0 %v2758
        %3088 = vmatprep.subr.bf16.mxu0 %v2763
        %3089 = vmatpush1.bf16.msra.mxu0 %v2762
        %3090 = vmatprep.subr.bf16.mxu0 %v2767
        %3091 = vmatpush1.bf16.msra.mxu0 %v2766
        %3092 = vmatprep.subr.bf16.mxu0 %v2771
        %3093 = vmatpush1.bf16.msra.mxu0 %v2770
        %3094 = vmatprep.subr.bf16.mxu0 %v2775
        %3095 = vmatpush1.bf16.msra.mxu0 %v2774
        %3096 = vmatprep.subr.bf16.mxu0 %v2779
        %3097 = vmatpush1.bf16.msra.mxu0 %v2778
        %3098 = vmatprep.subr.bf16.mxu0 %v2783
        %3099 = vmatpush1.bf16.msra.mxu0 %v2782
        %3100 = vmatprep.subr.bf16.mxu0 %v2787
        %3101 = vmatpush1.bf16.msra.mxu0 %v2786
        %3102 = vmatprep.subr.bf16.mxu0 %v2791
        %3103 = vmatpush1.bf16.msra.mxu0 %v2790
        %3104 = vmatprep.subr.bf16.mxu0 %v2795
        %3105 = vmatpush1.bf16.msra.mxu0 %v2794
        %3106 = vmatprep.mubr.bf16.mxu0 %v2201
        %3107 = vmatmul.mubr.bf16.gmra.mrb[0].mxu0 %v2200
        %v3108 = vpop.f32.mrb[0].mxu0
        %v3109 = vadd.f32 %v2343, %v3108
        %v3110 = vpop.f32.mrb[0].mxu0
        %v3111 = vadd.f32 %v2347, %v3110
        %v3112 = vpop.f32.mrb[0].mxu0
        %v3113 = vadd.f32 %v2343, %v3112
        %v3114 = vpop.f32.mrb[0].mxu0
        %v3115 = vadd.f32 %v2347, %v3114
        %3116 = vdwg.mxu0
        %3117 = vmatprep.subr.bf16.mxu0 %v2799
        %3118 = vmatpush1.bf16.msra.mxu0 %v2798
        %3119 = vmatprep.subr.bf16.mxu0 %v2803
        %3120 = vmatpush1.bf16.msra.mxu0 %v2802
        %3121 = vmatprep.subr.bf16.mxu0 %v2807
        %3122 = vmatpush1.bf16.msra.mxu0 %v2806
        %3123 = vmatprep.subr.bf16.mxu0 %v2811
        %3124 = vmatpush1.bf16.msra.mxu0 %v2810
        %3125 = vmatprep.subr.bf16.mxu0 %v2815
        %3126 = vmatpush1.bf16.msra.mxu0 %v2814
        %3127 = vmatprep.subr.bf16.mxu0 %v2819
        %3128 = vmatpush1.bf16.msra.mxu0 %v2818
        %3129 = vmatprep.subr.bf16.mxu0 %v2823
        %3130 = vmatpush1.bf16.msra.mxu0 %v2822
        %3131 = vmatprep.subr.bf16.mxu0 %v2827
        %3132 = vmatpush1.bf16.msra.mxu0 %v2826
        %3133 = vmatprep.subr.bf16.mxu0 %v2831
        %3134 = vmatpush1.bf16.msra.mxu0 %v2830
        %3135 = vmatprep.subr.bf16.mxu0 %v2835
        %3136 = vmatpush1.bf16.msra.mxu0 %v2834
        %3137 = vmatprep.subr.bf16.mxu0 %v2839
        %3138 = vmatpush1.bf16.msra.mxu0 %v2838
        %3139 = vmatprep.subr.bf16.mxu0 %v2843
        %3140 = vmatpush1.bf16.msra.mxu0 %v2842
        %3141 = vmatprep.subr.bf16.mxu0 %v2847
        %3142 = vmatpush1.bf16.msra.mxu0 %v2846
        %3143 = vmatprep.subr.bf16.mxu0 %v2851
        %3144 = vmatpush1.bf16.msra.mxu0 %v2850
        %3145 = vmatprep.subr.bf16.mxu0 %v2855
        %3146 = vmatpush1.bf16.msra.mxu0 %v2854
        %3147 = vmatprep.subr.bf16.mxu0 %v2859
        %3148 = vmatpush1.bf16.msra.mxu0 %v2858
        %3149 = vmatprep.mubr.bf16.mxu0 %v2203
        %3150 = vmatmul.mubr.bf16.gmra.mrb[0].mxu0 %v2202
        %v3151 = vpop.f32.mrb[0].mxu0
        %v3152 = vadd.f32 %v3109, %v3151
        %v3153 = vpop.f32.mrb[0].mxu0
        %v3154 = vadd.f32 %v3111, %v3153
        %v3155 = vpop.f32.mrb[0].mxu0
        %v3156 = vadd.f32 %v3113, %v3155
        %v3157 = vpop.f32.mrb[0].mxu0
        %v3158 = vadd.f32 %v3115, %v3157
        %3159 = vdwg.mxu0
        %v3160 = vmax.f32 %v3066, 0.0
        %v3161 = vmax.f32 %v3068, 0.0
        %v3162 = vmax.f32 %v3152, 0.0
        %v3163 = vmax.f32 %v3154, 0.0
        %v3164 = vmax.f32 %v3070, 0.0
        %v3165 = vmax.f32 %v3072, 0.0
        %v3166 = vmax.f32 %v3156, 0.0
        %v3167 = vmax.f32 %v3158, 0.0
        %v3168 = vpack.c.bf16 %v3164, %v3160
        %v3169 = vpack.c.bf16 %v3165, %v3161
        %v3170 = vpack.c.bf16 %v3166, %v3162
        %v3171 = vpack.c.bf16 %v3167, %v3163
        %v3172 = vld [vmem:[#allocation2] sm:$0xff]
        %v3173 = vld [vmem:[#allocation2 + $0x8] sm:$0xff]
        %v3174 = vld [vmem:[#allocation2 + $0x10] sm:$0xff]
        %v3175 = vld [vmem:[#allocation2 + $0x18] sm:$0xff]
        %v3176 = vld [vmem:[#allocation2 + $0x20] sm:$0xff]
        %v3177 = vld [vmem:[#allocation2 + $0x28] sm:$0xff]
        %v3178 = vld [vmem:[#allocation2 + $0x30] sm:$0xff]
        %v3179 = vld [vmem:[#allocation2 + $0x38] sm:$0xff]
        %v3180 = vld [vmem:[#allocation2 + $0x40] sm:$0xff]
        %v3181 = vld [vmem:[#allocation2 + $0x48] sm:$0xff]
        %v3182 = vld [vmem:[#allocation2 + $0x50] sm:$0xff]
        %v3183 = vld [vmem:[#allocation2 + $0x58] sm:$0xff]
        %v3184 = vld [vmem:[#allocation2 + $0x60] sm:$0xff]
        %v3185 = vld [vmem:[#allocation2 + $0x68] sm:$0xff]
        %v3186 = vld [vmem:[#allocation2 + $0x70] sm:$0xff]
        %v3187 = vld [vmem:[#allocation2 + $0x78] sm:$0xff]
        %v3188 = vld [vmem:[#allocation2 + $0x80] sm:$0xff]
        %v3189 = vld [vmem:[#allocation2 + $0x88] sm:$0xff]
        %v3190 = vld [vmem:[#allocation2 + $0x90] sm:$0xff]
        %v3191 = vld [vmem:[#allocation2 + $0x98] sm:$0xff]
        %v3192 = vld [vmem:[#allocation2 + $0xa0] sm:$0xff]
        %v3193 = vld [vmem:[#allocation2 + $0xa8] sm:$0xff]
        %v3194 = vld [vmem:[#allocation2 + $0xb0] sm:$0xff]
        %v3195 = vld [vmem:[#allocation2 + $0xb8] sm:$0xff]
        %v3196 = vld [vmem:[#allocation2 + $0xc0] sm:$0xff]
        %v3197 = vld [vmem:[#allocation2 + $0xc8] sm:$0xff]
        %v3198 = vld [vmem:[#allocation2 + $0xd0] sm:$0xff]
        %v3199 = vld [vmem:[#allocation2 + $0xd8] sm:$0xff]
        %v3200 = vld [vmem:[#allocation2 + $0xe0] sm:$0xff]
        %v3201 = vld [vmem:[#allocation2 + $0xe8] sm:$0xff]
        %v3202 = vld [vmem:[#allocation2 + $0xf0] sm:$0xff]
        %v3203 = vld [vmem:[#allocation2 + $0xf8] sm:$0xff]
        %v3204 = vld [vmem:[#allocation2 + $0x100] sm:$0xff]
        %v3205 = vld [vmem:[#allocation2 + $0x108] sm:$0xff]
        %v3206 = vld [vmem:[#allocation2 + $0x110] sm:$0xff]
        %v3207 = vld [vmem:[#allocation2 + $0x118] sm:$0xff]
        %v3208 = vld [vmem:[#allocation2 + $0x120] sm:$0xff]
        %v3209 = vld [vmem:[#allocation2 + $0x128] sm:$0xff]
        %v3210 = vld [vmem:[#allocation2 + $0x130] sm:$0xff]
        %v3211 = vld [vmem:[#allocation2 + $0x138] sm:$0xff]
        %v3212 = vld [vmem:[#allocation2 + $0x140] sm:$0xff]
        %v3213 = vld [vmem:[#allocation2 + $0x148] sm:$0xff]
        %v3214 = vld [vmem:[#allocation2 + $0x150] sm:$0xff]
        %v3215 = vld [vmem:[#allocation2 + $0x158] sm:$0xff]
        %v3216 = vld [vmem:[#allocation2 + $0x160] sm:$0xff]
        %v3217 = vld [vmem:[#allocation2 + $0x168] sm:$0xff]
        %v3218 = vld [vmem:[#allocation2 + $0x170] sm:$0xff]
        %v3219 = vld [vmem:[#allocation2 + $0x178] sm:$0xff]
        %v3220 = vld [vmem:[#allocation2 + $0x180] sm:$0xff]
        %v3221 = vld [vmem:[#allocation2 + $0x188] sm:$0xff]
        %v3222 = vld [vmem:[#allocation2 + $0x190] sm:$0xff]
        %v3223 = vld [vmem:[#allocation2 + $0x198] sm:$0xff]
        %v3224 = vld [vmem:[#allocation2 + $0x1a0] sm:$0xff]
        %v3225 = vld [vmem:[#allocation2 + $0x1a8] sm:$0xff]
        %v3226 = vld [vmem:[#allocation2 + $0x1b0] sm:$0xff]
        %v3227 = vld [vmem:[#allocation2 + $0x1b8] sm:$0xff]
        %v3228 = vld [vmem:[#allocation2 + $0x1c0] sm:$0xff]
        %v3229 = vld [vmem:[#allocation2 + $0x1c8] sm:$0xff]
        %v3230 = vld [vmem:[#allocation2 + $0x1d0] sm:$0xff]
        %v3231 = vld [vmem:[#allocation2 + $0x1d8] sm:$0xff]
        %v3232 = vld [vmem:[#allocation2 + $0x1e0] sm:$0xff]
        %v3233 = vld [vmem:[#allocation2 + $0x1e8] sm:$0xff]
        %v3234 = vld [vmem:[#allocation2 + $0x1f0] sm:$0xff]
        %v3235 = vld [vmem:[#allocation2 + $0x1f8] sm:$0xff]
        %v3236 = vld [vmem:[#allocation2 + $0x200] sm:$0xff]
        %v3237 = vld [vmem:[#allocation2 + $0x208] sm:$0xff]
        %v3238 = vld [vmem:[#allocation2 + $0x210] sm:$0xff]
        %v3239 = vld [vmem:[#allocation2 + $0x218] sm:$0xff]
        %v3240 = vld [vmem:[#allocation2 + $0x220] sm:$0xff]
        %v3241 = vld [vmem:[#allocation2 + $0x228] sm:$0xff]
        %v3242 = vld [vmem:[#allocation2 + $0x230] sm:$0xff]
        %v3243 = vld [vmem:[#allocation2 + $0x238] sm:$0xff]
        %v3244 = vld [vmem:[#allocation2 + $0x240] sm:$0xff]
        %v3245 = vld [vmem:[#allocation2 + $0x248] sm:$0xff]
        %v3246 = vld [vmem:[#allocation2 + $0x250] sm:$0xff]
        %v3247 = vld [vmem:[#allocation2 + $0x258] sm:$0xff]
        %v3248 = vld [vmem:[#allocation2 + $0x260] sm:$0xff]
        %v3249 = vld [vmem:[#allocation2 + $0x268] sm:$0xff]
        %v3250 = vld [vmem:[#allocation2 + $0x270] sm:$0xff]
        %v3251 = vld [vmem:[#allocation2 + $0x278] sm:$0xff]
        %v3252 = vld [vmem:[#allocation2 + $0x280] sm:$0xff]
        %v3253 = vld [vmem:[#allocation2 + $0x288] sm:$0xff]
        %v3254 = vld [vmem:[#allocation2 + $0x290] sm:$0xff]
        %v3255 = vld [vmem:[#allocation2 + $0x298] sm:$0xff]
        %v3256 = vld [vmem:[#allocation2 + $0x2a0] sm:$0xff]
        %v3257 = vld [vmem:[#allocation2 + $0x2a8] sm:$0xff]
        %v3258 = vld [vmem:[#allocation2 + $0x2b0] sm:$0xff]
        %v3259 = vld [vmem:[#allocation2 + $0x2b8] sm:$0xff]
        %v3260 = vld [vmem:[#allocation2 + $0x2c0] sm:$0xff]
        %v3261 = vld [vmem:[#allocation2 + $0x2c8] sm:$0xff]
        %v3262 = vld [vmem:[#allocation2 + $0x2d0] sm:$0xff]
        %v3263 = vld [vmem:[#allocation2 + $0x2d8] sm:$0xff]
        %v3264 = vld [vmem:[#allocation2 + $0x2e0] sm:$0xff]
        %v3265 = vld [vmem:[#allocation2 + $0x2e8] sm:$0xff]
        %v3266 = vld [vmem:[#allocation2 + $0x2f0] sm:$0xff]
        %v3267 = vld [vmem:[#allocation2 + $0x2f8] sm:$0xff]
        %v3268 = vld [vmem:[#allocation2 + $0x300] sm:$0xff]
        %v3269 = vld [vmem:[#allocation2 + $0x308] sm:$0xff]
        %v3270 = vld [vmem:[#allocation2 + $0x310] sm:$0xff]
        %v3271 = vld [vmem:[#allocation2 + $0x318] sm:$0xff]
        %v3272 = vld [vmem:[#allocation2 + $0x320] sm:$0xff]
        %v3273 = vld [vmem:[#allocation2 + $0x328] sm:$0xff]
        %v3274 = vld [vmem:[#allocation2 + $0x330] sm:$0xff]
        %v3275 = vld [vmem:[#allocation2 + $0x338] sm:$0xff]
        %v3276 = vld [vmem:[#allocation2 + $0x340] sm:$0xff]
        %v3277 = vld [vmem:[#allocation2 + $0x348] sm:$0xff]
        %v3278 = vld [vmem:[#allocation2 + $0x350] sm:$0xff]
        %v3279 = vld [vmem:[#allocation2 + $0x358] sm:$0xff]
        %v3280 = vld [vmem:[#allocation2 + $0x360] sm:$0xff]
        %v3281 = vld [vmem:[#allocation2 + $0x368] sm:$0xff]
        %v3282 = vld [vmem:[#allocation2 + $0x370] sm:$0xff]
        %v3283 = vld [vmem:[#allocation2 + $0x378] sm:$0xff]
        %v3284 = vld [vmem:[#allocation2 + $0x380] sm:$0xff]
        %v3285 = vld [vmem:[#allocation2 + $0x388] sm:$0xff]
        %v3286 = vld [vmem:[#allocation2 + $0x390] sm:$0xff]
        %v3287 = vld [vmem:[#allocation2 + $0x398] sm:$0xff]
        %v3288 = vld [vmem:[#allocation2 + $0x3a0] sm:$0xff]
        %v3289 = vld [vmem:[#allocation2 + $0x3a8] sm:$0xff]
        %v3290 = vld [vmem:[#allocation2 + $0x3b0] sm:$0xff]
        %v3291 = vld [vmem:[#allocation2 + $0x3b8] sm:$0xff]
        %v3292 = vld [vmem:[#allocation2 + $0x3c0] sm:$0xff]
        %v3293 = vld [vmem:[#allocation2 + $0x3c8] sm:$0xff]
        %v3294 = vld [vmem:[#allocation2 + $0x3d0] sm:$0xff]
        %v3295 = vld [vmem:[#allocation2 + $0x3d8] sm:$0xff]
        %v3296 = vld [vmem:[#allocation2 + $0x3e0] sm:$0xff]
        %v3297 = vld [vmem:[#allocation2 + $0x3e8] sm:$0xff]
        %v3298 = vld [vmem:[#allocation2 + $0x3f0] sm:$0xff]
        %v3299 = vld [vmem:[#allocation2 + $0x3f8] sm:$0xff]
        %v3300 = vlaneseq
        %v3301 = vshrl.u32 %v3300, 7
        %v3302 = vsub.s32 2, %v3301
        %v3303 = vrot.slane %v440, %v3302
        %v3304 = vlaneseq
        %v3305 = vshrl.u32 %v3304, 7
        %v3306 = vsub.s32 2, %v3305
        %v3307 = vrot.slane %v441, %v3306
        %v3308 = vlaneseq
        %v3309 = vshrl.u32 %v3308, 7
        %v3310 = vsub.s32 2, %v3309
        %v3311 = vrot.slane %v442, %v3310
        %v3312 = vlaneseq
        %v3313 = vshrl.u32 %v3312, 7
        %v3314 = vsub.s32 2, %v3313
        %v3315 = vrot.slane %v443, %v3314
        %v3444 = vunpack.c.l.b16 %v3172
        %v3445 = vunpack.c.h.b16 %v3172
        %v3446 = vunpack.c.l.b16 %v3173
        %v3447 = vunpack.c.h.b16 %v3173
        %v3448 = vunpack.c.l.b16 %v3174
        %v3449 = vunpack.c.h.b16 %v3174
        %v3450 = vunpack.c.l.b16 %v3175
        %v3451 = vunpack.c.h.b16 %v3175
        %v3452 = vunpack.c.l.b16 %v3176
        %v3453 = vunpack.c.h.b16 %v3176
        %v3454 = vunpack.c.l.b16 %v3177
        %v3455 = vunpack.c.h.b16 %v3177
        %v3456 = vunpack.c.l.b16 %v3178
        %v3457 = vunpack.c.h.b16 %v3178
        %v3458 = vunpack.c.l.b16 %v3179
        %v3459 = vunpack.c.h.b16 %v3179
        %v3460 = vunpack.c.l.b16 %v3180
        %v3461 = vunpack.c.h.b16 %v3180
        %v3462 = vunpack.c.l.b16 %v3181
        %v3463 = vunpack.c.h.b16 %v3181
        %v3464 = vunpack.c.l.b16 %v3182
        %v3465 = vunpack.c.h.b16 %v3182
        %v3466 = vunpack.c.l.b16 %v3183
        %v3467 = vunpack.c.h.b16 %v3183
        %v3468 = vunpack.c.l.b16 %v3184
        %v3469 = vunpack.c.h.b16 %v3184
        %v3470 = vunpack.c.l.b16 %v3185
        %v3471 = vunpack.c.h.b16 %v3185
        %v3472 = vunpack.c.l.b16 %v3186
        %v3473 = vunpack.c.h.b16 %v3186
        %v3474 = vunpack.c.l.b16 %v3187
        %v3475 = vunpack.c.h.b16 %v3187
        %v3476 = vunpack.c.l.b16 %v3188
        %v3477 = vunpack.c.h.b16 %v3188
        %v3478 = vunpack.c.l.b16 %v3189
        %v3479 = vunpack.c.h.b16 %v3189
        %v3480 = vunpack.c.l.b16 %v3190
        %v3481 = vunpack.c.h.b16 %v3190
        %v3482 = vunpack.c.l.b16 %v3191
        %v3483 = vunpack.c.h.b16 %v3191
        %v3484 = vunpack.c.l.b16 %v3192
        %v3485 = vunpack.c.h.b16 %v3192
        %v3486 = vunpack.c.l.b16 %v3193
        %v3487 = vunpack.c.h.b16 %v3193
        %v3488 = vunpack.c.l.b16 %v3194
        %v3489 = vunpack.c.h.b16 %v3194
        %v3490 = vunpack.c.l.b16 %v3195
        %v3491 = vunpack.c.h.b16 %v3195
        %v3492 = vunpack.c.l.b16 %v3196
        %v3493 = vunpack.c.h.b16 %v3196
        %v3494 = vunpack.c.l.b16 %v3197
        %v3495 = vunpack.c.h.b16 %v3197
        %v3496 = vunpack.c.l.b16 %v3198
        %v3497 = vunpack.c.h.b16 %v3198
        %v3498 = vunpack.c.l.b16 %v3199
        %v3499 = vunpack.c.h.b16 %v3199
        %v3500 = vunpack.c.l.b16 %v3200
        %v3501 = vunpack.c.h.b16 %v3200
        %v3502 = vunpack.c.l.b16 %v3201
        %v3503 = vunpack.c.h.b16 %v3201
        %v3504 = vunpack.c.l.b16 %v3202
        %v3505 = vunpack.c.h.b16 %v3202
        %v3506 = vunpack.c.l.b16 %v3203
        %v3507 = vunpack.c.h.b16 %v3203
        %v3508 = vunpack.c.l.b16 %v3204
        %v3509 = vunpack.c.h.b16 %v3204
        %v3510 = vunpack.c.l.b16 %v3205
        %v3511 = vunpack.c.h.b16 %v3205
        %v3512 = vunpack.c.l.b16 %v3206
        %v3513 = vunpack.c.h.b16 %v3206
        %v3514 = vunpack.c.l.b16 %v3207
        %v3515 = vunpack.c.h.b16 %v3207
        %v3516 = vunpack.c.l.b16 %v3208
        %v3517 = vunpack.c.h.b16 %v3208
        %v3518 = vunpack.c.l.b16 %v3209
        %v3519 = vunpack.c.h.b16 %v3209
        %v3520 = vunpack.c.l.b16 %v3210
        %v3521 = vunpack.c.h.b16 %v3210
        %v3522 = vunpack.c.l.b16 %v3211
        %v3523 = vunpack.c.h.b16 %v3211
        %v3524 = vunpack.c.l.b16 %v3212
        %v3525 = vunpack.c.h.b16 %v3212
        %v3526 = vunpack.c.l.b16 %v3213
        %v3527 = vunpack.c.h.b16 %v3213
        %v3528 = vunpack.c.l.b16 %v3214
        %v3529 = vunpack.c.h.b16 %v3214
        %v3530 = vunpack.c.l.b16 %v3215
        %v3531 = vunpack.c.h.b16 %v3215
        %v3532 = vunpack.c.l.b16 %v3216
        %v3533 = vunpack.c.h.b16 %v3216
        %v3534 = vunpack.c.l.b16 %v3217
        %v3535 = vunpack.c.h.b16 %v3217
        %v3536 = vunpack.c.l.b16 %v3218
        %v3537 = vunpack.c.h.b16 %v3218
        %v3538 = vunpack.c.l.b16 %v3219
        %v3539 = vunpack.c.h.b16 %v3219
        %v3540 = vunpack.c.l.b16 %v3220
        %v3541 = vunpack.c.h.b16 %v3220
        %v3542 = vunpack.c.l.b16 %v3221
        %v3543 = vunpack.c.h.b16 %v3221
        %v3544 = vunpack.c.l.b16 %v3222
        %v3545 = vunpack.c.h.b16 %v3222
        %v3546 = vunpack.c.l.b16 %v3223
        %v3547 = vunpack.c.h.b16 %v3223
        %v3548 = vunpack.c.l.b16 %v3224
        %v3549 = vunpack.c.h.b16 %v3224
        %v3550 = vunpack.c.l.b16 %v3225
        %v3551 = vunpack.c.h.b16 %v3225
        %v3552 = vunpack.c.l.b16 %v3226
        %v3553 = vunpack.c.h.b16 %v3226
        %v3554 = vunpack.c.l.b16 %v3227
        %v3555 = vunpack.c.h.b16 %v3227
        %v3556 = vunpack.c.l.b16 %v3228
        %v3557 = vunpack.c.h.b16 %v3228
        %v3558 = vunpack.c.l.b16 %v3229
        %v3559 = vunpack.c.h.b16 %v3229
        %v3560 = vunpack.c.l.b16 %v3230
        %v3561 = vunpack.c.h.b16 %v3230
        %v3562 = vunpack.c.l.b16 %v3231
        %v3563 = vunpack.c.h.b16 %v3231
        %v3564 = vunpack.c.l.b16 %v3232
        %v3565 = vunpack.c.h.b16 %v3232
        %v3566 = vunpack.c.l.b16 %v3233
        %v3567 = vunpack.c.h.b16 %v3233
        %v3568 = vunpack.c.l.b16 %v3234
        %v3569 = vunpack.c.h.b16 %v3234
        %v3570 = vunpack.c.l.b16 %v3235
        %v3571 = vunpack.c.h.b16 %v3235
        %v3572 = vunpack.c.l.b16 %v3236
        %v3573 = vunpack.c.h.b16 %v3236
        %v3574 = vunpack.c.l.b16 %v3237
        %v3575 = vunpack.c.h.b16 %v3237
        %v3576 = vunpack.c.l.b16 %v3238
        %v3577 = vunpack.c.h.b16 %v3238
        %v3578 = vunpack.c.l.b16 %v3239
        %v3579 = vunpack.c.h.b16 %v3239
        %v3580 = vunpack.c.l.b16 %v3240
        %v3581 = vunpack.c.h.b16 %v3240
        %v3582 = vunpack.c.l.b16 %v3241
        %v3583 = vunpack.c.h.b16 %v3241
        %v3584 = vunpack.c.l.b16 %v3242
        %v3585 = vunpack.c.h.b16 %v3242
        %v3586 = vunpack.c.l.b16 %v3243
        %v3587 = vunpack.c.h.b16 %v3243
        %v3588 = vunpack.c.l.b16 %v3244
        %v3589 = vunpack.c.h.b16 %v3244
        %v3590 = vunpack.c.l.b16 %v3245
        %v3591 = vunpack.c.h.b16 %v3245
        %v3592 = vunpack.c.l.b16 %v3246
        %v3593 = vunpack.c.h.b16 %v3246
        %v3594 = vunpack.c.l.b16 %v3247
        %v3595 = vunpack.c.h.b16 %v3247
        %v3596 = vunpack.c.l.b16 %v3248
        %v3597 = vunpack.c.h.b16 %v3248
        %v3598 = vunpack.c.l.b16 %v3249
        %v3599 = vunpack.c.h.b16 %v3249
        %v3600 = vunpack.c.l.b16 %v3250
        %v3601 = vunpack.c.h.b16 %v3250
        %v3602 = vunpack.c.l.b16 %v3251
        %v3603 = vunpack.c.h.b16 %v3251
        %v3604 = vunpack.c.l.b16 %v3252
        %v3605 = vunpack.c.h.b16 %v3252
        %v3606 = vunpack.c.l.b16 %v3253
        %v3607 = vunpack.c.h.b16 %v3253
        %v3608 = vunpack.c.l.b16 %v3254
        %v3609 = vunpack.c.h.b16 %v3254
        %v3610 = vunpack.c.l.b16 %v3255
        %v3611 = vunpack.c.h.b16 %v3255
        %v3612 = vunpack.c.l.b16 %v3256
        %v3613 = vunpack.c.h.b16 %v3256
        %v3614 = vunpack.c.l.b16 %v3257
        %v3615 = vunpack.c.h.b16 %v3257
        %v3616 = vunpack.c.l.b16 %v3258
        %v3617 = vunpack.c.h.b16 %v3258
        %v3618 = vunpack.c.l.b16 %v3259
        %v3619 = vunpack.c.h.b16 %v3259
        %v3620 = vunpack.c.l.b16 %v3260
        %v3621 = vunpack.c.h.b16 %v3260
        %v3622 = vunpack.c.l.b16 %v3261
        %v3623 = vunpack.c.h.b16 %v3261
        %v3624 = vunpack.c.l.b16 %v3262
        %v3625 = vunpack.c.h.b16 %v3262
        %v3626 = vunpack.c.l.b16 %v3263
        %v3627 = vunpack.c.h.b16 %v3263
        %v3628 = vunpack.c.l.b16 %v3264
        %v3629 = vunpack.c.h.b16 %v3264
        %v3630 = vunpack.c.l.b16 %v3265
        %v3631 = vunpack.c.h.b16 %v3265
        %v3632 = vunpack.c.l.b16 %v3266
        %v3633 = vunpack.c.h.b16 %v3266
        %v3634 = vunpack.c.l.b16 %v3267
        %v3635 = vunpack.c.h.b16 %v3267
        %v3636 = vunpack.c.l.b16 %v3268
        %v3637 = vunpack.c.h.b16 %v3268
        %v3638 = vunpack.c.l.b16 %v3269
        %v3639 = vunpack.c.h.b16 %v3269
        %v3640 = vunpack.c.l.b16 %v3270
        %v3641 = vunpack.c.h.b16 %v3270
        %v3642 = vunpack.c.l.b16 %v3271
        %v3643 = vunpack.c.h.b16 %v3271
        %v3644 = vunpack.c.l.b16 %v3272
        %v3645 = vunpack.c.h.b16 %v3272
        %v3646 = vunpack.c.l.b16 %v3273
        %v3647 = vunpack.c.h.b16 %v3273
        %v3648 = vunpack.c.l.b16 %v3274
        %v3649 = vunpack.c.h.b16 %v3274
        %v3650 = vunpack.c.l.b16 %v3275
        %v3651 = vunpack.c.h.b16 %v3275
        %v3652 = vunpack.c.l.b16 %v3276
        %v3653 = vunpack.c.h.b16 %v3276
        %v3654 = vunpack.c.l.b16 %v3277
        %v3655 = vunpack.c.h.b16 %v3277
        %v3656 = vunpack.c.l.b16 %v3278
        %v3657 = vunpack.c.h.b16 %v3278
        %v3658 = vunpack.c.l.b16 %v3279
        %v3659 = vunpack.c.h.b16 %v3279
        %v3660 = vunpack.c.l.b16 %v3280
        %v3661 = vunpack.c.h.b16 %v3280
        %v3662 = vunpack.c.l.b16 %v3281
        %v3663 = vunpack.c.h.b16 %v3281
        %v3664 = vunpack.c.l.b16 %v3282
        %v3665 = vunpack.c.h.b16 %v3282
        %v3666 = vunpack.c.l.b16 %v3283
        %v3667 = vunpack.c.h.b16 %v3283
        %v3668 = vunpack.c.l.b16 %v3284
        %v3669 = vunpack.c.h.b16 %v3284
        %v3670 = vunpack.c.l.b16 %v3285
        %v3671 = vunpack.c.h.b16 %v3285
        %v3672 = vunpack.c.l.b16 %v3286
        %v3673 = vunpack.c.h.b16 %v3286
        %v3674 = vunpack.c.l.b16 %v3287
        %v3675 = vunpack.c.h.b16 %v3287
        %v3676 = vunpack.c.l.b16 %v3288
        %v3677 = vunpack.c.h.b16 %v3288
        %v3678 = vunpack.c.l.b16 %v3289
        %v3679 = vunpack.c.h.b16 %v3289
        %v3680 = vunpack.c.l.b16 %v3290
        %v3681 = vunpack.c.h.b16 %v3290
        %v3682 = vunpack.c.l.b16 %v3291
        %v3683 = vunpack.c.h.b16 %v3291
        %v3684 = vunpack.c.l.b16 %v3292
        %v3685 = vunpack.c.h.b16 %v3292
        %v3686 = vunpack.c.l.b16 %v3293
        %v3687 = vunpack.c.h.b16 %v3293
        %v3688 = vunpack.c.l.b16 %v3294
        %v3689 = vunpack.c.h.b16 %v3294
        %v3690 = vunpack.c.l.b16 %v3295
        %v3691 = vunpack.c.h.b16 %v3295
        %v3692 = vunpack.c.l.b16 %v3296
        %v3693 = vunpack.c.h.b16 %v3296
        %v3694 = vunpack.c.l.b16 %v3297
        %v3695 = vunpack.c.h.b16 %v3297
        %v3696 = vunpack.c.l.b16 %v3298
        %v3697 = vunpack.c.h.b16 %v3298
        %v3698 = vunpack.c.l.b16 %v3299
        %v3699 = vunpack.c.h.b16 %v3299
        %v3700 = vpack.c.b16 %v3448, %v3444
        %v3701 = vpack.c.b16 %v3449, %v3445
        %v3702 = vpack.c.b16 %v3450, %v3446
        %v3703 = vpack.c.b16 %v3451, %v3447
        %v3704 = vpack.c.b16 %v3456, %v3452
        %v3705 = vpack.c.b16 %v3457, %v3453
        %v3706 = vpack.c.b16 %v3458, %v3454
        %v3707 = vpack.c.b16 %v3459, %v3455
        %v3708 = vpack.c.b16 %v3464, %v3460
        %v3709 = vpack.c.b16 %v3465, %v3461
        %v3710 = vpack.c.b16 %v3466, %v3462
        %v3711 = vpack.c.b16 %v3467, %v3463
        %v3712 = vpack.c.b16 %v3472, %v3468
        %v3713 = vpack.c.b16 %v3473, %v3469
        %v3714 = vpack.c.b16 %v3474, %v3470
        %v3715 = vpack.c.b16 %v3475, %v3471
        %v3716 = vpack.c.b16 %v3480, %v3476
        %v3717 = vpack.c.b16 %v3481, %v3477
        %v3718 = vpack.c.b16 %v3482, %v3478
        %v3719 = vpack.c.b16 %v3483, %v3479
        %v3720 = vpack.c.b16 %v3488, %v3484
        %v3721 = vpack.c.b16 %v3489, %v3485
        %v3722 = vpack.c.b16 %v3490, %v3486
        %v3723 = vpack.c.b16 %v3491, %v3487
        %v3724 = vpack.c.b16 %v3496, %v3492
        %v3725 = vpack.c.b16 %v3497, %v3493
        %v3726 = vpack.c.b16 %v3498, %v3494
        %v3727 = vpack.c.b16 %v3499, %v3495
        %v3728 = vpack.c.b16 %v3504, %v3500
        %v3729 = vpack.c.b16 %v3505, %v3501
        %v3730 = vpack.c.b16 %v3506, %v3502
        %v3731 = vpack.c.b16 %v3507, %v3503
        %v3732 = vpack.c.b16 %v3512, %v3508
        %v3733 = vpack.c.b16 %v3513, %v3509
        %v3734 = vpack.c.b16 %v3514, %v3510
        %v3735 = vpack.c.b16 %v3515, %v3511
        %v3736 = vpack.c.b16 %v3520, %v3516
        %v3737 = vpack.c.b16 %v3521, %v3517
        %v3738 = vpack.c.b16 %v3522, %v3518
        %v3739 = vpack.c.b16 %v3523, %v3519
        %v3740 = vpack.c.b16 %v3528, %v3524
        %v3741 = vpack.c.b16 %v3529, %v3525
        %v3742 = vpack.c.b16 %v3530, %v3526
        %v3743 = vpack.c.b16 %v3531, %v3527
        %v3744 = vpack.c.b16 %v3536, %v3532
        %v3745 = vpack.c.b16 %v3537, %v3533
        %v3746 = vpack.c.b16 %v3538, %v3534
        %v3747 = vpack.c.b16 %v3539, %v3535
        %v3748 = vpack.c.b16 %v3544, %v3540
        %v3749 = vpack.c.b16 %v3545, %v3541
        %v3750 = vpack.c.b16 %v3546, %v3542
        %v3751 = vpack.c.b16 %v3547, %v3543
        %v3752 = vpack.c.b16 %v3552, %v3548
        %v3753 = vpack.c.b16 %v3553, %v3549
        %v3754 = vpack.c.b16 %v3554, %v3550
        %v3755 = vpack.c.b16 %v3555, %v3551
        %v3756 = vpack.c.b16 %v3560, %v3556
        %v3757 = vpack.c.b16 %v3561, %v3557
        %v3758 = vpack.c.b16 %v3562, %v3558
        %v3759 = vpack.c.b16 %v3563, %v3559
        %v3760 = vpack.c.b16 %v3568, %v3564
        %v3761 = vpack.c.b16 %v3569, %v3565
        %v3762 = vpack.c.b16 %v3570, %v3566
        %v3763 = vpack.c.b16 %v3571, %v3567
        %v3764 = vpack.c.b16 %v3576, %v3572
        %v3765 = vpack.c.b16 %v3577, %v3573
        %v3766 = vpack.c.b16 %v3578, %v3574
        %v3767 = vpack.c.b16 %v3579, %v3575
        %v3768 = vpack.c.b16 %v3584, %v3580
        %v3769 = vpack.c.b16 %v3585, %v3581
        %v3770 = vpack.c.b16 %v3586, %v3582
        %v3771 = vpack.c.b16 %v3587, %v3583
        %v3772 = vpack.c.b16 %v3592, %v3588
        %v3773 = vpack.c.b16 %v3593, %v3589
        %v3774 = vpack.c.b16 %v3594, %v3590
        %v3775 = vpack.c.b16 %v3595, %v3591
        %v3776 = vpack.c.b16 %v3600, %v3596
        %v3777 = vpack.c.b16 %v3601, %v3597
        %v3778 = vpack.c.b16 %v3602, %v3598
        %v3779 = vpack.c.b16 %v3603, %v3599
        %v3780 = vpack.c.b16 %v3608, %v3604
        %v3781 = vpack.c.b16 %v3609, %v3605
        %v3782 = vpack.c.b16 %v3610, %v3606
        %v3783 = vpack.c.b16 %v3611, %v3607
        %v3784 = vpack.c.b16 %v3616, %v3612
        %v3785 = vpack.c.b16 %v3617, %v3613
        %v3786 = vpack.c.b16 %v3618, %v3614
        %v3787 = vpack.c.b16 %v3619, %v3615
        %v3788 = vpack.c.b16 %v3624, %v3620
        %v3789 = vpack.c.b16 %v3625, %v3621
        %v3790 = vpack.c.b16 %v3626, %v3622
        %v3791 = vpack.c.b16 %v3627, %v3623
        %v3792 = vpack.c.b16 %v3632, %v3628
        %v3793 = vpack.c.b16 %v3633, %v3629
        %v3794 = vpack.c.b16 %v3634, %v3630
        %v3795 = vpack.c.b16 %v3635, %v3631
        %v3796 = vpack.c.b16 %v3640, %v3636
        %v3797 = vpack.c.b16 %v3641, %v3637
        %v3798 = vpack.c.b16 %v3642, %v3638
        %v3799 = vpack.c.b16 %v3643, %v3639
        %v3800 = vpack.c.b16 %v3648, %v3644
        %v3801 = vpack.c.b16 %v3649, %v3645
        %v3802 = vpack.c.b16 %v3650, %v3646
        %v3803 = vpack.c.b16 %v3651, %v3647
        %v3804 = vpack.c.b16 %v3656, %v3652
        %v3805 = vpack.c.b16 %v3657, %v3653
        %v3806 = vpack.c.b16 %v3658, %v3654
        %v3807 = vpack.c.b16 %v3659, %v3655
        %v3808 = vpack.c.b16 %v3664, %v3660
        %v3809 = vpack.c.b16 %v3665, %v3661
        %v3810 = vpack.c.b16 %v3666, %v3662
        %v3811 = vpack.c.b16 %v3667, %v3663
        %v3812 = vpack.c.b16 %v3672, %v3668
        %v3813 = vpack.c.b16 %v3673, %v3669
        %v3814 = vpack.c.b16 %v3674, %v3670
        %v3815 = vpack.c.b16 %v3675, %v3671
        %v3816 = vpack.c.b16 %v3680, %v3676
        %v3817 = vpack.c.b16 %v3681, %v3677
        %v3818 = vpack.c.b16 %v3682, %v3678
        %v3819 = vpack.c.b16 %v3683, %v3679
        %v3820 = vpack.c.b16 %v3688, %v3684
        %v3821 = vpack.c.b16 %v3689, %v3685
        %v3822 = vpack.c.b16 %v3690, %v3686
        %v3823 = vpack.c.b16 %v3691, %v3687
        %v3824 = vpack.c.b16 %v3696, %v3692
        %v3825 = vpack.c.b16 %v3697, %v3693
        %v3826 = vpack.c.b16 %v3698, %v3694
        %v3827 = vpack.c.b16 %v3699, %v3695
        %3956 = vmatprep.subr.bf16.mxu0 %v3701
        %3957 = vmatpush1.bf16.msra.mxu0 %v3700
        %3958 = vmatprep.subr.bf16.mxu0 %v3705
        %3959 = vmatpush1.bf16.msra.mxu0 %v3704
        %3960 = vmatprep.subr.bf16.mxu0 %v3709
        %3961 = vmatpush1.bf16.msra.mxu0 %v3708
        %3962 = vmatprep.subr.bf16.mxu0 %v3713
        %3963 = vmatpush1.bf16.msra.mxu0 %v3712
        %3964 = vmatprep.subr.bf16.mxu0 %v3717
        %3965 = vmatpush1.bf16.msra.mxu0 %v3716
        %3966 = vmatprep.subr.bf16.mxu0 %v3721
        %3967 = vmatpush1.bf16.msra.mxu0 %v3720
        %3968 = vmatprep.subr.bf16.mxu0 %v3725
        %3969 = vmatpush1.bf16.msra.mxu0 %v3724
        %3970 = vmatprep.subr.bf16.mxu0 %v3729
        %3971 = vmatpush1.bf16.msra.mxu0 %v3728
        %3972 = vmatprep.subr.bf16.mxu0 %v3733
        %3973 = vmatpush1.bf16.msra.mxu0 %v3732
        %3974 = vmatprep.subr.bf16.mxu0 %v3737
        %3975 = vmatpush1.bf16.msra.mxu0 %v3736
        %3976 = vmatprep.subr.bf16.mxu0 %v3741
        %3977 = vmatpush1.bf16.msra.mxu0 %v3740
        %3978 = vmatprep.subr.bf16.mxu0 %v3745
        %3979 = vmatpush1.bf16.msra.mxu0 %v3744
        %3980 = vmatprep.subr.bf16.mxu0 %v3749
        %3981 = vmatpush1.bf16.msra.mxu0 %v3748
        %3982 = vmatprep.subr.bf16.mxu0 %v3753
        %3983 = vmatpush1.bf16.msra.mxu0 %v3752
        %3984 = vmatprep.subr.bf16.mxu0 %v3757
        %3985 = vmatpush1.bf16.msra.mxu0 %v3756
        %3986 = vmatprep.subr.bf16.mxu0 %v3761
        %3987 = vmatpush1.bf16.msra.mxu0 %v3760
        %3988 = vmatprep.mubr.bf16.mxu0 %v3169
        %3989 = vmatmul.mubr.bf16.gmra.mrb[0].mxu0 %v3168
        %v3990 = vpop.f32.mrb[0].mxu0
        %v3991 = vadd.f32 %v3303, %v3990
        %v3992 = vpop.f32.mrb[0].mxu0
        %v3993 = vadd.f32 %v3307, %v3992
        %v3994 = vpop.f32.mrb[0].mxu0
        %v3995 = vadd.f32 %v3303, %v3994
        %v3996 = vpop.f32.mrb[0].mxu0
        %v3997 = vadd.f32 %v3307, %v3996
        %3998 = vdwg.mxu0
        %3999 = vmatprep.subr.bf16.mxu0 %v3765
        %4000 = vmatpush1.bf16.msra.mxu0 %v3764
        %4001 = vmatprep.subr.bf16.mxu0 %v3769
        %4002 = vmatpush1.bf16.msra.mxu0 %v3768
        %4003 = vmatprep.subr.bf16.mxu0 %v3773
        %4004 = vmatpush1.bf16.msra.mxu0 %v3772
        %4005 = vmatprep.subr.bf16.mxu0 %v3777
        %4006 = vmatpush1.bf16.msra.mxu0 %v3776
        %4007 = vmatprep.subr.bf16.mxu0 %v3781
        %4008 = vmatpush1.bf16.msra.mxu0 %v3780
        %4009 = vmatprep.subr.bf16.mxu0 %v3785
        %4010 = vmatpush1.bf16.msra.mxu0 %v3784
        %4011 = vmatprep.subr.bf16.mxu0 %v3789
        %4012 = vmatpush1.bf16.msra.mxu0 %v3788
        %4013 = vmatprep.subr.bf16.mxu0 %v3793
        %4014 = vmatpush1.bf16.msra.mxu0 %v3792
        %4015 = vmatprep.subr.bf16.mxu0 %v3797
        %4016 = vmatpush1.bf16.msra.mxu0 %v3796
        %4017 = vmatprep.subr.bf16.mxu0 %v3801
        %4018 = vmatpush1.bf16.msra.mxu0 %v3800
        %4019 = vmatprep.subr.bf16.mxu0 %v3805
        %4020 = vmatpush1.bf16.msra.mxu0 %v3804
        %4021 = vmatprep.subr.bf16.mxu0 %v3809
        %4022 = vmatpush1.bf16.msra.mxu0 %v3808
        %4023 = vmatprep.subr.bf16.mxu0 %v3813
        %4024 = vmatpush1.bf16.msra.mxu0 %v3812
        %4025 = vmatprep.subr.bf16.mxu0 %v3817
        %4026 = vmatpush1.bf16.msra.mxu0 %v3816
        %4027 = vmatprep.subr.bf16.mxu0 %v3821
        %4028 = vmatpush1.bf16.msra.mxu0 %v3820
        %4029 = vmatprep.subr.bf16.mxu0 %v3825
        %4030 = vmatpush1.bf16.msra.mxu0 %v3824
        %4031 = vmatprep.mubr.bf16.mxu0 %v3171
        %4032 = vmatmul.mubr.bf16.gmra.mrb[0].mxu0 %v3170
        %v4033 = vpop.f32.mrb[0].mxu0
        %v4034 = vadd.f32 %v3991, %v4033
        %v4035 = vpop.f32.mrb[0].mxu0
        %v4036 = vadd.f32 %v3993, %v4035
        %v4037 = vpop.f32.mrb[0].mxu0
        %v4038 = vadd.f32 %v3995, %v4037
        %v4039 = vpop.f32.mrb[0].mxu0
        %v4040 = vadd.f32 %v3997, %v4039
        %4041 = vdwg.mxu0
        %4042 = vmatprep.subr.bf16.mxu0 %v3703
        %4043 = vmatpush1.bf16.msra.mxu0 %v3702
        %4044 = vmatprep.subr.bf16.mxu0 %v3707
        %4045 = vmatpush1.bf16.msra.mxu0 %v3706
        %4046 = vmatprep.subr.bf16.mxu0 %v3711
        %4047 = vmatpush1.bf16.msra.mxu0 %v3710
        %4048 = vmatprep.subr.bf16.mxu0 %v3715
        %4049 = vmatpush1.bf16.msra.mxu0 %v3714
        %4050 = vmatprep.subr.bf16.mxu0 %v3719
        %4051 = vmatpush1.bf16.msra.mxu0 %v3718
        %4052 = vmatprep.subr.bf16.mxu0 %v3723
        %4053 = vmatpush1.bf16.msra.mxu0 %v3722
        %4054 = vmatprep.subr.bf16.mxu0 %v3727
        %4055 = vmatpush1.bf16.msra.mxu0 %v3726
        %4056 = vmatprep.subr.bf16.mxu0 %v3731
        %4057 = vmatpush1.bf16.msra.mxu0 %v3730
        %4058 = vmatprep.subr.bf16.mxu0 %v3735
        %4059 = vmatpush1.bf16.msra.mxu0 %v3734
        %4060 = vmatprep.subr.bf16.mxu0 %v3739
        %4061 = vmatpush1.bf16.msra.mxu0 %v3738
        %4062 = vmatprep.subr.bf16.mxu0 %v3743
        %4063 = vmatpush1.bf16.msra.mxu0 %v3742
        %4064 = vmatprep.subr.bf16.mxu0 %v3747
        %4065 = vmatpush1.bf16.msra.mxu0 %v3746
        %4066 = vmatprep.subr.bf16.mxu0 %v3751
        %4067 = vmatpush1.bf16.msra.mxu0 %v3750
        %4068 = vmatprep.subr.bf16.mxu0 %v3755
        %4069 = vmatpush1.bf16.msra.mxu0 %v3754
        %4070 = vmatprep.subr.bf16.mxu0 %v3759
        %4071 = vmatpush1.bf16.msra.mxu0 %v3758
        %4072 = vmatprep.subr.bf16.mxu0 %v3763
        %4073 = vmatpush1.bf16.msra.mxu0 %v3762
        %4074 = vmatprep.mubr.bf16.mxu0 %v3169
        %4075 = vmatmul.mubr.bf16.gmra.mrb[0].mxu0 %v3168
        %v4076 = vpop.f32.mrb[0].mxu0
        %v4077 = vadd.f32 %v3311, %v4076
        %v4078 = vpop.f32.mrb[0].mxu0
        %v4079 = vadd.f32 %v3315, %v4078
        %v4080 = vpop.f32.mrb[0].mxu0
        %v4081 = vadd.f32 %v3311, %v4080
        %v4082 = vpop.f32.mrb[0].mxu0
        %v4083 = vadd.f32 %v3315, %v4082
        %4084 = vdwg.mxu0
        %4085 = vmatprep.subr.bf16.mxu0 %v3767
        %4086 = vmatpush1.bf16.msra.mxu0 %v3766
        %4087 = vmatprep.subr.bf16.mxu0 %v3771
        %4088 = vmatpush1.bf16.msra.mxu0 %v3770
        %4089 = vmatprep.subr.bf16.mxu0 %v3775
        %4090 = vmatpush1.bf16.msra.mxu0 %v3774
        %4091 = vmatprep.subr.bf16.mxu0 %v3779
        %4092 = vmatpush1.bf16.msra.mxu0 %v3778
        %4093 = vmatprep.subr.bf16.mxu0 %v3783
        %4094 = vmatpush1.bf16.msra.mxu0 %v3782
        %4095 = vmatprep.subr.bf16.mxu0 %v3787
        %4096 = vmatpush1.bf16.msra.mxu0 %v3786
        %4097 = vmatprep.subr.bf16.mxu0 %v3791
        %4098 = vmatpush1.bf16.msra.mxu0 %v3790
        %4099 = vmatprep.subr.bf16.mxu0 %v3795
        %4100 = vmatpush1.bf16.msra.mxu0 %v3794
        %4101 = vmatprep.subr.bf16.mxu0 %v3799
        %4102 = vmatpush1.bf16.msra.mxu0 %v3798
        %4103 = vmatprep.subr.bf16.mxu0 %v3803
        %4104 = vmatpush1.bf16.msra.mxu0 %v3802
        %4105 = vmatprep.subr.bf16.mxu0 %v3807
        %4106 = vmatpush1.bf16.msra.mxu0 %v3806
        %4107 = vmatprep.subr.bf16.mxu0 %v3811
        %4108 = vmatpush1.bf16.msra.mxu0 %v3810
        %4109 = vmatprep.subr.bf16.mxu0 %v3815
        %4110 = vmatpush1.bf16.msra.mxu0 %v3814
        %4111 = vmatprep.subr.bf16.mxu0 %v3819
        %4112 = vmatpush1.bf16.msra.mxu0 %v3818
        %4113 = vmatprep.subr.bf16.mxu0 %v3823
        %4114 = vmatpush1.bf16.msra.mxu0 %v3822
        %4115 = vmatprep.subr.bf16.mxu0 %v3827
        %4116 = vmatpush1.bf16.msra.mxu0 %v3826
        %4117 = vmatprep.mubr.bf16.mxu0 %v3171
        %4118 = vmatmul.mubr.bf16.gmra.mrb[0].mxu0 %v3170
        %v4119 = vpop.f32.mrb[0].mxu0
        %v4120 = vadd.f32 %v4077, %v4119
        %v4121 = vpop.f32.mrb[0].mxu0
        %v4122 = vadd.f32 %v4079, %v4121
        %v4123 = vpop.f32.mrb[0].mxu0
        %v4124 = vadd.f32 %v4081, %v4123
        %v4125 = vpop.f32.mrb[0].mxu0
        %v4126 = vadd.f32 %v4083, %v4125
        %4127 = vdwg.mxu0
        %v4128 = vmax.f32 %v4034, 0.0
        %v4129 = vmax.f32 %v4036, 0.0
        %v4130 = vmax.f32 %v4120, 0.0
        %v4131 = vmax.f32 %v4122, 0.0
        %v4132 = vmax.f32 %v4038, 0.0
        %v4133 = vmax.f32 %v4040, 0.0
        %v4134 = vmax.f32 %v4124, 0.0
        %v4135 = vmax.f32 %v4126, 0.0
        %v4136 = vpack.c.bf16 %v4132, %v4128
        %v4137 = vpack.c.bf16 %v4133, %v4129
        %v4138 = vpack.c.bf16 %v4134, %v4130
        %v4139 = vpack.c.bf16 %v4135, %v4131
        %v4140 = vld [vmem:[#allocation4] sm:$0xff]
        %v4141 = vld [vmem:[#allocation4 + $0x8] sm:$0xff]
        %v4142 = vld [vmem:[#allocation4 + $0x10] sm:$0xff]
        %v4143 = vld [vmem:[#allocation4 + $0x18] sm:$0xff]
        %v4144 = vld [vmem:[#allocation4 + $0x20] sm:$0xff]
        %v4145 = vld [vmem:[#allocation4 + $0x28] sm:$0xff]
        %v4146 = vld [vmem:[#allocation4 + $0x30] sm:$0xff]
        %v4147 = vld [vmem:[#allocation4 + $0x38] sm:$0xff]
        %v4148 = vld [vmem:[#allocation4 + $0x40] sm:$0xff]
        %v4149 = vld [vmem:[#allocation4 + $0x48] sm:$0xff]
        %v4150 = vld [vmem:[#allocation4 + $0x50] sm:$0xff]
        %v4151 = vld [vmem:[#allocation4 + $0x58] sm:$0xff]
        %v4152 = vld [vmem:[#allocation4 + $0x60] sm:$0xff]
        %v4153 = vld [vmem:[#allocation4 + $0x68] sm:$0xff]
        %v4154 = vld [vmem:[#allocation4 + $0x70] sm:$0xff]
        %v4155 = vld [vmem:[#allocation4 + $0x78] sm:$0xff]
        %v4156 = vld [vmem:[#allocation4 + $0x80] sm:$0xff]
        %v4157 = vld [vmem:[#allocation4 + $0x88] sm:$0xff]
        %v4158 = vld [vmem:[#allocation4 + $0x90] sm:$0xff]
        %v4159 = vld [vmem:[#allocation4 + $0x98] sm:$0xff]
        %v4160 = vld [vmem:[#allocation4 + $0xa0] sm:$0xff]
        %v4161 = vld [vmem:[#allocation4 + $0xa8] sm:$0xff]
        %v4162 = vld [vmem:[#allocation4 + $0xb0] sm:$0xff]
        %v4163 = vld [vmem:[#allocation4 + $0xb8] sm:$0xff]
        %v4164 = vld [vmem:[#allocation4 + $0xc0] sm:$0xff]
        %v4165 = vld [vmem:[#allocation4 + $0xc8] sm:$0xff]
        %v4166 = vld [vmem:[#allocation4 + $0xd0] sm:$0xff]
        %v4167 = vld [vmem:[#allocation4 + $0xd8] sm:$0xff]
        %v4168 = vld [vmem:[#allocation4 + $0xe0] sm:$0xff]
        %v4169 = vld [vmem:[#allocation4 + $0xe8] sm:$0xff]
        %v4170 = vld [vmem:[#allocation4 + $0xf0] sm:$0xff]
        %v4171 = vld [vmem:[#allocation4 + $0xf8] sm:$0xff]
        %v4172 = vld [vmem:[#allocation4 + $0x100] sm:$0xff]
        %v4173 = vld [vmem:[#allocation4 + $0x108] sm:$0xff]
        %v4174 = vld [vmem:[#allocation4 + $0x110] sm:$0xff]
        %v4175 = vld [vmem:[#allocation4 + $0x118] sm:$0xff]
        %v4176 = vld [vmem:[#allocation4 + $0x120] sm:$0xff]
        %v4177 = vld [vmem:[#allocation4 + $0x128] sm:$0xff]
        %v4178 = vld [vmem:[#allocation4 + $0x130] sm:$0xff]
        %v4179 = vld [vmem:[#allocation4 + $0x138] sm:$0xff]
        %v4180 = vld [vmem:[#allocation4 + $0x140] sm:$0xff]
        %v4181 = vld [vmem:[#allocation4 + $0x148] sm:$0xff]
        %v4182 = vld [vmem:[#allocation4 + $0x150] sm:$0xff]
        %v4183 = vld [vmem:[#allocation4 + $0x158] sm:$0xff]
        %v4184 = vld [vmem:[#allocation4 + $0x160] sm:$0xff]
        %v4185 = vld [vmem:[#allocation4 + $0x168] sm:$0xff]
        %v4186 = vld [vmem:[#allocation4 + $0x170] sm:$0xff]
        %v4187 = vld [vmem:[#allocation4 + $0x178] sm:$0xff]
        %v4188 = vld [vmem:[#allocation4 + $0x180] sm:$0xff]
        %v4189 = vld [vmem:[#allocation4 + $0x188] sm:$0xff]
        %v4190 = vld [vmem:[#allocation4 + $0x190] sm:$0xff]
        %v4191 = vld [vmem:[#allocation4 + $0x198] sm:$0xff]
        %v4192 = vld [vmem:[#allocation4 + $0x1a0] sm:$0xff]
        %v4193 = vld [vmem:[#allocation4 + $0x1a8] sm:$0xff]
        %v4194 = vld [vmem:[#allocation4 + $0x1b0] sm:$0xff]
        %v4195 = vld [vmem:[#allocation4 + $0x1b8] sm:$0xff]
        %v4196 = vld [vmem:[#allocation4 + $0x1c0] sm:$0xff]
        %v4197 = vld [vmem:[#allocation4 + $0x1c8] sm:$0xff]
        %v4198 = vld [vmem:[#allocation4 + $0x1d0] sm:$0xff]
        %v4199 = vld [vmem:[#allocation4 + $0x1d8] sm:$0xff]
        %v4200 = vld [vmem:[#allocation4 + $0x1e0] sm:$0xff]
        %v4201 = vld [vmem:[#allocation4 + $0x1e8] sm:$0xff]
        %v4202 = vld [vmem:[#allocation4 + $0x1f0] sm:$0xff]
        %v4203 = vld [vmem:[#allocation4 + $0x1f8] sm:$0xff]
        %v4204 = vld [vmem:[#allocation4 + $0x200] sm:$0xff]
        %v4205 = vld [vmem:[#allocation4 + $0x208] sm:$0xff]
        %v4206 = vld [vmem:[#allocation4 + $0x210] sm:$0xff]
        %v4207 = vld [vmem:[#allocation4 + $0x218] sm:$0xff]
        %v4208 = vld [vmem:[#allocation4 + $0x220] sm:$0xff]
        %v4209 = vld [vmem:[#allocation4 + $0x228] sm:$0xff]
        %v4210 = vld [vmem:[#allocation4 + $0x230] sm:$0xff]
        %v4211 = vld [vmem:[#allocation4 + $0x238] sm:$0xff]
        %v4212 = vld [vmem:[#allocation4 + $0x240] sm:$0xff]
        %v4213 = vld [vmem:[#allocation4 + $0x248] sm:$0xff]
        %v4214 = vld [vmem:[#allocation4 + $0x250] sm:$0xff]
        %v4215 = vld [vmem:[#allocation4 + $0x258] sm:$0xff]
        %v4216 = vld [vmem:[#allocation4 + $0x260] sm:$0xff]
        %v4217 = vld [vmem:[#allocation4 + $0x268] sm:$0xff]
        %v4218 = vld [vmem:[#allocation4 + $0x270] sm:$0xff]
        %v4219 = vld [vmem:[#allocation4 + $0x278] sm:$0xff]
        %v4220 = vld [vmem:[#allocation4 + $0x280] sm:$0xff]
        %v4221 = vld [vmem:[#allocation4 + $0x288] sm:$0xff]
        %v4222 = vld [vmem:[#allocation4 + $0x290] sm:$0xff]
        %v4223 = vld [vmem:[#allocation4 + $0x298] sm:$0xff]
        %v4224 = vld [vmem:[#allocation4 + $0x2a0] sm:$0xff]
        %v4225 = vld [vmem:[#allocation4 + $0x2a8] sm:$0xff]
        %v4226 = vld [vmem:[#allocation4 + $0x2b0] sm:$0xff]
        %v4227 = vld [vmem:[#allocation4 + $0x2b8] sm:$0xff]
        %v4228 = vld [vmem:[#allocation4 + $0x2c0] sm:$0xff]
        %v4229 = vld [vmem:[#allocation4 + $0x2c8] sm:$0xff]
        %v4230 = vld [vmem:[#allocation4 + $0x2d0] sm:$0xff]
        %v4231 = vld [vmem:[#allocation4 + $0x2d8] sm:$0xff]
        %v4232 = vld [vmem:[#allocation4 + $0x2e0] sm:$0xff]
        %v4233 = vld [vmem:[#allocation4 + $0x2e8] sm:$0xff]
        %v4234 = vld [vmem:[#allocation4 + $0x2f0] sm:$0xff]
        %v4235 = vld [vmem:[#allocation4 + $0x2f8] sm:$0xff]
        %v4236 = vld [vmem:[#allocation4 + $0x300] sm:$0xff]
        %v4237 = vld [vmem:[#allocation4 + $0x308] sm:$0xff]
        %v4238 = vld [vmem:[#allocation4 + $0x310] sm:$0xff]
        %v4239 = vld [vmem:[#allocation4 + $0x318] sm:$0xff]
        %v4240 = vld [vmem:[#allocation4 + $0x320] sm:$0xff]
        %v4241 = vld [vmem:[#allocation4 + $0x328] sm:$0xff]
        %v4242 = vld [vmem:[#allocation4 + $0x330] sm:$0xff]
        %v4243 = vld [vmem:[#allocation4 + $0x338] sm:$0xff]
        %v4244 = vld [vmem:[#allocation4 + $0x340] sm:$0xff]
        %v4245 = vld [vmem:[#allocation4 + $0x348] sm:$0xff]
        %v4246 = vld [vmem:[#allocation4 + $0x350] sm:$0xff]
        %v4247 = vld [vmem:[#allocation4 + $0x358] sm:$0xff]
        %v4248 = vld [vmem:[#allocation4 + $0x360] sm:$0xff]
        %v4249 = vld [vmem:[#allocation4 + $0x368] sm:$0xff]
        %v4250 = vld [vmem:[#allocation4 + $0x370] sm:$0xff]
        %v4251 = vld [vmem:[#allocation4 + $0x378] sm:$0xff]
        %v4252 = vld [vmem:[#allocation4 + $0x380] sm:$0xff]
        %v4253 = vld [vmem:[#allocation4 + $0x388] sm:$0xff]
        %v4254 = vld [vmem:[#allocation4 + $0x390] sm:$0xff]
        %v4255 = vld [vmem:[#allocation4 + $0x398] sm:$0xff]
        %v4256 = vld [vmem:[#allocation4 + $0x3a0] sm:$0xff]
        %v4257 = vld [vmem:[#allocation4 + $0x3a8] sm:$0xff]
        %v4258 = vld [vmem:[#allocation4 + $0x3b0] sm:$0xff]
        %v4259 = vld [vmem:[#allocation4 + $0x3b8] sm:$0xff]
        %v4260 = vld [vmem:[#allocation4 + $0x3c0] sm:$0xff]
        %v4261 = vld [vmem:[#allocation4 + $0x3c8] sm:$0xff]
        %v4262 = vld [vmem:[#allocation4 + $0x3d0] sm:$0xff]
        %v4263 = vld [vmem:[#allocation4 + $0x3d8] sm:$0xff]
        %v4264 = vld [vmem:[#allocation4 + $0x3e0] sm:$0xff]
        %v4265 = vld [vmem:[#allocation4 + $0x3e8] sm:$0xff]
        %v4266 = vld [vmem:[#allocation4 + $0x3f0] sm:$0xff]
        %v4267 = vld [vmem:[#allocation4 + $0x3f8] sm:$0xff]
        %v4268 = vlaneseq
        %v4269 = vshrl.u32 %v4268, 7
        %v4270 = vsub.s32 3, %v4269
        %v4271 = vrot.slane %v440, %v4270
        %v4272 = vlaneseq
        %v4273 = vshrl.u32 %v4272, 7
        %v4274 = vsub.s32 3, %v4273
        %v4275 = vrot.slane %v441, %v4274
        %v4276 = vlaneseq
        %v4277 = vshrl.u32 %v4276, 7
        %v4278 = vsub.s32 3, %v4277
        %v4279 = vrot.slane %v442, %v4278
        %v4280 = vlaneseq
        %v4281 = vshrl.u32 %v4280, 7
        %v4282 = vsub.s32 3, %v4281
        %v4283 = vrot.slane %v443, %v4282
        %v4412 = vunpack.c.l.b16 %v4140
        %v4413 = vunpack.c.h.b16 %v4140
        %v4414 = vunpack.c.l.b16 %v4141
        %v4415 = vunpack.c.h.b16 %v4141
        %v4416 = vunpack.c.l.b16 %v4142
        %v4417 = vunpack.c.h.b16 %v4142
        %v4418 = vunpack.c.l.b16 %v4143
        %v4419 = vunpack.c.h.b16 %v4143
        %v4420 = vunpack.c.l.b16 %v4144
        %v4421 = vunpack.c.h.b16 %v4144
        %v4422 = vunpack.c.l.b16 %v4145
        %v4423 = vunpack.c.h.b16 %v4145
        %v4424 = vunpack.c.l.b16 %v4146
        %v4425 = vunpack.c.h.b16 %v4146
        %v4426 = vunpack.c.l.b16 %v4147
        %v4427 = vunpack.c.h.b16 %v4147
        %v4428 = vunpack.c.l.b16 %v4148
        %v4429 = vunpack.c.h.b16 %v4148
        %v4430 = vunpack.c.l.b16 %v4149
        %v4431 = vunpack.c.h.b16 %v4149
        %v4432 = vunpack.c.l.b16 %v4150
        %v4433 = vunpack.c.h.b16 %v4150
        %v4434 = vunpack.c.l.b16 %v4151
        %v4435 = vunpack.c.h.b16 %v4151
        %v4436 = vunpack.c.l.b16 %v4152
        %v4437 = vunpack.c.h.b16 %v4152
        %v4438 = vunpack.c.l.b16 %v4153
        %v4439 = vunpack.c.h.b16 %v4153
        %v4440 = vunpack.c.l.b16 %v4154
        %v4441 = vunpack.c.h.b16 %v4154
        %v4442 = vunpack.c.l.b16 %v4155
        %v4443 = vunpack.c.h.b16 %v4155
        %v4444 = vunpack.c.l.b16 %v4156
        %v4445 = vunpack.c.h.b16 %v4156
        %v4446 = vunpack.c.l.b16 %v4157
        %v4447 = vunpack.c.h.b16 %v4157
        %v4448 = vunpack.c.l.b16 %v4158
        %v4449 = vunpack.c.h.b16 %v4158
        %v4450 = vunpack.c.l.b16 %v4159
        %v4451 = vunpack.c.h.b16 %v4159
        %v4452 = vunpack.c.l.b16 %v4160
        %v4453 = vunpack.c.h.b16 %v4160
        %v4454 = vunpack.c.l.b16 %v4161
        %v4455 = vunpack.c.h.b16 %v4161
        %v4456 = vunpack.c.l.b16 %v4162
        %v4457 = vunpack.c.h.b16 %v4162
        %v4458 = vunpack.c.l.b16 %v4163
        %v4459 = vunpack.c.h.b16 %v4163
        %v4460 = vunpack.c.l.b16 %v4164
        %v4461 = vunpack.c.h.b16 %v4164
        %v4462 = vunpack.c.l.b16 %v4165
        %v4463 = vunpack.c.h.b16 %v4165
        %v4464 = vunpack.c.l.b16 %v4166
        %v4465 = vunpack.c.h.b16 %v4166
        %v4466 = vunpack.c.l.b16 %v4167
        %v4467 = vunpack.c.h.b16 %v4167
        %v4468 = vunpack.c.l.b16 %v4168
        %v4469 = vunpack.c.h.b16 %v4168
        %v4470 = vunpack.c.l.b16 %v4169
        %v4471 = vunpack.c.h.b16 %v4169
        %v4472 = vunpack.c.l.b16 %v4170
        %v4473 = vunpack.c.h.b16 %v4170
        %v4474 = vunpack.c.l.b16 %v4171
        %v4475 = vunpack.c.h.b16 %v4171
        %v4476 = vunpack.c.l.b16 %v4172
        %v4477 = vunpack.c.h.b16 %v4172
        %v4478 = vunpack.c.l.b16 %v4173
        %v4479 = vunpack.c.h.b16 %v4173
        %v4480 = vunpack.c.l.b16 %v4174
        %v4481 = vunpack.c.h.b16 %v4174
        %v4482 = vunpack.c.l.b16 %v4175
        %v4483 = vunpack.c.h.b16 %v4175
        %v4484 = vunpack.c.l.b16 %v4176
        %v4485 = vunpack.c.h.b16 %v4176
        %v4486 = vunpack.c.l.b16 %v4177
        %v4487 = vunpack.c.h.b16 %v4177
        %v4488 = vunpack.c.l.b16 %v4178
        %v4489 = vunpack.c.h.b16 %v4178
        %v4490 = vunpack.c.l.b16 %v4179
        %v4491 = vunpack.c.h.b16 %v4179
        %v4492 = vunpack.c.l.b16 %v4180
        %v4493 = vunpack.c.h.b16 %v4180
        %v4494 = vunpack.c.l.b16 %v4181
        %v4495 = vunpack.c.h.b16 %v4181
        %v4496 = vunpack.c.l.b16 %v4182
        %v4497 = vunpack.c.h.b16 %v4182
        %v4498 = vunpack.c.l.b16 %v4183
        %v4499 = vunpack.c.h.b16 %v4183
        %v4500 = vunpack.c.l.b16 %v4184
        %v4501 = vunpack.c.h.b16 %v4184
        %v4502 = vunpack.c.l.b16 %v4185
        %v4503 = vunpack.c.h.b16 %v4185
        %v4504 = vunpack.c.l.b16 %v4186
        %v4505 = vunpack.c.h.b16 %v4186
        %v4506 = vunpack.c.l.b16 %v4187
        %v4507 = vunpack.c.h.b16 %v4187
        %v4508 = vunpack.c.l.b16 %v4188
        %v4509 = vunpack.c.h.b16 %v4188
        %v4510 = vunpack.c.l.b16 %v4189
        %v4511 = vunpack.c.h.b16 %v4189
        %v4512 = vunpack.c.l.b16 %v4190
        %v4513 = vunpack.c.h.b16 %v4190
        %v4514 = vunpack.c.l.b16 %v4191
        %v4515 = vunpack.c.h.b16 %v4191
        %v4516 = vunpack.c.l.b16 %v4192
        %v4517 = vunpack.c.h.b16 %v4192
        %v4518 = vunpack.c.l.b16 %v4193
        %v4519 = vunpack.c.h.b16 %v4193
        %v4520 = vunpack.c.l.b16 %v4194
        %v4521 = vunpack.c.h.b16 %v4194
        %v4522 = vunpack.c.l.b16 %v4195
        %v4523 = vunpack.c.h.b16 %v4195
        %v4524 = vunpack.c.l.b16 %v4196
        %v4525 = vunpack.c.h.b16 %v4196
        %v4526 = vunpack.c.l.b16 %v4197
        %v4527 = vunpack.c.h.b16 %v4197
        %v4528 = vunpack.c.l.b16 %v4198
        %v4529 = vunpack.c.h.b16 %v4198
        %v4530 = vunpack.c.l.b16 %v4199
        %v4531 = vunpack.c.h.b16 %v4199
        %v4532 = vunpack.c.l.b16 %v4200
        %v4533 = vunpack.c.h.b16 %v4200
        %v4534 = vunpack.c.l.b16 %v4201
        %v4535 = vunpack.c.h.b16 %v4201
        %v4536 = vunpack.c.l.b16 %v4202
        %v4537 = vunpack.c.h.b16 %v4202
        %v4538 = vunpack.c.l.b16 %v4203
        %v4539 = vunpack.c.h.b16 %v4203
        %v4540 = vunpack.c.l.b16 %v4204
        %v4541 = vunpack.c.h.b16 %v4204
        %v4542 = vunpack.c.l.b16 %v4205
        %v4543 = vunpack.c.h.b16 %v4205
        %v4544 = vunpack.c.l.b16 %v4206
        %v4545 = vunpack.c.h.b16 %v4206
        %v4546 = vunpack.c.l.b16 %v4207
        %v4547 = vunpack.c.h.b16 %v4207
        %v4548 = vunpack.c.l.b16 %v4208
        %v4549 = vunpack.c.h.b16 %v4208
        %v4550 = vunpack.c.l.b16 %v4209
        %v4551 = vunpack.c.h.b16 %v4209
        %v4552 = vunpack.c.l.b16 %v4210
        %v4553 = vunpack.c.h.b16 %v4210
        %v4554 = vunpack.c.l.b16 %v4211
        %v4555 = vunpack.c.h.b16 %v4211
        %v4556 = vunpack.c.l.b16 %v4212
        %v4557 = vunpack.c.h.b16 %v4212
        %v4558 = vunpack.c.l.b16 %v4213
        %v4559 = vunpack.c.h.b16 %v4213
        %v4560 = vunpack.c.l.b16 %v4214
        %v4561 = vunpack.c.h.b16 %v4214
        %v4562 = vunpack.c.l.b16 %v4215
        %v4563 = vunpack.c.h.b16 %v4215
        %v4564 = vunpack.c.l.b16 %v4216
        %v4565 = vunpack.c.h.b16 %v4216
        %v4566 = vunpack.c.l.b16 %v4217
        %v4567 = vunpack.c.h.b16 %v4217
        %v4568 = vunpack.c.l.b16 %v4218
        %v4569 = vunpack.c.h.b16 %v4218
        %v4570 = vunpack.c.l.b16 %v4219
        %v4571 = vunpack.c.h.b16 %v4219
        %v4572 = vunpack.c.l.b16 %v4220
        %v4573 = vunpack.c.h.b16 %v4220
        %v4574 = vunpack.c.l.b16 %v4221
        %v4575 = vunpack.c.h.b16 %v4221
        %v4576 = vunpack.c.l.b16 %v4222
        %v4577 = vunpack.c.h.b16 %v4222
        %v4578 = vunpack.c.l.b16 %v4223
        %v4579 = vunpack.c.h.b16 %v4223
        %v4580 = vunpack.c.l.b16 %v4224
        %v4581 = vunpack.c.h.b16 %v4224
        %v4582 = vunpack.c.l.b16 %v4225
        %v4583 = vunpack.c.h.b16 %v4225
        %v4584 = vunpack.c.l.b16 %v4226
        %v4585 = vunpack.c.h.b16 %v4226
        %v4586 = vunpack.c.l.b16 %v4227
        %v4587 = vunpack.c.h.b16 %v4227
        %v4588 = vunpack.c.l.b16 %v4228
        %v4589 = vunpack.c.h.b16 %v4228
        %v4590 = vunpack.c.l.b16 %v4229
        %v4591 = vunpack.c.h.b16 %v4229
        %v4592 = vunpack.c.l.b16 %v4230
        %v4593 = vunpack.c.h.b16 %v4230
        %v4594 = vunpack.c.l.b16 %v4231
        %v4595 = vunpack.c.h.b16 %v4231
        %v4596 = vunpack.c.l.b16 %v4232
        %v4597 = vunpack.c.h.b16 %v4232
        %v4598 = vunpack.c.l.b16 %v4233
        %v4599 = vunpack.c.h.b16 %v4233
        %v4600 = vunpack.c.l.b16 %v4234
        %v4601 = vunpack.c.h.b16 %v4234
        %v4602 = vunpack.c.l.b16 %v4235
        %v4603 = vunpack.c.h.b16 %v4235
        %v4604 = vunpack.c.l.b16 %v4236
        %v4605 = vunpack.c.h.b16 %v4236
        %v4606 = vunpack.c.l.b16 %v4237
        %v4607 = vunpack.c.h.b16 %v4237
        %v4608 = vunpack.c.l.b16 %v4238
        %v4609 = vunpack.c.h.b16 %v4238
        %v4610 = vunpack.c.l.b16 %v4239
        %v4611 = vunpack.c.h.b16 %v4239
        %v4612 = vunpack.c.l.b16 %v4240
        %v4613 = vunpack.c.h.b16 %v4240
        %v4614 = vunpack.c.l.b16 %v4241
        %v4615 = vunpack.c.h.b16 %v4241
        %v4616 = vunpack.c.l.b16 %v4242
        %v4617 = vunpack.c.h.b16 %v4242
        %v4618 = vunpack.c.l.b16 %v4243
        %v4619 = vunpack.c.h.b16 %v4243
        %v4620 = vunpack.c.l.b16 %v4244
        %v4621 = vunpack.c.h.b16 %v4244
        %v4622 = vunpack.c.l.b16 %v4245
        %v4623 = vunpack.c.h.b16 %v4245
        %v4624 = vunpack.c.l.b16 %v4246
        %v4625 = vunpack.c.h.b16 %v4246
        %v4626 = vunpack.c.l.b16 %v4247
        %v4627 = vunpack.c.h.b16 %v4247
        %v4628 = vunpack.c.l.b16 %v4248
        %v4629 = vunpack.c.h.b16 %v4248
        %v4630 = vunpack.c.l.b16 %v4249
        %v4631 = vunpack.c.h.b16 %v4249
        %v4632 = vunpack.c.l.b16 %v4250
        %v4633 = vunpack.c.h.b16 %v4250
        %v4634 = vunpack.c.l.b16 %v4251
        %v4635 = vunpack.c.h.b16 %v4251
        %v4636 = vunpack.c.l.b16 %v4252
        %v4637 = vunpack.c.h.b16 %v4252
        %v4638 = vunpack.c.l.b16 %v4253
        %v4639 = vunpack.c.h.b16 %v4253
        %v4640 = vunpack.c.l.b16 %v4254
        %v4641 = vunpack.c.h.b16 %v4254
        %v4642 = vunpack.c.l.b16 %v4255
        %v4643 = vunpack.c.h.b16 %v4255
        %v4644 = vunpack.c.l.b16 %v4256
        %v4645 = vunpack.c.h.b16 %v4256
        %v4646 = vunpack.c.l.b16 %v4257
        %v4647 = vunpack.c.h.b16 %v4257
        %v4648 = vunpack.c.l.b16 %v4258
        %v4649 = vunpack.c.h.b16 %v4258
        %v4650 = vunpack.c.l.b16 %v4259
        %v4651 = vunpack.c.h.b16 %v4259
        %v4652 = vunpack.c.l.b16 %v4260
        %v4653 = vunpack.c.h.b16 %v4260
        %v4654 = vunpack.c.l.b16 %v4261
        %v4655 = vunpack.c.h.b16 %v4261
        %v4656 = vunpack.c.l.b16 %v4262
        %v4657 = vunpack.c.h.b16 %v4262
        %v4658 = vunpack.c.l.b16 %v4263
        %v4659 = vunpack.c.h.b16 %v4263
        %v4660 = vunpack.c.l.b16 %v4264
        %v4661 = vunpack.c.h.b16 %v4264
        %v4662 = vunpack.c.l.b16 %v4265
        %v4663 = vunpack.c.h.b16 %v4265
        %v4664 = vunpack.c.l.b16 %v4266
        %v4665 = vunpack.c.h.b16 %v4266
        %v4666 = vunpack.c.l.b16 %v4267
        %v4667 = vunpack.c.h.b16 %v4267
        %v4668 = vpack.c.b16 %v4416, %v4412
        %v4669 = vpack.c.b16 %v4417, %v4413
        %v4670 = vpack.c.b16 %v4418, %v4414
        %v4671 = vpack.c.b16 %v4419, %v4415
        %v4672 = vpack.c.b16 %v4424, %v4420
        %v4673 = vpack.c.b16 %v4425, %v4421
        %v4674 = vpack.c.b16 %v4426, %v4422
        %v4675 = vpack.c.b16 %v4427, %v4423
        %v4676 = vpack.c.b16 %v4432, %v4428
        %v4677 = vpack.c.b16 %v4433, %v4429
        %v4678 = vpack.c.b16 %v4434, %v4430
        %v4679 = vpack.c.b16 %v4435, %v4431
        %v4680 = vpack.c.b16 %v4440, %v4436
        %v4681 = vpack.c.b16 %v4441, %v4437
        %v4682 = vpack.c.b16 %v4442, %v4438
        %v4683 = vpack.c.b16 %v4443, %v4439
        %v4684 = vpack.c.b16 %v4448, %v4444
        %v4685 = vpack.c.b16 %v4449, %v4445
        %v4686 = vpack.c.b16 %v4450, %v4446
        %v4687 = vpack.c.b16 %v4451, %v4447
        %v4688 = vpack.c.b16 %v4456, %v4452
        %v4689 = vpack.c.b16 %v4457, %v4453
        %v4690 = vpack.c.b16 %v4458, %v4454
        %v4691 = vpack.c.b16 %v4459, %v4455
        %v4692 = vpack.c.b16 %v4464, %v4460
        %v4693 = vpack.c.b16 %v4465, %v4461
        %v4694 = vpack.c.b16 %v4466, %v4462
        %v4695 = vpack.c.b16 %v4467, %v4463
        %v4696 = vpack.c.b16 %v4472, %v4468
        %v4697 = vpack.c.b16 %v4473, %v4469
        %v4698 = vpack.c.b16 %v4474, %v4470
        %v4699 = vpack.c.b16 %v4475, %v4471
        %v4700 = vpack.c.b16 %v4480, %v4476
        %v4701 = vpack.c.b16 %v4481, %v4477
        %v4702 = vpack.c.b16 %v4482, %v4478
        %v4703 = vpack.c.b16 %v4483, %v4479
        %v4704 = vpack.c.b16 %v4488, %v4484
        %v4705 = vpack.c.b16 %v4489, %v4485
        %v4706 = vpack.c.b16 %v4490, %v4486
        %v4707 = vpack.c.b16 %v4491, %v4487
        %v4708 = vpack.c.b16 %v4496, %v4492
        %v4709 = vpack.c.b16 %v4497, %v4493
        %v4710 = vpack.c.b16 %v4498, %v4494
        %v4711 = vpack.c.b16 %v4499, %v4495
        %v4712 = vpack.c.b16 %v4504, %v4500
        %v4713 = vpack.c.b16 %v4505, %v4501
        %v4714 = vpack.c.b16 %v4506, %v4502
        %v4715 = vpack.c.b16 %v4507, %v4503
        %v4716 = vpack.c.b16 %v4512, %v4508
        %v4717 = vpack.c.b16 %v4513, %v4509
        %v4718 = vpack.c.b16 %v4514, %v4510
        %v4719 = vpack.c.b16 %v4515, %v4511
        %v4720 = vpack.c.b16 %v4520, %v4516
        %v4721 = vpack.c.b16 %v4521, %v4517
        %v4722 = vpack.c.b16 %v4522, %v4518
        %v4723 = vpack.c.b16 %v4523, %v4519
        %v4724 = vpack.c.b16 %v4528, %v4524
        %v4725 = vpack.c.b16 %v4529, %v4525
        %v4726 = vpack.c.b16 %v4530, %v4526
        %v4727 = vpack.c.b16 %v4531, %v4527
        %v4728 = vpack.c.b16 %v4536, %v4532
        %v4729 = vpack.c.b16 %v4537, %v4533
        %v4730 = vpack.c.b16 %v4538, %v4534
        %v4731 = vpack.c.b16 %v4539, %v4535
        %v4732 = vpack.c.b16 %v4544, %v4540
        %v4733 = vpack.c.b16 %v4545, %v4541
        %v4734 = vpack.c.b16 %v4546, %v4542
        %v4735 = vpack.c.b16 %v4547, %v4543
        %v4736 = vpack.c.b16 %v4552, %v4548
        %v4737 = vpack.c.b16 %v4553, %v4549
        %v4738 = vpack.c.b16 %v4554, %v4550
        %v4739 = vpack.c.b16 %v4555, %v4551
        %v4740 = vpack.c.b16 %v4560, %v4556
        %v4741 = vpack.c.b16 %v4561, %v4557
        %v4742 = vpack.c.b16 %v4562, %v4558
        %v4743 = vpack.c.b16 %v4563, %v4559
        %v4744 = vpack.c.b16 %v4568, %v4564
        %v4745 = vpack.c.b16 %v4569, %v4565
        %v4746 = vpack.c.b16 %v4570, %v4566
        %v4747 = vpack.c.b16 %v4571, %v4567
        %v4748 = vpack.c.b16 %v4576, %v4572
        %v4749 = vpack.c.b16 %v4577, %v4573
        %v4750 = vpack.c.b16 %v4578, %v4574
        %v4751 = vpack.c.b16 %v4579, %v4575
        %v4752 = vpack.c.b16 %v4584, %v4580
        %v4753 = vpack.c.b16 %v4585, %v4581
        %v4754 = vpack.c.b16 %v4586, %v4582
        %v4755 = vpack.c.b16 %v4587, %v4583
        %v4756 = vpack.c.b16 %v4592, %v4588
        %v4757 = vpack.c.b16 %v4593, %v4589
        %v4758 = vpack.c.b16 %v4594, %v4590
        %v4759 = vpack.c.b16 %v4595, %v4591
        %v4760 = vpack.c.b16 %v4600, %v4596
        %v4761 = vpack.c.b16 %v4601, %v4597
        %v4762 = vpack.c.b16 %v4602, %v4598
        %v4763 = vpack.c.b16 %v4603, %v4599
        %v4764 = vpack.c.b16 %v4608, %v4604
        %v4765 = vpack.c.b16 %v4609, %v4605
        %v4766 = vpack.c.b16 %v4610, %v4606
        %v4767 = vpack.c.b16 %v4611, %v4607
        %v4768 = vpack.c.b16 %v4616, %v4612
        %v4769 = vpack.c.b16 %v4617, %v4613
        %v4770 = vpack.c.b16 %v4618, %v4614
        %v4771 = vpack.c.b16 %v4619, %v4615
        %v4772 = vpack.c.b16 %v4624, %v4620
        %v4773 = vpack.c.b16 %v4625, %v4621
        %v4774 = vpack.c.b16 %v4626, %v4622
        %v4775 = vpack.c.b16 %v4627, %v4623
        %v4776 = vpack.c.b16 %v4632, %v4628
        %v4777 = vpack.c.b16 %v4633, %v4629
        %v4778 = vpack.c.b16 %v4634, %v4630
        %v4779 = vpack.c.b16 %v4635, %v4631
        %v4780 = vpack.c.b16 %v4640, %v4636
        %v4781 = vpack.c.b16 %v4641, %v4637
        %v4782 = vpack.c.b16 %v4642, %v4638
        %v4783 = vpack.c.b16 %v4643, %v4639
        %v4784 = vpack.c.b16 %v4648, %v4644
        %v4785 = vpack.c.b16 %v4649, %v4645
        %v4786 = vpack.c.b16 %v4650, %v4646
        %v4787 = vpack.c.b16 %v4651, %v4647
        %v4788 = vpack.c.b16 %v4656, %v4652
        %v4789 = vpack.c.b16 %v4657, %v4653
        %v4790 = vpack.c.b16 %v4658, %v4654
        %v4791 = vpack.c.b16 %v4659, %v4655
        %v4792 = vpack.c.b16 %v4664, %v4660
        %v4793 = vpack.c.b16 %v4665, %v4661
        %v4794 = vpack.c.b16 %v4666, %v4662
        %v4795 = vpack.c.b16 %v4667, %v4663
        %4924 = vmatprep.subr.bf16.mxu0 %v4669
        %4925 = vmatpush1.bf16.msra.mxu0 %v4668
        %4926 = vmatprep.subr.bf16.mxu0 %v4673
        %4927 = vmatpush1.bf16.msra.mxu0 %v4672
        %4928 = vmatprep.subr.bf16.mxu0 %v4677
        %4929 = vmatpush1.bf16.msra.mxu0 %v4676
        %4930 = vmatprep.subr.bf16.mxu0 %v4681
        %4931 = vmatpush1.bf16.msra.mxu0 %v4680
        %4932 = vmatprep.subr.bf16.mxu0 %v4685
        %4933 = vmatpush1.bf16.msra.mxu0 %v4684
        %4934 = vmatprep.subr.bf16.mxu0 %v4689
        %4935 = vmatpush1.bf16.msra.mxu0 %v4688
        %4936 = vmatprep.subr.bf16.mxu0 %v4693
        %4937 = vmatpush1.bf16.msra.mxu0 %v4692
        %4938 = vmatprep.subr.bf16.mxu0 %v4697
        %4939 = vmatpush1.bf16.msra.mxu0 %v4696
        %4940 = vmatprep.subr.bf16.mxu0 %v4701
        %4941 = vmatpush1.bf16.msra.mxu0 %v4700
        %4942 = vmatprep.subr.bf16.mxu0 %v4705
        %4943 = vmatpush1.bf16.msra.mxu0 %v4704
        %4944 = vmatprep.subr.bf16.mxu0 %v4709
        %4945 = vmatpush1.bf16.msra.mxu0 %v4708
        %4946 = vmatprep.subr.bf16.mxu0 %v4713
        %4947 = vmatpush1.bf16.msra.mxu0 %v4712
        %4948 = vmatprep.subr.bf16.mxu0 %v4717
        %4949 = vmatpush1.bf16.msra.mxu0 %v4716
        %4950 = vmatprep.subr.bf16.mxu0 %v4721
        %4951 = vmatpush1.bf16.msra.mxu0 %v4720
        %4952 = vmatprep.subr.bf16.mxu0 %v4725
        %4953 = vmatpush1.bf16.msra.mxu0 %v4724
        %4954 = vmatprep.subr.bf16.mxu0 %v4729
        %4955 = vmatpush1.bf16.msra.mxu0 %v4728
        %4956 = vmatprep.mubr.bf16.mxu0 %v4137
        %4957 = vmatmul.mubr.bf16.gmra.mrb[0].mxu0 %v4136
        %v4958 = vpop.f32.mrb[0].mxu0
        %v4959 = vadd.f32 %v4271, %v4958
        %v4960 = vpop.f32.mrb[0].mxu0
        %v4961 = vadd.f32 %v4275, %v4960
        %v4962 = vpop.f32.mrb[0].mxu0
        %v4963 = vadd.f32 %v4271, %v4962
        %v4964 = vpop.f32.mrb[0].mxu0
        %v4965 = vadd.f32 %v4275, %v4964
        %4966 = vdwg.mxu0
        %4967 = vmatprep.subr.bf16.mxu0 %v4733
        %4968 = vmatpush1.bf16.msra.mxu0 %v4732
        %4969 = vmatprep.subr.bf16.mxu0 %v4737
        %4970 = vmatpush1.bf16.msra.mxu0 %v4736
        %4971 = vmatprep.subr.bf16.mxu0 %v4741
        %4972 = vmatpush1.bf16.msra.mxu0 %v4740
        %4973 = vmatprep.subr.bf16.mxu0 %v4745
        %4974 = vmatpush1.bf16.msra.mxu0 %v4744
        %4975 = vmatprep.subr.bf16.mxu0 %v4749
        %4976 = vmatpush1.bf16.msra.mxu0 %v4748
        %4977 = vmatprep.subr.bf16.mxu0 %v4753
        %4978 = vmatpush1.bf16.msra.mxu0 %v4752
        %4979 = vmatprep.subr.bf16.mxu0 %v4757
        %4980 = vmatpush1.bf16.msra.mxu0 %v4756
        %4981 = vmatprep.subr.bf16.mxu0 %v4761
        %4982 = vmatpush1.bf16.msra.mxu0 %v4760
        %4983 = vmatprep.subr.bf16.mxu0 %v4765
        %4984 = vmatpush1.bf16.msra.mxu0 %v4764
        %4985 = vmatprep.subr.bf16.mxu0 %v4769
        %4986 = vmatpush1.bf16.msra.mxu0 %v4768
        %4987 = vmatprep.subr.bf16.mxu0 %v4773
        %4988 = vmatpush1.bf16.msra.mxu0 %v4772
        %4989 = vmatprep.subr.bf16.mxu0 %v4777
        %4990 = vmatpush1.bf16.msra.mxu0 %v4776
        %4991 = vmatprep.subr.bf16.mxu0 %v4781
        %4992 = vmatpush1.bf16.msra.mxu0 %v4780
        %4993 = vmatprep.subr.bf16.mxu0 %v4785
        %4994 = vmatpush1.bf16.msra.mxu0 %v4784
        %4995 = vmatprep.subr.bf16.mxu0 %v4789
        %4996 = vmatpush1.bf16.msra.mxu0 %v4788
        %4997 = vmatprep.subr.bf16.mxu0 %v4793
        %4998 = vmatpush1.bf16.msra.mxu0 %v4792
        %4999 = vmatprep.mubr.bf16.mxu0 %v4139
        %5000 = vmatmul.mubr.bf16.gmra.mrb[0].mxu0 %v4138
        %v5001 = vpop.f32.mrb[0].mxu0
        %v5002 = vadd.f32 %v4959, %v5001
        %v5003 = vpop.f32.mrb[0].mxu0
        %v5004 = vadd.f32 %v4961, %v5003
        %v5005 = vpop.f32.mrb[0].mxu0
        %v5006 = vadd.f32 %v4963, %v5005
        %v5007 = vpop.f32.mrb[0].mxu0
        %v5008 = vadd.f32 %v4965, %v5007
        %5009 = vdwg.mxu0
        %5010 = vmatprep.subr.bf16.mxu0 %v4671
        %5011 = vmatpush1.bf16.msra.mxu0 %v4670
        %5012 = vmatprep.subr.bf16.mxu0 %v4675
        %5013 = vmatpush1.bf16.msra.mxu0 %v4674
        %5014 = vmatprep.subr.bf16.mxu0 %v4679
        %5015 = vmatpush1.bf16.msra.mxu0 %v4678
        %5016 = vmatprep.subr.bf16.mxu0 %v4683
        %5017 = vmatpush1.bf16.msra.mxu0 %v4682
        %5018 = vmatprep.subr.bf16.mxu0 %v4687
        %5019 = vmatpush1.bf16.msra.mxu0 %v4686
        %5020 = vmatprep.subr.bf16.mxu0 %v4691
        %5021 = vmatpush1.bf16.msra.mxu0 %v4690
        %5022 = vmatprep.subr.bf16.mxu0 %v4695
        %5023 = vmatpush1.bf16.msra.mxu0 %v4694
        %5024 = vmatprep.subr.bf16.mxu0 %v4699
        %5025 = vmatpush1.bf16.msra.mxu0 %v4698
        %5026 = vmatprep.subr.bf16.mxu0 %v4703
        %5027 = vmatpush1.bf16.msra.mxu0 %v4702
        %5028 = vmatprep.subr.bf16.mxu0 %v4707
        %5029 = vmatpush1.bf16.msra.mxu0 %v4706
        %5030 = vmatprep.subr.bf16.mxu0 %v4711
        %5031 = vmatpush1.bf16.msra.mxu0 %v4710
        %5032 = vmatprep.subr.bf16.mxu0 %v4715
        %5033 = vmatpush1.bf16.msra.mxu0 %v4714
        %5034 = vmatprep.subr.bf16.mxu0 %v4719
        %5035 = vmatpush1.bf16.msra.mxu0 %v4718
        %5036 = vmatprep.subr.bf16.mxu0 %v4723
        %5037 = vmatpush1.bf16.msra.mxu0 %v4722
        %5038 = vmatprep.subr.bf16.mxu0 %v4727
        %5039 = vmatpush1.bf16.msra.mxu0 %v4726
        %5040 = vmatprep.subr.bf16.mxu0 %v4731
        %5041 = vmatpush1.bf16.msra.mxu0 %v4730
        %5042 = vmatprep.mubr.bf16.mxu0 %v4137
        %5043 = vmatmul.mubr.bf16.gmra.mrb[0].mxu0 %v4136
        %v5044 = vpop.f32.mrb[0].mxu0
        %v5045 = vadd.f32 %v4279, %v5044
        %v5046 = vpop.f32.mrb[0].mxu0
        %v5047 = vadd.f32 %v4283, %v5046
        %v5048 = vpop.f32.mrb[0].mxu0
        %v5049 = vadd.f32 %v4279, %v5048
        %v5050 = vpop.f32.mrb[0].mxu0
        %v5051 = vadd.f32 %v4283, %v5050
        %5052 = vdwg.mxu0
        %5053 = vmatprep.subr.bf16.mxu0 %v4735
        %5054 = vmatpush1.bf16.msra.mxu0 %v4734
        %5055 = vmatprep.subr.bf16.mxu0 %v4739
        %5056 = vmatpush1.bf16.msra.mxu0 %v4738
        %5057 = vmatprep.subr.bf16.mxu0 %v4743
        %5058 = vmatpush1.bf16.msra.mxu0 %v4742
        %5059 = vmatprep.subr.bf16.mxu0 %v4747
        %5060 = vmatpush1.bf16.msra.mxu0 %v4746
        %5061 = vmatprep.subr.bf16.mxu0 %v4751
        %5062 = vmatpush1.bf16.msra.mxu0 %v4750
        %5063 = vmatprep.subr.bf16.mxu0 %v4755
        %5064 = vmatpush1.bf16.msra.mxu0 %v4754
        %5065 = vmatprep.subr.bf16.mxu0 %v4759
        %5066 = vmatpush1.bf16.msra.mxu0 %v4758
        %5067 = vmatprep.subr.bf16.mxu0 %v4763
        %5068 = vmatpush1.bf16.msra.mxu0 %v4762
        %5069 = vmatprep.subr.bf16.mxu0 %v4767
        %5070 = vmatpush1.bf16.msra.mxu0 %v4766
        %5071 = vmatprep.subr.bf16.mxu0 %v4771
        %5072 = vmatpush1.bf16.msra.mxu0 %v4770
        %5073 = vmatprep.subr.bf16.mxu0 %v4775
        %5074 = vmatpush1.bf16.msra.mxu0 %v4774
        %5075 = vmatprep.subr.bf16.mxu0 %v4779
        %5076 = vmatpush1.bf16.msra.mxu0 %v4778
        %5077 = vmatprep.subr.bf16.mxu0 %v4783
        %5078 = vmatpush1.bf16.msra.mxu0 %v4782
        %5079 = vmatprep.subr.bf16.mxu0 %v4787
        %5080 = vmatpush1.bf16.msra.mxu0 %v4786
        %5081 = vmatprep.subr.bf16.mxu0 %v4791
        %5082 = vmatpush1.bf16.msra.mxu0 %v4790
        %5083 = vmatprep.subr.bf16.mxu0 %v4795
        %5084 = vmatpush1.bf16.msra.mxu0 %v4794
        %5085 = vmatprep.mubr.bf16.mxu0 %v4139
        %5086 = vmatmul.mubr.bf16.gmra.mrb[0].mxu0 %v4138
        %v5087 = vpop.f32.mrb[0].mxu0
        %v5088 = vadd.f32 %v5045, %v5087
        %v5089 = vpop.f32.mrb[0].mxu0
        %v5090 = vadd.f32 %v5047, %v5089
        %v5091 = vpop.f32.mrb[0].mxu0
        %v5092 = vadd.f32 %v5049, %v5091
        %v5093 = vpop.f32.mrb[0].mxu0
        %v5094 = vadd.f32 %v5051, %v5093
        %5095 = vdwg.mxu0
        %v5096 = vmax.f32 %v5002, 0.0
        %v5097 = vmax.f32 %v5004, 0.0
        %v5098 = vmax.f32 %v5088, 0.0
        %v5099 = vmax.f32 %v5090, 0.0
        %v5100 = vmax.f32 %v5006, 0.0
        %v5101 = vmax.f32 %v5008, 0.0
        %v5102 = vmax.f32 %v5092, 0.0
        %v5103 = vmax.f32 %v5094, 0.0
        %v5104 = vpack.c.bf16 %v5100, %v5096
        %v5105 = vpack.c.bf16 %v5101, %v5097
        %v5106 = vpack.c.bf16 %v5102, %v5098
        %v5107 = vpack.c.bf16 %v5103, %v5099
        %v5108 = vld [vmem:[#allocation6] sm:$0xff]
        %v5109 = vld [vmem:[#allocation6 + $0x8] sm:$0xff]
        %v5110 = vld [vmem:[#allocation6 + $0x10] sm:$0xff]
        %v5111 = vld [vmem:[#allocation6 + $0x18] sm:$0xff]
        %v5112 = vld [vmem:[#allocation6 + $0x20] sm:$0xff]
        %v5113 = vld [vmem:[#allocation6 + $0x28] sm:$0xff]
        %v5114 = vld [vmem:[#allocation6 + $0x30] sm:$0xff]
        %v5115 = vld [vmem:[#allocation6 + $0x38] sm:$0xff]
        %v5116 = vld [vmem:[#allocation6 + $0x40] sm:$0xff]
        %v5117 = vld [vmem:[#allocation6 + $0x48] sm:$0xff]
        %v5118 = vld [vmem:[#allocation6 + $0x50] sm:$0xff]
        %v5119 = vld [vmem:[#allocation6 + $0x58] sm:$0xff]
        %v5120 = vld [vmem:[#allocation6 + $0x60] sm:$0xff]
        %v5121 = vld [vmem:[#allocation6 + $0x68] sm:$0xff]
        %v5122 = vld [vmem:[#allocation6 + $0x70] sm:$0xff]
        %v5123 = vld [vmem:[#allocation6 + $0x78] sm:$0xff]
        %v5124 = vld [vmem:[#allocation6 + $0x80] sm:$0xff]
        %v5125 = vld [vmem:[#allocation6 + $0x88] sm:$0xff]
        %v5126 = vld [vmem:[#allocation6 + $0x90] sm:$0xff]
        %v5127 = vld [vmem:[#allocation6 + $0x98] sm:$0xff]
        %v5128 = vld [vmem:[#allocation6 + $0xa0] sm:$0xff]
        %v5129 = vld [vmem:[#allocation6 + $0xa8] sm:$0xff]
        %v5130 = vld [vmem:[#allocation6 + $0xb0] sm:$0xff]
        %v5131 = vld [vmem:[#allocation6 + $0xb8] sm:$0xff]
        %v5132 = vld [vmem:[#allocation6 + $0xc0] sm:$0xff]
        %v5133 = vld [vmem:[#allocation6 + $0xc8] sm:$0xff]
        %v5134 = vld [vmem:[#allocation6 + $0xd0] sm:$0xff]
        %v5135 = vld [vmem:[#allocation6 + $0xd8] sm:$0xff]
        %v5136 = vld [vmem:[#allocation6 + $0xe0] sm:$0xff]
        %v5137 = vld [vmem:[#allocation6 + $0xe8] sm:$0xff]
        %v5138 = vld [vmem:[#allocation6 + $0xf0] sm:$0xff]
        %v5139 = vld [vmem:[#allocation6 + $0xf8] sm:$0xff]
        %v5140 = vld [vmem:[#allocation6 + $0x100] sm:$0xff]
        %v5141 = vld [vmem:[#allocation6 + $0x108] sm:$0xff]
        %v5142 = vld [vmem:[#allocation6 + $0x110] sm:$0xff]
        %v5143 = vld [vmem:[#allocation6 + $0x118] sm:$0xff]
        %v5144 = vld [vmem:[#allocation6 + $0x120] sm:$0xff]
        %v5145 = vld [vmem:[#allocation6 + $0x128] sm:$0xff]
        %v5146 = vld [vmem:[#allocation6 + $0x130] sm:$0xff]
        %v5147 = vld [vmem:[#allocation6 + $0x138] sm:$0xff]
        %v5148 = vld [vmem:[#allocation6 + $0x140] sm:$0xff]
        %v5149 = vld [vmem:[#allocation6 + $0x148] sm:$0xff]
        %v5150 = vld [vmem:[#allocation6 + $0x150] sm:$0xff]
        %v5151 = vld [vmem:[#allocation6 + $0x158] sm:$0xff]
        %v5152 = vld [vmem:[#allocation6 + $0x160] sm:$0xff]
        %v5153 = vld [vmem:[#allocation6 + $0x168] sm:$0xff]
        %v5154 = vld [vmem:[#allocation6 + $0x170] sm:$0xff]
        %v5155 = vld [vmem:[#allocation6 + $0x178] sm:$0xff]
        %v5156 = vld [vmem:[#allocation6 + $0x180] sm:$0xff]
        %v5157 = vld [vmem:[#allocation6 + $0x188] sm:$0xff]
        %v5158 = vld [vmem:[#allocation6 + $0x190] sm:$0xff]
        %v5159 = vld [vmem:[#allocation6 + $0x198] sm:$0xff]
        %v5160 = vld [vmem:[#allocation6 + $0x1a0] sm:$0xff]
        %v5161 = vld [vmem:[#allocation6 + $0x1a8] sm:$0xff]
        %v5162 = vld [vmem:[#allocation6 + $0x1b0] sm:$0xff]
        %v5163 = vld [vmem:[#allocation6 + $0x1b8] sm:$0xff]
        %v5164 = vld [vmem:[#allocation6 + $0x1c0] sm:$0xff]
        %v5165 = vld [vmem:[#allocation6 + $0x1c8] sm:$0xff]
        %v5166 = vld [vmem:[#allocation6 + $0x1d0] sm:$0xff]
        %v5167 = vld [vmem:[#allocation6 + $0x1d8] sm:$0xff]
        %v5168 = vld [vmem:[#allocation6 + $0x1e0] sm:$0xff]
        %v5169 = vld [vmem:[#allocation6 + $0x1e8] sm:$0xff]
        %v5170 = vld [vmem:[#allocation6 + $0x1f0] sm:$0xff]
        %v5171 = vld [vmem:[#allocation6 + $0x1f8] sm:$0xff]
        %v5172 = vld [vmem:[#allocation6 + $0x200] sm:$0xff]
        %v5173 = vld [vmem:[#allocation6 + $0x208] sm:$0xff]
        %v5174 = vld [vmem:[#allocation6 + $0x210] sm:$0xff]
        %v5175 = vld [vmem:[#allocation6 + $0x218] sm:$0xff]
        %v5176 = vld [vmem:[#allocation6 + $0x220] sm:$0xff]
        %v5177 = vld [vmem:[#allocation6 + $0x228] sm:$0xff]
        %v5178 = vld [vmem:[#allocation6 + $0x230] sm:$0xff]
        %v5179 = vld [vmem:[#allocation6 + $0x238] sm:$0xff]
        %v5180 = vld [vmem:[#allocation6 + $0x240] sm:$0xff]
        %v5181 = vld [vmem:[#allocation6 + $0x248] sm:$0xff]
        %v5182 = vld [vmem:[#allocation6 + $0x250] sm:$0xff]
        %v5183 = vld [vmem:[#allocation6 + $0x258] sm:$0xff]
        %v5184 = vld [vmem:[#allocation6 + $0x260] sm:$0xff]
        %v5185 = vld [vmem:[#allocation6 + $0x268] sm:$0xff]
        %v5186 = vld [vmem:[#allocation6 + $0x270] sm:$0xff]
        %v5187 = vld [vmem:[#allocation6 + $0x278] sm:$0xff]
        %v5188 = vld [vmem:[#allocation6 + $0x280] sm:$0xff]
        %v5189 = vld [vmem:[#allocation6 + $0x288] sm:$0xff]
        %v5190 = vld [vmem:[#allocation6 + $0x290] sm:$0xff]
        %v5191 = vld [vmem:[#allocation6 + $0x298] sm:$0xff]
        %v5192 = vld [vmem:[#allocation6 + $0x2a0] sm:$0xff]
        %v5193 = vld [vmem:[#allocation6 + $0x2a8] sm:$0xff]
        %v5194 = vld [vmem:[#allocation6 + $0x2b0] sm:$0xff]
        %v5195 = vld [vmem:[#allocation6 + $0x2b8] sm:$0xff]
        %v5196 = vld [vmem:[#allocation6 + $0x2c0] sm:$0xff]
        %v5197 = vld [vmem:[#allocation6 + $0x2c8] sm:$0xff]
        %v5198 = vld [vmem:[#allocation6 + $0x2d0] sm:$0xff]
        %v5199 = vld [vmem:[#allocation6 + $0x2d8] sm:$0xff]
        %v5200 = vld [vmem:[#allocation6 + $0x2e0] sm:$0xff]
        %v5201 = vld [vmem:[#allocation6 + $0x2e8] sm:$0xff]
        %v5202 = vld [vmem:[#allocation6 + $0x2f0] sm:$0xff]
        %v5203 = vld [vmem:[#allocation6 + $0x2f8] sm:$0xff]
        %v5204 = vld [vmem:[#allocation6 + $0x300] sm:$0xff]
        %v5205 = vld [vmem:[#allocation6 + $0x308] sm:$0xff]
        %v5206 = vld [vmem:[#allocation6 + $0x310] sm:$0xff]
        %v5207 = vld [vmem:[#allocation6 + $0x318] sm:$0xff]
        %v5208 = vld [vmem:[#allocation6 + $0x320] sm:$0xff]
        %v5209 = vld [vmem:[#allocation6 + $0x328] sm:$0xff]
        %v5210 = vld [vmem:[#allocation6 + $0x330] sm:$0xff]
        %v5211 = vld [vmem:[#allocation6 + $0x338] sm:$0xff]
        %v5212 = vld [vmem:[#allocation6 + $0x340] sm:$0xff]
        %v5213 = vld [vmem:[#allocation6 + $0x348] sm:$0xff]
        %v5214 = vld [vmem:[#allocation6 + $0x350] sm:$0xff]
        %v5215 = vld [vmem:[#allocation6 + $0x358] sm:$0xff]
        %v5216 = vld [vmem:[#allocation6 + $0x360] sm:$0xff]
        %v5217 = vld [vmem:[#allocation6 + $0x368] sm:$0xff]
        %v5218 = vld [vmem:[#allocation6 + $0x370] sm:$0xff]
        %v5219 = vld [vmem:[#allocation6 + $0x378] sm:$0xff]
        %v5220 = vld [vmem:[#allocation6 + $0x380] sm:$0xff]
        %v5221 = vld [vmem:[#allocation6 + $0x388] sm:$0xff]
        %v5222 = vld [vmem:[#allocation6 + $0x390] sm:$0xff]
        %v5223 = vld [vmem:[#allocation6 + $0x398] sm:$0xff]
        %v5224 = vld [vmem:[#allocation6 + $0x3a0] sm:$0xff]
        %v5225 = vld [vmem:[#allocation6 + $0x3a8] sm:$0xff]
        %v5226 = vld [vmem:[#allocation6 + $0x3b0] sm:$0xff]
        %v5227 = vld [vmem:[#allocation6 + $0x3b8] sm:$0xff]
        %v5228 = vld [vmem:[#allocation6 + $0x3c0] sm:$0xff]
        %v5229 = vld [vmem:[#allocation6 + $0x3c8] sm:$0xff]
        %v5230 = vld [vmem:[#allocation6 + $0x3d0] sm:$0xff]
        %v5231 = vld [vmem:[#allocation6 + $0x3d8] sm:$0xff]
        %v5232 = vld [vmem:[#allocation6 + $0x3e0] sm:$0xff]
        %v5233 = vld [vmem:[#allocation6 + $0x3e8] sm:$0xff]
        %v5234 = vld [vmem:[#allocation6 + $0x3f0] sm:$0xff]
        %v5235 = vld [vmem:[#allocation6 + $0x3f8] sm:$0xff]
        %v5236 = vlaneseq
        %v5237 = vshrl.u32 %v5236, 7
        %v5238 = vsub.s32 4, %v5237
        %v5239 = vrot.slane %v440, %v5238
        %v5240 = vlaneseq
        %v5241 = vshrl.u32 %v5240, 7
        %v5242 = vsub.s32 4, %v5241
        %v5243 = vrot.slane %v441, %v5242
        %v5244 = vlaneseq
        %v5245 = vshrl.u32 %v5244, 7
        %v5246 = vsub.s32 4, %v5245
        %v5247 = vrot.slane %v442, %v5246
        %v5248 = vlaneseq
        %v5249 = vshrl.u32 %v5248, 7
        %v5250 = vsub.s32 4, %v5249
        %v5251 = vrot.slane %v443, %v5250
        %v5380 = vunpack.c.l.b16 %v5108
        %v5381 = vunpack.c.h.b16 %v5108
        %v5382 = vunpack.c.l.b16 %v5109
        %v5383 = vunpack.c.h.b16 %v5109
        %v5384 = vunpack.c.l.b16 %v5110
        %v5385 = vunpack.c.h.b16 %v5110
        %v5386 = vunpack.c.l.b16 %v5111
        %v5387 = vunpack.c.h.b16 %v5111
        %v5388 = vunpack.c.l.b16 %v5112
        %v5389 = vunpack.c.h.b16 %v5112
        %v5390 = vunpack.c.l.b16 %v5113
        %v5391 = vunpack.c.h.b16 %v5113
        %v5392 = vunpack.c.l.b16 %v5114
        %v5393 = vunpack.c.h.b16 %v5114
        %v5394 = vunpack.c.l.b16 %v5115
        %v5395 = vunpack.c.h.b16 %v5115
        %v5396 = vunpack.c.l.b16 %v5116
        %v5397 = vunpack.c.h.b16 %v5116
        %v5398 = vunpack.c.l.b16 %v5117
        %v5399 = vunpack.c.h.b16 %v5117
        %v5400 = vunpack.c.l.b16 %v5118
        %v5401 = vunpack.c.h.b16 %v5118
        %v5402 = vunpack.c.l.b16 %v5119
        %v5403 = vunpack.c.h.b16 %v5119
        %v5404 = vunpack.c.l.b16 %v5120
        %v5405 = vunpack.c.h.b16 %v5120
        %v5406 = vunpack.c.l.b16 %v5121
        %v5407 = vunpack.c.h.b16 %v5121
        %v5408 = vunpack.c.l.b16 %v5122
        %v5409 = vunpack.c.h.b16 %v5122
        %v5410 = vunpack.c.l.b16 %v5123
        %v5411 = vunpack.c.h.b16 %v5123
        %v5412 = vunpack.c.l.b16 %v5124
        %v5413 = vunpack.c.h.b16 %v5124
        %v5414 = vunpack.c.l.b16 %v5125
        %v5415 = vunpack.c.h.b16 %v5125
        %v5416 = vunpack.c.l.b16 %v5126
        %v5417 = vunpack.c.h.b16 %v5126
        %v5418 = vunpack.c.l.b16 %v5127
        %v5419 = vunpack.c.h.b16 %v5127
        %v5420 = vunpack.c.l.b16 %v5128
        %v5421 = vunpack.c.h.b16 %v5128
        %v5422 = vunpack.c.l.b16 %v5129
        %v5423 = vunpack.c.h.b16 %v5129
        %v5424 = vunpack.c.l.b16 %v5130
        %v5425 = vunpack.c.h.b16 %v5130
        %v5426 = vunpack.c.l.b16 %v5131
        %v5427 = vunpack.c.h.b16 %v5131
        %v5428 = vunpack.c.l.b16 %v5132
        %v5429 = vunpack.c.h.b16 %v5132
        %v5430 = vunpack.c.l.b16 %v5133
        %v5431 = vunpack.c.h.b16 %v5133
        %v5432 = vunpack.c.l.b16 %v5134
        %v5433 = vunpack.c.h.b16 %v5134
        %v5434 = vunpack.c.l.b16 %v5135
        %v5435 = vunpack.c.h.b16 %v5135
        %v5436 = vunpack.c.l.b16 %v5136
        %v5437 = vunpack.c.h.b16 %v5136
        %v5438 = vunpack.c.l.b16 %v5137
        %v5439 = vunpack.c.h.b16 %v5137
        %v5440 = vunpack.c.l.b16 %v5138
        %v5441 = vunpack.c.h.b16 %v5138
        %v5442 = vunpack.c.l.b16 %v5139
        %v5443 = vunpack.c.h.b16 %v5139
        %v5444 = vunpack.c.l.b16 %v5140
        %v5445 = vunpack.c.h.b16 %v5140
        %v5446 = vunpack.c.l.b16 %v5141
        %v5447 = vunpack.c.h.b16 %v5141
        %v5448 = vunpack.c.l.b16 %v5142
        %v5449 = vunpack.c.h.b16 %v5142
        %v5450 = vunpack.c.l.b16 %v5143
        %v5451 = vunpack.c.h.b16 %v5143
        %v5452 = vunpack.c.l.b16 %v5144
        %v5453 = vunpack.c.h.b16 %v5144
        %v5454 = vunpack.c.l.b16 %v5145
        %v5455 = vunpack.c.h.b16 %v5145
        %v5456 = vunpack.c.l.b16 %v5146
        %v5457 = vunpack.c.h.b16 %v5146
        %v5458 = vunpack.c.l.b16 %v5147
        %v5459 = vunpack.c.h.b16 %v5147
        %v5460 = vunpack.c.l.b16 %v5148
        %v5461 = vunpack.c.h.b16 %v5148
        %v5462 = vunpack.c.l.b16 %v5149
        %v5463 = vunpack.c.h.b16 %v5149
        %v5464 = vunpack.c.l.b16 %v5150
        %v5465 = vunpack.c.h.b16 %v5150
        %v5466 = vunpack.c.l.b16 %v5151
        %v5467 = vunpack.c.h.b16 %v5151
        %v5468 = vunpack.c.l.b16 %v5152
        %v5469 = vunpack.c.h.b16 %v5152
        %v5470 = vunpack.c.l.b16 %v5153
        %v5471 = vunpack.c.h.b16 %v5153
        %v5472 = vunpack.c.l.b16 %v5154
        %v5473 = vunpack.c.h.b16 %v5154
        %v5474 = vunpack.c.l.b16 %v5155
        %v5475 = vunpack.c.h.b16 %v5155
        %v5476 = vunpack.c.l.b16 %v5156
        %v5477 = vunpack.c.h.b16 %v5156
        %v5478 = vunpack.c.l.b16 %v5157
        %v5479 = vunpack.c.h.b16 %v5157
        %v5480 = vunpack.c.l.b16 %v5158
        %v5481 = vunpack.c.h.b16 %v5158
        %v5482 = vunpack.c.l.b16 %v5159
        %v5483 = vunpack.c.h.b16 %v5159
        %v5484 = vunpack.c.l.b16 %v5160
        %v5485 = vunpack.c.h.b16 %v5160
        %v5486 = vunpack.c.l.b16 %v5161
        %v5487 = vunpack.c.h.b16 %v5161
        %v5488 = vunpack.c.l.b16 %v5162
        %v5489 = vunpack.c.h.b16 %v5162
        %v5490 = vunpack.c.l.b16 %v5163
        %v5491 = vunpack.c.h.b16 %v5163
        %v5492 = vunpack.c.l.b16 %v5164
        %v5493 = vunpack.c.h.b16 %v5164
        %v5494 = vunpack.c.l.b16 %v5165
        %v5495 = vunpack.c.h.b16 %v5165
        %v5496 = vunpack.c.l.b16 %v5166
        %v5497 = vunpack.c.h.b16 %v5166
        %v5498 = vunpack.c.l.b16 %v5167
        %v5499 = vunpack.c.h.b16 %v5167
        %v5500 = vunpack.c.l.b16 %v5168
        %v5501 = vunpack.c.h.b16 %v5168
        %v5502 = vunpack.c.l.b16 %v5169
        %v5503 = vunpack.c.h.b16 %v5169
        %v5504 = vunpack.c.l.b16 %v5170
        %v5505 = vunpack.c.h.b16 %v5170
        %v5506 = vunpack.c.l.b16 %v5171
        %v5507 = vunpack.c.h.b16 %v5171
        %v5508 = vunpack.c.l.b16 %v5172
        %v5509 = vunpack.c.h.b16 %v5172
        %v5510 = vunpack.c.l.b16 %v5173
        %v5511 = vunpack.c.h.b16 %v5173
        %v5512 = vunpack.c.l.b16 %v5174
        %v5513 = vunpack.c.h.b16 %v5174
        %v5514 = vunpack.c.l.b16 %v5175
        %v5515 = vunpack.c.h.b16 %v5175
        %v5516 = vunpack.c.l.b16 %v5176
        %v5517 = vunpack.c.h.b16 %v5176
        %v5518 = vunpack.c.l.b16 %v5177
        %v5519 = vunpack.c.h.b16 %v5177
        %v5520 = vunpack.c.l.b16 %v5178
        %v5521 = vunpack.c.h.b16 %v5178
        %v5522 = vunpack.c.l.b16 %v5179
        %v5523 = vunpack.c.h.b16 %v5179
        %v5524 = vunpack.c.l.b16 %v5180
        %v5525 = vunpack.c.h.b16 %v5180
        %v5526 = vunpack.c.l.b16 %v5181
        %v5527 = vunpack.c.h.b16 %v5181
        %v5528 = vunpack.c.l.b16 %v5182
        %v5529 = vunpack.c.h.b16 %v5182
        %v5530 = vunpack.c.l.b16 %v5183
        %v5531 = vunpack.c.h.b16 %v5183
        %v5532 = vunpack.c.l.b16 %v5184
        %v5533 = vunpack.c.h.b16 %v5184
        %v5534 = vunpack.c.l.b16 %v5185
        %v5535 = vunpack.c.h.b16 %v5185
        %v5536 = vunpack.c.l.b16 %v5186
        %v5537 = vunpack.c.h.b16 %v5186
        %v5538 = vunpack.c.l.b16 %v5187
        %v5539 = vunpack.c.h.b16 %v5187
        %v5540 = vunpack.c.l.b16 %v5188
        %v5541 = vunpack.c.h.b16 %v5188
        %v5542 = vunpack.c.l.b16 %v5189
        %v5543 = vunpack.c.h.b16 %v5189
        %v5544 = vunpack.c.l.b16 %v5190
        %v5545 = vunpack.c.h.b16 %v5190
        %v5546 = vunpack.c.l.b16 %v5191
        %v5547 = vunpack.c.h.b16 %v5191
        %v5548 = vunpack.c.l.b16 %v5192
        %v5549 = vunpack.c.h.b16 %v5192
        %v5550 = vunpack.c.l.b16 %v5193
        %v5551 = vunpack.c.h.b16 %v5193
        %v5552 = vunpack.c.l.b16 %v5194
        %v5553 = vunpack.c.h.b16 %v5194
        %v5554 = vunpack.c.l.b16 %v5195
        %v5555 = vunpack.c.h.b16 %v5195
        %v5556 = vunpack.c.l.b16 %v5196
        %v5557 = vunpack.c.h.b16 %v5196
        %v5558 = vunpack.c.l.b16 %v5197
        %v5559 = vunpack.c.h.b16 %v5197
        %v5560 = vunpack.c.l.b16 %v5198
        %v5561 = vunpack.c.h.b16 %v5198
        %v5562 = vunpack.c.l.b16 %v5199
        %v5563 = vunpack.c.h.b16 %v5199
        %v5564 = vunpack.c.l.b16 %v5200
        %v5565 = vunpack.c.h.b16 %v5200
        %v5566 = vunpack.c.l.b16 %v5201
        %v5567 = vunpack.c.h.b16 %v5201
        %v5568 = vunpack.c.l.b16 %v5202
        %v5569 = vunpack.c.h.b16 %v5202
        %v5570 = vunpack.c.l.b16 %v5203
        %v5571 = vunpack.c.h.b16 %v5203
        %v5572 = vunpack.c.l.b16 %v5204
        %v5573 = vunpack.c.h.b16 %v5204
        %v5574 = vunpack.c.l.b16 %v5205
        %v5575 = vunpack.c.h.b16 %v5205
        %v5576 = vunpack.c.l.b16 %v5206
        %v5577 = vunpack.c.h.b16 %v5206
        %v5578 = vunpack.c.l.b16 %v5207
        %v5579 = vunpack.c.h.b16 %v5207
        %v5580 = vunpack.c.l.b16 %v5208
        %v5581 = vunpack.c.h.b16 %v5208
        %v5582 = vunpack.c.l.b16 %v5209
        %v5583 = vunpack.c.h.b16 %v5209
        %v5584 = vunpack.c.l.b16 %v5210
        %v5585 = vunpack.c.h.b16 %v5210
        %v5586 = vunpack.c.l.b16 %v5211
        %v5587 = vunpack.c.h.b16 %v5211
        %v5588 = vunpack.c.l.b16 %v5212
        %v5589 = vunpack.c.h.b16 %v5212
        %v5590 = vunpack.c.l.b16 %v5213
        %v5591 = vunpack.c.h.b16 %v5213
        %v5592 = vunpack.c.l.b16 %v5214
        %v5593 = vunpack.c.h.b16 %v5214
        %v5594 = vunpack.c.l.b16 %v5215
        %v5595 = vunpack.c.h.b16 %v5215
        %v5596 = vunpack.c.l.b16 %v5216
        %v5597 = vunpack.c.h.b16 %v5216
        %v5598 = vunpack.c.l.b16 %v5217
        %v5599 = vunpack.c.h.b16 %v5217
        %v5600 = vunpack.c.l.b16 %v5218
        %v5601 = vunpack.c.h.b16 %v5218
        %v5602 = vunpack.c.l.b16 %v5219
        %v5603 = vunpack.c.h.b16 %v5219
        %v5604 = vunpack.c.l.b16 %v5220
        %v5605 = vunpack.c.h.b16 %v5220
        %v5606 = vunpack.c.l.b16 %v5221
        %v5607 = vunpack.c.h.b16 %v5221
        %v5608 = vunpack.c.l.b16 %v5222
        %v5609 = vunpack.c.h.b16 %v5222
        %v5610 = vunpack.c.l.b16 %v5223
        %v5611 = vunpack.c.h.b16 %v5223
        %v5612 = vunpack.c.l.b16 %v5224
        %v5613 = vunpack.c.h.b16 %v5224
        %v5614 = vunpack.c.l.b16 %v5225
        %v5615 = vunpack.c.h.b16 %v5225
        %v5616 = vunpack.c.l.b16 %v5226
        %v5617 = vunpack.c.h.b16 %v5226
        %v5618 = vunpack.c.l.b16 %v5227
        %v5619 = vunpack.c.h.b16 %v5227
        %v5620 = vunpack.c.l.b16 %v5228
        %v5621 = vunpack.c.h.b16 %v5228
        %v5622 = vunpack.c.l.b16 %v5229
        %v5623 = vunpack.c.h.b16 %v5229
        %v5624 = vunpack.c.l.b16 %v5230
        %v5625 = vunpack.c.h.b16 %v5230
        %v5626 = vunpack.c.l.b16 %v5231
        %v5627 = vunpack.c.h.b16 %v5231
        %v5628 = vunpack.c.l.b16 %v5232
        %v5629 = vunpack.c.h.b16 %v5232
        %v5630 = vunpack.c.l.b16 %v5233
        %v5631 = vunpack.c.h.b16 %v5233
        %v5632 = vunpack.c.l.b16 %v5234
        %v5633 = vunpack.c.h.b16 %v5234
        %v5634 = vunpack.c.l.b16 %v5235
        %v5635 = vunpack.c.h.b16 %v5235
        %v5636 = vpack.c.b16 %v5384, %v5380
        %v5637 = vpack.c.b16 %v5385, %v5381
        %v5638 = vpack.c.b16 %v5386, %v5382
        %v5639 = vpack.c.b16 %v5387, %v5383
        %v5640 = vpack.c.b16 %v5392, %v5388
        %v5641 = vpack.c.b16 %v5393, %v5389
        %v5642 = vpack.c.b16 %v5394, %v5390
        %v5643 = vpack.c.b16 %v5395, %v5391
        %v5644 = vpack.c.b16 %v5400, %v5396
        %v5645 = vpack.c.b16 %v5401, %v5397
        %v5646 = vpack.c.b16 %v5402, %v5398
        %v5647 = vpack.c.b16 %v5403, %v5399
        %v5648 = vpack.c.b16 %v5408, %v5404
        %v5649 = vpack.c.b16 %v5409, %v5405
        %v5650 = vpack.c.b16 %v5410, %v5406
        %v5651 = vpack.c.b16 %v5411, %v5407
        %v5652 = vpack.c.b16 %v5416, %v5412
        %v5653 = vpack.c.b16 %v5417, %v5413
        %v5654 = vpack.c.b16 %v5418, %v5414
        %v5655 = vpack.c.b16 %v5419, %v5415
        %v5656 = vpack.c.b16 %v5424, %v5420
        %v5657 = vpack.c.b16 %v5425, %v5421
        %v5658 = vpack.c.b16 %v5426, %v5422
        %v5659 = vpack.c.b16 %v5427, %v5423
        %v5660 = vpack.c.b16 %v5432, %v5428
        %v5661 = vpack.c.b16 %v5433, %v5429
        %v5662 = vpack.c.b16 %v5434, %v5430
        %v5663 = vpack.c.b16 %v5435, %v5431
        %v5664 = vpack.c.b16 %v5440, %v5436
        %v5665 = vpack.c.b16 %v5441, %v5437
        %v5666 = vpack.c.b16 %v5442, %v5438
        %v5667 = vpack.c.b16 %v5443, %v5439
        %v5668 = vpack.c.b16 %v5448, %v5444
        %v5669 = vpack.c.b16 %v5449, %v5445
        %v5670 = vpack.c.b16 %v5450, %v5446
        %v5671 = vpack.c.b16 %v5451, %v5447
        %v5672 = vpack.c.b16 %v5456, %v5452
        %v5673 = vpack.c.b16 %v5457, %v5453
        %v5674 = vpack.c.b16 %v5458, %v5454
        %v5675 = vpack.c.b16 %v5459, %v5455
        %v5676 = vpack.c.b16 %v5464, %v5460
        %v5677 = vpack.c.b16 %v5465, %v5461
        %v5678 = vpack.c.b16 %v5466, %v5462
        %v5679 = vpack.c.b16 %v5467, %v5463
        %v5680 = vpack.c.b16 %v5472, %v5468
        %v5681 = vpack.c.b16 %v5473, %v5469
        %v5682 = vpack.c.b16 %v5474, %v5470
        %v5683 = vpack.c.b16 %v5475, %v5471
        %v5684 = vpack.c.b16 %v5480, %v5476
        %v5685 = vpack.c.b16 %v5481, %v5477
        %v5686 = vpack.c.b16 %v5482, %v5478
        %v5687 = vpack.c.b16 %v5483, %v5479
        %v5688 = vpack.c.b16 %v5488, %v5484
        %v5689 = vpack.c.b16 %v5489, %v5485
        %v5690 = vpack.c.b16 %v5490, %v5486
        %v5691 = vpack.c.b16 %v5491, %v5487
        %v5692 = vpack.c.b16 %v5496, %v5492
        %v5693 = vpack.c.b16 %v5497, %v5493
        %v5694 = vpack.c.b16 %v5498, %v5494
        %v5695 = vpack.c.b16 %v5499, %v5495
        %v5696 = vpack.c.b16 %v5504, %v5500
        %v5697 = vpack.c.b16 %v5505, %v5501
        %v5698 = vpack.c.b16 %v5506, %v5502
        %v5699 = vpack.c.b16 %v5507, %v5503
        %v5700 = vpack.c.b16 %v5512, %v5508
        %v5701 = vpack.c.b16 %v5513, %v5509
        %v5702 = vpack.c.b16 %v5514, %v5510
        %v5703 = vpack.c.b16 %v5515, %v5511
        %v5704 = vpack.c.b16 %v5520, %v5516
        %v5705 = vpack.c.b16 %v5521, %v5517
        %v5706 = vpack.c.b16 %v5522, %v5518
        %v5707 = vpack.c.b16 %v5523, %v5519
        %v5708 = vpack.c.b16 %v5528, %v5524
        %v5709 = vpack.c.b16 %v5529, %v5525
        %v5710 = vpack.c.b16 %v5530, %v5526
        %v5711 = vpack.c.b16 %v5531, %v5527
        %v5712 = vpack.c.b16 %v5536, %v5532
        %v5713 = vpack.c.b16 %v5537, %v5533
        %v5714 = vpack.c.b16 %v5538, %v5534
        %v5715 = vpack.c.b16 %v5539, %v5535
        %v5716 = vpack.c.b16 %v5544, %v5540
        %v5717 = vpack.c.b16 %v5545, %v5541
        %v5718 = vpack.c.b16 %v5546, %v5542
        %v5719 = vpack.c.b16 %v5547, %v5543
        %v5720 = vpack.c.b16 %v5552, %v5548
        %v5721 = vpack.c.b16 %v5553, %v5549
        %v5722 = vpack.c.b16 %v5554, %v5550
        %v5723 = vpack.c.b16 %v5555, %v5551
        %v5724 = vpack.c.b16 %v5560, %v5556
        %v5725 = vpack.c.b16 %v5561, %v5557
        %v5726 = vpack.c.b16 %v5562, %v5558
        %v5727 = vpack.c.b16 %v5563, %v5559
        %v5728 = vpack.c.b16 %v5568, %v5564
        %v5729 = vpack.c.b16 %v5569, %v5565
        %v5730 = vpack.c.b16 %v5570, %v5566
        %v5731 = vpack.c.b16 %v5571, %v5567
        %v5732 = vpack.c.b16 %v5576, %v5572
        %v5733 = vpack.c.b16 %v5577, %v5573
        %v5734 = vpack.c.b16 %v5578, %v5574
        %v5735 = vpack.c.b16 %v5579, %v5575
        %v5736 = vpack.c.b16 %v5584, %v5580
        %v5737 = vpack.c.b16 %v5585, %v5581
        %v5738 = vpack.c.b16 %v5586, %v5582
        %v5739 = vpack.c.b16 %v5587, %v5583
        %v5740 = vpack.c.b16 %v5592, %v5588
        %v5741 = vpack.c.b16 %v5593, %v5589
        %v5742 = vpack.c.b16 %v5594, %v5590
        %v5743 = vpack.c.b16 %v5595, %v5591
        %v5744 = vpack.c.b16 %v5600, %v5596
        %v5745 = vpack.c.b16 %v5601, %v5597
        %v5746 = vpack.c.b16 %v5602, %v5598
        %v5747 = vpack.c.b16 %v5603, %v5599
        %v5748 = vpack.c.b16 %v5608, %v5604
        %v5749 = vpack.c.b16 %v5609, %v5605
        %v5750 = vpack.c.b16 %v5610, %v5606
        %v5751 = vpack.c.b16 %v5611, %v5607
        %v5752 = vpack.c.b16 %v5616, %v5612
        %v5753 = vpack.c.b16 %v5617, %v5613
        %v5754 = vpack.c.b16 %v5618, %v5614
        %v5755 = vpack.c.b16 %v5619, %v5615
        %v5756 = vpack.c.b16 %v5624, %v5620
        %v5757 = vpack.c.b16 %v5625, %v5621
        %v5758 = vpack.c.b16 %v5626, %v5622
        %v5759 = vpack.c.b16 %v5627, %v5623
        %v5760 = vpack.c.b16 %v5632, %v5628
        %v5761 = vpack.c.b16 %v5633, %v5629
        %v5762 = vpack.c.b16 %v5634, %v5630
        %v5763 = vpack.c.b16 %v5635, %v5631
        %5892 = vmatprep.subr.bf16.mxu0 %v5637
        %5893 = vmatpush1.bf16.msra.mxu0 %v5636
        %5894 = vmatprep.subr.bf16.mxu0 %v5641
        %5895 = vmatpush1.bf16.msra.mxu0 %v5640
        %5896 = vmatprep.subr.bf16.mxu0 %v5645
        %5897 = vmatpush1.bf16.msra.mxu0 %v5644
        %5898 = vmatprep.subr.bf16.mxu0 %v5649
        %5899 = vmatpush1.bf16.msra.mxu0 %v5648
        %5900 = vmatprep.subr.bf16.mxu0 %v5653
        %5901 = vmatpush1.bf16.msra.mxu0 %v5652
        %5902 = vmatprep.subr.bf16.mxu0 %v5657
        %5903 = vmatpush1.bf16.msra.mxu0 %v5656
        %5904 = vmatprep.subr.bf16.mxu0 %v5661
        %5905 = vmatpush1.bf16.msra.mxu0 %v5660
        %5906 = vmatprep.subr.bf16.mxu0 %v5665
        %5907 = vmatpush1.bf16.msra.mxu0 %v5664
        %5908 = vmatprep.subr.bf16.mxu0 %v5669
        %5909 = vmatpush1.bf16.msra.mxu0 %v5668
        %5910 = vmatprep.subr.bf16.mxu0 %v5673
        %5911 = vmatpush1.bf16.msra.mxu0 %v5672
        %5912 = vmatprep.subr.bf16.mxu0 %v5677
        %5913 = vmatpush1.bf16.msra.mxu0 %v5676
        %5914 = vmatprep.subr.bf16.mxu0 %v5681
        %5915 = vmatpush1.bf16.msra.mxu0 %v5680
        %5916 = vmatprep.subr.bf16.mxu0 %v5685
        %5917 = vmatpush1.bf16.msra.mxu0 %v5684
        %5918 = vmatprep.subr.bf16.mxu0 %v5689
        %5919 = vmatpush1.bf16.msra.mxu0 %v5688
        %5920 = vmatprep.subr.bf16.mxu0 %v5693
        %5921 = vmatpush1.bf16.msra.mxu0 %v5692
        %5922 = vmatprep.subr.bf16.mxu0 %v5697
        %5923 = vmatpush1.bf16.msra.mxu0 %v5696
        %5924 = vmatprep.mubr.bf16.mxu0 %v5105
        %5925 = vmatmul.mubr.bf16.gmra.mrb[0].mxu0 %v5104
        %v5926 = vpop.f32.mrb[0].mxu0
        %v5927 = vadd.f32 %v5239, %v5926
        %v5928 = vpop.f32.mrb[0].mxu0
        %v5929 = vadd.f32 %v5243, %v5928
        %v5930 = vpop.f32.mrb[0].mxu0
        %v5931 = vadd.f32 %v5239, %v5930
        %v5932 = vpop.f32.mrb[0].mxu0
        %v5933 = vadd.f32 %v5243, %v5932
        %5934 = vdwg.mxu0
        %5935 = vmatprep.subr.bf16.mxu0 %v5701
        %5936 = vmatpush1.bf16.msra.mxu0 %v5700
        %5937 = vmatprep.subr.bf16.mxu0 %v5705
        %5938 = vmatpush1.bf16.msra.mxu0 %v5704
        %5939 = vmatprep.subr.bf16.mxu0 %v5709
        %5940 = vmatpush1.bf16.msra.mxu0 %v5708
        %5941 = vmatprep.subr.bf16.mxu0 %v5713
        %5942 = vmatpush1.bf16.msra.mxu0 %v5712
        %5943 = vmatprep.subr.bf16.mxu0 %v5717
        %5944 = vmatpush1.bf16.msra.mxu0 %v5716
        %5945 = vmatprep.subr.bf16.mxu0 %v5721
        %5946 = vmatpush1.bf16.msra.mxu0 %v5720
        %5947 = vmatprep.subr.bf16.mxu0 %v5725
        %5948 = vmatpush1.bf16.msra.mxu0 %v5724
        %5949 = vmatprep.subr.bf16.mxu0 %v5729
        %5950 = vmatpush1.bf16.msra.mxu0 %v5728
        %5951 = vmatprep.subr.bf16.mxu0 %v5733
        %5952 = vmatpush1.bf16.msra.mxu0 %v5732
        %5953 = vmatprep.subr.bf16.mxu0 %v5737
        %5954 = vmatpush1.bf16.msra.mxu0 %v5736
        %5955 = vmatprep.subr.bf16.mxu0 %v5741
        %5956 = vmatpush1.bf16.msra.mxu0 %v5740
        %5957 = vmatprep.subr.bf16.mxu0 %v5745
        %5958 = vmatpush1.bf16.msra.mxu0 %v5744
        %5959 = vmatprep.subr.bf16.mxu0 %v5749
        %5960 = vmatpush1.bf16.msra.mxu0 %v5748
        %5961 = vmatprep.subr.bf16.mxu0 %v5753
        %5962 = vmatpush1.bf16.msra.mxu0 %v5752
        %5963 = vmatprep.subr.bf16.mxu0 %v5757
        %5964 = vmatpush1.bf16.msra.mxu0 %v5756
        %5965 = vmatprep.subr.bf16.mxu0 %v5761
        %5966 = vmatpush1.bf16.msra.mxu0 %v5760
        %5967 = vmatprep.mubr.bf16.mxu0 %v5107
        %5968 = vmatmul.mubr.bf16.gmra.mrb[0].mxu0 %v5106
        %v5969 = vpop.f32.mrb[0].mxu0
        %v5970 = vadd.f32 %v5927, %v5969
        %v5971 = vpop.f32.mrb[0].mxu0
        %v5972 = vadd.f32 %v5929, %v5971
        %v5973 = vpop.f32.mrb[0].mxu0
        %v5974 = vadd.f32 %v5931, %v5973
        %v5975 = vpop.f32.mrb[0].mxu0
        %v5976 = vadd.f32 %v5933, %v5975
        %5977 = vdwg.mxu0
        %5978 = vmatprep.subr.bf16.mxu0 %v5639
        %5979 = vmatpush1.bf16.msra.mxu0 %v5638
        %5980 = vmatprep.subr.bf16.mxu0 %v5643
        %5981 = vmatpush1.bf16.msra.mxu0 %v5642
        %5982 = vmatprep.subr.bf16.mxu0 %v5647
        %5983 = vmatpush1.bf16.msra.mxu0 %v5646
        %5984 = vmatprep.subr.bf16.mxu0 %v5651
        %5985 = vmatpush1.bf16.msra.mxu0 %v5650
        %5986 = vmatprep.subr.bf16.mxu0 %v5655
        %5987 = vmatpush1.bf16.msra.mxu0 %v5654
        %5988 = vmatprep.subr.bf16.mxu0 %v5659
        %5989 = vmatpush1.bf16.msra.mxu0 %v5658
        %5990 = vmatprep.subr.bf16.mxu0 %v5663
        %5991 = vmatpush1.bf16.msra.mxu0 %v5662
        %5992 = vmatprep.subr.bf16.mxu0 %v5667
        %5993 = vmatpush1.bf16.msra.mxu0 %v5666
        %5994 = vmatprep.subr.bf16.mxu0 %v5671
        %5995 = vmatpush1.bf16.msra.mxu0 %v5670
        %5996 = vmatprep.subr.bf16.mxu0 %v5675
        %5997 = vmatpush1.bf16.msra.mxu0 %v5674
        %5998 = vmatprep.subr.bf16.mxu0 %v5679
        %5999 = vmatpush1.bf16.msra.mxu0 %v5678
        %6000 = vmatprep.subr.bf16.mxu0 %v5683
        %6001 = vmatpush1.bf16.msra.mxu0 %v5682
        %6002 = vmatprep.subr.bf16.mxu0 %v5687
        %6003 = vmatpush1.bf16.msra.mxu0 %v5686
        %6004 = vmatprep.subr.bf16.mxu0 %v5691
        %6005 = vmatpush1.bf16.msra.mxu0 %v5690
        %6006 = vmatprep.subr.bf16.mxu0 %v5695
        %6007 = vmatpush1.bf16.msra.mxu0 %v5694
        %6008 = vmatprep.subr.bf16.mxu0 %v5699
        %6009 = vmatpush1.bf16.msra.mxu0 %v5698
        %6010 = vmatprep.mubr.bf16.mxu0 %v5105
        %6011 = vmatmul.mubr.bf16.gmra.mrb[0].mxu0 %v5104
        %v6012 = vpop.f32.mrb[0].mxu0
        %v6013 = vadd.f32 %v5247, %v6012
        %v6014 = vpop.f32.mrb[0].mxu0
        %v6015 = vadd.f32 %v5251, %v6014
        %v6016 = vpop.f32.mrb[0].mxu0
        %v6017 = vadd.f32 %v5247, %v6016
        %v6018 = vpop.f32.mrb[0].mxu0
        %v6019 = vadd.f32 %v5251, %v6018
        %6020 = vdwg.mxu0
        %6021 = vmatprep.subr.bf16.mxu0 %v5703
        %6022 = vmatpush1.bf16.msra.mxu0 %v5702
        %6023 = vmatprep.subr.bf16.mxu0 %v5707
        %6024 = vmatpush1.bf16.msra.mxu0 %v5706
        %6025 = vmatprep.subr.bf16.mxu0 %v5711
        %6026 = vmatpush1.bf16.msra.mxu0 %v5710
        %6027 = vmatprep.subr.bf16.mxu0 %v5715
        %6028 = vmatpush1.bf16.msra.mxu0 %v5714
        %6029 = vmatprep.subr.bf16.mxu0 %v5719
        %6030 = vmatpush1.bf16.msra.mxu0 %v5718
        %6031 = vmatprep.subr.bf16.mxu0 %v5723
        %6032 = vmatpush1.bf16.msra.mxu0 %v5722
        %6033 = vmatprep.subr.bf16.mxu0 %v5727
        %6034 = vmatpush1.bf16.msra.mxu0 %v5726
        %6035 = vmatprep.subr.bf16.mxu0 %v5731
        %6036 = vmatpush1.bf16.msra.mxu0 %v5730
        %6037 = vmatprep.subr.bf16.mxu0 %v5735
        %6038 = vmatpush1.bf16.msra.mxu0 %v5734
        %6039 = vmatprep.subr.bf16.mxu0 %v5739
        %6040 = vmatpush1.bf16.msra.mxu0 %v5738
        %6041 = vmatprep.subr.bf16.mxu0 %v5743
        %6042 = vmatpush1.bf16.msra.mxu0 %v5742
        %6043 = vmatprep.subr.bf16.mxu0 %v5747
        %6044 = vmatpush1.bf16.msra.mxu0 %v5746
        %6045 = vmatprep.subr.bf16.mxu0 %v5751
        %6046 = vmatpush1.bf16.msra.mxu0 %v5750
        %6047 = vmatprep.subr.bf16.mxu0 %v5755
        %6048 = vmatpush1.bf16.msra.mxu0 %v5754
        %6049 = vmatprep.subr.bf16.mxu0 %v5759
        %6050 = vmatpush1.bf16.msra.mxu0 %v5758
        %6051 = vmatprep.subr.bf16.mxu0 %v5763
        %6052 = vmatpush1.bf16.msra.mxu0 %v5762
        %6053 = vmatprep.mubr.bf16.mxu0 %v5107
        %6054 = vmatmul.mubr.bf16.gmra.mrb[0].mxu0 %v5106
        %v6055 = vpop.f32.mrb[0].mxu0
        %v6056 = vadd.f32 %v6013, %v6055
        %v6057 = vpop.f32.mrb[0].mxu0
        %v6058 = vadd.f32 %v6015, %v6057
        %v6059 = vpop.f32.mrb[0].mxu0
        %v6060 = vadd.f32 %v6017, %v6059
        %v6061 = vpop.f32.mrb[0].mxu0
        %v6062 = vadd.f32 %v6019, %v6061
        %6063 = vdwg.mxu0
        %v6064 = vmax.f32 %v5970, 0.0
        %v6065 = vmax.f32 %v5972, 0.0
        %v6066 = vmax.f32 %v6056, 0.0
        %v6067 = vmax.f32 %v6058, 0.0
        %v6068 = vmax.f32 %v5974, 0.0
        %v6069 = vmax.f32 %v5976, 0.0
        %v6070 = vmax.f32 %v6060, 0.0
        %v6071 = vmax.f32 %v6062, 0.0
        %v6072 = vpack.c.bf16 %v6068, %v6064
        %v6073 = vpack.c.bf16 %v6069, %v6065
        %v6074 = vpack.c.bf16 %v6070, %v6066
        %v6075 = vpack.c.bf16 %v6071, %v6067
        %v6076 = vld [vmem:[#allocation7] sm:$0xff]
        %v6077 = vld [vmem:[#allocation7 + $0x8] sm:$0xff]
        %v6078 = vld [vmem:[#allocation7 + $0x10] sm:$0xff]
        %v6079 = vld [vmem:[#allocation7 + $0x18] sm:$0xff]
        %v6080 = vld [vmem:[#allocation7 + $0x20] sm:$0xff]
        %v6081 = vld [vmem:[#allocation7 + $0x28] sm:$0xff]
        %v6082 = vld [vmem:[#allocation7 + $0x30] sm:$0xff]
        %v6083 = vld [vmem:[#allocation7 + $0x38] sm:$0xff]
        %v6084 = vld [vmem:[#allocation7 + $0x40] sm:$0xff]
        %v6085 = vld [vmem:[#allocation7 + $0x48] sm:$0xff]
        %v6086 = vld [vmem:[#allocation7 + $0x50] sm:$0xff]
        %v6087 = vld [vmem:[#allocation7 + $0x58] sm:$0xff]
        %v6088 = vld [vmem:[#allocation7 + $0x60] sm:$0xff]
        %v6089 = vld [vmem:[#allocation7 + $0x68] sm:$0xff]
        %v6090 = vld [vmem:[#allocation7 + $0x70] sm:$0xff]
        %v6091 = vld [vmem:[#allocation7 + $0x78] sm:$0xff]
        %v6092 = vld [vmem:[#allocation7 + $0x80] sm:$0xff]
        %v6093 = vld [vmem:[#allocation7 + $0x88] sm:$0xff]
        %v6094 = vld [vmem:[#allocation7 + $0x90] sm:$0xff]
        %v6095 = vld [vmem:[#allocation7 + $0x98] sm:$0xff]
        %v6096 = vld [vmem:[#allocation7 + $0xa0] sm:$0xff]
        %v6097 = vld [vmem:[#allocation7 + $0xa8] sm:$0xff]
        %v6098 = vld [vmem:[#allocation7 + $0xb0] sm:$0xff]
        %v6099 = vld [vmem:[#allocation7 + $0xb8] sm:$0xff]
        %v6100 = vld [vmem:[#allocation7 + $0xc0] sm:$0xff]
        %v6101 = vld [vmem:[#allocation7 + $0xc8] sm:$0xff]
        %v6102 = vld [vmem:[#allocation7 + $0xd0] sm:$0xff]
        %v6103 = vld [vmem:[#allocation7 + $0xd8] sm:$0xff]
        %v6104 = vld [vmem:[#allocation7 + $0xe0] sm:$0xff]
        %v6105 = vld [vmem:[#allocation7 + $0xe8] sm:$0xff]
        %v6106 = vld [vmem:[#allocation7 + $0xf0] sm:$0xff]
        %v6107 = vld [vmem:[#allocation7 + $0xf8] sm:$0xff]
        %v6108 = vld [vmem:[#allocation7 + $0x100] sm:$0xff]
        %v6109 = vld [vmem:[#allocation7 + $0x108] sm:$0xff]
        %v6110 = vld [vmem:[#allocation7 + $0x110] sm:$0xff]
        %v6111 = vld [vmem:[#allocation7 + $0x118] sm:$0xff]
        %v6112 = vld [vmem:[#allocation7 + $0x120] sm:$0xff]
        %v6113 = vld [vmem:[#allocation7 + $0x128] sm:$0xff]
        %v6114 = vld [vmem:[#allocation7 + $0x130] sm:$0xff]
        %v6115 = vld [vmem:[#allocation7 + $0x138] sm:$0xff]
        %v6116 = vld [vmem:[#allocation7 + $0x140] sm:$0xff]
        %v6117 = vld [vmem:[#allocation7 + $0x148] sm:$0xff]
        %v6118 = vld [vmem:[#allocation7 + $0x150] sm:$0xff]
        %v6119 = vld [vmem:[#allocation7 + $0x158] sm:$0xff]
        %v6120 = vld [vmem:[#allocation7 + $0x160] sm:$0xff]
        %v6121 = vld [vmem:[#allocation7 + $0x168] sm:$0xff]
        %v6122 = vld [vmem:[#allocation7 + $0x170] sm:$0xff]
        %v6123 = vld [vmem:[#allocation7 + $0x178] sm:$0xff]
        %v6124 = vld [vmem:[#allocation7 + $0x180] sm:$0xff]
        %v6125 = vld [vmem:[#allocation7 + $0x188] sm:$0xff]
        %v6126 = vld [vmem:[#allocation7 + $0x190] sm:$0xff]
        %v6127 = vld [vmem:[#allocation7 + $0x198] sm:$0xff]
        %v6128 = vld [vmem:[#allocation7 + $0x1a0] sm:$0xff]
        %v6129 = vld [vmem:[#allocation7 + $0x1a8] sm:$0xff]
        %v6130 = vld [vmem:[#allocation7 + $0x1b0] sm:$0xff]
        %v6131 = vld [vmem:[#allocation7 + $0x1b8] sm:$0xff]
        %v6132 = vld [vmem:[#allocation7 + $0x1c0] sm:$0xff]
        %v6133 = vld [vmem:[#allocation7 + $0x1c8] sm:$0xff]
        %v6134 = vld [vmem:[#allocation7 + $0x1d0] sm:$0xff]
        %v6135 = vld [vmem:[#allocation7 + $0x1d8] sm:$0xff]
        %v6136 = vld [vmem:[#allocation7 + $0x1e0] sm:$0xff]
        %v6137 = vld [vmem:[#allocation7 + $0x1e8] sm:$0xff]
        %v6138 = vld [vmem:[#allocation7 + $0x1f0] sm:$0xff]
        %v6139 = vld [vmem:[#allocation7 + $0x1f8] sm:$0xff]
        %v6140 = vld [vmem:[#allocation7 + $0x200] sm:$0xff]
        %v6141 = vld [vmem:[#allocation7 + $0x208] sm:$0xff]
        %v6142 = vld [vmem:[#allocation7 + $0x210] sm:$0xff]
        %v6143 = vld [vmem:[#allocation7 + $0x218] sm:$0xff]
        %v6144 = vld [vmem:[#allocation7 + $0x220] sm:$0xff]
        %v6145 = vld [vmem:[#allocation7 + $0x228] sm:$0xff]
        %v6146 = vld [vmem:[#allocation7 + $0x230] sm:$0xff]
        %v6147 = vld [vmem:[#allocation7 + $0x238] sm:$0xff]
        %v6148 = vld [vmem:[#allocation7 + $0x240] sm:$0xff]
        %v6149 = vld [vmem:[#allocation7 + $0x248] sm:$0xff]
        %v6150 = vld [vmem:[#allocation7 + $0x250] sm:$0xff]
        %v6151 = vld [vmem:[#allocation7 + $0x258] sm:$0xff]
        %v6152 = vld [vmem:[#allocation7 + $0x260] sm:$0xff]
        %v6153 = vld [vmem:[#allocation7 + $0x268] sm:$0xff]
        %v6154 = vld [vmem:[#allocation7 + $0x270] sm:$0xff]
        %v6155 = vld [vmem:[#allocation7 + $0x278] sm:$0xff]
        %v6156 = vld [vmem:[#allocation7 + $0x280] sm:$0xff]
        %v6157 = vld [vmem:[#allocation7 + $0x288] sm:$0xff]
        %v6158 = vld [vmem:[#allocation7 + $0x290] sm:$0xff]
        %v6159 = vld [vmem:[#allocation7 + $0x298] sm:$0xff]
        %v6160 = vld [vmem:[#allocation7 + $0x2a0] sm:$0xff]
        %v6161 = vld [vmem:[#allocation7 + $0x2a8] sm:$0xff]
        %v6162 = vld [vmem:[#allocation7 + $0x2b0] sm:$0xff]
        %v6163 = vld [vmem:[#allocation7 + $0x2b8] sm:$0xff]
        %v6164 = vld [vmem:[#allocation7 + $0x2c0] sm:$0xff]
        %v6165 = vld [vmem:[#allocation7 + $0x2c8] sm:$0xff]
        %v6166 = vld [vmem:[#allocation7 + $0x2d0] sm:$0xff]
        %v6167 = vld [vmem:[#allocation7 + $0x2d8] sm:$0xff]
        %v6168 = vld [vmem:[#allocation7 + $0x2e0] sm:$0xff]
        %v6169 = vld [vmem:[#allocation7 + $0x2e8] sm:$0xff]
        %v6170 = vld [vmem:[#allocation7 + $0x2f0] sm:$0xff]
        %v6171 = vld [vmem:[#allocation7 + $0x2f8] sm:$0xff]
        %v6172 = vld [vmem:[#allocation7 + $0x300] sm:$0xff]
        %v6173 = vld [vmem:[#allocation7 + $0x308] sm:$0xff]
        %v6174 = vld [vmem:[#allocation7 + $0x310] sm:$0xff]
        %v6175 = vld [vmem:[#allocation7 + $0x318] sm:$0xff]
        %v6176 = vld [vmem:[#allocation7 + $0x320] sm:$0xff]
        %v6177 = vld [vmem:[#allocation7 + $0x328] sm:$0xff]
        %v6178 = vld [vmem:[#allocation7 + $0x330] sm:$0xff]
        %v6179 = vld [vmem:[#allocation7 + $0x338] sm:$0xff]
        %v6180 = vld [vmem:[#allocation7 + $0x340] sm:$0xff]
        %v6181 = vld [vmem:[#allocation7 + $0x348] sm:$0xff]
        %v6182 = vld [vmem:[#allocation7 + $0x350] sm:$0xff]
        %v6183 = vld [vmem:[#allocation7 + $0x358] sm:$0xff]
        %v6184 = vld [vmem:[#allocation7 + $0x360] sm:$0xff]
        %v6185 = vld [vmem:[#allocation7 + $0x368] sm:$0xff]
        %v6186 = vld [vmem:[#allocation7 + $0x370] sm:$0xff]
        %v6187 = vld [vmem:[#allocation7 + $0x378] sm:$0xff]
        %v6188 = vld [vmem:[#allocation7 + $0x380] sm:$0xff]
        %v6189 = vld [vmem:[#allocation7 + $0x388] sm:$0xff]
        %v6190 = vld [vmem:[#allocation7 + $0x390] sm:$0xff]
        %v6191 = vld [vmem:[#allocation7 + $0x398] sm:$0xff]
        %v6192 = vld [vmem:[#allocation7 + $0x3a0] sm:$0xff]
        %v6193 = vld [vmem:[#allocation7 + $0x3a8] sm:$0xff]
        %v6194 = vld [vmem:[#allocation7 + $0x3b0] sm:$0xff]
        %v6195 = vld [vmem:[#allocation7 + $0x3b8] sm:$0xff]
        %v6196 = vld [vmem:[#allocation7 + $0x3c0] sm:$0xff]
        %v6197 = vld [vmem:[#allocation7 + $0x3c8] sm:$0xff]
        %v6198 = vld [vmem:[#allocation7 + $0x3d0] sm:$0xff]
        %v6199 = vld [vmem:[#allocation7 + $0x3d8] sm:$0xff]
        %v6200 = vld [vmem:[#allocation7 + $0x3e0] sm:$0xff]
        %v6201 = vld [vmem:[#allocation7 + $0x3e8] sm:$0xff]
        %v6202 = vld [vmem:[#allocation7 + $0x3f0] sm:$0xff]
        %v6203 = vld [vmem:[#allocation7 + $0x3f8] sm:$0xff]
        %v6204 = vlaneseq
        %v6205 = vshrl.u32 %v6204, 7
        %v6206 = vsub.s32 5, %v6205
        %v6207 = vrot.slane %v440, %v6206
        %v6208 = vlaneseq
        %v6209 = vshrl.u32 %v6208, 7
        %v6210 = vsub.s32 5, %v6209
        %v6211 = vrot.slane %v441, %v6210
        %v6212 = vlaneseq
        %v6213 = vshrl.u32 %v6212, 7
        %v6214 = vsub.s32 5, %v6213
        %v6215 = vrot.slane %v442, %v6214
        %v6216 = vlaneseq
        %v6217 = vshrl.u32 %v6216, 7
        %v6218 = vsub.s32 5, %v6217
        %v6219 = vrot.slane %v443, %v6218
        %v6348 = vunpack.c.l.b16 %v6076
        %v6349 = vunpack.c.h.b16 %v6076
        %v6350 = vunpack.c.l.b16 %v6077
        %v6351 = vunpack.c.h.b16 %v6077
        %v6352 = vunpack.c.l.b16 %v6078
        %v6353 = vunpack.c.h.b16 %v6078
        %v6354 = vunpack.c.l.b16 %v6079
        %v6355 = vunpack.c.h.b16 %v6079
        %v6356 = vunpack.c.l.b16 %v6080
        %v6357 = vunpack.c.h.b16 %v6080
        %v6358 = vunpack.c.l.b16 %v6081
        %v6359 = vunpack.c.h.b16 %v6081
        %v6360 = vunpack.c.l.b16 %v6082
        %v6361 = vunpack.c.h.b16 %v6082
        %v6362 = vunpack.c.l.b16 %v6083
        %v6363 = vunpack.c.h.b16 %v6083
        %v6364 = vunpack.c.l.b16 %v6084
        %v6365 = vunpack.c.h.b16 %v6084
        %v6366 = vunpack.c.l.b16 %v6085
        %v6367 = vunpack.c.h.b16 %v6085
        %v6368 = vunpack.c.l.b16 %v6086
        %v6369 = vunpack.c.h.b16 %v6086
        %v6370 = vunpack.c.l.b16 %v6087
        %v6371 = vunpack.c.h.b16 %v6087
        %v6372 = vunpack.c.l.b16 %v6088
        %v6373 = vunpack.c.h.b16 %v6088
        %v6374 = vunpack.c.l.b16 %v6089
        %v6375 = vunpack.c.h.b16 %v6089
        %v6376 = vunpack.c.l.b16 %v6090
        %v6377 = vunpack.c.h.b16 %v6090
        %v6378 = vunpack.c.l.b16 %v6091
        %v6379 = vunpack.c.h.b16 %v6091
        %v6380 = vunpack.c.l.b16 %v6092
        %v6381 = vunpack.c.h.b16 %v6092
        %v6382 = vunpack.c.l.b16 %v6093
        %v6383 = vunpack.c.h.b16 %v6093
        %v6384 = vunpack.c.l.b16 %v6094
        %v6385 = vunpack.c.h.b16 %v6094
        %v6386 = vunpack.c.l.b16 %v6095
        %v6387 = vunpack.c.h.b16 %v6095
        %v6388 = vunpack.c.l.b16 %v6096
        %v6389 = vunpack.c.h.b16 %v6096
        %v6390 = vunpack.c.l.b16 %v6097
        %v6391 = vunpack.c.h.b16 %v6097
        %v6392 = vunpack.c.l.b16 %v6098
        %v6393 = vunpack.c.h.b16 %v6098
        %v6394 = vunpack.c.l.b16 %v6099
        %v6395 = vunpack.c.h.b16 %v6099
        %v6396 = vunpack.c.l.b16 %v6100
        %v6397 = vunpack.c.h.b16 %v6100
        %v6398 = vunpack.c.l.b16 %v6101
        %v6399 = vunpack.c.h.b16 %v6101
        %v6400 = vunpack.c.l.b16 %v6102
        %v6401 = vunpack.c.h.b16 %v6102
        %v6402 = vunpack.c.l.b16 %v6103
        %v6403 = vunpack.c.h.b16 %v6103
        %v6404 = vunpack.c.l.b16 %v6104
        %v6405 = vunpack.c.h.b16 %v6104
        %v6406 = vunpack.c.l.b16 %v6105
        %v6407 = vunpack.c.h.b16 %v6105
        %v6408 = vunpack.c.l.b16 %v6106
        %v6409 = vunpack.c.h.b16 %v6106
        %v6410 = vunpack.c.l.b16 %v6107
        %v6411 = vunpack.c.h.b16 %v6107
        %v6412 = vunpack.c.l.b16 %v6108
        %v6413 = vunpack.c.h.b16 %v6108
        %v6414 = vunpack.c.l.b16 %v6109
        %v6415 = vunpack.c.h.b16 %v6109
        %v6416 = vunpack.c.l.b16 %v6110
        %v6417 = vunpack.c.h.b16 %v6110
        %v6418 = vunpack.c.l.b16 %v6111
        %v6419 = vunpack.c.h.b16 %v6111
        %v6420 = vunpack.c.l.b16 %v6112
        %v6421 = vunpack.c.h.b16 %v6112
        %v6422 = vunpack.c.l.b16 %v6113
        %v6423 = vunpack.c.h.b16 %v6113
        %v6424 = vunpack.c.l.b16 %v6114
        %v6425 = vunpack.c.h.b16 %v6114
        %v6426 = vunpack.c.l.b16 %v6115
        %v6427 = vunpack.c.h.b16 %v6115
        %v6428 = vunpack.c.l.b16 %v6116
        %v6429 = vunpack.c.h.b16 %v6116
        %v6430 = vunpack.c.l.b16 %v6117
        %v6431 = vunpack.c.h.b16 %v6117
        %v6432 = vunpack.c.l.b16 %v6118
        %v6433 = vunpack.c.h.b16 %v6118
        %v6434 = vunpack.c.l.b16 %v6119
        %v6435 = vunpack.c.h.b16 %v6119
        %v6436 = vunpack.c.l.b16 %v6120
        %v6437 = vunpack.c.h.b16 %v6120
        %v6438 = vunpack.c.l.b16 %v6121
        %v6439 = vunpack.c.h.b16 %v6121
        %v6440 = vunpack.c.l.b16 %v6122
        %v6441 = vunpack.c.h.b16 %v6122
        %v6442 = vunpack.c.l.b16 %v6123
        %v6443 = vunpack.c.h.b16 %v6123
        %v6444 = vunpack.c.l.b16 %v6124
        %v6445 = vunpack.c.h.b16 %v6124
        %v6446 = vunpack.c.l.b16 %v6125
        %v6447 = vunpack.c.h.b16 %v6125
        %v6448 = vunpack.c.l.b16 %v6126
        %v6449 = vunpack.c.h.b16 %v6126
        %v6450 = vunpack.c.l.b16 %v6127
        %v6451 = vunpack.c.h.b16 %v6127
        %v6452 = vunpack.c.l.b16 %v6128
        %v6453 = vunpack.c.h.b16 %v6128
        %v6454 = vunpack.c.l.b16 %v6129
        %v6455 = vunpack.c.h.b16 %v6129
        %v6456 = vunpack.c.l.b16 %v6130
        %v6457 = vunpack.c.h.b16 %v6130
        %v6458 = vunpack.c.l.b16 %v6131
        %v6459 = vunpack.c.h.b16 %v6131
        %v6460 = vunpack.c.l.b16 %v6132
        %v6461 = vunpack.c.h.b16 %v6132
        %v6462 = vunpack.c.l.b16 %v6133
        %v6463 = vunpack.c.h.b16 %v6133
        %v6464 = vunpack.c.l.b16 %v6134
        %v6465 = vunpack.c.h.b16 %v6134
        %v6466 = vunpack.c.l.b16 %v6135
        %v6467 = vunpack.c.h.b16 %v6135
        %v6468 = vunpack.c.l.b16 %v6136
        %v6469 = vunpack.c.h.b16 %v6136
        %v6470 = vunpack.c.l.b16 %v6137
        %v6471 = vunpack.c.h.b16 %v6137
        %v6472 = vunpack.c.l.b16 %v6138
        %v6473 = vunpack.c.h.b16 %v6138
        %v6474 = vunpack.c.l.b16 %v6139
        %v6475 = vunpack.c.h.b16 %v6139
        %v6476 = vunpack.c.l.b16 %v6140
        %v6477 = vunpack.c.h.b16 %v6140
        %v6478 = vunpack.c.l.b16 %v6141
        %v6479 = vunpack.c.h.b16 %v6141
        %v6480 = vunpack.c.l.b16 %v6142
        %v6481 = vunpack.c.h.b16 %v6142
        %v6482 = vunpack.c.l.b16 %v6143
        %v6483 = vunpack.c.h.b16 %v6143
        %v6484 = vunpack.c.l.b16 %v6144
        %v6485 = vunpack.c.h.b16 %v6144
        %v6486 = vunpack.c.l.b16 %v6145
        %v6487 = vunpack.c.h.b16 %v6145
        %v6488 = vunpack.c.l.b16 %v6146
        %v6489 = vunpack.c.h.b16 %v6146
        %v6490 = vunpack.c.l.b16 %v6147
        %v6491 = vunpack.c.h.b16 %v6147
        %v6492 = vunpack.c.l.b16 %v6148
        %v6493 = vunpack.c.h.b16 %v6148
        %v6494 = vunpack.c.l.b16 %v6149
        %v6495 = vunpack.c.h.b16 %v6149
        %v6496 = vunpack.c.l.b16 %v6150
        %v6497 = vunpack.c.h.b16 %v6150
        %v6498 = vunpack.c.l.b16 %v6151
        %v6499 = vunpack.c.h.b16 %v6151
        %v6500 = vunpack.c.l.b16 %v6152
        %v6501 = vunpack.c.h.b16 %v6152
        %v6502 = vunpack.c.l.b16 %v6153
        %v6503 = vunpack.c.h.b16 %v6153
        %v6504 = vunpack.c.l.b16 %v6154
        %v6505 = vunpack.c.h.b16 %v6154
        %v6506 = vunpack.c.l.b16 %v6155
        %v6507 = vunpack.c.h.b16 %v6155
        %v6508 = vunpack.c.l.b16 %v6156
        %v6509 = vunpack.c.h.b16 %v6156
        %v6510 = vunpack.c.l.b16 %v6157
        %v6511 = vunpack.c.h.b16 %v6157
        %v6512 = vunpack.c.l.b16 %v6158
        %v6513 = vunpack.c.h.b16 %v6158
        %v6514 = vunpack.c.l.b16 %v6159
        %v6515 = vunpack.c.h.b16 %v6159
        %v6516 = vunpack.c.l.b16 %v6160
        %v6517 = vunpack.c.h.b16 %v6160
        %v6518 = vunpack.c.l.b16 %v6161
        %v6519 = vunpack.c.h.b16 %v6161
        %v6520 = vunpack.c.l.b16 %v6162
        %v6521 = vunpack.c.h.b16 %v6162
        %v6522 = vunpack.c.l.b16 %v6163
        %v6523 = vunpack.c.h.b16 %v6163
        %v6524 = vunpack.c.l.b16 %v6164
        %v6525 = vunpack.c.h.b16 %v6164
        %v6526 = vunpack.c.l.b16 %v6165
        %v6527 = vunpack.c.h.b16 %v6165
        %v6528 = vunpack.c.l.b16 %v6166
        %v6529 = vunpack.c.h.b16 %v6166
        %v6530 = vunpack.c.l.b16 %v6167
        %v6531 = vunpack.c.h.b16 %v6167
        %v6532 = vunpack.c.l.b16 %v6168
        %v6533 = vunpack.c.h.b16 %v6168
        %v6534 = vunpack.c.l.b16 %v6169
        %v6535 = vunpack.c.h.b16 %v6169
        %v6536 = vunpack.c.l.b16 %v6170
        %v6537 = vunpack.c.h.b16 %v6170
        %v6538 = vunpack.c.l.b16 %v6171
        %v6539 = vunpack.c.h.b16 %v6171
        %v6540 = vunpack.c.l.b16 %v6172
        %v6541 = vunpack.c.h.b16 %v6172
        %v6542 = vunpack.c.l.b16 %v6173
        %v6543 = vunpack.c.h.b16 %v6173
        %v6544 = vunpack.c.l.b16 %v6174
        %v6545 = vunpack.c.h.b16 %v6174
        %v6546 = vunpack.c.l.b16 %v6175
        %v6547 = vunpack.c.h.b16 %v6175
        %v6548 = vunpack.c.l.b16 %v6176
        %v6549 = vunpack.c.h.b16 %v6176
        %v6550 = vunpack.c.l.b16 %v6177
        %v6551 = vunpack.c.h.b16 %v6177
        %v6552 = vunpack.c.l.b16 %v6178
        %v6553 = vunpack.c.h.b16 %v6178
        %v6554 = vunpack.c.l.b16 %v6179
        %v6555 = vunpack.c.h.b16 %v6179
        %v6556 = vunpack.c.l.b16 %v6180
        %v6557 = vunpack.c.h.b16 %v6180
        %v6558 = vunpack.c.l.b16 %v6181
        %v6559 = vunpack.c.h.b16 %v6181
        %v6560 = vunpack.c.l.b16 %v6182
        %v6561 = vunpack.c.h.b16 %v6182
        %v6562 = vunpack.c.l.b16 %v6183
        %v6563 = vunpack.c.h.b16 %v6183
        %v6564 = vunpack.c.l.b16 %v6184
        %v6565 = vunpack.c.h.b16 %v6184
        %v6566 = vunpack.c.l.b16 %v6185
        %v6567 = vunpack.c.h.b16 %v6185
        %v6568 = vunpack.c.l.b16 %v6186
        %v6569 = vunpack.c.h.b16 %v6186
        %v6570 = vunpack.c.l.b16 %v6187
        %v6571 = vunpack.c.h.b16 %v6187
        %v6572 = vunpack.c.l.b16 %v6188
        %v6573 = vunpack.c.h.b16 %v6188
        %v6574 = vunpack.c.l.b16 %v6189
        %v6575 = vunpack.c.h.b16 %v6189
        %v6576 = vunpack.c.l.b16 %v6190
        %v6577 = vunpack.c.h.b16 %v6190
        %v6578 = vunpack.c.l.b16 %v6191
        %v6579 = vunpack.c.h.b16 %v6191
        %v6580 = vunpack.c.l.b16 %v6192
        %v6581 = vunpack.c.h.b16 %v6192
        %v6582 = vunpack.c.l.b16 %v6193
        %v6583 = vunpack.c.h.b16 %v6193
        %v6584 = vunpack.c.l.b16 %v6194
        %v6585 = vunpack.c.h.b16 %v6194
        %v6586 = vunpack.c.l.b16 %v6195
        %v6587 = vunpack.c.h.b16 %v6195
        %v6588 = vunpack.c.l.b16 %v6196
        %v6589 = vunpack.c.h.b16 %v6196
        %v6590 = vunpack.c.l.b16 %v6197
        %v6591 = vunpack.c.h.b16 %v6197
        %v6592 = vunpack.c.l.b16 %v6198
        %v6593 = vunpack.c.h.b16 %v6198
        %v6594 = vunpack.c.l.b16 %v6199
        %v6595 = vunpack.c.h.b16 %v6199
        %v6596 = vunpack.c.l.b16 %v6200
        %v6597 = vunpack.c.h.b16 %v6200
        %v6598 = vunpack.c.l.b16 %v6201
        %v6599 = vunpack.c.h.b16 %v6201
        %v6600 = vunpack.c.l.b16 %v6202
        %v6601 = vunpack.c.h.b16 %v6202
        %v6602 = vunpack.c.l.b16 %v6203
        %v6603 = vunpack.c.h.b16 %v6203
        %v6604 = vpack.c.b16 %v6352, %v6348
        %v6605 = vpack.c.b16 %v6353, %v6349
        %v6606 = vpack.c.b16 %v6354, %v6350
        %v6607 = vpack.c.b16 %v6355, %v6351
        %v6608 = vpack.c.b16 %v6360, %v6356
        %v6609 = vpack.c.b16 %v6361, %v6357
        %v6610 = vpack.c.b16 %v6362, %v6358
        %v6611 = vpack.c.b16 %v6363, %v6359
        %v6612 = vpack.c.b16 %v6368, %v6364
        %v6613 = vpack.c.b16 %v6369, %v6365
        %v6614 = vpack.c.b16 %v6370, %v6366
        %v6615 = vpack.c.b16 %v6371, %v6367
        %v6616 = vpack.c.b16 %v6376, %v6372
        %v6617 = vpack.c.b16 %v6377, %v6373
        %v6618 = vpack.c.b16 %v6378, %v6374
        %v6619 = vpack.c.b16 %v6379, %v6375
        %v6620 = vpack.c.b16 %v6384, %v6380
        %v6621 = vpack.c.b16 %v6385, %v6381
        %v6622 = vpack.c.b16 %v6386, %v6382
        %v6623 = vpack.c.b16 %v6387, %v6383
        %v6624 = vpack.c.b16 %v6392, %v6388
        %v6625 = vpack.c.b16 %v6393, %v6389
        %v6626 = vpack.c.b16 %v6394, %v6390
        %v6627 = vpack.c.b16 %v6395, %v6391
        %v6628 = vpack.c.b16 %v6400, %v6396
        %v6629 = vpack.c.b16 %v6401, %v6397
        %v6630 = vpack.c.b16 %v6402, %v6398
        %v6631 = vpack.c.b16 %v6403, %v6399
        %v6632 = vpack.c.b16 %v6408, %v6404
        %v6633 = vpack.c.b16 %v6409, %v6405
        %v6634 = vpack.c.b16 %v6410, %v6406
        %v6635 = vpack.c.b16 %v6411, %v6407
        %v6636 = vpack.c.b16 %v6416, %v6412
        %v6637 = vpack.c.b16 %v6417, %v6413
        %v6638 = vpack.c.b16 %v6418, %v6414
        %v6639 = vpack.c.b16 %v6419, %v6415
        %v6640 = vpack.c.b16 %v6424, %v6420
        %v6641 = vpack.c.b16 %v6425, %v6421
        %v6642 = vpack.c.b16 %v6426, %v6422
        %v6643 = vpack.c.b16 %v6427, %v6423
        %v6644 = vpack.c.b16 %v6432, %v6428
        %v6645 = vpack.c.b16 %v6433, %v6429
        %v6646 = vpack.c.b16 %v6434, %v6430
        %v6647 = vpack.c.b16 %v6435, %v6431
        %v6648 = vpack.c.b16 %v6440, %v6436
        %v6649 = vpack.c.b16 %v6441, %v6437
        %v6650 = vpack.c.b16 %v6442, %v6438
        %v6651 = vpack.c.b16 %v6443, %v6439
        %v6652 = vpack.c.b16 %v6448, %v6444
        %v6653 = vpack.c.b16 %v6449, %v6445
        %v6654 = vpack.c.b16 %v6450, %v6446
        %v6655 = vpack.c.b16 %v6451, %v6447
        %v6656 = vpack.c.b16 %v6456, %v6452
        %v6657 = vpack.c.b16 %v6457, %v6453
        %v6658 = vpack.c.b16 %v6458, %v6454
        %v6659 = vpack.c.b16 %v6459, %v6455
        %v6660 = vpack.c.b16 %v6464, %v6460
        %v6661 = vpack.c.b16 %v6465, %v6461
        %v6662 = vpack.c.b16 %v6466, %v6462
        %v6663 = vpack.c.b16 %v6467, %v6463
        %v6664 = vpack.c.b16 %v6472, %v6468
        %v6665 = vpack.c.b16 %v6473, %v6469
        %v6666 = vpack.c.b16 %v6474, %v6470
        %v6667 = vpack.c.b16 %v6475, %v6471
        %v6668 = vpack.c.b16 %v6480, %v6476
        %v6669 = vpack.c.b16 %v6481, %v6477
        %v6670 = vpack.c.b16 %v6482, %v6478
        %v6671 = vpack.c.b16 %v6483, %v6479
        %v6672 = vpack.c.b16 %v6488, %v6484
        %v6673 = vpack.c.b16 %v6489, %v6485
        %v6674 = vpack.c.b16 %v6490, %v6486
        %v6675 = vpack.c.b16 %v6491, %v6487
        %v6676 = vpack.c.b16 %v6496, %v6492
        %v6677 = vpack.c.b16 %v6497, %v6493
        %v6678 = vpack.c.b16 %v6498, %v6494
        %v6679 = vpack.c.b16 %v6499, %v6495
        %v6680 = vpack.c.b16 %v6504, %v6500
        %v6681 = vpack.c.b16 %v6505, %v6501
        %v6682 = vpack.c.b16 %v6506, %v6502
        %v6683 = vpack.c.b16 %v6507, %v6503
        %v6684 = vpack.c.b16 %v6512, %v6508
        %v6685 = vpack.c.b16 %v6513, %v6509
        %v6686 = vpack.c.b16 %v6514, %v6510
        %v6687 = vpack.c.b16 %v6515, %v6511
        %v6688 = vpack.c.b16 %v6520, %v6516
        %v6689 = vpack.c.b16 %v6521, %v6517
        %v6690 = vpack.c.b16 %v6522, %v6518
        %v6691 = vpack.c.b16 %v6523, %v6519
        %v6692 = vpack.c.b16 %v6528, %v6524
        %v6693 = vpack.c.b16 %v6529, %v6525
        %v6694 = vpack.c.b16 %v6530, %v6526
        %v6695 = vpack.c.b16 %v6531, %v6527
        %v6696 = vpack.c.b16 %v6536, %v6532
        %v6697 = vpack.c.b16 %v6537, %v6533
        %v6698 = vpack.c.b16 %v6538, %v6534
        %v6699 = vpack.c.b16 %v6539, %v6535
        %v6700 = vpack.c.b16 %v6544, %v6540
        %v6701 = vpack.c.b16 %v6545, %v6541
        %v6702 = vpack.c.b16 %v6546, %v6542
        %v6703 = vpack.c.b16 %v6547, %v6543
        %v6704 = vpack.c.b16 %v6552, %v6548
        %v6705 = vpack.c.b16 %v6553, %v6549
        %v6706 = vpack.c.b16 %v6554, %v6550
        %v6707 = vpack.c.b16 %v6555, %v6551
        %v6708 = vpack.c.b16 %v6560, %v6556
        %v6709 = vpack.c.b16 %v6561, %v6557
        %v6710 = vpack.c.b16 %v6562, %v6558
        %v6711 = vpack.c.b16 %v6563, %v6559
        %v6712 = vpack.c.b16 %v6568, %v6564
        %v6713 = vpack.c.b16 %v6569, %v6565
        %v6714 = vpack.c.b16 %v6570, %v6566
        %v6715 = vpack.c.b16 %v6571, %v6567
        %v6716 = vpack.c.b16 %v6576, %v6572
        %v6717 = vpack.c.b16 %v6577, %v6573
        %v6718 = vpack.c.b16 %v6578, %v6574
        %v6719 = vpack.c.b16 %v6579, %v6575
        %v6720 = vpack.c.b16 %v6584, %v6580
        %v6721 = vpack.c.b16 %v6585, %v6581
        %v6722 = vpack.c.b16 %v6586, %v6582
        %v6723 = vpack.c.b16 %v6587, %v6583
        %v6724 = vpack.c.b16 %v6592, %v6588
        %v6725 = vpack.c.b16 %v6593, %v6589
        %v6726 = vpack.c.b16 %v6594, %v6590
        %v6727 = vpack.c.b16 %v6595, %v6591
        %v6728 = vpack.c.b16 %v6600, %v6596
        %v6729 = vpack.c.b16 %v6601, %v6597
        %v6730 = vpack.c.b16 %v6602, %v6598
        %v6731 = vpack.c.b16 %v6603, %v6599
        %6860 = vmatprep.subr.bf16.mxu0 %v6605
        %6861 = vmatpush1.bf16.msra.mxu0 %v6604
        %6862 = vmatprep.subr.bf16.mxu0 %v6609
        %6863 = vmatpush1.bf16.msra.mxu0 %v6608
        %6864 = vmatprep.subr.bf16.mxu0 %v6613
        %6865 = vmatpush1.bf16.msra.mxu0 %v6612
        %6866 = vmatprep.subr.bf16.mxu0 %v6617
        %6867 = vmatpush1.bf16.msra.mxu0 %v6616
        %6868 = vmatprep.subr.bf16.mxu0 %v6621
        %6869 = vmatpush1.bf16.msra.mxu0 %v6620
        %6870 = vmatprep.subr.bf16.mxu0 %v6625
        %6871 = vmatpush1.bf16.msra.mxu0 %v6624
        %6872 = vmatprep.subr.bf16.mxu0 %v6629
        %6873 = vmatpush1.bf16.msra.mxu0 %v6628
        %6874 = vmatprep.subr.bf16.mxu0 %v6633
        %6875 = vmatpush1.bf16.msra.mxu0 %v6632
        %6876 = vmatprep.subr.bf16.mxu0 %v6637
        %6877 = vmatpush1.bf16.msra.mxu0 %v6636
        %6878 = vmatprep.subr.bf16.mxu0 %v6641
        %6879 = vmatpush1.bf16.msra.mxu0 %v6640
        %6880 = vmatprep.subr.bf16.mxu0 %v6645
        %6881 = vmatpush1.bf16.msra.mxu0 %v6644
        %6882 = vmatprep.subr.bf16.mxu0 %v6649
        %6883 = vmatpush1.bf16.msra.mxu0 %v6648
        %6884 = vmatprep.subr.bf16.mxu0 %v6653
        %6885 = vmatpush1.bf16.msra.mxu0 %v6652
        %6886 = vmatprep.subr.bf16.mxu0 %v6657
        %6887 = vmatpush1.bf16.msra.mxu0 %v6656
        %6888 = vmatprep.subr.bf16.mxu0 %v6661
        %6889 = vmatpush1.bf16.msra.mxu0 %v6660
        %6890 = vmatprep.subr.bf16.mxu0 %v6665
        %6891 = vmatpush1.bf16.msra.mxu0 %v6664
        %6892 = vmatprep.mubr.bf16.mxu0 %v6073
        %6893 = vmatmul.mubr.bf16.gmra.mrb[0].mxu0 %v6072
        %v6894 = vpop.f32.mrb[0].mxu0
        %v6895 = vadd.f32 %v6207, %v6894
        %v6896 = vpop.f32.mrb[0].mxu0
        %v6897 = vadd.f32 %v6211, %v6896
        %v6898 = vpop.f32.mrb[0].mxu0
        %v6899 = vadd.f32 %v6207, %v6898
        %v6900 = vpop.f32.mrb[0].mxu0
        %v6901 = vadd.f32 %v6211, %v6900
        %6902 = vdwg.mxu0
        %6903 = vmatprep.subr.bf16.mxu0 %v6669
        %6904 = vmatpush1.bf16.msra.mxu0 %v6668
        %6905 = vmatprep.subr.bf16.mxu0 %v6673
        %6906 = vmatpush1.bf16.msra.mxu0 %v6672
        %6907 = vmatprep.subr.bf16.mxu0 %v6677
        %6908 = vmatpush1.bf16.msra.mxu0 %v6676
        %6909 = vmatprep.subr.bf16.mxu0 %v6681
        %6910 = vmatpush1.bf16.msra.mxu0 %v6680
        %6911 = vmatprep.subr.bf16.mxu0 %v6685
        %6912 = vmatpush1.bf16.msra.mxu0 %v6684
        %6913 = vmatprep.subr.bf16.mxu0 %v6689
        %6914 = vmatpush1.bf16.msra.mxu0 %v6688
        %6915 = vmatprep.subr.bf16.mxu0 %v6693
        %6916 = vmatpush1.bf16.msra.mxu0 %v6692
        %6917 = vmatprep.subr.bf16.mxu0 %v6697
        %6918 = vmatpush1.bf16.msra.mxu0 %v6696
        %6919 = vmatprep.subr.bf16.mxu0 %v6701
        %6920 = vmatpush1.bf16.msra.mxu0 %v6700
        %6921 = vmatprep.subr.bf16.mxu0 %v6705
        %6922 = vmatpush1.bf16.msra.mxu0 %v6704
        %6923 = vmatprep.subr.bf16.mxu0 %v6709
        %6924 = vmatpush1.bf16.msra.mxu0 %v6708
        %6925 = vmatprep.subr.bf16.mxu0 %v6713
        %6926 = vmatpush1.bf16.msra.mxu0 %v6712
        %6927 = vmatprep.subr.bf16.mxu0 %v6717
        %6928 = vmatpush1.bf16.msra.mxu0 %v6716
        %6929 = vmatprep.subr.bf16.mxu0 %v6721
        %6930 = vmatpush1.bf16.msra.mxu0 %v6720
        %6931 = vmatprep.subr.bf16.mxu0 %v6725
        %6932 = vmatpush1.bf16.msra.mxu0 %v6724
        %6933 = vmatprep.subr.bf16.mxu0 %v6729
        %6934 = vmatpush1.bf16.msra.mxu0 %v6728
        %6935 = vmatprep.mubr.bf16.mxu0 %v6075
        %6936 = vmatmul.mubr.bf16.gmra.mrb[0].mxu0 %v6074
        %v6937 = vpop.f32.mrb[0].mxu0
        %v6938 = vadd.f32 %v6895, %v6937
        %v6939 = vpop.f32.mrb[0].mxu0
        %v6940 = vadd.f32 %v6897, %v6939
        %v6941 = vpop.f32.mrb[0].mxu0
        %v6942 = vadd.f32 %v6899, %v6941
        %v6943 = vpop.f32.mrb[0].mxu0
        %v6944 = vadd.f32 %v6901, %v6943
        %6945 = vdwg.mxu0
        %6946 = vmatprep.subr.bf16.mxu0 %v6607
        %6947 = vmatpush1.bf16.msra.mxu0 %v6606
        %6948 = vmatprep.subr.bf16.mxu0 %v6611
        %6949 = vmatpush1.bf16.msra.mxu0 %v6610
        %6950 = vmatprep.subr.bf16.mxu0 %v6615
        %6951 = vmatpush1.bf16.msra.mxu0 %v6614
        %6952 = vmatprep.subr.bf16.mxu0 %v6619
        %6953 = vmatpush1.bf16.msra.mxu0 %v6618
        %6954 = vmatprep.subr.bf16.mxu0 %v6623
        %6955 = vmatpush1.bf16.msra.mxu0 %v6622
        %6956 = vmatprep.subr.bf16.mxu0 %v6627
        %6957 = vmatpush1.bf16.msra.mxu0 %v6626
        %6958 = vmatprep.subr.bf16.mxu0 %v6631
        %6959 = vmatpush1.bf16.msra.mxu0 %v6630
        %6960 = vmatprep.subr.bf16.mxu0 %v6635
        %6961 = vmatpush1.bf16.msra.mxu0 %v6634
        %6962 = vmatprep.subr.bf16.mxu0 %v6639
        %6963 = vmatpush1.bf16.msra.mxu0 %v6638
        %6964 = vmatprep.subr.bf16.mxu0 %v6643
        %6965 = vmatpush1.bf16.msra.mxu0 %v6642
        %6966 = vmatprep.subr.bf16.mxu0 %v6647
        %6967 = vmatpush1.bf16.msra.mxu0 %v6646
        %6968 = vmatprep.subr.bf16.mxu0 %v6651
        %6969 = vmatpush1.bf16.msra.mxu0 %v6650
        %6970 = vmatprep.subr.bf16.mxu0 %v6655
        %6971 = vmatpush1.bf16.msra.mxu0 %v6654
        %6972 = vmatprep.subr.bf16.mxu0 %v6659
        %6973 = vmatpush1.bf16.msra.mxu0 %v6658
        %6974 = vmatprep.subr.bf16.mxu0 %v6663
        %6975 = vmatpush1.bf16.msra.mxu0 %v6662
        %6976 = vmatprep.subr.bf16.mxu0 %v6667
        %6977 = vmatpush1.bf16.msra.mxu0 %v6666
        %6978 = vmatprep.mubr.bf16.mxu0 %v6073
        %6979 = vmatmul.mubr.bf16.gmra.mrb[0].mxu0 %v6072
        %v6980 = vpop.f32.mrb[0].mxu0
        %v6981 = vadd.f32 %v6215, %v6980
        %v6982 = vpop.f32.mrb[0].mxu0
        %v6983 = vadd.f32 %v6219, %v6982
        %v6984 = vpop.f32.mrb[0].mxu0
        %v6985 = vadd.f32 %v6215, %v6984
        %v6986 = vpop.f32.mrb[0].mxu0
        %v6987 = vadd.f32 %v6219, %v6986
        %6988 = vdwg.mxu0
        %6989 = vmatprep.subr.bf16.mxu0 %v6671
        %6990 = vmatpush1.bf16.msra.mxu0 %v6670
        %6991 = vmatprep.subr.bf16.mxu0 %v6675
        %6992 = vmatpush1.bf16.msra.mxu0 %v6674
        %6993 = vmatprep.subr.bf16.mxu0 %v6679
        %6994 = vmatpush1.bf16.msra.mxu0 %v6678
        %6995 = vmatprep.subr.bf16.mxu0 %v6683
        %6996 = vmatpush1.bf16.msra.mxu0 %v6682
        %6997 = vmatprep.subr.bf16.mxu0 %v6687
        %6998 = vmatpush1.bf16.msra.mxu0 %v6686
        %6999 = vmatprep.subr.bf16.mxu0 %v6691
        %7000 = vmatpush1.bf16.msra.mxu0 %v6690
        %7001 = vmatprep.subr.bf16.mxu0 %v6695
        %7002 = vmatpush1.bf16.msra.mxu0 %v6694
        %7003 = vmatprep.subr.bf16.mxu0 %v6699
        %7004 = vmatpush1.bf16.msra.mxu0 %v6698
        %7005 = vmatprep.subr.bf16.mxu0 %v6703
        %7006 = vmatpush1.bf16.msra.mxu0 %v6702
        %7007 = vmatprep.subr.bf16.mxu0 %v6707
        %7008 = vmatpush1.bf16.msra.mxu0 %v6706
        %7009 = vmatprep.subr.bf16.mxu0 %v6711
        %7010 = vmatpush1.bf16.msra.mxu0 %v6710
        %7011 = vmatprep.subr.bf16.mxu0 %v6715
        %7012 = vmatpush1.bf16.msra.mxu0 %v6714
        %7013 = vmatprep.subr.bf16.mxu0 %v6719
        %7014 = vmatpush1.bf16.msra.mxu0 %v6718
        %7015 = vmatprep.subr.bf16.mxu0 %v6723
        %7016 = vmatpush1.bf16.msra.mxu0 %v6722
        %7017 = vmatprep.subr.bf16.mxu0 %v6727
        %7018 = vmatpush1.bf16.msra.mxu0 %v6726
        %7019 = vmatprep.subr.bf16.mxu0 %v6731
        %7020 = vmatpush1.bf16.msra.mxu0 %v6730
        %7021 = vmatprep.mubr.bf16.mxu0 %v6075
        %7022 = vmatmul.mubr.bf16.gmra.mrb[0].mxu0 %v6074
        %v7023 = vpop.f32.mrb[0].mxu0
        %v7024 = vadd.f32 %v6981, %v7023
        %v7025 = vpop.f32.mrb[0].mxu0
        %v7026 = vadd.f32 %v6983, %v7025
        %v7027 = vpop.f32.mrb[0].mxu0
        %v7028 = vadd.f32 %v6985, %v7027
        %v7029 = vpop.f32.mrb[0].mxu0
        %v7030 = vadd.f32 %v6987, %v7029
        %7031 = vdwg.mxu0
        %v7032 = vmax.f32 %v6938, 0.0
        %v7033 = vmax.f32 %v6940, 0.0
        %v7034 = vmax.f32 %v7024, 0.0
        %v7035 = vmax.f32 %v7026, 0.0
        %v7036 = vmax.f32 %v6942, 0.0
        %v7037 = vmax.f32 %v6944, 0.0
        %v7038 = vmax.f32 %v7028, 0.0
        %v7039 = vmax.f32 %v7030, 0.0
        %v7040 = vpack.c.bf16 %v7036, %v7032
        %v7041 = vpack.c.bf16 %v7037, %v7033
        %v7042 = vpack.c.bf16 %v7038, %v7034
        %v7043 = vpack.c.bf16 %v7039, %v7035
        %v7044 = vld [vmem:[#allocation9] sm:$0xff]
        %v7045 = vld [vmem:[#allocation9 + $0x8] sm:$0xff]
        %v7046 = vld [vmem:[#allocation9 + $0x10] sm:$0xff]
        %v7047 = vld [vmem:[#allocation9 + $0x18] sm:$0xff]
        %v7048 = vld [vmem:[#allocation9 + $0x20] sm:$0xff]
        %v7049 = vld [vmem:[#allocation9 + $0x28] sm:$0xff]
        %v7050 = vld [vmem:[#allocation9 + $0x30] sm:$0xff]
        %v7051 = vld [vmem:[#allocation9 + $0x38] sm:$0xff]
        %v7052 = vld [vmem:[#allocation9 + $0x40] sm:$0xff]
        %v7053 = vld [vmem:[#allocation9 + $0x48] sm:$0xff]
        %v7054 = vld [vmem:[#allocation9 + $0x50] sm:$0xff]
        %v7055 = vld [vmem:[#allocation9 + $0x58] sm:$0xff]
        %v7056 = vld [vmem:[#allocation9 + $0x60] sm:$0xff]
        %v7057 = vld [vmem:[#allocation9 + $0x68] sm:$0xff]
        %v7058 = vld [vmem:[#allocation9 + $0x70] sm:$0xff]
        %v7059 = vld [vmem:[#allocation9 + $0x78] sm:$0xff]
        %v7060 = vld [vmem:[#allocation9 + $0x80] sm:$0xff]
        %v7061 = vld [vmem:[#allocation9 + $0x88] sm:$0xff]
        %v7062 = vld [vmem:[#allocation9 + $0x90] sm:$0xff]
        %v7063 = vld [vmem:[#allocation9 + $0x98] sm:$0xff]
        %v7064 = vld [vmem:[#allocation9 + $0xa0] sm:$0xff]
        %v7065 = vld [vmem:[#allocation9 + $0xa8] sm:$0xff]
        %v7066 = vld [vmem:[#allocation9 + $0xb0] sm:$0xff]
        %v7067 = vld [vmem:[#allocation9 + $0xb8] sm:$0xff]
        %v7068 = vld [vmem:[#allocation9 + $0xc0] sm:$0xff]
        %v7069 = vld [vmem:[#allocation9 + $0xc8] sm:$0xff]
        %v7070 = vld [vmem:[#allocation9 + $0xd0] sm:$0xff]
        %v7071 = vld [vmem:[#allocation9 + $0xd8] sm:$0xff]
        %v7072 = vld [vmem:[#allocation9 + $0xe0] sm:$0xff]
        %v7073 = vld [vmem:[#allocation9 + $0xe8] sm:$0xff]
        %v7074 = vld [vmem:[#allocation9 + $0xf0] sm:$0xff]
        %v7075 = vld [vmem:[#allocation9 + $0xf8] sm:$0xff]
        %v7076 = vld [vmem:[#allocation9 + $0x100] sm:$0xff]
        %v7077 = vld [vmem:[#allocation9 + $0x108] sm:$0xff]
        %v7078 = vld [vmem:[#allocation9 + $0x110] sm:$0xff]
        %v7079 = vld [vmem:[#allocation9 + $0x118] sm:$0xff]
        %v7080 = vld [vmem:[#allocation9 + $0x120] sm:$0xff]
        %v7081 = vld [vmem:[#allocation9 + $0x128] sm:$0xff]
        %v7082 = vld [vmem:[#allocation9 + $0x130] sm:$0xff]
        %v7083 = vld [vmem:[#allocation9 + $0x138] sm:$0xff]
        %v7084 = vld [vmem:[#allocation9 + $0x140] sm:$0xff]
        %v7085 = vld [vmem:[#allocation9 + $0x148] sm:$0xff]
        %v7086 = vld [vmem:[#allocation9 + $0x150] sm:$0xff]
        %v7087 = vld [vmem:[#allocation9 + $0x158] sm:$0xff]
        %v7088 = vld [vmem:[#allocation9 + $0x160] sm:$0xff]
        %v7089 = vld [vmem:[#allocation9 + $0x168] sm:$0xff]
        %v7090 = vld [vmem:[#allocation9 + $0x170] sm:$0xff]
        %v7091 = vld [vmem:[#allocation9 + $0x178] sm:$0xff]
        %v7092 = vld [vmem:[#allocation9 + $0x180] sm:$0xff]
        %v7093 = vld [vmem:[#allocation9 + $0x188] sm:$0xff]
        %v7094 = vld [vmem:[#allocation9 + $0x190] sm:$0xff]
        %v7095 = vld [vmem:[#allocation9 + $0x198] sm:$0xff]
        %v7096 = vld [vmem:[#allocation9 + $0x1a0] sm:$0xff]
        %v7097 = vld [vmem:[#allocation9 + $0x1a8] sm:$0xff]
        %v7098 = vld [vmem:[#allocation9 + $0x1b0] sm:$0xff]
        %v7099 = vld [vmem:[#allocation9 + $0x1b8] sm:$0xff]
        %v7100 = vld [vmem:[#allocation9 + $0x1c0] sm:$0xff]
        %v7101 = vld [vmem:[#allocation9 + $0x1c8] sm:$0xff]
        %v7102 = vld [vmem:[#allocation9 + $0x1d0] sm:$0xff]
        %v7103 = vld [vmem:[#allocation9 + $0x1d8] sm:$0xff]
        %v7104 = vld [vmem:[#allocation9 + $0x1e0] sm:$0xff]
        %v7105 = vld [vmem:[#allocation9 + $0x1e8] sm:$0xff]
        %v7106 = vld [vmem:[#allocation9 + $0x1f0] sm:$0xff]
        %v7107 = vld [vmem:[#allocation9 + $0x1f8] sm:$0xff]
        %v7108 = vld [vmem:[#allocation9 + $0x200] sm:$0xff]
        %v7109 = vld [vmem:[#allocation9 + $0x208] sm:$0xff]
        %v7110 = vld [vmem:[#allocation9 + $0x210] sm:$0xff]
        %v7111 = vld [vmem:[#allocation9 + $0x218] sm:$0xff]
        %v7112 = vld [vmem:[#allocation9 + $0x220] sm:$0xff]
        %v7113 = vld [vmem:[#allocation9 + $0x228] sm:$0xff]
        %v7114 = vld [vmem:[#allocation9 + $0x230] sm:$0xff]
        %v7115 = vld [vmem:[#allocation9 + $0x238] sm:$0xff]
        %v7116 = vld [vmem:[#allocation9 + $0x240] sm:$0xff]
        %v7117 = vld [vmem:[#allocation9 + $0x248] sm:$0xff]
        %v7118 = vld [vmem:[#allocation9 + $0x250] sm:$0xff]
        %v7119 = vld [vmem:[#allocation9 + $0x258] sm:$0xff]
        %v7120 = vld [vmem:[#allocation9 + $0x260] sm:$0xff]
        %v7121 = vld [vmem:[#allocation9 + $0x268] sm:$0xff]
        %v7122 = vld [vmem:[#allocation9 + $0x270] sm:$0xff]
        %v7123 = vld [vmem:[#allocation9 + $0x278] sm:$0xff]
        %v7124 = vld [vmem:[#allocation9 + $0x280] sm:$0xff]
        %v7125 = vld [vmem:[#allocation9 + $0x288] sm:$0xff]
        %v7126 = vld [vmem:[#allocation9 + $0x290] sm:$0xff]
        %v7127 = vld [vmem:[#allocation9 + $0x298] sm:$0xff]
        %v7128 = vld [vmem:[#allocation9 + $0x2a0] sm:$0xff]
        %v7129 = vld [vmem:[#allocation9 + $0x2a8] sm:$0xff]
        %v7130 = vld [vmem:[#allocation9 + $0x2b0] sm:$0xff]
        %v7131 = vld [vmem:[#allocation9 + $0x2b8] sm:$0xff]
        %v7132 = vld [vmem:[#allocation9 + $0x2c0] sm:$0xff]
        %v7133 = vld [vmem:[#allocation9 + $0x2c8] sm:$0xff]
        %v7134 = vld [vmem:[#allocation9 + $0x2d0] sm:$0xff]
        %v7135 = vld [vmem:[#allocation9 + $0x2d8] sm:$0xff]
        %v7136 = vld [vmem:[#allocation9 + $0x2e0] sm:$0xff]
        %v7137 = vld [vmem:[#allocation9 + $0x2e8] sm:$0xff]
        %v7138 = vld [vmem:[#allocation9 + $0x2f0] sm:$0xff]
        %v7139 = vld [vmem:[#allocation9 + $0x2f8] sm:$0xff]
        %v7140 = vld [vmem:[#allocation9 + $0x300] sm:$0xff]
        %v7141 = vld [vmem:[#allocation9 + $0x308] sm:$0xff]
        %v7142 = vld [vmem:[#allocation9 + $0x310] sm:$0xff]
        %v7143 = vld [vmem:[#allocation9 + $0x318] sm:$0xff]
        %v7144 = vld [vmem:[#allocation9 + $0x320] sm:$0xff]
        %v7145 = vld [vmem:[#allocation9 + $0x328] sm:$0xff]
        %v7146 = vld [vmem:[#allocation9 + $0x330] sm:$0xff]
        %v7147 = vld [vmem:[#allocation9 + $0x338] sm:$0xff]
        %v7148 = vld [vmem:[#allocation9 + $0x340] sm:$0xff]
        %v7149 = vld [vmem:[#allocation9 + $0x348] sm:$0xff]
        %v7150 = vld [vmem:[#allocation9 + $0x350] sm:$0xff]
        %v7151 = vld [vmem:[#allocation9 + $0x358] sm:$0xff]
        %v7152 = vld [vmem:[#allocation9 + $0x360] sm:$0xff]
        %v7153 = vld [vmem:[#allocation9 + $0x368] sm:$0xff]
        %v7154 = vld [vmem:[#allocation9 + $0x370] sm:$0xff]
        %v7155 = vld [vmem:[#allocation9 + $0x378] sm:$0xff]
        %v7156 = vld [vmem:[#allocation9 + $0x380] sm:$0xff]
        %v7157 = vld [vmem:[#allocation9 + $0x388] sm:$0xff]
        %v7158 = vld [vmem:[#allocation9 + $0x390] sm:$0xff]
        %v7159 = vld [vmem:[#allocation9 + $0x398] sm:$0xff]
        %v7160 = vld [vmem:[#allocation9 + $0x3a0] sm:$0xff]
        %v7161 = vld [vmem:[#allocation9 + $0x3a8] sm:$0xff]
        %v7162 = vld [vmem:[#allocation9 + $0x3b0] sm:$0xff]
        %v7163 = vld [vmem:[#allocation9 + $0x3b8] sm:$0xff]
        %v7164 = vld [vmem:[#allocation9 + $0x3c0] sm:$0xff]
        %v7165 = vld [vmem:[#allocation9 + $0x3c8] sm:$0xff]
        %v7166 = vld [vmem:[#allocation9 + $0x3d0] sm:$0xff]
        %v7167 = vld [vmem:[#allocation9 + $0x3d8] sm:$0xff]
        %v7168 = vld [vmem:[#allocation9 + $0x3e0] sm:$0xff]
        %v7169 = vld [vmem:[#allocation9 + $0x3e8] sm:$0xff]
        %v7170 = vld [vmem:[#allocation9 + $0x3f0] sm:$0xff]
        %v7171 = vld [vmem:[#allocation9 + $0x3f8] sm:$0xff]
        %v7172 = vlaneseq
        %v7173 = vshrl.u32 %v7172, 7
        %v7174 = vsub.s32 6, %v7173
        %v7175 = vrot.slane %v440, %v7174
        %v7176 = vlaneseq
        %v7177 = vshrl.u32 %v7176, 7
        %v7178 = vsub.s32 6, %v7177
        %v7179 = vrot.slane %v441, %v7178
        %v7180 = vlaneseq
        %v7181 = vshrl.u32 %v7180, 7
        %v7182 = vsub.s32 6, %v7181
        %v7183 = vrot.slane %v442, %v7182
        %v7184 = vlaneseq
        %v7185 = vshrl.u32 %v7184, 7
        %v7186 = vsub.s32 6, %v7185
        %v7187 = vrot.slane %v443, %v7186
        %v7316 = vunpack.c.l.b16 %v7044
        %v7317 = vunpack.c.h.b16 %v7044
        %v7318 = vunpack.c.l.b16 %v7045
        %v7319 = vunpack.c.h.b16 %v7045
        %v7320 = vunpack.c.l.b16 %v7046
        %v7321 = vunpack.c.h.b16 %v7046
        %v7322 = vunpack.c.l.b16 %v7047
        %v7323 = vunpack.c.h.b16 %v7047
        %v7324 = vunpack.c.l.b16 %v7048
        %v7325 = vunpack.c.h.b16 %v7048
        %v7326 = vunpack.c.l.b16 %v7049
        %v7327 = vunpack.c.h.b16 %v7049
        %v7328 = vunpack.c.l.b16 %v7050
        %v7329 = vunpack.c.h.b16 %v7050
        %v7330 = vunpack.c.l.b16 %v7051
        %v7331 = vunpack.c.h.b16 %v7051
        %v7332 = vunpack.c.l.b16 %v7052
        %v7333 = vunpack.c.h.b16 %v7052
        %v7334 = vunpack.c.l.b16 %v7053
        %v7335 = vunpack.c.h.b16 %v7053
        %v7336 = vunpack.c.l.b16 %v7054
        %v7337 = vunpack.c.h.b16 %v7054
        %v7338 = vunpack.c.l.b16 %v7055
        %v7339 = vunpack.c.h.b16 %v7055
        %v7340 = vunpack.c.l.b16 %v7056
        %v7341 = vunpack.c.h.b16 %v7056
        %v7342 = vunpack.c.l.b16 %v7057
        %v7343 = vunpack.c.h.b16 %v7057
        %v7344 = vunpack.c.l.b16 %v7058
        %v7345 = vunpack.c.h.b16 %v7058
        %v7346 = vunpack.c.l.b16 %v7059
        %v7347 = vunpack.c.h.b16 %v7059
        %v7348 = vunpack.c.l.b16 %v7060
        %v7349 = vunpack.c.h.b16 %v7060
        %v7350 = vunpack.c.l.b16 %v7061
        %v7351 = vunpack.c.h.b16 %v7061
        %v7352 = vunpack.c.l.b16 %v7062
        %v7353 = vunpack.c.h.b16 %v7062
        %v7354 = vunpack.c.l.b16 %v7063
        %v7355 = vunpack.c.h.b16 %v7063
        %v7356 = vunpack.c.l.b16 %v7064
        %v7357 = vunpack.c.h.b16 %v7064
        %v7358 = vunpack.c.l.b16 %v7065
        %v7359 = vunpack.c.h.b16 %v7065
        %v7360 = vunpack.c.l.b16 %v7066
        %v7361 = vunpack.c.h.b16 %v7066
        %v7362 = vunpack.c.l.b16 %v7067
        %v7363 = vunpack.c.h.b16 %v7067
        %v7364 = vunpack.c.l.b16 %v7068
        %v7365 = vunpack.c.h.b16 %v7068
        %v7366 = vunpack.c.l.b16 %v7069
        %v7367 = vunpack.c.h.b16 %v7069
        %v7368 = vunpack.c.l.b16 %v7070
        %v7369 = vunpack.c.h.b16 %v7070
        %v7370 = vunpack.c.l.b16 %v7071
        %v7371 = vunpack.c.h.b16 %v7071
        %v7372 = vunpack.c.l.b16 %v7072
        %v7373 = vunpack.c.h.b16 %v7072
        %v7374 = vunpack.c.l.b16 %v7073
        %v7375 = vunpack.c.h.b16 %v7073
        %v7376 = vunpack.c.l.b16 %v7074
        %v7377 = vunpack.c.h.b16 %v7074
        %v7378 = vunpack.c.l.b16 %v7075
        %v7379 = vunpack.c.h.b16 %v7075
        %v7380 = vunpack.c.l.b16 %v7076
        %v7381 = vunpack.c.h.b16 %v7076
        %v7382 = vunpack.c.l.b16 %v7077
        %v7383 = vunpack.c.h.b16 %v7077
        %v7384 = vunpack.c.l.b16 %v7078
        %v7385 = vunpack.c.h.b16 %v7078
        %v7386 = vunpack.c.l.b16 %v7079
        %v7387 = vunpack.c.h.b16 %v7079
        %v7388 = vunpack.c.l.b16 %v7080
        %v7389 = vunpack.c.h.b16 %v7080
        %v7390 = vunpack.c.l.b16 %v7081
        %v7391 = vunpack.c.h.b16 %v7081
        %v7392 = vunpack.c.l.b16 %v7082
        %v7393 = vunpack.c.h.b16 %v7082
        %v7394 = vunpack.c.l.b16 %v7083
        %v7395 = vunpack.c.h.b16 %v7083
        %v7396 = vunpack.c.l.b16 %v7084
        %v7397 = vunpack.c.h.b16 %v7084
        %v7398 = vunpack.c.l.b16 %v7085
        %v7399 = vunpack.c.h.b16 %v7085
        %v7400 = vunpack.c.l.b16 %v7086
        %v7401 = vunpack.c.h.b16 %v7086
        %v7402 = vunpack.c.l.b16 %v7087
        %v7403 = vunpack.c.h.b16 %v7087
        %v7404 = vunpack.c.l.b16 %v7088
        %v7405 = vunpack.c.h.b16 %v7088
        %v7406 = vunpack.c.l.b16 %v7089
        %v7407 = vunpack.c.h.b16 %v7089
        %v7408 = vunpack.c.l.b16 %v7090
        %v7409 = vunpack.c.h.b16 %v7090
        %v7410 = vunpack.c.l.b16 %v7091
        %v7411 = vunpack.c.h.b16 %v7091
        %v7412 = vunpack.c.l.b16 %v7092
        %v7413 = vunpack.c.h.b16 %v7092
        %v7414 = vunpack.c.l.b16 %v7093
        %v7415 = vunpack.c.h.b16 %v7093
        %v7416 = vunpack.c.l.b16 %v7094
        %v7417 = vunpack.c.h.b16 %v7094
        %v7418 = vunpack.c.l.b16 %v7095
        %v7419 = vunpack.c.h.b16 %v7095
        %v7420 = vunpack.c.l.b16 %v7096
        %v7421 = vunpack.c.h.b16 %v7096
        %v7422 = vunpack.c.l.b16 %v7097
        %v7423 = vunpack.c.h.b16 %v7097
        %v7424 = vunpack.c.l.b16 %v7098
        %v7425 = vunpack.c.h.b16 %v7098
        %v7426 = vunpack.c.l.b16 %v7099
        %v7427 = vunpack.c.h.b16 %v7099
        %v7428 = vunpack.c.l.b16 %v7100
        %v7429 = vunpack.c.h.b16 %v7100
        %v7430 = vunpack.c.l.b16 %v7101
        %v7431 = vunpack.c.h.b16 %v7101
        %v7432 = vunpack.c.l.b16 %v7102
        %v7433 = vunpack.c.h.b16 %v7102
        %v7434 = vunpack.c.l.b16 %v7103
        %v7435 = vunpack.c.h.b16 %v7103
        %v7436 = vunpack.c.l.b16 %v7104
        %v7437 = vunpack.c.h.b16 %v7104
        %v7438 = vunpack.c.l.b16 %v7105
        %v7439 = vunpack.c.h.b16 %v7105
        %v7440 = vunpack.c.l.b16 %v7106
        %v7441 = vunpack.c.h.b16 %v7106
        %v7442 = vunpack.c.l.b16 %v7107
        %v7443 = vunpack.c.h.b16 %v7107
        %v7444 = vunpack.c.l.b16 %v7108
        %v7445 = vunpack.c.h.b16 %v7108
        %v7446 = vunpack.c.l.b16 %v7109
        %v7447 = vunpack.c.h.b16 %v7109
        %v7448 = vunpack.c.l.b16 %v7110
        %v7449 = vunpack.c.h.b16 %v7110
        %v7450 = vunpack.c.l.b16 %v7111
        %v7451 = vunpack.c.h.b16 %v7111
        %v7452 = vunpack.c.l.b16 %v7112
        %v7453 = vunpack.c.h.b16 %v7112
        %v7454 = vunpack.c.l.b16 %v7113
        %v7455 = vunpack.c.h.b16 %v7113
        %v7456 = vunpack.c.l.b16 %v7114
        %v7457 = vunpack.c.h.b16 %v7114
        %v7458 = vunpack.c.l.b16 %v7115
        %v7459 = vunpack.c.h.b16 %v7115
        %v7460 = vunpack.c.l.b16 %v7116
        %v7461 = vunpack.c.h.b16 %v7116
        %v7462 = vunpack.c.l.b16 %v7117
        %v7463 = vunpack.c.h.b16 %v7117
        %v7464 = vunpack.c.l.b16 %v7118
        %v7465 = vunpack.c.h.b16 %v7118
        %v7466 = vunpack.c.l.b16 %v7119
        %v7467 = vunpack.c.h.b16 %v7119
        %v7468 = vunpack.c.l.b16 %v7120
        %v7469 = vunpack.c.h.b16 %v7120
        %v7470 = vunpack.c.l.b16 %v7121
        %v7471 = vunpack.c.h.b16 %v7121
        %v7472 = vunpack.c.l.b16 %v7122
        %v7473 = vunpack.c.h.b16 %v7122
        %v7474 = vunpack.c.l.b16 %v7123
        %v7475 = vunpack.c.h.b16 %v7123
        %v7476 = vunpack.c.l.b16 %v7124
        %v7477 = vunpack.c.h.b16 %v7124
        %v7478 = vunpack.c.l.b16 %v7125
        %v7479 = vunpack.c.h.b16 %v7125
        %v7480 = vunpack.c.l.b16 %v7126
        %v7481 = vunpack.c.h.b16 %v7126
        %v7482 = vunpack.c.l.b16 %v7127
        %v7483 = vunpack.c.h.b16 %v7127
        %v7484 = vunpack.c.l.b16 %v7128
        %v7485 = vunpack.c.h.b16 %v7128
        %v7486 = vunpack.c.l.b16 %v7129
        %v7487 = vunpack.c.h.b16 %v7129
        %v7488 = vunpack.c.l.b16 %v7130
        %v7489 = vunpack.c.h.b16 %v7130
        %v7490 = vunpack.c.l.b16 %v7131
        %v7491 = vunpack.c.h.b16 %v7131
        %v7492 = vunpack.c.l.b16 %v7132
        %v7493 = vunpack.c.h.b16 %v7132
        %v7494 = vunpack.c.l.b16 %v7133
        %v7495 = vunpack.c.h.b16 %v7133
        %v7496 = vunpack.c.l.b16 %v7134
        %v7497 = vunpack.c.h.b16 %v7134
        %v7498 = vunpack.c.l.b16 %v7135
        %v7499 = vunpack.c.h.b16 %v7135
        %v7500 = vunpack.c.l.b16 %v7136
        %v7501 = vunpack.c.h.b16 %v7136
        %v7502 = vunpack.c.l.b16 %v7137
        %v7503 = vunpack.c.h.b16 %v7137
        %v7504 = vunpack.c.l.b16 %v7138
        %v7505 = vunpack.c.h.b16 %v7138
        %v7506 = vunpack.c.l.b16 %v7139
        %v7507 = vunpack.c.h.b16 %v7139
        %v7508 = vunpack.c.l.b16 %v7140
        %v7509 = vunpack.c.h.b16 %v7140
        %v7510 = vunpack.c.l.b16 %v7141
        %v7511 = vunpack.c.h.b16 %v7141
        %v7512 = vunpack.c.l.b16 %v7142
        %v7513 = vunpack.c.h.b16 %v7142
        %v7514 = vunpack.c.l.b16 %v7143
        %v7515 = vunpack.c.h.b16 %v7143
        %v7516 = vunpack.c.l.b16 %v7144
        %v7517 = vunpack.c.h.b16 %v7144
        %v7518 = vunpack.c.l.b16 %v7145
        %v7519 = vunpack.c.h.b16 %v7145
        %v7520 = vunpack.c.l.b16 %v7146
        %v7521 = vunpack.c.h.b16 %v7146
        %v7522 = vunpack.c.l.b16 %v7147
        %v7523 = vunpack.c.h.b16 %v7147
        %v7524 = vunpack.c.l.b16 %v7148
        %v7525 = vunpack.c.h.b16 %v7148
        %v7526 = vunpack.c.l.b16 %v7149
        %v7527 = vunpack.c.h.b16 %v7149
        %v7528 = vunpack.c.l.b16 %v7150
        %v7529 = vunpack.c.h.b16 %v7150
        %v7530 = vunpack.c.l.b16 %v7151
        %v7531 = vunpack.c.h.b16 %v7151
        %v7532 = vunpack.c.l.b16 %v7152
        %v7533 = vunpack.c.h.b16 %v7152
        %v7534 = vunpack.c.l.b16 %v7153
        %v7535 = vunpack.c.h.b16 %v7153
        %v7536 = vunpack.c.l.b16 %v7154
        %v7537 = vunpack.c.h.b16 %v7154
        %v7538 = vunpack.c.l.b16 %v7155
        %v7539 = vunpack.c.h.b16 %v7155
        %v7540 = vunpack.c.l.b16 %v7156
        %v7541 = vunpack.c.h.b16 %v7156
        %v7542 = vunpack.c.l.b16 %v7157
        %v7543 = vunpack.c.h.b16 %v7157
        %v7544 = vunpack.c.l.b16 %v7158
        %v7545 = vunpack.c.h.b16 %v7158
        %v7546 = vunpack.c.l.b16 %v7159
        %v7547 = vunpack.c.h.b16 %v7159
        %v7548 = vunpack.c.l.b16 %v7160
        %v7549 = vunpack.c.h.b16 %v7160
        %v7550 = vunpack.c.l.b16 %v7161
        %v7551 = vunpack.c.h.b16 %v7161
        %v7552 = vunpack.c.l.b16 %v7162
        %v7553 = vunpack.c.h.b16 %v7162
        %v7554 = vunpack.c.l.b16 %v7163
        %v7555 = vunpack.c.h.b16 %v7163
        %v7556 = vunpack.c.l.b16 %v7164
        %v7557 = vunpack.c.h.b16 %v7164
        %v7558 = vunpack.c.l.b16 %v7165
        %v7559 = vunpack.c.h.b16 %v7165
        %v7560 = vunpack.c.l.b16 %v7166
        %v7561 = vunpack.c.h.b16 %v7166
        %v7562 = vunpack.c.l.b16 %v7167
        %v7563 = vunpack.c.h.b16 %v7167
        %v7564 = vunpack.c.l.b16 %v7168
        %v7565 = vunpack.c.h.b16 %v7168
        %v7566 = vunpack.c.l.b16 %v7169
        %v7567 = vunpack.c.h.b16 %v7169
        %v7568 = vunpack.c.l.b16 %v7170
        %v7569 = vunpack.c.h.b16 %v7170
        %v7570 = vunpack.c.l.b16 %v7171
        %v7571 = vunpack.c.h.b16 %v7171
        %v7572 = vpack.c.b16 %v7320, %v7316
        %v7573 = vpack.c.b16 %v7321, %v7317
        %v7574 = vpack.c.b16 %v7322, %v7318
        %v7575 = vpack.c.b16 %v7323, %v7319
        %v7576 = vpack.c.b16 %v7328, %v7324
        %v7577 = vpack.c.b16 %v7329, %v7325
        %v7578 = vpack.c.b16 %v7330, %v7326
        %v7579 = vpack.c.b16 %v7331, %v7327
        %v7580 = vpack.c.b16 %v7336, %v7332
        %v7581 = vpack.c.b16 %v7337, %v7333
        %v7582 = vpack.c.b16 %v7338, %v7334
        %v7583 = vpack.c.b16 %v7339, %v7335
        %v7584 = vpack.c.b16 %v7344, %v7340
        %v7585 = vpack.c.b16 %v7345, %v7341
        %v7586 = vpack.c.b16 %v7346, %v7342
        %v7587 = vpack.c.b16 %v7347, %v7343
        %v7588 = vpack.c.b16 %v7352, %v7348
        %v7589 = vpack.c.b16 %v7353, %v7349
        %v7590 = vpack.c.b16 %v7354, %v7350
        %v7591 = vpack.c.b16 %v7355, %v7351
        %v7592 = vpack.c.b16 %v7360, %v7356
        %v7593 = vpack.c.b16 %v7361, %v7357
        %v7594 = vpack.c.b16 %v7362, %v7358
        %v7595 = vpack.c.b16 %v7363, %v7359
        %v7596 = vpack.c.b16 %v7368, %v7364
        %v7597 = vpack.c.b16 %v7369, %v7365
        %v7598 = vpack.c.b16 %v7370, %v7366
        %v7599 = vpack.c.b16 %v7371, %v7367
        %v7600 = vpack.c.b16 %v7376, %v7372
        %v7601 = vpack.c.b16 %v7377, %v7373
        %v7602 = vpack.c.b16 %v7378, %v7374
        %v7603 = vpack.c.b16 %v7379, %v7375
        %v7604 = vpack.c.b16 %v7384, %v7380
        %v7605 = vpack.c.b16 %v7385, %v7381
        %v7606 = vpack.c.b16 %v7386, %v7382
        %v7607 = vpack.c.b16 %v7387, %v7383
        %v7608 = vpack.c.b16 %v7392, %v7388
        %v7609 = vpack.c.b16 %v7393, %v7389
        %v7610 = vpack.c.b16 %v7394, %v7390
        %v7611 = vpack.c.b16 %v7395, %v7391
        %v7612 = vpack.c.b16 %v7400, %v7396
        %v7613 = vpack.c.b16 %v7401, %v7397
        %v7614 = vpack.c.b16 %v7402, %v7398
        %v7615 = vpack.c.b16 %v7403, %v7399
        %v7616 = vpack.c.b16 %v7408, %v7404
        %v7617 = vpack.c.b16 %v7409, %v7405
        %v7618 = vpack.c.b16 %v7410, %v7406
        %v7619 = vpack.c.b16 %v7411, %v7407
        %v7620 = vpack.c.b16 %v7416, %v7412
        %v7621 = vpack.c.b16 %v7417, %v7413
        %v7622 = vpack.c.b16 %v7418, %v7414
        %v7623 = vpack.c.b16 %v7419, %v7415
        %v7624 = vpack.c.b16 %v7424, %v7420
        %v7625 = vpack.c.b16 %v7425, %v7421
        %v7626 = vpack.c.b16 %v7426, %v7422
        %v7627 = vpack.c.b16 %v7427, %v7423
        %v7628 = vpack.c.b16 %v7432, %v7428
        %v7629 = vpack.c.b16 %v7433, %v7429
        %v7630 = vpack.c.b16 %v7434, %v7430
        %v7631 = vpack.c.b16 %v7435, %v7431
        %v7632 = vpack.c.b16 %v7440, %v7436
        %v7633 = vpack.c.b16 %v7441, %v7437
        %v7634 = vpack.c.b16 %v7442, %v7438
        %v7635 = vpack.c.b16 %v7443, %v7439
        %v7636 = vpack.c.b16 %v7448, %v7444
        %v7637 = vpack.c.b16 %v7449, %v7445
        %v7638 = vpack.c.b16 %v7450, %v7446
        %v7639 = vpack.c.b16 %v7451, %v7447
        %v7640 = vpack.c.b16 %v7456, %v7452
        %v7641 = vpack.c.b16 %v7457, %v7453
        %v7642 = vpack.c.b16 %v7458, %v7454
        %v7643 = vpack.c.b16 %v7459, %v7455
        %v7644 = vpack.c.b16 %v7464, %v7460
        %v7645 = vpack.c.b16 %v7465, %v7461
        %v7646 = vpack.c.b16 %v7466, %v7462
        %v7647 = vpack.c.b16 %v7467, %v7463
        %v7648 = vpack.c.b16 %v7472, %v7468
        %v7649 = vpack.c.b16 %v7473, %v7469
        %v7650 = vpack.c.b16 %v7474, %v7470
        %v7651 = vpack.c.b16 %v7475, %v7471
        %v7652 = vpack.c.b16 %v7480, %v7476
        %v7653 = vpack.c.b16 %v7481, %v7477
        %v7654 = vpack.c.b16 %v7482, %v7478
        %v7655 = vpack.c.b16 %v7483, %v7479
        %v7656 = vpack.c.b16 %v7488, %v7484
        %v7657 = vpack.c.b16 %v7489, %v7485
        %v7658 = vpack.c.b16 %v7490, %v7486
        %v7659 = vpack.c.b16 %v7491, %v7487
        %v7660 = vpack.c.b16 %v7496, %v7492
        %v7661 = vpack.c.b16 %v7497, %v7493
        %v7662 = vpack.c.b16 %v7498, %v7494
        %v7663 = vpack.c.b16 %v7499, %v7495
        %v7664 = vpack.c.b16 %v7504, %v7500
        %v7665 = vpack.c.b16 %v7505, %v7501
        %v7666 = vpack.c.b16 %v7506, %v7502
        %v7667 = vpack.c.b16 %v7507, %v7503
        %v7668 = vpack.c.b16 %v7512, %v7508
        %v7669 = vpack.c.b16 %v7513, %v7509
        %v7670 = vpack.c.b16 %v7514, %v7510
        %v7671 = vpack.c.b16 %v7515, %v7511
        %v7672 = vpack.c.b16 %v7520, %v7516
        %v7673 = vpack.c.b16 %v7521, %v7517
        %v7674 = vpack.c.b16 %v7522, %v7518
        %v7675 = vpack.c.b16 %v7523, %v7519
        %v7676 = vpack.c.b16 %v7528, %v7524
        %v7677 = vpack.c.b16 %v7529, %v7525
        %v7678 = vpack.c.b16 %v7530, %v7526
        %v7679 = vpack.c.b16 %v7531, %v7527
        %v7680 = vpack.c.b16 %v7536, %v7532
        %v7681 = vpack.c.b16 %v7537, %v7533
        %v7682 = vpack.c.b16 %v7538, %v7534
        %v7683 = vpack.c.b16 %v7539, %v7535
        %v7684 = vpack.c.b16 %v7544, %v7540
        %v7685 = vpack.c.b16 %v7545, %v7541
        %v7686 = vpack.c.b16 %v7546, %v7542
        %v7687 = vpack.c.b16 %v7547, %v7543
        %v7688 = vpack.c.b16 %v7552, %v7548
        %v7689 = vpack.c.b16 %v7553, %v7549
        %v7690 = vpack.c.b16 %v7554, %v7550
        %v7691 = vpack.c.b16 %v7555, %v7551
        %v7692 = vpack.c.b16 %v7560, %v7556
        %v7693 = vpack.c.b16 %v7561, %v7557
        %v7694 = vpack.c.b16 %v7562, %v7558
        %v7695 = vpack.c.b16 %v7563, %v7559
        %v7696 = vpack.c.b16 %v7568, %v7564
        %v7697 = vpack.c.b16 %v7569, %v7565
        %v7698 = vpack.c.b16 %v7570, %v7566
        %v7699 = vpack.c.b16 %v7571, %v7567
        %7828 = vmatprep.subr.bf16.mxu0 %v7573
        %7829 = vmatpush1.bf16.msra.mxu0 %v7572
        %7830 = vmatprep.subr.bf16.mxu0 %v7577
        %7831 = vmatpush1.bf16.msra.mxu0 %v7576
        %7832 = vmatprep.subr.bf16.mxu0 %v7581
        %7833 = vmatpush1.bf16.msra.mxu0 %v7580
        %7834 = vmatprep.subr.bf16.mxu0 %v7585
        %7835 = vmatpush1.bf16.msra.mxu0 %v7584
        %7836 = vmatprep.subr.bf16.mxu0 %v7589
        %7837 = vmatpush1.bf16.msra.mxu0 %v7588
        %7838 = vmatprep.subr.bf16.mxu0 %v7593
        %7839 = vmatpush1.bf16.msra.mxu0 %v7592
        %7840 = vmatprep.subr.bf16.mxu0 %v7597
        %7841 = vmatpush1.bf16.msra.mxu0 %v7596
        %7842 = vmatprep.subr.bf16.mxu0 %v7601
        %7843 = vmatpush1.bf16.msra.mxu0 %v7600
        %7844 = vmatprep.subr.bf16.mxu0 %v7605
        %7845 = vmatpush1.bf16.msra.mxu0 %v7604
        %7846 = vmatprep.subr.bf16.mxu0 %v7609
        %7847 = vmatpush1.bf16.msra.mxu0 %v7608
        %7848 = vmatprep.subr.bf16.mxu0 %v7613
        %7849 = vmatpush1.bf16.msra.mxu0 %v7612
        %7850 = vmatprep.subr.bf16.mxu0 %v7617
        %7851 = vmatpush1.bf16.msra.mxu0 %v7616
        %7852 = vmatprep.subr.bf16.mxu0 %v7621
        %7853 = vmatpush1.bf16.msra.mxu0 %v7620
        %7854 = vmatprep.subr.bf16.mxu0 %v7625
        %7855 = vmatpush1.bf16.msra.mxu0 %v7624
        %7856 = vmatprep.subr.bf16.mxu0 %v7629
        %7857 = vmatpush1.bf16.msra.mxu0 %v7628
        %7858 = vmatprep.subr.bf16.mxu0 %v7633
        %7859 = vmatpush1.bf16.msra.mxu0 %v7632
        %7860 = vmatprep.mubr.bf16.mxu0 %v7041
        %7861 = vmatmul.mubr.bf16.gmra.mrb[0].mxu0 %v7040
        %v7862 = vpop.f32.mrb[0].mxu0
        %v7863 = vadd.f32 %v7175, %v7862
        %v7864 = vpop.f32.mrb[0].mxu0
        %v7865 = vadd.f32 %v7179, %v7864
        %v7866 = vpop.f32.mrb[0].mxu0
        %v7867 = vadd.f32 %v7175, %v7866
        %v7868 = vpop.f32.mrb[0].mxu0
        %v7869 = vadd.f32 %v7179, %v7868
        %7870 = vdwg.mxu0
        %7871 = vmatprep.subr.bf16.mxu0 %v7637
        %7872 = vmatpush1.bf16.msra.mxu0 %v7636
        %7873 = vmatprep.subr.bf16.mxu0 %v7641
        %7874 = vmatpush1.bf16.msra.mxu0 %v7640
        %7875 = vmatprep.subr.bf16.mxu0 %v7645
        %7876 = vmatpush1.bf16.msra.mxu0 %v7644
        %7877 = vmatprep.subr.bf16.mxu0 %v7649
        %7878 = vmatpush1.bf16.msra.mxu0 %v7648
        %7879 = vmatprep.subr.bf16.mxu0 %v7653
        %7880 = vmatpush1.bf16.msra.mxu0 %v7652
        %7881 = vmatprep.subr.bf16.mxu0 %v7657
        %7882 = vmatpush1.bf16.msra.mxu0 %v7656
        %7883 = vmatprep.subr.bf16.mxu0 %v7661
        %7884 = vmatpush1.bf16.msra.mxu0 %v7660
        %7885 = vmatprep.subr.bf16.mxu0 %v7665
        %7886 = vmatpush1.bf16.msra.mxu0 %v7664
        %7887 = vmatprep.subr.bf16.mxu0 %v7669
        %7888 = vmatpush1.bf16.msra.mxu0 %v7668
        %7889 = vmatprep.subr.bf16.mxu0 %v7673
        %7890 = vmatpush1.bf16.msra.mxu0 %v7672
        %7891 = vmatprep.subr.bf16.mxu0 %v7677
        %7892 = vmatpush1.bf16.msra.mxu0 %v7676
        %7893 = vmatprep.subr.bf16.mxu0 %v7681
        %7894 = vmatpush1.bf16.msra.mxu0 %v7680
        %7895 = vmatprep.subr.bf16.mxu0 %v7685
        %7896 = vmatpush1.bf16.msra.mxu0 %v7684
        %7897 = vmatprep.subr.bf16.mxu0 %v7689
        %7898 = vmatpush1.bf16.msra.mxu0 %v7688
        %7899 = vmatprep.subr.bf16.mxu0 %v7693
        %7900 = vmatpush1.bf16.msra.mxu0 %v7692
        %7901 = vmatprep.subr.bf16.mxu0 %v7697
        %7902 = vmatpush1.bf16.msra.mxu0 %v7696
        %7903 = vmatprep.mubr.bf16.mxu0 %v7043
        %7904 = vmatmul.mubr.bf16.gmra.mrb[0].mxu0 %v7042
        %v7905 = vpop.f32.mrb[0].mxu0
        %v7906 = vadd.f32 %v7863, %v7905
        %v7907 = vpop.f32.mrb[0].mxu0
        %v7908 = vadd.f32 %v7865, %v7907
        %v7909 = vpop.f32.mrb[0].mxu0
        %v7910 = vadd.f32 %v7867, %v7909
        %v7911 = vpop.f32.mrb[0].mxu0
        %v7912 = vadd.f32 %v7869, %v7911
        %7913 = vdwg.mxu0
        %7914 = vmatprep.subr.bf16.mxu0 %v7575
        %7915 = vmatpush1.bf16.msra.mxu0 %v7574
        %7916 = vmatprep.subr.bf16.mxu0 %v7579
        %7917 = vmatpush1.bf16.msra.mxu0 %v7578
        %7918 = vmatprep.subr.bf16.mxu0 %v7583
        %7919 = vmatpush1.bf16.msra.mxu0 %v7582
        %7920 = vmatprep.subr.bf16.mxu0 %v7587
        %7921 = vmatpush1.bf16.msra.mxu0 %v7586
        %7922 = vmatprep.subr.bf16.mxu0 %v7591
        %7923 = vmatpush1.bf16.msra.mxu0 %v7590
        %7924 = vmatprep.subr.bf16.mxu0 %v7595
        %7925 = vmatpush1.bf16.msra.mxu0 %v7594
        %7926 = vmatprep.subr.bf16.mxu0 %v7599
        %7927 = vmatpush1.bf16.msra.mxu0 %v7598
        %7928 = vmatprep.subr.bf16.mxu0 %v7603
        %7929 = vmatpush1.bf16.msra.mxu0 %v7602
        %7930 = vmatprep.subr.bf16.mxu0 %v7607
        %7931 = vmatpush1.bf16.msra.mxu0 %v7606
        %7932 = vmatprep.subr.bf16.mxu0 %v7611
        %7933 = vmatpush1.bf16.msra.mxu0 %v7610
        %7934 = vmatprep.subr.bf16.mxu0 %v7615
        %7935 = vmatpush1.bf16.msra.mxu0 %v7614
        %7936 = vmatprep.subr.bf16.mxu0 %v7619
        %7937 = vmatpush1.bf16.msra.mxu0 %v7618
        %7938 = vmatprep.subr.bf16.mxu0 %v7623
        %7939 = vmatpush1.bf16.msra.mxu0 %v7622
        %7940 = vmatprep.subr.bf16.mxu0 %v7627
        %7941 = vmatpush1.bf16.msra.mxu0 %v7626
        %7942 = vmatprep.subr.bf16.mxu0 %v7631
        %7943 = vmatpush1.bf16.msra.mxu0 %v7630
        %7944 = vmatprep.subr.bf16.mxu0 %v7635
        %7945 = vmatpush1.bf16.msra.mxu0 %v7634
        %7946 = vmatprep.mubr.bf16.mxu0 %v7041
        %7947 = vmatmul.mubr.bf16.gmra.mrb[0].mxu0 %v7040
        %v7948 = vpop.f32.mrb[0].mxu0
        %v7949 = vadd.f32 %v7183, %v7948
        %v7950 = vpop.f32.mrb[0].mxu0
        %v7951 = vadd.f32 %v7187, %v7950
        %v7952 = vpop.f32.mrb[0].mxu0
        %v7953 = vadd.f32 %v7183, %v7952
        %v7954 = vpop.f32.mrb[0].mxu0
        %v7955 = vadd.f32 %v7187, %v7954
        %7956 = vdwg.mxu0
        %7957 = vmatprep.subr.bf16.mxu0 %v7639
        %7958 = vmatpush1.bf16.msra.mxu0 %v7638
        %7959 = vmatprep.subr.bf16.mxu0 %v7643
        %7960 = vmatpush1.bf16.msra.mxu0 %v7642
        %7961 = vmatprep.subr.bf16.mxu0 %v7647
        %7962 = vmatpush1.bf16.msra.mxu0 %v7646
        %7963 = vmatprep.subr.bf16.mxu0 %v7651
        %7964 = vmatpush1.bf16.msra.mxu0 %v7650
        %7965 = vmatprep.subr.bf16.mxu0 %v7655
        %7966 = vmatpush1.bf16.msra.mxu0 %v7654
        %7967 = vmatprep.subr.bf16.mxu0 %v7659
        %7968 = vmatpush1.bf16.msra.mxu0 %v7658
        %7969 = vmatprep.subr.bf16.mxu0 %v7663
        %7970 = vmatpush1.bf16.msra.mxu0 %v7662
        %7971 = vmatprep.subr.bf16.mxu0 %v7667
        %7972 = vmatpush1.bf16.msra.mxu0 %v7666
        %7973 = vmatprep.subr.bf16.mxu0 %v7671
        %7974 = vmatpush1.bf16.msra.mxu0 %v7670
        %7975 = vmatprep.subr.bf16.mxu0 %v7675
        %7976 = vmatpush1.bf16.msra.mxu0 %v7674
        %7977 = vmatprep.subr.bf16.mxu0 %v7679
        %7978 = vmatpush1.bf16.msra.mxu0 %v7678
        %7979 = vmatprep.subr.bf16.mxu0 %v7683
        %7980 = vmatpush1.bf16.msra.mxu0 %v7682
        %7981 = vmatprep.subr.bf16.mxu0 %v7687
        %7982 = vmatpush1.bf16.msra.mxu0 %v7686
        %7983 = vmatprep.subr.bf16.mxu0 %v7691
        %7984 = vmatpush1.bf16.msra.mxu0 %v7690
        %7985 = vmatprep.subr.bf16.mxu0 %v7695
        %7986 = vmatpush1.bf16.msra.mxu0 %v7694
        %7987 = vmatprep.subr.bf16.mxu0 %v7699
        %7988 = vmatpush1.bf16.msra.mxu0 %v7698
        %7989 = vmatprep.mubr.bf16.mxu0 %v7043
        %7990 = vmatmul.mubr.bf16.gmra.mrb[0].mxu0 %v7042
        %v7991 = vpop.f32.mrb[0].mxu0
        %v7992 = vadd.f32 %v7949, %v7991
        %v7993 = vpop.f32.mrb[0].mxu0
        %v7994 = vadd.f32 %v7951, %v7993
        %v7995 = vpop.f32.mrb[0].mxu0
        %v7996 = vadd.f32 %v7953, %v7995
        %v7997 = vpop.f32.mrb[0].mxu0
        %v7998 = vadd.f32 %v7955, %v7997
        %7999 = vdwg.mxu0
        %v8000 = vmax.f32 %v7906, 0.0
        %v8001 = vmax.f32 %v7908, 0.0
        %v8002 = vmax.f32 %v7992, 0.0
        %v8003 = vmax.f32 %v7994, 0.0
        %v8004 = vmax.f32 %v7910, 0.0
        %v8005 = vmax.f32 %v7912, 0.0
        %v8006 = vmax.f32 %v7996, 0.0
        %v8007 = vmax.f32 %v7998, 0.0
        %v8008 = vpack.c.bf16 %v8004, %v8000
        %v8009 = vpack.c.bf16 %v8005, %v8001
        %v8010 = vpack.c.bf16 %v8006, %v8002
        %v8011 = vpack.c.bf16 %v8007, %v8003
        %v8012 = vld [vmem:[%s8] sm:$0xf]
        %v8013 = vld [vmem:[%s8 + $0x4] sm:$0xf]
        %v8014 = vld [vmem:[%s8 + $0x8] sm:$0xf]
        %v8015 = vld [vmem:[%s8 + $0xc] sm:$0xf]
        %v8016 = vld [vmem:[%s8 + $0x10] sm:$0xf]
        %v8017 = vld [vmem:[%s8 + $0x14] sm:$0xf]
        %v8018 = vld [vmem:[%s8 + $0x18] sm:$0xf]
        %v8019 = vld [vmem:[%s8 + $0x1c] sm:$0xf]
        %v8020 = vld [vmem:[%s8 + $0x20] sm:$0xf]
        %v8021 = vld [vmem:[%s8 + $0x24] sm:$0xf]
        %v8022 = vld [vmem:[%s8 + $0x28] sm:$0xf]
        %v8023 = vld [vmem:[%s8 + $0x2c] sm:$0xf]
        %v8024 = vld [vmem:[%s8 + $0x30] sm:$0xf]
        %v8025 = vld [vmem:[%s8 + $0x34] sm:$0xf]
        %v8026 = vld [vmem:[%s8 + $0x38] sm:$0xf]
        %v8027 = vld [vmem:[%s8 + $0x3c] sm:$0xf]
        %v8028 = vld [vmem:[%s8 + $0x40] sm:$0xf]
        %v8029 = vld [vmem:[%s8 + $0x44] sm:$0xf]
        %v8030 = vld [vmem:[%s8 + $0x48] sm:$0xf]
        %v8031 = vld [vmem:[%s8 + $0x4c] sm:$0xf]
        %v8032 = vld [vmem:[%s8 + $0x50] sm:$0xf]
        %v8033 = vld [vmem:[%s8 + $0x54] sm:$0xf]
        %v8034 = vld [vmem:[%s8 + $0x58] sm:$0xf]
        %v8035 = vld [vmem:[%s8 + $0x5c] sm:$0xf]
        %v8036 = vld [vmem:[%s8 + $0x60] sm:$0xf]
        %v8037 = vld [vmem:[%s8 + $0x64] sm:$0xf]
        %v8038 = vld [vmem:[%s8 + $0x68] sm:$0xf]
        %v8039 = vld [vmem:[%s8 + $0x6c] sm:$0xf]
        %v8040 = vld [vmem:[%s8 + $0x70] sm:$0xf]
        %v8041 = vld [vmem:[%s8 + $0x74] sm:$0xf]
        %v8042 = vld [vmem:[%s8 + $0x78] sm:$0xf]
        %v8043 = vld [vmem:[%s8 + $0x7c] sm:$0xf]
        %v8044 = vld [vmem:[%s8 + $0x80] sm:$0xf]
        %v8045 = vld [vmem:[%s8 + $0x84] sm:$0xf]
        %v8046 = vld [vmem:[%s8 + $0x88] sm:$0xf]
        %v8047 = vld [vmem:[%s8 + $0x8c] sm:$0xf]
        %v8048 = vld [vmem:[%s8 + $0x90] sm:$0xf]
        %v8049 = vld [vmem:[%s8 + $0x94] sm:$0xf]
        %v8050 = vld [vmem:[%s8 + $0x98] sm:$0xf]
        %v8051 = vld [vmem:[%s8 + $0x9c] sm:$0xf]
        %v8052 = vld [vmem:[%s8 + $0xa0] sm:$0xf]
        %v8053 = vld [vmem:[%s8 + $0xa4] sm:$0xf]
        %v8054 = vld [vmem:[%s8 + $0xa8] sm:$0xf]
        %v8055 = vld [vmem:[%s8 + $0xac] sm:$0xf]
        %v8056 = vld [vmem:[%s8 + $0xb0] sm:$0xf]
        %v8057 = vld [vmem:[%s8 + $0xb4] sm:$0xf]
        %v8058 = vld [vmem:[%s8 + $0xb8] sm:$0xf]
        %v8059 = vld [vmem:[%s8 + $0xbc] sm:$0xf]
        %v8060 = vld [vmem:[%s8 + $0xc0] sm:$0xf]
        %v8061 = vld [vmem:[%s8 + $0xc4] sm:$0xf]
        %v8062 = vld [vmem:[%s8 + $0xc8] sm:$0xf]
        %v8063 = vld [vmem:[%s8 + $0xcc] sm:$0xf]
        %v8064 = vld [vmem:[%s8 + $0xd0] sm:$0xf]
        %v8065 = vld [vmem:[%s8 + $0xd4] sm:$0xf]
        %v8066 = vld [vmem:[%s8 + $0xd8] sm:$0xf]
        %v8067 = vld [vmem:[%s8 + $0xdc] sm:$0xf]
        %v8068 = vld [vmem:[%s8 + $0xe0] sm:$0xf]
        %v8069 = vld [vmem:[%s8 + $0xe4] sm:$0xf]
        %v8070 = vld [vmem:[%s8 + $0xe8] sm:$0xf]
        %v8071 = vld [vmem:[%s8 + $0xec] sm:$0xf]
        %v8072 = vld [vmem:[%s8 + $0xf0] sm:$0xf]
        %v8073 = vld [vmem:[%s8 + $0xf4] sm:$0xf]
        %v8074 = vld [vmem:[%s8 + $0xf8] sm:$0xf]
        %v8075 = vld [vmem:[%s8 + $0xfc] sm:$0xf]
        %v8076 = vlaneseq
        %v8077 = vshrl.u32 %v8076, 7
        %v8078 = vsub.s32 7, %v8077
        %v8079 = vrot.slane %v440, %v8078
        %v8144 = vunpack.c.l.b16 %v8012
        %v8145 = vunpack.c.l.b16 %v8013
        %v8146 = vunpack.c.l.b16 %v8014
        %v8147 = vunpack.c.l.b16 %v8015
        %v8148 = vunpack.c.l.b16 %v8016
        %v8149 = vunpack.c.l.b16 %v8017
        %v8150 = vunpack.c.l.b16 %v8018
        %v8151 = vunpack.c.l.b16 %v8019
        %v8152 = vunpack.c.l.b16 %v8020
        %v8153 = vunpack.c.l.b16 %v8021
        %v8154 = vunpack.c.l.b16 %v8022
        %v8155 = vunpack.c.l.b16 %v8023
        %v8156 = vunpack.c.l.b16 %v8024
        %v8157 = vunpack.c.l.b16 %v8025
        %v8158 = vunpack.c.l.b16 %v8026
        %v8159 = vunpack.c.l.b16 %v8027
        %v8160 = vunpack.c.l.b16 %v8028
        %v8161 = vunpack.c.l.b16 %v8029
        %v8162 = vunpack.c.l.b16 %v8030
        %v8163 = vunpack.c.l.b16 %v8031
        %v8164 = vunpack.c.l.b16 %v8032
        %v8165 = vunpack.c.l.b16 %v8033
        %v8166 = vunpack.c.l.b16 %v8034
        %v8167 = vunpack.c.l.b16 %v8035
        %v8168 = vunpack.c.l.b16 %v8036
        %v8169 = vunpack.c.l.b16 %v8037
        %v8170 = vunpack.c.l.b16 %v8038
        %v8171 = vunpack.c.l.b16 %v8039
        %v8172 = vunpack.c.l.b16 %v8040
        %v8173 = vunpack.c.l.b16 %v8041
        %v8174 = vunpack.c.l.b16 %v8042
        %v8175 = vunpack.c.l.b16 %v8043
        %v8176 = vunpack.c.l.b16 %v8044
        %v8177 = vunpack.c.l.b16 %v8045
        %v8178 = vunpack.c.l.b16 %v8046
        %v8179 = vunpack.c.l.b16 %v8047
        %v8180 = vunpack.c.l.b16 %v8048
        %v8181 = vunpack.c.l.b16 %v8049
        %v8182 = vunpack.c.l.b16 %v8050
        %v8183 = vunpack.c.l.b16 %v8051
        %v8184 = vunpack.c.l.b16 %v8052
        %v8185 = vunpack.c.l.b16 %v8053
        %v8186 = vunpack.c.l.b16 %v8054
        %v8187 = vunpack.c.l.b16 %v8055
        %v8188 = vunpack.c.l.b16 %v8056
        %v8189 = vunpack.c.l.b16 %v8057
        %v8190 = vunpack.c.l.b16 %v8058
        %v8191 = vunpack.c.l.b16 %v8059
        %v8192 = vunpack.c.l.b16 %v8060
        %v8193 = vunpack.c.l.b16 %v8061
        %v8194 = vunpack.c.l.b16 %v8062
        %v8195 = vunpack.c.l.b16 %v8063
        %v8196 = vunpack.c.l.b16 %v8064
        %v8197 = vunpack.c.l.b16 %v8065
        %v8198 = vunpack.c.l.b16 %v8066
        %v8199 = vunpack.c.l.b16 %v8067
        %v8200 = vunpack.c.l.b16 %v8068
        %v8201 = vunpack.c.l.b16 %v8069
        %v8202 = vunpack.c.l.b16 %v8070
        %v8203 = vunpack.c.l.b16 %v8071
        %v8204 = vunpack.c.l.b16 %v8072
        %v8205 = vunpack.c.l.b16 %v8073
        %v8206 = vunpack.c.l.b16 %v8074
        %v8207 = vunpack.c.l.b16 %v8075
        %v8208 = vpack.c.b16 %v8145, %v8144
        %v8209 = vpack.c.b16 %v8147, %v8146
        %v8210 = vpack.c.b16 %v8149, %v8148
        %v8211 = vpack.c.b16 %v8151, %v8150
        %v8212 = vpack.c.b16 %v8153, %v8152
        %v8213 = vpack.c.b16 %v8155, %v8154
        %v8214 = vpack.c.b16 %v8157, %v8156
        %v8215 = vpack.c.b16 %v8159, %v8158
        %v8216 = vpack.c.b16 %v8161, %v8160
        %v8217 = vpack.c.b16 %v8163, %v8162
        %v8218 = vpack.c.b16 %v8165, %v8164
        %v8219 = vpack.c.b16 %v8167, %v8166
        %v8220 = vpack.c.b16 %v8169, %v8168
        %v8221 = vpack.c.b16 %v8171, %v8170
        %v8222 = vpack.c.b16 %v8173, %v8172
        %v8223 = vpack.c.b16 %v8175, %v8174
        %v8224 = vpack.c.b16 %v8177, %v8176
        %v8225 = vpack.c.b16 %v8179, %v8178
        %v8226 = vpack.c.b16 %v8181, %v8180
        %v8227 = vpack.c.b16 %v8183, %v8182
        %v8228 = vpack.c.b16 %v8185, %v8184
        %v8229 = vpack.c.b16 %v8187, %v8186
        %v8230 = vpack.c.b16 %v8189, %v8188
        %v8231 = vpack.c.b16 %v8191, %v8190
        %v8232 = vpack.c.b16 %v8193, %v8192
        %v8233 = vpack.c.b16 %v8195, %v8194
        %v8234 = vpack.c.b16 %v8197, %v8196
        %v8235 = vpack.c.b16 %v8199, %v8198
        %v8236 = vpack.c.b16 %v8201, %v8200
        %v8237 = vpack.c.b16 %v8203, %v8202
        %v8238 = vpack.c.b16 %v8205, %v8204
        %v8239 = vpack.c.b16 %v8207, %v8206
        %8272 = vmatprep.subr.bf16.mxu0 0
        %8273 = vmatpush1.bf16.msra.mxu0 %v8208
        %8274 = vmatprep.subr.bf16.mxu0 0
        %8275 = vmatpush1.bf16.msra.mxu0 %v8209
        %8276 = vmatprep.subr.bf16.mxu0 0
        %8277 = vmatpush1.bf16.msra.mxu0 %v8210
        %8278 = vmatprep.subr.bf16.mxu0 0
        %8279 = vmatpush1.bf16.msra.mxu0 %v8211
        %8280 = vmatprep.subr.bf16.mxu0 0
        %8281 = vmatpush1.bf16.msra.mxu0 %v8212
        %8282 = vmatprep.subr.bf16.mxu0 0
        %8283 = vmatpush1.bf16.msra.mxu0 %v8213
        %8284 = vmatprep.subr.bf16.mxu0 0
        %8285 = vmatpush1.bf16.msra.mxu0 %v8214
        %8286 = vmatprep.subr.bf16.mxu0 0
        %8287 = vmatpush1.bf16.msra.mxu0 %v8215
        %8288 = vmatprep.subr.bf16.mxu0 0
        %8289 = vmatpush1.bf16.msra.mxu0 %v8216
        %8290 = vmatprep.subr.bf16.mxu0 0
        %8291 = vmatpush1.bf16.msra.mxu0 %v8217
        %8292 = vmatprep.subr.bf16.mxu0 0
        %8293 = vmatpush1.bf16.msra.mxu0 %v8218
        %8294 = vmatprep.subr.bf16.mxu0 0
        %8295 = vmatpush1.bf16.msra.mxu0 %v8219
        %8296 = vmatprep.subr.bf16.mxu0 0
        %8297 = vmatpush1.bf16.msra.mxu0 %v8220
        %8298 = vmatprep.subr.bf16.mxu0 0
        %8299 = vmatpush1.bf16.msra.mxu0 %v8221
        %8300 = vmatprep.subr.bf16.mxu0 0
        %8301 = vmatpush1.bf16.msra.mxu0 %v8222
        %8302 = vmatprep.subr.bf16.mxu0 0
        %8303 = vmatpush1.bf16.msra.mxu0 %v8223
        %8304 = vmatprep.mubr.bf16.mxu0 %v8009
        %8305 = vmatmul.mubr.bf16.gmra.mrb[0].mxu0 %v8008
        %v8306 = vpop.f32.mrb[0].mxu0
        %v8307 = vadd.f32 %v8079, %v8306
        %v8308 = vpop.f32.mrb[0].mxu0
        %v8309 = vpop.f32.mrb[0].mxu0
        %v8310 = vadd.f32 %v8079, %v8309
        %v8311 = vpop.f32.mrb[0].mxu0
        %8312 = vdwg.mxu0
        %8313 = vmatprep.subr.bf16.mxu0 0
        %8314 = vmatpush1.bf16.msra.mxu0 %v8224
        %8315 = vmatprep.subr.bf16.mxu0 0
        %8316 = vmatpush1.bf16.msra.mxu0 %v8225
        %8317 = vmatprep.subr.bf16.mxu0 0
        %8318 = vmatpush1.bf16.msra.mxu0 %v8226
        %8319 = vmatprep.subr.bf16.mxu0 0
        %8320 = vmatpush1.bf16.msra.mxu0 %v8227
        %8321 = vmatprep.subr.bf16.mxu0 0
        %8322 = vmatpush1.bf16.msra.mxu0 %v8228
        %8323 = vmatprep.subr.bf16.mxu0 0
        %8324 = vmatpush1.bf16.msra.mxu0 %v8229
        %8325 = vmatprep.subr.bf16.mxu0 0
        %8326 = vmatpush1.bf16.msra.mxu0 %v8230
        %8327 = vmatprep.subr.bf16.mxu0 0
        %8328 = vmatpush1.bf16.msra.mxu0 %v8231
        %8329 = vmatprep.subr.bf16.mxu0 0
        %8330 = vmatpush1.bf16.msra.mxu0 %v8232
        %8331 = vmatprep.subr.bf16.mxu0 0
        %8332 = vmatpush1.bf16.msra.mxu0 %v8233
        %8333 = vmatprep.subr.bf16.mxu0 0
        %8334 = vmatpush1.bf16.msra.mxu0 %v8234
        %8335 = vmatprep.subr.bf16.mxu0 0
        %8336 = vmatpush1.bf16.msra.mxu0 %v8235
        %8337 = vmatprep.subr.bf16.mxu0 0
        %8338 = vmatpush1.bf16.msra.mxu0 %v8236
        %8339 = vmatprep.subr.bf16.mxu0 0
        %8340 = vmatpush1.bf16.msra.mxu0 %v8237
        %8341 = vmatprep.subr.bf16.mxu0 0
        %8342 = vmatpush1.bf16.msra.mxu0 %v8238
        %8343 = vmatprep.subr.bf16.mxu0 0
        %8344 = vmatpush1.bf16.msra.mxu0 %v8239
        %8345 = vmatprep.mubr.bf16.mxu0 %v8011
        %8346 = vmatmul.mubr.bf16.gmra.mrb[0].mxu0 %v8010
        %v8347 = vpop.f32.mrb[0].mxu0
        %v8348 = vadd.f32 %v8307, %v8347
        %v8349 = vpop.f32.mrb[0].mxu0
        %v8350 = vpop.f32.mrb[0].mxu0
        %v8351 = vadd.f32 %v8310, %v8350
        %v8352 = vpop.f32.mrb[0].mxu0
        %8353 = vdwg.mxu0
        %8354 = vst [vmem:[%s437] sm:$0xff] %v8348
        %8355 = vst [vmem:[%s437 + $0x8] sm:$0xff] %v8351
        %s8356 = smul.u32 2, %s24
        %p8357 = scmp.lt.s32.totalorder %s8356, 3
        %s8358 = scalar_select %p8357, %s8356, 3
        %s8359 = smul.addr %s8358, 8
        %s8360 = scalar_lea.vmem %s10, %s8359
        // Predicated region
        $region81: #{neural_network_forward.1} parent=59 // pred_check
          %p8361 = pneg %p257
        $region82: #{neural_network_forward.1} parent=59 // pred_check_branch
          %8363 = sbr.rel (%p8361) target = $region84
        $region83: #{neural_network_forward.1} parent=59 // pred_region
          %s8364 = smul.u32 2, %s24
        $region84: #{neural_network_forward.1} parent=59 // pred_fallthru
          _
      $region60: #{neural_network_forward.1} parent=5 // pred_fallthru
        _
      %p8365 = scmp.le.s32.totalorder 2, %s19
      // Predicated region
      $region85: #{neural_network_forward.1} parent=5 // pred_check
        %p8366 = pneg %p8365
      $region86: #{neural_network_forward.1} parent=5 // pred_check_branch
        %8368 = sbr.rel (%p8366) target = $region88
      $region87: #{neural_network_forward.1} parent=5 // pred_region
        %s8369 = ssub.s32 %s19, 2
        // Predicated region
        $region89: #{neural_network_forward.1} parent=87 // pred_check
          %p8370 = pneg %p263
        $region90: #{neural_network_forward.1} parent=87 // pred_check_branch
          %8372 = sbr.rel (%p8370) target = $region92
        $region91: #{neural_network_forward.1} parent=87 // pred_region
          %s8373 = smul.u32 2, %s25
          %p8374 = scmp.lt.s32.totalorder %s8373, 3
          %s8375 = scalar_select %p8374, %s8373, 3
          %s8376 = smul.addr %s8375, 8
          %s8377 = scalar_lea.vmem %s10, %s8376
        $region92: #{neural_network_forward.1} parent=87 // pred_fallthru
          _
      $region88: #{neural_network_forward.1} parent=5 // pred_fallthru
        _
    $region6: #{neural_network_forward.1} parent=1 // loop_footer
      %s23 = sadd.s32 1, %s19
    $region7: #{neural_network_forward.1} parent=1 // loop_footer_branch
      %18 = sbr.rel target = $region3
    $region8: #{neural_network_forward.1} parent=1 // loop_exit
      _
    %8378 = vsyncpa [#allocation3], 1
    %s8379 = scalar_lea.sflag [#allocation3], 1
    %8380 = vsyncpa %s8379, 1
    %8381 = vsyncpa [#allocation5], 1
    %8382 = vsyncpa [#allocation8], 1

</llo_original>
